<compile_context>
chip_gen: v7x
topology: tpu7x:2x2x1
jax: 0.10.0
libtpu: 0.0.40
codegen_flags: <defaults>
</compile_context>

<pallas_src>
import numpy as np

import jax
import jax.numpy as jnp
from jax.experimental import pallas as pl
from jax.experimental.pallas import tpu as pltpu


# Synthetic-instance configuration.
IN_CH = 4
C1 = 8
C2 = 16
IMG_H = 16
IMG_W = 16
FC1 = 128        # fc_channels[1]
FC2 = 4096       # fc_channels[2]
NUM_CLASSES = 10
PAD_OUT = 128    # last linear padded to a full lane tile


# ----------------------------------------------------------------------------
# Fused kernel: conv1 -> conv2 -> maxpool -> (avgpool+flatten+fc1) -> fc2 -> fc3
# One image per grid step.
# ----------------------------------------------------------------------------
def _vgg_kernel(x_ref, t1_ref, b1r_ref, t2_ref, b2r_ref, s0_ref, s1_ref,
                ws_ref, bl1_ref, wl2_ref, bl2_ref, wl3_ref, bl3_ref,
                o_ref, xp2_ref):
    f32 = jnp.float32
    bf16 = jnp.bfloat16
    H, W = IMG_H, IMG_W

    # ---- conv1 (3x3, pad=1) + ReLU -------------------------------------
    # Input rows are pre-padded vertically in the wrapper: x_ref is
    # (1, H+2, W*IN_CH) with lane index w*IN_CH + ci.  The horizontal zero
    # padding is folded into the banded Toeplitz weights t1/t2, so each conv is
    # just 3 row-shifted matmuls (one per vertical tap).
    acc = jnp.dot(x_ref[0, 0:H, :], t1_ref[0], preferred_element_type=f32)
    for dh in (1, 2):
        acc = acc + jnp.dot(x_ref[0, dh:dh + H, :], t1_ref[dh],
                            preferred_element_type=f32)
    a1 = jnp.maximum(acc + b1r_ref[...], 0.0)          # (H, W*C1), lane=w*C1+c

    # ---- conv2 (3x3, pad=1) + ReLU -------------------------------------
    # Only the two halo rows are re-zeroed each step (cheap + megacore-safe);
    # the interior is fully overwritten.
    xp2_ref[0:1, :] = jnp.zeros((1, W * C1), f32)
    xp2_ref[H + 1:H + 2, :] = jnp.zeros((1, W * C1), f32)
    xp2_ref[1:H + 1, :] = a1
    acc = jnp.dot(xp2_ref[0:H, :], t2_ref[0], preferred_element_type=f32)
    for dh in (1, 2):
        acc = acc + jnp.dot(xp2_ref[dh:dh + H, :], t2_ref[dh],
                            preferred_element_type=f32)
    a2 = jnp.maximum(acc + b2r_ref[...], 0.0)          # (H, W*C2), lane=w*C2+c

    # ---- 2x2 max pool ----------------------------------------------------
    # H direction: split the row (sublane) axis into pairs, max in-register.
    rows = a2.reshape(H // 2, 2, W * C2)
    m_h = jnp.maximum(rows[:, 0, :], rows[:, 1, :])    # (H/2, W*C2)
    # W direction: select even / odd columns with two 0/1 matrices on the MXU
    # (compacts lanes to j*C2 + c), then max.  No strided loads, no scratch.
    even = jnp.dot(m_h, s0_ref[...], preferred_element_type=f32)
    odd = jnp.dot(m_h, s1_ref[...], preferred_element_type=f32)
    pooled = jnp.maximum(even, odd)                    # (H/2, (W/2)*C2) = (8,128)

    # ---- adaptive avgpool(7,7) + flatten + fc1 (all folded into ws) ------
    # ws is packed so that column block i holds the fc1 weights seen by pooled
    # row i; summing the 8 aligned diagonal (1,128) blocks gives fc1 exactly.
    part = jnp.dot(pooled.astype(bf16), ws_ref[...],
                   preferred_element_type=f32)         # (8, 8*FC1)
    h = part[0:1, 0:FC1]
    for i in range(1, H // 2):
        h = h + part[i:i + 1, i * FC1:(i + 1) * FC1]
    h = jnp.maximum(h + bl1_ref[...], 0.0)             # (1, FC1)
    # TODO(synk): nn.Dropout(0.5) treated as identity (inference-mode forward).

    # ---- fc2 + ReLU -------------------------------------------------------
    h = jnp.dot(h.astype(bf16), wl2_ref[...], preferred_element_type=f32)
    h = jnp.maximum(h + bl2_ref[...], 0.0)             # (1, FC2)
    # TODO(synk): second nn.Dropout(0.5) treated as identity as well.

    # ---- fc3 (outputs padded to 128 lanes; wrapper slices :NUM_CLASSES) ---
    logits = jnp.dot(h.astype(bf16), wl3_ref[...], preferred_element_type=f32)
    o_ref[0] = logits + bl3_ref[...]                   # (1, 128)


def vgg_forward(x_nchw, p):
    n = x_nchw.shape[0]
    # Channels-last rows, lane index = w*IN_CH + ci; vertical zero halo added
    # once here so the kernel never zero-fills a conv1 scratch.
    x_rows = jnp.transpose(x_nchw, (0, 2, 3, 1)).reshape(n, IMG_H, IMG_W * IN_CH)
    x_pad = jnp.pad(x_rows, ((0, 0), (1, 1), (0, 0)))

    out = pl.pallas_call(
        _vgg_kernel,
        out_shape=jax.ShapeDtypeStruct((n, 1, PAD_OUT), jnp.float32),
        grid=(n,),
        in_specs=[
            pl.BlockSpec((1, IMG_H + 2, IMG_W * IN_CH), lambda i: (i, 0, 0)),
            pl.BlockSpec((3, IMG_W * IN_CH, IMG_W * C1), lambda i: (0, 0, 0)),
            pl.BlockSpec((1, IMG_W * C1), lambda i: (0, 0)),
            pl.BlockSpec((3, IMG_W * C1, IMG_W * C2), lambda i: (0, 0, 0)),
            pl.BlockSpec((1, IMG_W * C2), lambda i: (0, 0)),
            pl.BlockSpec((IMG_W * C2, (IMG_W // 2) * C2), lambda i: (0, 0)),
            pl.BlockSpec((IMG_W * C2, (IMG_W // 2) * C2), lambda i: (0, 0)),
            pl.BlockSpec(((IMG_W // 2) * C2, (IMG_H // 2) * FC1), lambda i: (0, 0)),
            pl.BlockSpec((1, FC1), lambda i: (0, 0)),
            pl.BlockSpec((FC1, FC2), lambda i: (0, 0)),
            pl.BlockSpec((1, FC2), lambda i: (0, 0)),
            pl.BlockSpec((FC2, PAD_OUT), lambda i: (0, 0)),
            pl.BlockSpec((1, PAD_OUT), lambda i: (0, 0)),
        ],
        out_specs=pl.BlockSpec((1, 1, PAD_OUT), lambda i: (i, 0, 0)),
        scratch_shapes=[pltpu.VMEM((IMG_H + 2, IMG_W * C1), jnp.float32)],
        compiler_params=pltpu.CompilerParams(dimension_semantics=("parallel",)),
    )(x_pad, p["t1"], p["b1r"], p["t2"], p["b2r"], p["s0"], p["s1"],
      p["wstack"], p["bl1"], p["wl2"], p["bl2"], p["wl3"], p["bl3"])

    return out[:, 0, :NUM_CLASSES]


# ----------------------------------------------------------------------------
# Parameters: PyTorch-layout init + packing into kernel layouts
# ----------------------------------------------------------------------------
def init_torch_params(key):
    """Random params in PyTorch layouts, matching VGG._initialize_weights."""
    ks = jax.random.split(key, 5)
    conv1 = jax.random.normal(ks[0], (C1, IN_CH, 3, 3), jnp.float32) * np.sqrt(2.0 / (C1 * 9))
    conv2 = jax.random.normal(ks[1], (C2, C1, 3, 3), jnp.float32) * np.sqrt(2.0 / (C2 * 9))
    lin1 = 0.01 * jax.random.normal(ks[2], (FC1, 7 * 7 * C2), jnp.float32)
    lin2 = 0.01 * jax.random.normal(ks[3], (FC2, FC1), jnp.float32)
    lin3 = 0.01 * jax.random.normal(ks[4], (NUM_CLASSES, FC2), jnp.float32)
    return {
        "conv1.weight": conv1, "conv1.bias": jnp.zeros((C1,), jnp.float32),
        "conv2.weight": conv2, "conv2.bias": jnp.zeros((C2,), jnp.float32),
        "fc1.weight": lin1, "fc1.bias": jnp.zeros((FC1,), jnp.float32),
        "fc2.weight": lin2, "fc2.bias": jnp.zeros((FC2,), jnp.float32),
        "fc3.weight": lin3, "fc3.bias": jnp.zeros((NUM_CLASSES,), jnp.float32),
    }


def _adaptive_avg_matrix(in_size, out_size):
    """A[p, i] = weight of input row i in adaptive-avg-pool output bin p."""
    a = np.zeros((out_size, in_size), np.float32)
    for p_ in range(out_size):
        s = (p_ * in_size) // out_size
        e = -(-((p_ + 1) * in_size) // out_size)
        a[p_, s:e] = 1.0 / (e - s)
    return a


def _toeplitz_conv_weights(w, width):
    """(Cout, Cin, 3, 3) torch conv weight -> (3, width*Cin, width*Cout).

    T[dh, w_in*Cin + ci, w*Cout + co] = w[co, ci, dh, w_in - w + 1]; the banded
    structure implements the horizontal zero padding exactly (missing taps at
    the edges contribute zero)."""
    w = np.asarray(w)
    cout, cin = w.shape[0], w.shape[1]
    t = np.zeros((3, width * cin, width * cout), np.float32)
    for dh in range(3):
        for wo in range(width):
            for kw in range(3):
                wi = wo + kw - 1
                if 0 <= wi < width:
                    t[dh, wi * cin:(wi + 1) * cin,
                      wo * cout:(wo + 1) * cout] = w[:, :, dh, kw].T
    return jnp.asarray(t)


def _pool_select_matrices(width, c):
    """0/1 matrices picking even / odd columns of a (rows, width*c) tensor and
    compacting the lane index from w*c + ch to (w//2)*c + ch."""
    s0 = np.zeros((width * c, (width // 2) * c), np.float32)
    s1 = np.zeros_like(s0)
    for j in range(width // 2):
        for ch in range(c):
            s0[(2 * j) * c + ch, j * c + ch] = 1.0
            s1[(2 * j + 1) * c + ch, j * c + ch] = 1.0
    return jnp.asarray(s0), jnp.asarray(s1)


def pack_params(tp):
    """PyTorch-layout weights -> fused-kernel layouts.

    * conv weights -> banded Toeplitz matrices (3 vertical taps).
    * conv biases tiled along W so they broadcast over lane index w*C + c.
    * AdaptiveAvgPool2d((7,7)), the NCHW flatten and fc1 are folded into one
      (128, 1024) matrix `wstack` whose column block i is the fc1 weight seen by
      pooled row i (exact algebraic refactoring).
    * classifier weights stored bf16 (f32 accumulate in-kernel), fc3 padded to
      128 output lanes."""
    hp, wp = IMG_H // 2, IMG_W // 2

    ah = _adaptive_avg_matrix(hp, 7)                        # (7, hp)
    aw = _adaptive_avg_matrix(wp, 7)                        # (7, wp)
    w1 = np.asarray(tp["fc1.weight"]).reshape(FC1, C2, 7, 7)        # [o,c,p,q]
    wfold = np.einsum("ocpq,pi,qj->ijco", w1, ah, aw)                # [i,j,c,o]
    wstack = np.transpose(wfold, (1, 2, 0, 3)).reshape(wp * C2, hp * FC1)
    # rows: j*C2 + c (kernel's pooled lane order); cols: i*FC1 + o.

    s0, s1 = _pool_select_matrices(IMG_W, C2)

    w3 = np.asarray(tp["fc3.weight"]).T                     # (FC2, NUM_CLASSES)
    w3p = np.zeros((FC2, PAD_OUT), np.float32)
    w3p[:, :NUM_CLASSES] = w3
    b3p = np.zeros((1, PAD_OUT), np.float32)
    b3p[0, :NUM_CLASSES] = np.asarray(tp["fc3.bias"])

    return {
        "t1": _toeplitz_conv_weights(tp["conv1.weight"], IMG_W),
        "b1r": jnp.tile(tp["conv1.bias"], IMG_W).reshape(1, -1),
        "t2": _toeplitz_conv_weights(tp["conv2.weight"], IMG_W),
        "b2r": jnp.tile(tp["conv2.bias"], IMG_W).reshape(1, -1),
        "s0": s0, "s1": s1,
        "wstack": jnp.asarray(wstack, dtype=jnp.bfloat16),
        "bl1": jnp.asarray(tp["fc1.bias"]).reshape(1, -1),
        "wl2": jnp.asarray(np.asarray(tp["fc2.weight"]).T, dtype=jnp.bfloat16),
        "bl2": jnp.asarray(tp["fc2.bias"]).reshape(1, -1),
        "wl3": jnp.asarray(w3p, dtype=jnp.bfloat16),
        "bl3": jnp.asarray(b3p),
    }


# ----------------------------------------------------------------------------
# Pure-JAX reference (PyTorch semantics) for an in-script correctness check.
# ----------------------------------------------------------------------------
def reference_forward(x, tp):
    hi = jax.lax.Precision.HIGHEST

    def conv_relu(h, w, b):
        y = jax.lax.conv_general_dilated(
            h, w, window_strides=(1, 1), padding=((1, 1), (1, 1)),
            dimension_numbers=("NCHW", "OIHW", "NCHW"), precision=hi)
        return jax.nn.relu(y + b[None, :, None, None])

    h = conv_relu(x, tp["conv1.weight"], tp["conv1.bias"])
    h = conv_relu(h, tp["conv2.weight"], tp["conv2.bias"])
    n, c, hh, ww = h.shape
    h = h.reshape(n, c, hh // 2, 2, ww // 2, 2).max(axis=(3, 5))     # MaxPool2d(2)
    ah = jnp.asarray(_adaptive_avg_matrix(hh // 2, 7))
    aw = jnp.asarray(_adaptive_avg_matrix(ww // 2, 7))
    h = jnp.einsum("ncij,pi,qj->ncpq", h, ah, aw, precision=hi)      # avgpool 7x7
    h = h.reshape(n, -1)                                             # flatten
    h = jax.nn.relu(jnp.dot(h, tp["fc1.weight"].T, precision=hi) + tp["fc1.bias"])
    h = jax.nn.relu(jnp.dot(h, tp["fc2.weight"].T, precision=hi) + tp["fc2.bias"])
    return jnp.dot(h, tp["fc3.weight"].T, precision=hi) + tp["fc3.bias"]


if __name__ == "__main__":
    key = jax.random.PRNGKey(0)
    k_x, k_p = jax.random.split(key)

    # NCHW input, matching the PyTorch module's convention.
    x = jax.random.normal(k_x, (2, IN_CH, IMG_H, IMG_W), jnp.float32)
    torch_params = init_torch_params(k_p)
    params = pack_params(torch_params)

    out = jax.block_until_ready(jax.jit(vgg_forward)(x, params))

    assert out.shape == (2, NUM_CLASSES), out.shape
    assert bool(jnp.all(jnp.isfinite(out)))

    # Correctness vs. f32 reference (tolerance covers bf16 classifier weights
    # and MXU default-precision matmuls; a structural bug would blow way past it).
    ref = reference_forward(x, torch_params)
    max_err = float(jnp.max(jnp.abs(out - ref)))
    assert bool(jnp.allclose(out, ref, rtol=3e-2, atol=2e-3)), max_err

    print("KERNEL_OK")
</pallas_src>

<mosaic_0001>
module attributes {stable_mosaic.version = 11 : i64} {
  func.func @_vgg_kernel(%arg0: i32, %arg1: memref<1x18x64xf32, #tpu.memory_space<vmem>>, %arg2: memref<3x64x128xf32, #tpu.memory_space<vmem>>, %arg3: memref<1x128xf32, #tpu.memory_space<vmem>>, %arg4: memref<3x128x256xf32, #tpu.memory_space<vmem>>, %arg5: memref<1x256xf32, #tpu.memory_space<vmem>>, %arg6: memref<256x128xf32, #tpu.memory_space<vmem>>, %arg7: memref<256x128xf32, #tpu.memory_space<vmem>>, %arg8: memref<128x1024xbf16, #tpu.memory_space<vmem>>, %arg9: memref<1x128xf32, #tpu.memory_space<vmem>>, %arg10: memref<128x4096xbf16, #tpu.memory_space<vmem>>, %arg11: memref<1x4096xf32, #tpu.memory_space<vmem>>, %arg12: memref<4096x128xbf16, #tpu.memory_space<vmem>>, %arg13: memref<1x128xf32, #tpu.memory_space<vmem>>, %arg14: memref<1x1x128xf32, #tpu.memory_space<vmem>>, %arg15: memref<18x128xf32, #tpu.memory_space<vmem>>) attributes {dimension_semantics = [#tpu.dimension_semantics<parallel>], iteration_bounds = array<i64: 2>, scalar_prefetch = 0 : i64, scratch_operands = 1 : i64, tpu.core_type = #tpu.core_type<tc>, window_params = [{transform_indices = @transform_0, window_bounds = array<i64: 1, 18, 64>}, {pipeline_mode = #tpu.pipeline_mode<synchronous>, transform_indices = @transform_1, window_bounds = array<i64: 3, 64, 128>}, {pipeline_mode = #tpu.pipeline_mode<synchronous>, transform_indices = @transform_2, window_bounds = array<i64: 1, 128>}, {pipeline_mode = #tpu.pipeline_mode<synchronous>, transform_indices = @transform_3, window_bounds = array<i64: 3, 128, 256>}, {pipeline_mode = #tpu.pipeline_mode<synchronous>, transform_indices = @transform_4, window_bounds = array<i64: 1, 256>}, {pipeline_mode = #tpu.pipeline_mode<synchronous>, transform_indices = @transform_5, window_bounds = array<i64: 256, 128>}, {pipeline_mode = #tpu.pipeline_mode<synchronous>, transform_indices = @transform_6, window_bounds = array<i64: 256, 128>}, {pipeline_mode = #tpu.pipeline_mode<synchronous>, transform_indices = @transform_7, window_bounds = array<i64: 128, 1024>}, {pipeline_mode = #tpu.pipeline_mode<synchronous>, transform_indices = @transform_8, window_bounds = array<i64: 1, 128>}, {pipeline_mode = #tpu.pipeline_mode<synchronous>, transform_indices = @transform_9, window_bounds = array<i64: 128, 4096>}, {pipeline_mode = #tpu.pipeline_mode<synchronous>, transform_indices = @transform_10, window_bounds = array<i64: 1, 4096>}, {pipeline_mode = #tpu.pipeline_mode<synchronous>, transform_indices = @transform_11, window_bounds = array<i64: 4096, 128>}, {pipeline_mode = #tpu.pipeline_mode<synchronous>, transform_indices = @transform_12, window_bounds = array<i64: 1, 128>}, {transform_indices = @transform_13, window_bounds = array<i64: 1, 1, 128>}]} {
    %c0 = arith.constant 0 : index
    %c0_0 = arith.constant 0 : index
    %c0_1 = arith.constant 0 : index
    %0 = vector.load %arg1[%c0, %c0_0, %c0_1] : memref<1x18x64xf32, #tpu.memory_space<vmem>>, vector<1x16x64xf32>
    %1 = vector.shape_cast %0 : vector<1x16x64xf32> to vector<16x64xf32>
    %c0_2 = arith.constant 0 : index
    %c0_3 = arith.constant 0 : index
    %c0_4 = arith.constant 0 : index
    %2 = vector.load %arg2[%c0_2, %c0_3, %c0_4] : memref<3x64x128xf32, #tpu.memory_space<vmem>>, vector<1x64x128xf32>
    %3 = vector.shape_cast %2 : vector<1x64x128xf32> to vector<64x128xf32>
    %cst = arith.constant dense<0.000000e+00> : vector<16x128xf32>
    %4 = tpu.matmul %1, %3, %cst {dimension_numbers = #tpu.dot_dimension_numbers<[1], [0], [0], [1], [0, 0, 1, 1], [], []>} : vector<16x64xf32>, vector<64x128xf32>, vector<16x128xf32> -> vector<16x128xf32>
    %c0_5 = arith.constant 0 : index
    %c1 = arith.constant 1 : index
    %c0_6 = arith.constant 0 : index
    %5 = vector.load %arg1[%c0_5, %c1, %c0_6] : memref<1x18x64xf32, #tpu.memory_space<vmem>>, vector<1x16x64xf32>
    %6 = vector.shape_cast %5 : vector<1x16x64xf32> to vector<16x64xf32>
    %c1_7 = arith.constant 1 : index
    %c0_8 = arith.constant 0 : index
    %c0_9 = arith.constant 0 : index
    %7 = vector.load %arg2[%c1_7, %c0_8, %c0_9] : memref<3x64x128xf32, #tpu.memory_space<vmem>>, vector<1x64x128xf32>
    %8 = vector.shape_cast %7 : vector<1x64x128xf32> to vector<64x128xf32>
    %cst_10 = arith.constant dense<0.000000e+00> : vector<16x128xf32>
    %9 = tpu.matmul %6, %8, %cst_10 {dimension_numbers = #tpu.dot_dimension_numbers<[1], [0], [0], [1], [0, 0, 1, 1], [], []>} : vector<16x64xf32>, vector<64x128xf32>, vector<16x128xf32> -> vector<16x128xf32>
    %10 = arith.addf %4, %9 : vector<16x128xf32>
    %c0_11 = arith.constant 0 : index
    %c2 = arith.constant 2 : index
    %c0_12 = arith.constant 0 : index
    %11 = vector.load %arg1[%c0_11, %c2, %c0_12] : memref<1x18x64xf32, #tpu.memory_space<vmem>>, vector<1x16x64xf32>
    %12 = vector.shape_cast %11 : vector<1x16x64xf32> to vector<16x64xf32>
    %c2_13 = arith.constant 2 : index
    %c0_14 = arith.constant 0 : index
    %c0_15 = arith.constant 0 : index
    %13 = vector.load %arg2[%c2_13, %c0_14, %c0_15] : memref<3x64x128xf32, #tpu.memory_space<vmem>>, vector<1x64x128xf32>
    %14 = vector.shape_cast %13 : vector<1x64x128xf32> to vector<64x128xf32>
    %cst_16 = arith.constant dense<0.000000e+00> : vector<16x128xf32>
    %15 = tpu.matmul %12, %14, %cst_16 {dimension_numbers = #tpu.dot_dimension_numbers<[1], [0], [0], [1], [0, 0, 1, 1], [], []>} : vector<16x64xf32>, vector<64x128xf32>, vector<16x128xf32> -> vector<16x128xf32>
    %16 = arith.addf %10, %15 : vector<16x128xf32>
    %c0_17 = arith.constant 0 : index
    %c0_18 = arith.constant 0 : index
    %17 = vector.load %arg3[%c0_17, %c0_18] : memref<1x128xf32, #tpu.memory_space<vmem>>, vector<1x128xf32>
    %18 = vector.broadcast %17 : vector<1x128xf32> to vector<16x128xf32>
    %19 = arith.addf %16, %18 : vector<16x128xf32>
    %cst_19 = arith.constant 0.000000e+00 : f32
    %20 = vector.broadcast %cst_19 : f32 to vector<16x128xf32>
    %21 = arith.maximumf %19, %20 : vector<16x128xf32>
    %cst_20 = arith.constant 0.000000e+00 : f32
    %22 = vector.broadcast %cst_20 : f32 to vector<1x128xf32>
    %c0_21 = arith.constant 0 : index
    %c0_22 = arith.constant 0 : index
    %23 = vector.load %arg15[%c0_21, %c0_22] : memref<18x128xf32, #tpu.memory_space<vmem>>, vector<1x128xf32>
    tpu.vector_store %arg15[%c0_21, %c0_22], %22 {strides = array<i32>} : memref<18x128xf32, #tpu.memory_space<vmem>>, vector<1x128xf32>,
    %cst_23 = arith.constant 0.000000e+00 : f32
    %24 = vector.broadcast %cst_23 : f32 to vector<1x128xf32>
    %c17 = arith.constant 17 : index
    %c0_24 = arith.constant 0 : index
    %25 = vector.load %arg15[%c17, %c0_24] : memref<18x128xf32, #tpu.memory_space<vmem>>, vector<1x128xf32>
    tpu.vector_store %arg15[%c17, %c0_24], %24 {strides = array<i32>} : memref<18x128xf32, #tpu.memory_space<vmem>>, vector<1x128xf32>,
    %c1_25 = arith.constant 1 : index
    %c0_26 = arith.constant 0 : index
    %26 = vector.load %arg15[%c1_25, %c0_26] : memref<18x128xf32, #tpu.memory_space<vmem>>, vector<16x128xf32>
    tpu.vector_store %arg15[%c1_25, %c0_26], %21 {strides = array<i32>} : memref<18x128xf32, #tpu.memory_space<vmem>>, vector<16x128xf32>,
    %c0_27 = arith.constant 0 : index
    %c0_28 = arith.constant 0 : index
    %27 = vector.load %arg15[%c0_27, %c0_28] : memref<18x128xf32, #tpu.memory_space<vmem>>, vector<16x128xf32>
    %c0_29 = arith.constant 0 : index
    %c0_30 = arith.constant 0 : index
    %c0_31 = arith.constant 0 : index
    %28 = vector.load %arg4[%c0_29, %c0_30, %c0_31] : memref<3x128x256xf32, #tpu.memory_space<vmem>>, vector<1x128x256xf32>
    %29 = vector.shape_cast %28 : vector<1x128x256xf32> to vector<128x256xf32>
    %cst_32 = arith.constant dense<0.000000e+00> : vector<16x256xf32>
    %30 = tpu.matmul %27, %29, %cst_32 {dimension_numbers = #tpu.dot_dimension_numbers<[1], [0], [0], [1], [0, 0, 1, 1], [], []>} : vector<16x128xf32>, vector<128x256xf32>, vector<16x256xf32> -> vector<16x256xf32>
    %c1_33 = arith.constant 1 : index
    %c0_34 = arith.constant 0 : index
    %31 = vector.load %arg15[%c1_33, %c0_34] : memref<18x128xf32, #tpu.memory_space<vmem>>, vector<16x128xf32>
    %c1_35 = arith.constant 1 : index
    %c0_36 = arith.constant 0 : index
    %c0_37 = arith.constant 0 : index
    %32 = vector.load %arg4[%c1_35, %c0_36, %c0_37] : memref<3x128x256xf32, #tpu.memory_space<vmem>>, vector<1x128x256xf32>
    %33 = vector.shape_cast %32 : vector<1x128x256xf32> to vector<128x256xf32>
    %cst_38 = arith.constant dense<0.000000e+00> : vector<16x256xf32>
    %34 = tpu.matmul %31, %33, %cst_38 {dimension_numbers = #tpu.dot_dimension_numbers<[1], [0], [0], [1], [0, 0, 1, 1], [], []>} : vector<16x128xf32>, vector<128x256xf32>, vector<16x256xf32> -> vector<16x256xf32>
    %35 = arith.addf %30, %34 : vector<16x256xf32>
    %c2_39 = arith.constant 2 : index
    %c0_40 = arith.constant 0 : index
    %36 = vector.load %arg15[%c2_39, %c0_40] : memref<18x128xf32, #tpu.memory_space<vmem>>, vector<16x128xf32>
    %c2_41 = arith.constant 2 : index
    %c0_42 = arith.constant 0 : index
    %c0_43 = arith.constant 0 : index
    %37 = vector.load %arg4[%c2_41, %c0_42, %c0_43] : memref<3x128x256xf32, #tpu.memory_space<vmem>>, vector<1x128x256xf32>
    %38 = vector.shape_cast %37 : vector<1x128x256xf32> to vector<128x256xf32>
    %cst_44 = arith.constant dense<0.000000e+00> : vector<16x256xf32>
    %39 = tpu.matmul %36, %38, %cst_44 {dimension_numbers = #tpu.dot_dimension_numbers<[1], [0], [0], [1], [0, 0, 1, 1], [], []>} : vector<16x128xf32>, vector<128x256xf32>, vector<16x256xf32> -> vector<16x256xf32>
    %40 = arith.addf %35, %39 : vector<16x256xf32>
    %c0_45 = arith.constant 0 : index
    %c0_46 = arith.constant 0 : index
    %41 = vector.load %arg5[%c0_45, %c0_46] : memref<1x256xf32, #tpu.memory_space<vmem>>, vector<1x256xf32>
    %42 = vector.broadcast %41 : vector<1x256xf32> to vector<16x256xf32>
    %43 = arith.addf %40, %42 : vector<16x256xf32>
    %cst_47 = arith.constant 0.000000e+00 : f32
    %44 = vector.broadcast %cst_47 : f32 to vector<16x256xf32>
    %45 = arith.maximumf %43, %44 : vector<16x256xf32>
    %46 = vector.shape_cast %45 : vector<16x256xf32> to vector<8x2x256xf32>
    %47 = vector.extract_strided_slice %46 {offsets = [0, 0, 0], sizes = [8, 1, 256], strides = [1, 1, 1]} : vector<8x2x256xf32> to vector<8x1x256xf32>
    %48 = vector.shape_cast %47 : vector<8x1x256xf32> to vector<8x256xf32>
    %49 = vector.extract_strided_slice %46 {offsets = [0, 1, 0], sizes = [8, 1, 256], strides = [1, 1, 1]} : vector<8x2x256xf32> to vector<8x1x256xf32>
    %50 = vector.shape_cast %49 : vector<8x1x256xf32> to vector<8x256xf32>
    %51 = arith.maximumf %48, %50 : vector<8x256xf32>
    %c0_48 = arith.constant 0 : index
    %c0_49 = arith.constant 0 : index
    %52 = vector.load %arg6[%c0_48, %c0_49] : memref<256x128xf32, #tpu.memory_space<vmem>>, vector<256x128xf32>
    %cst_50 = arith.constant dense<0.000000e+00> : vector<8x128xf32>
    %53 = tpu.matmul %51, %52, %cst_50 {dimension_numbers = #tpu.dot_dimension_numbers<[1], [0], [0], [1], [0, 0, 1, 1], [], []>} : vector<8x256xf32>, vector<256x128xf32>, vector<8x128xf32> -> vector<8x128xf32>
    %c0_51 = arith.constant 0 : index
    %c0_52 = arith.constant 0 : index
    %54 = vector.load %arg7[%c0_51, %c0_52] : memref<256x128xf32, #tpu.memory_space<vmem>>, vector<256x128xf32>
    %cst_53 = arith.constant dense<0.000000e+00> : vector<8x128xf32>
    %55 = tpu.matmul %51, %54, %cst_53 {dimension_numbers = #tpu.dot_dimension_numbers<[1], [0], [0], [1], [0, 0, 1, 1], [], []>} : vector<8x256xf32>, vector<256x128xf32>, vector<8x128xf32> -> vector<8x128xf32>
    %56 = arith.maximumf %53, %55 : vector<8x128xf32>
    %57 = arith.truncf %56 : vector<8x128xf32> to vector<8x128xbf16>
    %c0_54 = arith.constant 0 : index
    %c0_55 = arith.constant 0 : index
    %58 = vector.load %arg8[%c0_54, %c0_55] : memref<128x1024xbf16, #tpu.memory_space<vmem>>, vector<128x1024xbf16>
    %cst_56 = arith.constant dense<0.000000e+00> : vector<8x1024xf32>
    %59 = tpu.matmul %57, %58, %cst_56 {dimension_numbers = #tpu.dot_dimension_numbers<[1], [0], [0], [1], [0, 0, 1, 1], [], []>} : vector<8x128xbf16>, vector<128x1024xbf16>, vector<8x1024xf32> -> vector<8x1024xf32>
    %60 = vector.extract_strided_slice %59 {offsets = [0, 0], sizes = [1, 128], strides = [1, 1]} : vector<8x1024xf32> to vector<1x128xf32>
    %61 = vector.extract_strided_slice %59 {offsets = [1, 128], sizes = [1, 128], strides = [1, 1]} : vector<8x1024xf32> to vector<1x128xf32>
    %62 = arith.addf %60, %61 : vector<1x128xf32>
    %63 = vector.extract_strided_slice %59 {offsets = [2, 256], sizes = [1, 128], strides = [1, 1]} : vector<8x1024xf32> to vector<1x128xf32>
    %64 = arith.addf %62, %63 : vector<1x128xf32>
    %65 = vector.extract_strided_slice %59 {offsets = [3, 384], sizes = [1, 128], strides = [1, 1]} : vector<8x1024xf32> to vector<1x128xf32>
    %66 = arith.addf %64, %65 : vector<1x128xf32>
    %67 = vector.extract_strided_slice %59 {offsets = [4, 512], sizes = [1, 128], strides = [1, 1]} : vector<8x1024xf32> to vector<1x128xf32>
    %68 = arith.addf %66, %67 : vector<1x128xf32>
    %69 = vector.extract_strided_slice %59 {offsets = [5, 640], sizes = [1, 128], strides = [1, 1]} : vector<8x1024xf32> to vector<1x128xf32>
    %70 = arith.addf %68, %69 : vector<1x128xf32>
    %71 = vector.extract_strided_slice %59 {offsets = [6, 768], sizes = [1, 128], strides = [1, 1]} : vector<8x1024xf32> to vector<1x128xf32>
    %72 = arith.addf %70, %71 : vector<1x128xf32>
    %73 = vector.extract_strided_slice %59 {offsets = [7, 896], sizes = [1, 128], strides = [1, 1]} : vector<8x1024xf32> to vector<1x128xf32>
    %74 = arith.addf %72, %73 : vector<1x128xf32>
    %c0_57 = arith.constant 0 : index
    %c0_58 = arith.constant 0 : index
    %75 = vector.load %arg9[%c0_57, %c0_58] : memref<1x128xf32, #tpu.memory_space<vmem>>, vector<1x128xf32>
    %76 = arith.addf %74, %75 : vector<1x128xf32>
    %cst_59 = arith.constant 0.000000e+00 : f32
    %77 = vector.broadcast %cst_59 : f32 to vector<1x128xf32>
    %78 = arith.maximumf %76, %77 : vector<1x128xf32>
    %79 = arith.truncf %78 : vector<1x128xf32> to vector<1x128xbf16>
    %c0_60 = arith.constant 0 : index
    %c0_61 = arith.constant 0 : index
    %80 = vector.load %arg10[%c0_60, %c0_61] : memref<128x4096xbf16, #tpu.memory_space<vmem>>, vector<128x4096xbf16>
    %cst_62 = arith.constant dense<0.000000e+00> : vector<1x4096xf32>
    %81 = tpu.matmul %79, %80, %cst_62 {dimension_numbers = #tpu.dot_dimension_numbers<[1], [0], [0], [1], [0, 0, 1, 1], [], []>} : vector<1x128xbf16>, vector<128x4096xbf16>, vector<1x4096xf32> -> vector<1x4096xf32>
    %c0_63 = arith.constant 0 : index
    %c0_64 = arith.constant 0 : index
    %82 = vector.load %arg11[%c0_63, %c0_64] : memref<1x4096xf32, #tpu.memory_space<vmem>>, vector<1x4096xf32>
    %83 = arith.addf %81, %82 : vector<1x4096xf32>
    %cst_65 = arith.constant 0.000000e+00 : f32
    %84 = vector.broadcast %cst_65 : f32 to vector<1x4096xf32>
    %85 = arith.maximumf %83, %84 : vector<1x4096xf32>
    %86 = arith.truncf %85 : vector<1x4096xf32> to vector<1x4096xbf16>
    %c0_66 = arith.constant 0 : index
    %c0_67 = arith.constant 0 : index
    %87 = vector.load %arg12[%c0_66, %c0_67] : memref<4096x128xbf16, #tpu.memory_space<vmem>>, vector<4096x128xbf16>
    %cst_68 = arith.constant dense<0.000000e+00> : vector<1x128xf32>
    %88 = tpu.matmul %86, %87, %cst_68 {dimension_numbers = #tpu.dot_dimension_numbers<[1], [0], [0], [1], [0, 0, 1, 1], [], []>} : vector<1x4096xbf16>, vector<4096x128xbf16>, vector<1x128xf32> -> vector<1x128xf32>
    %c0_69 = arith.constant 0 : index
    %c0_70 = arith.constant 0 : index
    %89 = vector.load %arg13[%c0_69, %c0_70] : memref<1x128xf32, #tpu.memory_space<vmem>>, vector<1x128xf32>
    %90 = arith.addf %88, %89 : vector<1x128xf32>
    %c0_71 = arith.constant 0 : index
    %c0_72 = arith.constant 0 : index
    %c0_73 = arith.constant 0 : index
    %91 = vector.load %arg14[%c0_71, %c0_72, %c0_73] : memref<1x1x128xf32, #tpu.memory_space<vmem>>, vector<1x1x128xf32>
    %92 = vector.shape_cast %91 : vector<1x1x128xf32> to vector<1x128xf32>
    %93 = vector.shape_cast %90 : vector<1x128xf32> to vector<1x1x128xf32>
    tpu.vector_store %arg14[%c0_71, %c0_72, %c0_73], %93 {strides = array<i32>} : memref<1x1x128xf32, #tpu.memory_space<vmem>>, vector<1x1x128xf32>,
    return
  }
  func.func @transform_0(%arg0: i32) -> (i32, i32, i32) {
    %c0_i32 = arith.constant 0 : i32
    %c0_i32_0 = arith.constant 0 : i32
    %c0_i32_1 = arith.constant 0 : i32
    return %arg0, %c0_i32, %c0_i32_0 : i32, i32, i32
  }
  func.func @transform_1(%arg0: i32) -> (i32, i32, i32) {
    %c0_i32 = arith.constant 0 : i32
    %c0_i32_0 = arith.constant 0 : i32
    %c0_i32_1 = arith.constant 0 : i32
    %c0_i32_2 = arith.constant 0 : i32
    return %c0_i32, %c0_i32_0, %c0_i32_1 : i32, i32, i32
  }
  func.func @transform_2(%arg0: i32) -> (i32, i32) {
    %c0_i32 = arith.constant 0 : i32
    %c0_i32_0 = arith.constant 0 : i32
    %c0_i32_1 = arith.constant 0 : i32
    return %c0_i32, %c0_i32_0 : i32, i32
  }
  func.func @transform_3(%arg0: i32) -> (i32, i32, i32) {
    %c0_i32 = arith.constant 0 : i32
    %c0_i32_0 = arith.constant 0 : i32
    %c0_i32_1 = arith.constant 0 : i32
    %c0_i32_2 = arith.constant 0 : i32
    return %c0_i32, %c0_i32_0, %c0_i32_1 : i32, i32, i32
  }
  func.func @transform_4(%arg0: i32) -> (i32, i32) {
    %c0_i32 = arith.constant 0 : i32
    %c0_i32_0 = arith.constant 0 : i32
    %c0_i32_1 = arith.constant 0 : i32
    return %c0_i32, %c0_i32_0 : i32, i32
  }
  func.func @transform_5(%arg0: i32) -> (i32, i32) {
    %c0_i32 = arith.constant 0 : i32
    %c0_i32_0 = arith.constant 0 : i32
    %c0_i32_1 = arith.constant 0 : i32
    return %c0_i32, %c0_i32_0 : i32, i32
  }
  func.func @transform_6(%arg0: i32) -> (i32, i32) {
    %c0_i32 = arith.constant 0 : i32
    %c0_i32_0 = arith.constant 0 : i32
    %c0_i32_1 = arith.constant 0 : i32
    return %c0_i32, %c0_i32_0 : i32, i32
  }
  func.func @transform_7(%arg0: i32) -> (i32, i32) {
    %c0_i32 = arith.constant 0 : i32
    %c0_i32_0 = arith.constant 0 : i32
    %c0_i32_1 = arith.constant 0 : i32
    return %c0_i32, %c0_i32_0 : i32, i32
  }
  func.func @transform_8(%arg0: i32) -> (i32, i32) {
    %c0_i32 = arith.constant 0 : i32
    %c0_i32_0 = arith.constant 0 : i32
    %c0_i32_1 = arith.constant 0 : i32
    return %c0_i32, %c0_i32_0 : i32, i32
  }
  func.func @transform_9(%arg0: i32) -> (i32, i32) {
    %c0_i32 = arith.constant 0 : i32
    %c0_i32_0 = arith.constant 0 : i32
    %c0_i32_1 = arith.constant 0 : i32
    return %c0_i32, %c0_i32_0 : i32, i32
  }
  func.func @transform_10(%arg0: i32) -> (i32, i32) {
    %c0_i32 = arith.constant 0 : i32
    %c0_i32_0 = arith.constant 0 : i32
    %c0_i32_1 = arith.constant 0 : i32
    return %c0_i32, %c0_i32_0 : i32, i32
  }
  func.func @transform_11(%arg0: i32) -> (i32, i32) {
    %c0_i32 = arith.constant 0 : i32
    %c0_i32_0 = arith.constant 0 : i32
    %c0_i32_1 = arith.constant 0 : i32
    return %c0_i32, %c0_i32_0 : i32, i32
  }
  func.func @transform_12(%arg0: i32) -> (i32, i32) {
    %c0_i32 = arith.constant 0 : i32
    %c0_i32_0 = arith.constant 0 : i32
    %c0_i32_1 = arith.constant 0 : i32
    return %c0_i32, %c0_i32_0 : i32, i32
  }
  func.func @transform_13(%arg0: i32) -> (i32, i32, i32) {
    %c0_i32 = arith.constant 0 : i32
    %c0_i32_0 = arith.constant 0 : i32
    %c0_i32_1 = arith.constant 0 : i32
    return %arg0, %c0_i32, %c0_i32_0 : i32, i32, i32
  }
}

</mosaic_0001>

<llo_original>
// kernel: vgg_forward.1
$region0: #{vgg_forward.1}
  #allocation0 [shape = 'u32[]', space=smem, size = 0x4, offset = 0x4, fixed_abs, tag = 'smem constant byte address 0x4 - core index']
  #allocation1 [shape = 'u32[144,128]{1,0:T(1,128)}', space=vmem, size = 0x12000, scoped, tag = 'internal scratch']
  #allocation2 [shape = 'f32[18,128]{1,0:T(8,128)}', space=vmem, size = 0x3000, scoped, tag = 'scratch operand']
  %s0 = inlined_call_operand.vmem [shape: f32[2,18,64], index: 0, kind: input, shape index: {}]
  %s1 = inlined_call_operand.hbm [shape: f32[3,64,128], index: 1, kind: input, shape index: {}]
  %s2 = inlined_call_operand.vmem [shape: f32[1,128], index: 2, kind: input, shape index: {}]
  %s3 = inlined_call_operand.hbm [shape: f32[3,128,256], index: 3, kind: input, shape index: {}]
  %s4 = inlined_call_operand.vmem [shape: f32[1,256], index: 4, kind: input, shape index: {}]
  %s5 = inlined_call_operand.hbm [shape: f32[256,128], index: 5, kind: input, shape index: {}]
  %s6 = inlined_call_operand.hbm [shape: f32[256,128], index: 6, kind: input, shape index: {}]
  %s7 = inlined_call_operand.vmem [shape: bf16[128,1024], index: 7, kind: input, shape index: {}]
  %s8 = inlined_call_operand.vmem [shape: f32[1,128], index: 8, kind: input, shape index: {}]
  %s9 = inlined_call_operand.hbm [shape: bf16[128,4096], index: 9, kind: input, shape index: {}]
  %s10 = inlined_call_operand.vmem [shape: f32[1,4096], index: 10, kind: input, shape index: {}]
  %s11 = inlined_call_operand.hbm [shape: bf16[4096,128], index: 11, kind: input, shape index: {}]
  %s12 = inlined_call_operand.vmem [shape: f32[1,128], index: 12, kind: input, shape index: {}]
  %s13 = inlined_call_operand.hbm [shape: f32[2,1,128], index: 13, kind: output, shape index: {}]
  %s14 = sld [smem:[#allocation0]]
  $region109: #{vgg_forward.1} parent=0
    _
  %s16 = ssub.s32 1, %s14
  %s17 = scalar_select 0, %s16, %s14
  $region1: #{vgg_forward.1} parent=0
    #allocation3 [shape = 'u8[98304]{0}', space=vmem, size = 0x18000, scoped, tag = 'input window, operand 1, single buffered']
    #allocation4 [shape = 's32[2]{0}', space=sflag, size = 0x8, scoped, tag = 'scoped memory for vgg_forward.1']
    #allocation5 [shape = 's32[2]{0}', space=sflag, size = 0x8, scoped, tag = 'scoped memory for vgg_forward.1']
    #allocation6 [shape = 'u8[393216]{0}', space=vmem, size = 0x60000, scoped, tag = 'input window, operand 3, single buffered']
    #allocation7 [shape = 's32[1]{0}', space=sflag, size = 0x4, scoped, tag = 'scoped memory for vgg_forward.1']
    #allocation8 [shape = 'u8[131072]{0}', space=vmem, size = 0x20000, scoped, tag = 'input window, operand 5, single buffered']
    #allocation9 [shape = 'u8[131072]{0}', space=vmem, size = 0x20000, scoped, tag = 'input window, operand 6, single buffered']
    #allocation10 [shape = 's32[1]{0}', space=sflag, size = 0x4, scoped, tag = 'scoped memory for vgg_forward.1']
    #allocation11 [shape = 'u8[1048576]{0}', space=vmem, size = 0x100000, scoped, tag = 'input window, operand 9, single buffered']
    #allocation12 [shape = 'u8[1048576]{0}', space=vmem, size = 0x100000, scoped, tag = 'input window, operand 11, single buffered']
    #allocation13 [shape = 's32[1]{0}', space=sflag, size = 0x4, scoped, tag = 'scoped memory for vgg_forward.1']
    #allocation14 [shape = 'u8[1024]{0}', space=vmem, size = 0x400, scoped, tag = 'output window, operand 0']
    %18 = vsyncpa [#allocation4], 0
    %19 = vsyncpa [#allocation7], 0
    %20 = vsyncpa [#allocation10], 0
    %21 = vsyncpa [#allocation13], 0
    %22 = vsyncpa [#allocation5], 0
    %s23 = scalar_lea.sflag [#allocation5], 1
    %24 = vsyncpa %s23, 0
    loop: start=0, step=1, limit=4
    $region2: #{vgg_forward.1} parent=1 // loop_pre_header
      _
    $region3: #{vgg_forward.1} parent=1 // loop_header
      %s26 = sphi 0, %s30
      %p27 = scmp.ge.s32.totalorder %s26, 4
      %s36 = sphi 0, %s38
      %s39 = sphi 0, %s36
      %s40 = sphi 0, %s39
      %s56 = sphi 0, %s40
      %s60 = sphi 0, %s60
      %s62 = sphi 0, %s60
      %s63 = sphi 0, %s62
      %s77 = sphi 0, %s63
      %s81 = sphi 0, %s81
      %s83 = sphi 0, %s81
      %s84 = sphi 0, %s83
      %s98 = sphi 0, %s84
      %s102 = sphi 0, %s102
      %s104 = sphi 0, %s102
      %s105 = sphi 0, %s104
      %s119 = sphi 0, %s105
      %s123 = sphi 0, %s123
      %s125 = sphi 0, %s123
      %s126 = sphi 0, %s125
      %s140 = sphi 0, %s126
      %s144 = sphi 0, %s144
      %s146 = sphi 0, %s144
      %s147 = sphi 0, %s146
      %s161 = sphi 0, %s147
      %s165 = sphi 0, %s165
      %s167 = sphi 0, %s165
      %s168 = sphi 0, %s167
      %s182 = sphi 0, %s168
      %s186 = sphi 0, %s186
      %s188 = sphi 0, %s186
      %s189 = sphi 0, %s188
      %s203 = sphi 0, %s189
      %s207 = sphi 0, %s207
      %s209 = sphi 0, %s207
      %s210 = sphi 0, %s209
      %s224 = sphi 0, %s210
      %s228 = sphi 0, %s228
      %s230 = sphi 0, %s228
      %s231 = sphi 0, %s230
      %s245 = sphi 0, %s231
      %s249 = sphi 0, %s249
      %s251 = sphi 0, %s249
      %s252 = sphi 0, %s251
      %s266 = sphi 0, %s252
      %s270 = sphi 0, %s270
      %s272 = sphi 0, %s270
      %s273 = sphi 0, %s272
      %s287 = sphi 0, %s273
      %s291 = sphi 0, %s291
      %s293 = sphi 0, %s291
      %s294 = sphi 0, %s293
      %s308 = sphi 0, %s294
      %s314 = sphi 0, %s316
      %s317 = sphi 0, %s314
      %s318 = sphi 0, %s317
      %s334 = sphi 0, %s318
    $region4: #{vgg_forward.1} parent=1 // loop_header_branch
      %29 = sbr.rel (%p27) target = $region8
    $region5: #{vgg_forward.1} parent=1 // loop_body
      %s31 = ssub.s32 %s26, 1
      %s32 = ssub.s32 %s26, 2
      %s33 = sadd.s32 %s26, 1
      %s34 = ssub.s32 %s26, %s33
      %p35 = scmp.eq.s32.totalorder %s34, 0
      %s37 = sadd.s32 %s36, 1
      %s38 = scalar_select %p35, %s36, %s37
      %p41 = pneg %p35
      %p42 = scmp.eq.s32.totalorder %s26, 1
      %p43 = por %p41, %p42
      %p44 = scmp.ne.s32.totalorder %s36, %s39
      %p45 = scmp.eq.s32.totalorder %s26, 0
      %p46 = por %p44, %p45
      %p47 = scmp.ne.s32.totalorder %s36, %s39
      %p48 = scmp.eq.s32.totalorder %s31, 1
      %p49 = por %p47, %p48
      %p50 = scmp.ne.s32.totalorder %s39, %s40
      %p51 = scmp.eq.s32.totalorder %s31, 0
      %p52 = por %p50, %p51
      %p53 = scmp.ne.s32.totalorder %s39, %s40
      %p54 = scmp.eq.s32.totalorder %s32, 1
      %p55 = por %p53, %p54
      %p57 = scmp.ne.s32.totalorder %s40, %s56
      %p58 = scmp.eq.s32.totalorder %s32, 0
      %p59 = por %p57, %p58
      %s61 = sadd.s32 %s60, 1
      %p64 = scmp.eq.s32.totalorder %s26, 1
      %p65 = scmp.ne.s32.totalorder %s60, %s62
      %p66 = scmp.eq.s32.totalorder %s26, 0
      %p67 = por %p65, %p66
      %p68 = scmp.ne.s32.totalorder %s60, %s62
      %p69 = scmp.eq.s32.totalorder %s31, 1
      %p70 = por %p68, %p69
      %p71 = scmp.ne.s32.totalorder %s62, %s63
      %p72 = scmp.eq.s32.totalorder %s31, 0
      %p73 = por %p71, %p72
      %p74 = scmp.ne.s32.totalorder %s62, %s63
      %p75 = scmp.eq.s32.totalorder %s32, 1
      %p76 = por %p74, %p75
      %p78 = scmp.ne.s32.totalorder %s63, %s77
      %p79 = scmp.eq.s32.totalorder %s32, 0
      %p80 = por %p78, %p79
      %s82 = sadd.s32 %s81, 1
      %p85 = scmp.eq.s32.totalorder %s26, 1
      %p86 = scmp.ne.s32.totalorder %s81, %s83
      %p87 = scmp.eq.s32.totalorder %s26, 0
      %p88 = por %p86, %p87
      %p89 = scmp.ne.s32.totalorder %s81, %s83
      %p90 = scmp.eq.s32.totalorder %s31, 1
      %p91 = por %p89, %p90
      %p92 = scmp.ne.s32.totalorder %s83, %s84
      %p93 = scmp.eq.s32.totalorder %s31, 0
      %p94 = por %p92, %p93
      %p95 = scmp.ne.s32.totalorder %s83, %s84
      %p96 = scmp.eq.s32.totalorder %s32, 1
      %p97 = por %p95, %p96
      %p99 = scmp.ne.s32.totalorder %s84, %s98
      %p100 = scmp.eq.s32.totalorder %s32, 0
      %p101 = por %p99, %p100
      %s103 = sadd.s32 %s102, 1
      %p106 = scmp.eq.s32.totalorder %s26, 1
      %p107 = scmp.ne.s32.totalorder %s102, %s104
      %p108 = scmp.eq.s32.totalorder %s26, 0
      %p109 = por %p107, %p108
      %p110 = scmp.ne.s32.totalorder %s102, %s104
      %p111 = scmp.eq.s32.totalorder %s31, 1
      %p112 = por %p110, %p111
      %p113 = scmp.ne.s32.totalorder %s104, %s105
      %p114 = scmp.eq.s32.totalorder %s31, 0
      %p115 = por %p113, %p114
      %p116 = scmp.ne.s32.totalorder %s104, %s105
      %p117 = scmp.eq.s32.totalorder %s32, 1
      %p118 = por %p116, %p117
      %p120 = scmp.ne.s32.totalorder %s105, %s119
      %p121 = scmp.eq.s32.totalorder %s32, 0
      %p122 = por %p120, %p121
      %s124 = sadd.s32 %s123, 1
      %p127 = scmp.eq.s32.totalorder %s26, 1
      %p128 = scmp.ne.s32.totalorder %s123, %s125
      %p129 = scmp.eq.s32.totalorder %s26, 0
      %p130 = por %p128, %p129
      %p131 = scmp.ne.s32.totalorder %s123, %s125
      %p132 = scmp.eq.s32.totalorder %s31, 1
      %p133 = por %p131, %p132
      %p134 = scmp.ne.s32.totalorder %s125, %s126
      %p135 = scmp.eq.s32.totalorder %s31, 0
      %p136 = por %p134, %p135
      %p137 = scmp.ne.s32.totalorder %s125, %s126
      %p138 = scmp.eq.s32.totalorder %s32, 1
      %p139 = por %p137, %p138
      %p141 = scmp.ne.s32.totalorder %s126, %s140
      %p142 = scmp.eq.s32.totalorder %s32, 0
      %p143 = por %p141, %p142
      %s145 = sadd.s32 %s144, 1
      %p148 = scmp.eq.s32.totalorder %s26, 1
      %p149 = scmp.ne.s32.totalorder %s144, %s146
      %p150 = scmp.eq.s32.totalorder %s26, 0
      %p151 = por %p149, %p150
      %p152 = scmp.ne.s32.totalorder %s144, %s146
      %p153 = scmp.eq.s32.totalorder %s31, 1
      %p154 = por %p152, %p153
      %p155 = scmp.ne.s32.totalorder %s146, %s147
      %p156 = scmp.eq.s32.totalorder %s31, 0
      %p157 = por %p155, %p156
      %p158 = scmp.ne.s32.totalorder %s146, %s147
      %p159 = scmp.eq.s32.totalorder %s32, 1
      %p160 = por %p158, %p159
      %p162 = scmp.ne.s32.totalorder %s147, %s161
      %p163 = scmp.eq.s32.totalorder %s32, 0
      %p164 = por %p162, %p163
      %s166 = sadd.s32 %s165, 1
      %p169 = scmp.eq.s32.totalorder %s26, 1
      %p170 = scmp.ne.s32.totalorder %s165, %s167
      %p171 = scmp.eq.s32.totalorder %s26, 0
      %p172 = por %p170, %p171
      %p173 = scmp.ne.s32.totalorder %s165, %s167
      %p174 = scmp.eq.s32.totalorder %s31, 1
      %p175 = por %p173, %p174
      %p176 = scmp.ne.s32.totalorder %s167, %s168
      %p177 = scmp.eq.s32.totalorder %s31, 0
      %p178 = por %p176, %p177
      %p179 = scmp.ne.s32.totalorder %s167, %s168
      %p180 = scmp.eq.s32.totalorder %s32, 1
      %p181 = por %p179, %p180
      %p183 = scmp.ne.s32.totalorder %s168, %s182
      %p184 = scmp.eq.s32.totalorder %s32, 0
      %p185 = por %p183, %p184
      %s187 = sadd.s32 %s186, 1
      %p190 = scmp.eq.s32.totalorder %s26, 1
      %p191 = scmp.ne.s32.totalorder %s186, %s188
      %p192 = scmp.eq.s32.totalorder %s26, 0
      %p193 = por %p191, %p192
      %p194 = scmp.ne.s32.totalorder %s186, %s188
      %p195 = scmp.eq.s32.totalorder %s31, 1
      %p196 = por %p194, %p195
      %p197 = scmp.ne.s32.totalorder %s188, %s189
      %p198 = scmp.eq.s32.totalorder %s31, 0
      %p199 = por %p197, %p198
      %p200 = scmp.ne.s32.totalorder %s188, %s189
      %p201 = scmp.eq.s32.totalorder %s32, 1
      %p202 = por %p200, %p201
      %p204 = scmp.ne.s32.totalorder %s189, %s203
      %p205 = scmp.eq.s32.totalorder %s32, 0
      %p206 = por %p204, %p205
      %s208 = sadd.s32 %s207, 1
      %p211 = scmp.eq.s32.totalorder %s26, 1
      %p212 = scmp.ne.s32.totalorder %s207, %s209
      %p213 = scmp.eq.s32.totalorder %s26, 0
      %p214 = por %p212, %p213
      %p215 = scmp.ne.s32.totalorder %s207, %s209
      %p216 = scmp.eq.s32.totalorder %s31, 1
      %p217 = por %p215, %p216
      %p218 = scmp.ne.s32.totalorder %s209, %s210
      %p219 = scmp.eq.s32.totalorder %s31, 0
      %p220 = por %p218, %p219
      %p221 = scmp.ne.s32.totalorder %s209, %s210
      %p222 = scmp.eq.s32.totalorder %s32, 1
      %p223 = por %p221, %p222
      %p225 = scmp.ne.s32.totalorder %s210, %s224
      %p226 = scmp.eq.s32.totalorder %s32, 0
      %p227 = por %p225, %p226
      %s229 = sadd.s32 %s228, 1
      %p232 = scmp.eq.s32.totalorder %s26, 1
      %p233 = scmp.ne.s32.totalorder %s228, %s230
      %p234 = scmp.eq.s32.totalorder %s26, 0
      %p235 = por %p233, %p234
      %p236 = scmp.ne.s32.totalorder %s228, %s230
      %p237 = scmp.eq.s32.totalorder %s31, 1
      %p238 = por %p236, %p237
      %p239 = scmp.ne.s32.totalorder %s230, %s231
      %p240 = scmp.eq.s32.totalorder %s31, 0
      %p241 = por %p239, %p240
      %p242 = scmp.ne.s32.totalorder %s230, %s231
      %p243 = scmp.eq.s32.totalorder %s32, 1
      %p244 = por %p242, %p243
      %p246 = scmp.ne.s32.totalorder %s231, %s245
      %p247 = scmp.eq.s32.totalorder %s32, 0
      %p248 = por %p246, %p247
      %s250 = sadd.s32 %s249, 1
      %p253 = scmp.eq.s32.totalorder %s26, 1
      %p254 = scmp.ne.s32.totalorder %s249, %s251
      %p255 = scmp.eq.s32.totalorder %s26, 0
      %p256 = por %p254, %p255
      %p257 = scmp.ne.s32.totalorder %s249, %s251
      %p258 = scmp.eq.s32.totalorder %s31, 1
      %p259 = por %p257, %p258
      %p260 = scmp.ne.s32.totalorder %s251, %s252
      %p261 = scmp.eq.s32.totalorder %s31, 0
      %p262 = por %p260, %p261
      %p263 = scmp.ne.s32.totalorder %s251, %s252
      %p264 = scmp.eq.s32.totalorder %s32, 1
      %p265 = por %p263, %p264
      %p267 = scmp.ne.s32.totalorder %s252, %s266
      %p268 = scmp.eq.s32.totalorder %s32, 0
      %p269 = por %p267, %p268
      %s271 = sadd.s32 %s270, 1
      %p274 = scmp.eq.s32.totalorder %s26, 1
      %p275 = scmp.ne.s32.totalorder %s270, %s272
      %p276 = scmp.eq.s32.totalorder %s26, 0
      %p277 = por %p275, %p276
      %p278 = scmp.ne.s32.totalorder %s270, %s272
      %p279 = scmp.eq.s32.totalorder %s31, 1
      %p280 = por %p278, %p279
      %p281 = scmp.ne.s32.totalorder %s272, %s273
      %p282 = scmp.eq.s32.totalorder %s31, 0
      %p283 = por %p281, %p282
      %p284 = scmp.ne.s32.totalorder %s272, %s273
      %p285 = scmp.eq.s32.totalorder %s32, 1
      %p286 = por %p284, %p285
      %p288 = scmp.ne.s32.totalorder %s273, %s287
      %p289 = scmp.eq.s32.totalorder %s32, 0
      %p290 = por %p288, %p289
      %s292 = sadd.s32 %s291, 1
      %p295 = scmp.eq.s32.totalorder %s26, 1
      %p296 = scmp.ne.s32.totalorder %s291, %s293
      %p297 = scmp.eq.s32.totalorder %s26, 0
      %p298 = por %p296, %p297
      %p299 = scmp.ne.s32.totalorder %s291, %s293
      %p300 = scmp.eq.s32.totalorder %s31, 1
      %p301 = por %p299, %p300
      %p302 = scmp.ne.s32.totalorder %s293, %s294
      %p303 = scmp.eq.s32.totalorder %s31, 0
      %p304 = por %p302, %p303
      %p305 = scmp.ne.s32.totalorder %s293, %s294
      %p306 = scmp.eq.s32.totalorder %s32, 1
      %p307 = por %p305, %p306
      %p309 = scmp.ne.s32.totalorder %s294, %s308
      %p310 = scmp.eq.s32.totalorder %s32, 0
      %p311 = por %p309, %p310
      %s312 = ssub.s32 %s26, %s33
      %p313 = scmp.eq.s32.totalorder %s312, 0
      %s315 = sadd.s32 %s314, 1
      %s316 = scalar_select %p313, %s314, %s315
      %p319 = pneg %p313
      %p320 = scmp.eq.s32.totalorder %s26, 1
      %p321 = por %p319, %p320
      %p322 = scmp.ne.s32.totalorder %s314, %s317
      %p323 = scmp.eq.s32.totalorder %s26, 0
      %p324 = por %p322, %p323
      %p325 = scmp.ne.s32.totalorder %s314, %s317
      %p326 = scmp.eq.s32.totalorder %s31, 1
      %p327 = por %p325, %p326
      %p328 = scmp.ne.s32.totalorder %s317, %s318
      %p329 = scmp.eq.s32.totalorder %s31, 0
      %p330 = por %p328, %p329
      %p331 = scmp.ne.s32.totalorder %s317, %s318
      %p332 = scmp.eq.s32.totalorder %s32, 1
      %p333 = por %p331, %p332
      %p335 = scmp.ne.s32.totalorder %s318, %s334
      %p336 = scmp.eq.s32.totalorder %s32, 0
      %p337 = por %p335, %p336
      %p338 = scmp.le.s32.totalorder 1, %s26
      %p339 = scmp.lt.s32.totalorder %s26, 3
      %p340 = pnand %p338, %p339
      %p341 = pneg %p340
      // Predicated region
      $region9: #{vgg_forward.1} parent=5 // pred_check
        _
      $region10: #{vgg_forward.1} parent=5 // pred_check_branch
        %343 = sbr.rel (%p340) target = $region12
      $region11: #{vgg_forward.1} parent=5 // pred_region
        %s344 = ssub.s32 %s26, 1
        // Predicated region
        $region13: #{vgg_forward.1} parent=11 // pred_check
          %p345 = pneg %p73
        $region14: #{vgg_forward.1} parent=11 // pred_check_branch
          %347 = sbr.rel (%p345) target = $region16
        $region15: #{vgg_forward.1} parent=11 // pred_region
          %s349 = ssub.s32 3072, 3072
          %350 = vsyncadd [#allocation4], %s349
          %s351 = sshll.u32 [#allocation3], 4
          %s352 = int_to_ptr.vmem [resolvable:$true] %s351
          %357 = dma.hbm_to_vmem [thread:$0]  %s1, 3072, %s352, [#allocation4], 128, 128, 8
        $region16: #{vgg_forward.1} parent=11 // pred_fallthru
          _
        // Predicated region
        $region17: #{vgg_forward.1} parent=11 // pred_check
          %p358 = pneg %p94
        $region18: #{vgg_forward.1} parent=11 // pred_check_branch
          %360 = sbr.rel (%p358) target = $region20
        $region19: #{vgg_forward.1} parent=11 // pred_region
          _
        $region20: #{vgg_forward.1} parent=11 // pred_fallthru
          _
        // Predicated region
        $region21: #{vgg_forward.1} parent=11 // pred_check
          %p361 = pneg %p115
        $region22: #{vgg_forward.1} parent=11 // pred_check_branch
          %363 = sbr.rel (%p361) target = $region24
        $region23: #{vgg_forward.1} parent=11 // pred_region
          %s365 = ssub.s32 12288, 12288
          %366 = vsyncadd [#allocation7], %s365
          %s367 = sshll.u32 [#allocation6], 4
          %s368 = int_to_ptr.vmem [resolvable:$true] %s367
          %373 = dma.hbm_to_vmem [thread:$0]  %s3, 12288, %s368, [#allocation7], 256, 256, 16
        $region24: #{vgg_forward.1} parent=11 // pred_fallthru
          _
        // Predicated region
        $region25: #{vgg_forward.1} parent=11 // pred_check
          %p374 = pneg %p136
        $region26: #{vgg_forward.1} parent=11 // pred_check_branch
          %376 = sbr.rel (%p374) target = $region28
        $region27: #{vgg_forward.1} parent=11 // pred_region
          _
        $region28: #{vgg_forward.1} parent=11 // pred_fallthru
          _
        // Predicated region
        $region29: #{vgg_forward.1} parent=11 // pred_check
          %p377 = pneg %p157
        $region30: #{vgg_forward.1} parent=11 // pred_check_branch
          %379 = sbr.rel (%p377) target = $region32
        $region31: #{vgg_forward.1} parent=11 // pred_region
          %s381 = ssub.s32 4096, 4096
          %382 = vsyncadd [#allocation7], %s381
          %s383 = sshll.u32 [#allocation8], 4
          %s384 = int_to_ptr.vmem [resolvable:$true] %s383
          %389 = dma.hbm_to_vmem [thread:$0]  %s5, 4096, %s384, [#allocation7], 128, 128, 8
        $region32: #{vgg_forward.1} parent=11 // pred_fallthru
          _
        // Predicated region
        $region33: #{vgg_forward.1} parent=11 // pred_check
          %p390 = pneg %p178
        $region34: #{vgg_forward.1} parent=11 // pred_check_branch
          %392 = sbr.rel (%p390) target = $region36
        $region35: #{vgg_forward.1} parent=11 // pred_region
          %s394 = ssub.s32 4096, 4096
          %395 = vsyncadd [#allocation10], %s394
          %s396 = sshll.u32 [#allocation9], 4
          %s397 = int_to_ptr.vmem [resolvable:$true] %s396
          %402 = dma.hbm_to_vmem [thread:$0]  %s6, 4096, %s397, [#allocation10], 128, 128, 8
        $region36: #{vgg_forward.1} parent=11 // pred_fallthru
          _
        // Predicated region
        $region37: #{vgg_forward.1} parent=11 // pred_check
          %p403 = pneg %p199
        $region38: #{vgg_forward.1} parent=11 // pred_check_branch
          %405 = sbr.rel (%p403) target = $region40
        $region39: #{vgg_forward.1} parent=11 // pred_region
          _
        $region40: #{vgg_forward.1} parent=11 // pred_fallthru
          _
        // Predicated region
        $region41: #{vgg_forward.1} parent=11 // pred_check
          %p406 = pneg %p220
        $region42: #{vgg_forward.1} parent=11 // pred_check_branch
          %408 = sbr.rel (%p406) target = $region44
        $region43: #{vgg_forward.1} parent=11 // pred_region
          _
        $region44: #{vgg_forward.1} parent=11 // pred_fallthru
          _
        // Predicated region
        $region45: #{vgg_forward.1} parent=11 // pred_check
          %p409 = pneg %p241
        $region46: #{vgg_forward.1} parent=11 // pred_check_branch
          %411 = sbr.rel (%p409) target = $region48
        $region47: #{vgg_forward.1} parent=11 // pred_region
          %s413 = ssub.s32 32768, 32768
          %414 = vsyncadd [#allocation10], %s413
          %s415 = sshll.u32 [#allocation11], 4
          %s416 = int_to_ptr.vmem [resolvable:$true] %s415
          %421 = dma.hbm_to_vmem [thread:$0]  %s9, 32768, %s416, [#allocation10], 2048, 2048, 128
        $region48: #{vgg_forward.1} parent=11 // pred_fallthru
          _
        // Predicated region
        $region49: #{vgg_forward.1} parent=11 // pred_check
          %p422 = pneg %p262
        $region50: #{vgg_forward.1} parent=11 // pred_check_branch
          %424 = sbr.rel (%p422) target = $region52
        $region51: #{vgg_forward.1} parent=11 // pred_region
          _
        $region52: #{vgg_forward.1} parent=11 // pred_fallthru
          _
        // Predicated region
        $region53: #{vgg_forward.1} parent=11 // pred_check
          %p425 = pneg %p283
        $region54: #{vgg_forward.1} parent=11 // pred_check_branch
          %427 = sbr.rel (%p425) target = $region56
        $region55: #{vgg_forward.1} parent=11 // pred_region
          %s429 = ssub.s32 32768, 32768
          %430 = vsyncadd [#allocation13], %s429
          %s431 = sshll.u32 [#allocation12], 4
          %s432 = int_to_ptr.vmem [resolvable:$true] %s431
          %437 = dma.hbm_to_vmem [thread:$0]  %s11, 32768, %s432, [#allocation13], 64, 64, 4
        $region56: #{vgg_forward.1} parent=11 // pred_fallthru
          _
        // Predicated region
        $region57: #{vgg_forward.1} parent=11 // pred_check
          %p438 = pneg %p304
        $region58: #{vgg_forward.1} parent=11 // pred_check_branch
          %440 = sbr.rel (%p438) target = $region60
        $region59: #{vgg_forward.1} parent=11 // pred_region
          _
        $region60: #{vgg_forward.1} parent=11 // pred_fallthru
          _
      $region12: #{vgg_forward.1} parent=5 // pred_fallthru
        _
      %p441 = scmp.lt.s32.totalorder %s26, 2
      // Predicated region
      $region61: #{vgg_forward.1} parent=5 // pred_check
        %p442 = pneg %p441
      $region62: #{vgg_forward.1} parent=5 // pred_check_branch
        %444 = sbr.rel (%p442) target = $region64
      $region63: #{vgg_forward.1} parent=5 // pred_region
        // Predicated region
        $region65: #{vgg_forward.1} parent=63 // pred_check
          %p445 = pneg %p46
        $region66: #{vgg_forward.1} parent=63 // pred_check_branch
          %447 = sbr.rel (%p445) target = $region68
        $region67: #{vgg_forward.1} parent=63 // pred_region
          %p448 = scmp.lt.s32.totalorder %s26, 1
          %s449 = scalar_select %p448, %s26, 1
          %s450 = smul.addr %s449, 3
          %s451 = smul.addr %s450, 8
          %s452 = scalar_lea.vmem %s0, %s451
        $region68: #{vgg_forward.1} parent=63 // pred_fallthru
          _
      $region64: #{vgg_forward.1} parent=5 // pred_fallthru
        _
      %p453 = scmp.le.s32.totalorder 1, %s26
      %p454 = scmp.lt.s32.totalorder %s26, 3
      %p455 = pnand %p453, %p454
      %p456 = pneg %p455
      // Predicated region
      $region69: #{vgg_forward.1} parent=5 // pred_check
        _
      $region70: #{vgg_forward.1} parent=5 // pred_check_branch
        %458 = sbr.rel (%p455) target = $region72
      $region71: #{vgg_forward.1} parent=5 // pred_region
        %s459 = ssub.s32 %s26, 1
        // Predicated region
        $region73: #{vgg_forward.1} parent=71 // pred_check
          %p460 = pneg %p73
        $region74: #{vgg_forward.1} parent=71 // pred_check_branch
          %462 = sbr.rel (%p460) target = $region76
        $region75: #{vgg_forward.1} parent=71 // pred_region
          %463 = dma.done [#allocation4], 3072
        $region76: #{vgg_forward.1} parent=71 // pred_fallthru
          _
        // Predicated region
        $region77: #{vgg_forward.1} parent=71 // pred_check
          %p464 = pneg %p115
        $region78: #{vgg_forward.1} parent=71 // pred_check_branch
          %466 = sbr.rel (%p464) target = $region80
        $region79: #{vgg_forward.1} parent=71 // pred_region
          %467 = dma.done [#allocation7], 12288
        $region80: #{vgg_forward.1} parent=71 // pred_fallthru
          _
        // Predicated region
        $region81: #{vgg_forward.1} parent=71 // pred_check
          %p468 = pneg %p157
        $region82: #{vgg_forward.1} parent=71 // pred_check_branch
          %470 = sbr.rel (%p468) target = $region84
        $region83: #{vgg_forward.1} parent=71 // pred_region
          %471 = dma.done [#allocation7], 4096
        $region84: #{vgg_forward.1} parent=71 // pred_fallthru
          _
        // Predicated region
        $region85: #{vgg_forward.1} parent=71 // pred_check
          %p472 = pneg %p178
        $region86: #{vgg_forward.1} parent=71 // pred_check_branch
          %474 = sbr.rel (%p472) target = $region88
        $region87: #{vgg_forward.1} parent=71 // pred_region
          %475 = dma.done [#allocation10], 4096
        $region88: #{vgg_forward.1} parent=71 // pred_fallthru
          _
        // Predicated region
        $region89: #{vgg_forward.1} parent=71 // pred_check
          %p476 = pneg %p241
        $region90: #{vgg_forward.1} parent=71 // pred_check_branch
          %478 = sbr.rel (%p476) target = $region92
        $region91: #{vgg_forward.1} parent=71 // pred_region
          %479 = dma.done [#allocation10], 32768
        $region92: #{vgg_forward.1} parent=71 // pred_fallthru
          _
        // Predicated region
        $region93: #{vgg_forward.1} parent=71 // pred_check
          %p480 = pneg %p283
        $region94: #{vgg_forward.1} parent=71 // pred_check_branch
          %482 = sbr.rel (%p480) target = $region96
        $region95: #{vgg_forward.1} parent=71 // pred_region
          %483 = dma.done [#allocation13], 32768
        $region96: #{vgg_forward.1} parent=71 // pred_fallthru
          _
        %p484 = scmp.lt.s32.totalorder %s31, 1
        %s485 = scalar_select %p484, %s31, 1
        %s486 = smul.addr %s485, 3
        %s487 = smul.addr %s486, 8
        %s488 = scalar_lea.vmem %s0, %s487
        %p489 = pneg %p52
        %p490 = pneg %p49
        %p491 = pneg %p73
        %p492 = pneg %p70
        %p493 = pneg %p94
        %p494 = pneg %p91
        %p495 = pneg %p115
        %p496 = pneg %p112
        %p497 = pneg %p136
        %p498 = pneg %p133
        %p499 = pneg %p157
        %p500 = pneg %p154
        %p501 = pneg %p178
        %p502 = pneg %p175
        %p503 = pneg %p199
        %p504 = pneg %p196
        %p505 = pneg %p220
        %p506 = pneg %p217
        %p507 = pneg %p241
        %p508 = pneg %p238
        %p509 = pneg %p262
        %p510 = pneg %p259
        %p511 = pneg %p283
        %p512 = pneg %p280
        %p513 = pneg %p304
        %p514 = pneg %p301
        %p515 = pneg %p330
        %p516 = pneg %p327
        %s517 = sand.u32 %s317, 1
        %s518 = scalar_lea.sflag [#allocation5], %s517
        %s519 = sand.u32 %s317, 1
        %s520 = scalar_lea.vmem [#allocation14], %s519
        %p521 = scmp.lt.s32.totalorder %s31, 1
        %s522 = scalar_select %p521, %s31, 1
        %s523 = smul.addr %s522, 3
        %s524 = smul.addr %s523, 8
        %s525 = scalar_lea.vmem %s0, %s524
        %v527 = vld [vmem:[%s525] sm:$0xff]
        %v528 = vld [vmem:[%s525 + $0x8] sm:$0xff]
        %v529 = vld [vmem:[#allocation3] sm:$0xff]
        %v530 = vld [vmem:[#allocation3 + $0x8] sm:$0xff]
        %v531 = vld [vmem:[#allocation3 + $0x10] sm:$0xff]
        %v532 = vld [vmem:[#allocation3 + $0x18] sm:$0xff]
        %v533 = vld [vmem:[#allocation3 + $0x20] sm:$0xff]
        %v534 = vld [vmem:[#allocation3 + $0x28] sm:$0xff]
        %v535 = vld [vmem:[#allocation3 + $0x30] sm:$0xff]
        %v536 = vld [vmem:[#allocation3 + $0x38] sm:$0xff]
        %v537 = vld [vmem:[%s525 + $0x1] sm:$0xff]
        %v538 = vld [vmem:[%s525 + $0x9] sm:$0xff]
        %s539 = scalar_lea.vmem [#allocation3], 64
        %v540 = vld [vmem:[%s539] sm:$0xff]
        %v541 = vld [vmem:[%s539 + $0x8] sm:$0xff]
        %v542 = vld [vmem:[%s539 + $0x10] sm:$0xff]
        %v543 = vld [vmem:[%s539 + $0x18] sm:$0xff]
        %v544 = vld [vmem:[%s539 + $0x20] sm:$0xff]
        %v545 = vld [vmem:[%s539 + $0x28] sm:$0xff]
        %v546 = vld [vmem:[%s539 + $0x30] sm:$0xff]
        %v547 = vld [vmem:[%s539 + $0x38] sm:$0xff]
        %vm548 = vcmask 523264
        %v550 = vsel %vm548, %v537, 0
        %v553 = vsel %vm548, %v538, 0
        %555 = vmatprep.subr.mxu0 0.0
        %556 = vmatpush1.msra.mxu0 %v540
        %557 = vmatprep.subr.mxu0 0.0
        %558 = vmatpush1.msra.mxu0 %v541
        %559 = vmatprep.subr.mxu0 0.0
        %560 = vmatpush1.msra.mxu0 %v542
        %561 = vmatprep.subr.mxu0 0.0
        %562 = vmatpush1.msra.mxu0 %v543
        %563 = vmatprep.subr.mxu0 0.0
        %564 = vmatpush1.msra.mxu0 %v544
        %565 = vmatprep.subr.mxu0 0.0
        %566 = vmatpush1.msra.mxu0 %v545
        %567 = vmatprep.subr.mxu0 0.0
        %568 = vmatpush1.msra.mxu0 %v546
        %569 = vmatprep.subr.mxu0 0.0
        %570 = vmatpush1.msra.mxu0 %v547
        %571 = vmatprep.subr.mxu0 0.0
        %572 = vmatpush1.msra.mxu0 0.0
        %573 = vmatprep.subr.mxu0 0.0
        %574 = vmatpush1.msra.mxu0 0.0
        %575 = vmatprep.subr.mxu0 0.0
        %576 = vmatpush1.msra.mxu0 0.0
        %577 = vmatprep.subr.mxu0 0.0
        %578 = vmatpush1.msra.mxu0 0.0
        %579 = vmatprep.subr.mxu0 0.0
        %580 = vmatpush1.msra.mxu0 0.0
        %581 = vmatprep.subr.mxu0 0.0
        %582 = vmatpush1.msra.mxu0 0.0
        %583 = vmatprep.subr.mxu0 0.0
        %584 = vmatpush1.msra.mxu0 0.0
        %585 = vmatprep.subr.mxu0 0.0
        %586 = vmatpush1.msra.mxu0 0.0
        %587 = vmatprep.subr.mxu0 0.0
        %588 = vmatpush1.msra.mxu0 0.0
        %589 = vmatprep.subr.mxu0 0.0
        %590 = vmatpush1.msra.mxu0 0.0
        %591 = vmatprep.subr.mxu0 0.0
        %592 = vmatpush1.msra.mxu0 0.0
        %593 = vmatprep.subr.mxu0 0.0
        %594 = vmatpush1.msra.mxu0 0.0
        %595 = vmatprep.subr.mxu0 0.0
        %596 = vmatpush1.msra.mxu0 0.0
        %597 = vmatprep.subr.mxu0 0.0
        %598 = vmatpush1.msra.mxu0 0.0
        %599 = vmatprep.subr.mxu0 0.0
        %600 = vmatpush1.msra.mxu0 0.0
        %601 = vmatprep.subr.mxu0 0.0
        %602 = vmatpush1.msra.mxu0 0.0
        %603 = vmatprep.subr.mxu0 0.0
        %604 = vmatpush1.msra.mxu0 0.0
        %605 = vmatprep.subr.mxu0 0.0
        %606 = vmatpush1.msra.mxu0 0.0
        %607 = vmatprep.subr.mxu0 0.0
        %608 = vmatpush1.msra.mxu0 0.0
        %609 = vmatprep.subr.mxu0 0.0
        %610 = vmatpush1.msra.mxu0 0.0
        %611 = vmatprep.subr.mxu0 0.0
        %612 = vmatpush1.msra.mxu0 0.0
        %613 = vmatprep.subr.mxu0 0.0
        %614 = vmatpush1.msra.mxu0 0.0
        %615 = vmatprep.subr.mxu0 0.0
        %616 = vmatpush1.msra.mxu0 0.0
        %617 = vmatprep.subr.mxu0 0.0
        %618 = vmatpush1.msra.mxu0 0.0
        %619 = vmatprep.mubr.f32.mxu0 0.0
        %620 = vmatmul.mubr.f32.gmra.mrb[0].mxu0 %v550
        %v621 = vpop.f32.mrb[0].mxu0
        %v622 = vadd.f32 0.0, %v621
        %v623 = vpop.f32.mrb[0].mxu0
        %624 = vmatprep.mubr.f32.mxu0 0.0
        %625 = vmatmul.mubr.f32.gmra.mrb[0].mxu0 %v553
        %v626 = vpop.f32.mrb[0].mxu0
        %v627 = vadd.f32 0.0, %v626
        %v628 = vpop.f32.mrb[0].mxu0
        %629 = vdwg.mxu0
        %v631 = vsel %vm548, %v527, 0
        %v634 = vsel %vm548, %v528, 0
        %636 = vmatprep.subr.mxu0 0.0
        %637 = vmatpush1.msra.mxu0 %v529
        %638 = vmatprep.subr.mxu0 0.0
        %639 = vmatpush1.msra.mxu0 %v530
        %640 = vmatprep.subr.mxu0 0.0
        %641 = vmatpush1.msra.mxu0 %v531
        %642 = vmatprep.subr.mxu0 0.0
        %643 = vmatpush1.msra.mxu0 %v532
        %644 = vmatprep.subr.mxu0 0.0
        %645 = vmatpush1.msra.mxu0 %v533
        %646 = vmatprep.subr.mxu0 0.0
        %647 = vmatpush1.msra.mxu0 %v534
        %648 = vmatprep.subr.mxu0 0.0
        %649 = vmatpush1.msra.mxu0 %v535
        %650 = vmatprep.subr.mxu0 0.0
        %651 = vmatpush1.msra.mxu0 %v536
        %652 = vmatprep.subr.mxu0 0.0
        %653 = vmatpush1.msra.mxu0 0.0
        %654 = vmatprep.subr.mxu0 0.0
        %655 = vmatpush1.msra.mxu0 0.0
        %656 = vmatprep.subr.mxu0 0.0
        %657 = vmatpush1.msra.mxu0 0.0
        %658 = vmatprep.subr.mxu0 0.0
        %659 = vmatpush1.msra.mxu0 0.0
        %660 = vmatprep.subr.mxu0 0.0
        %661 = vmatpush1.msra.mxu0 0.0
        %662 = vmatprep.subr.mxu0 0.0
        %663 = vmatpush1.msra.mxu0 0.0
        %664 = vmatprep.subr.mxu0 0.0
        %665 = vmatpush1.msra.mxu0 0.0
        %666 = vmatprep.subr.mxu0 0.0
        %667 = vmatpush1.msra.mxu0 0.0
        %668 = vmatprep.subr.mxu0 0.0
        %669 = vmatpush1.msra.mxu0 0.0
        %670 = vmatprep.subr.mxu0 0.0
        %671 = vmatpush1.msra.mxu0 0.0
        %672 = vmatprep.subr.mxu0 0.0
        %673 = vmatpush1.msra.mxu0 0.0
        %674 = vmatprep.subr.mxu0 0.0
        %675 = vmatpush1.msra.mxu0 0.0
        %676 = vmatprep.subr.mxu0 0.0
        %677 = vmatpush1.msra.mxu0 0.0
        %678 = vmatprep.subr.mxu0 0.0
        %679 = vmatpush1.msra.mxu0 0.0
        %680 = vmatprep.subr.mxu0 0.0
        %681 = vmatpush1.msra.mxu0 0.0
        %682 = vmatprep.subr.mxu0 0.0
        %683 = vmatpush1.msra.mxu0 0.0
        %684 = vmatprep.subr.mxu0 0.0
        %685 = vmatpush1.msra.mxu0 0.0
        %686 = vmatprep.subr.mxu0 0.0
        %687 = vmatpush1.msra.mxu0 0.0
        %688 = vmatprep.subr.mxu0 0.0
        %689 = vmatpush1.msra.mxu0 0.0
        %690 = vmatprep.subr.mxu0 0.0
        %691 = vmatpush1.msra.mxu0 0.0
        %692 = vmatprep.subr.mxu0 0.0
        %693 = vmatpush1.msra.mxu0 0.0
        %694 = vmatprep.subr.mxu0 0.0
        %695 = vmatpush1.msra.mxu0 0.0
        %696 = vmatprep.subr.mxu0 0.0
        %697 = vmatpush1.msra.mxu0 0.0
        %698 = vmatprep.subr.mxu0 0.0
        %699 = vmatpush1.msra.mxu0 0.0
        %700 = vmatprep.mubr.f32.mxu0 0.0
        %701 = vmatmul.mubr.f32.gmra.mrb[0].mxu0 %v631
        %v702 = vpop.f32.mrb[0].mxu0
        %v703 = vadd.f32 %v622, %v702
        %v704 = vpop.f32.mrb[0].mxu0
        %705 = vmatprep.mubr.f32.mxu0 0.0
        %706 = vmatmul.mubr.f32.gmra.mrb[0].mxu0 %v634
        %v707 = vpop.f32.mrb[0].mxu0
        %v708 = vadd.f32 %v627, %v707
        %v709 = vpop.f32.mrb[0].mxu0
        %710 = vdwg.mxu0
        %v711 = vld [vmem:[%s525 + $0x2] sm:$0xff]
        %v712 = vld [vmem:[%s525 + $0xa] sm:$0xff]
        %s713 = scalar_lea.vmem [#allocation3], 128
        %v714 = vld [vmem:[%s713] sm:$0xff]
        %v715 = vld [vmem:[%s713 + $0x8] sm:$0xff]
        %v716 = vld [vmem:[%s713 + $0x10] sm:$0xff]
        %v717 = vld [vmem:[%s713 + $0x18] sm:$0xff]
        %v718 = vld [vmem:[%s713 + $0x20] sm:$0xff]
        %v719 = vld [vmem:[%s713 + $0x28] sm:$0xff]
        %v720 = vld [vmem:[%s713 + $0x30] sm:$0xff]
        %v721 = vld [vmem:[%s713 + $0x38] sm:$0xff]
        %v723 = vsel %vm548, %v711, 0
        %v726 = vsel %vm548, %v712, 0
        %728 = vmatprep.subr.mxu0 0.0
        %729 = vmatpush1.msra.mxu0 %v714
        %730 = vmatprep.subr.mxu0 0.0
        %731 = vmatpush1.msra.mxu0 %v715
        %732 = vmatprep.subr.mxu0 0.0
        %733 = vmatpush1.msra.mxu0 %v716
        %734 = vmatprep.subr.mxu0 0.0
        %735 = vmatpush1.msra.mxu0 %v717
        %736 = vmatprep.subr.mxu0 0.0
        %737 = vmatpush1.msra.mxu0 %v718
        %738 = vmatprep.subr.mxu0 0.0
        %739 = vmatpush1.msra.mxu0 %v719
        %740 = vmatprep.subr.mxu0 0.0
        %741 = vmatpush1.msra.mxu0 %v720
        %742 = vmatprep.subr.mxu0 0.0
        %743 = vmatpush1.msra.mxu0 %v721
        %744 = vmatprep.subr.mxu0 0.0
        %745 = vmatpush1.msra.mxu0 0.0
        %746 = vmatprep.subr.mxu0 0.0
        %747 = vmatpush1.msra.mxu0 0.0
        %748 = vmatprep.subr.mxu0 0.0
        %749 = vmatpush1.msra.mxu0 0.0
        %750 = vmatprep.subr.mxu0 0.0
        %751 = vmatpush1.msra.mxu0 0.0
        %752 = vmatprep.subr.mxu0 0.0
        %753 = vmatpush1.msra.mxu0 0.0
        %754 = vmatprep.subr.mxu0 0.0
        %755 = vmatpush1.msra.mxu0 0.0
        %756 = vmatprep.subr.mxu0 0.0
        %757 = vmatpush1.msra.mxu0 0.0
        %758 = vmatprep.subr.mxu0 0.0
        %759 = vmatpush1.msra.mxu0 0.0
        %760 = vmatprep.subr.mxu0 0.0
        %761 = vmatpush1.msra.mxu0 0.0
        %762 = vmatprep.subr.mxu0 0.0
        %763 = vmatpush1.msra.mxu0 0.0
        %764 = vmatprep.subr.mxu0 0.0
        %765 = vmatpush1.msra.mxu0 0.0
        %766 = vmatprep.subr.mxu0 0.0
        %767 = vmatpush1.msra.mxu0 0.0
        %768 = vmatprep.subr.mxu0 0.0
        %769 = vmatpush1.msra.mxu0 0.0
        %770 = vmatprep.subr.mxu0 0.0
        %771 = vmatpush1.msra.mxu0 0.0
        %772 = vmatprep.subr.mxu0 0.0
        %773 = vmatpush1.msra.mxu0 0.0
        %774 = vmatprep.subr.mxu0 0.0
        %775 = vmatpush1.msra.mxu0 0.0
        %776 = vmatprep.subr.mxu0 0.0
        %777 = vmatpush1.msra.mxu0 0.0
        %778 = vmatprep.subr.mxu0 0.0
        %779 = vmatpush1.msra.mxu0 0.0
        %780 = vmatprep.subr.mxu0 0.0
        %781 = vmatpush1.msra.mxu0 0.0
        %782 = vmatprep.subr.mxu0 0.0
        %783 = vmatpush1.msra.mxu0 0.0
        %784 = vmatprep.subr.mxu0 0.0
        %785 = vmatpush1.msra.mxu0 0.0
        %786 = vmatprep.subr.mxu0 0.0
        %787 = vmatpush1.msra.mxu0 0.0
        %788 = vmatprep.subr.mxu0 0.0
        %789 = vmatpush1.msra.mxu0 0.0
        %790 = vmatprep.subr.mxu0 0.0
        %791 = vmatpush1.msra.mxu0 0.0
        %792 = vmatprep.mubr.f32.mxu0 0.0
        %793 = vmatmul.mubr.f32.gmra.mrb[0].mxu0 %v723
        %v794 = vpop.f32.mrb[0].mxu0
        %v795 = vadd.f32 0.0, %v794
        %v796 = vpop.f32.mrb[0].mxu0
        %797 = vmatprep.mubr.f32.mxu0 0.0
        %798 = vmatmul.mubr.f32.gmra.mrb[0].mxu0 %v726
        %v799 = vpop.f32.mrb[0].mxu0
        %v800 = vadd.f32 0.0, %v799
        %v801 = vpop.f32.mrb[0].mxu0
        %802 = vdwg.mxu0
        %v803 = vadd.f32 %v703, %v795
        %v804 = vadd.f32 %v708, %v800
        %v805 = vld [vmem:[%s2] sm:$0x1]
        %v807 = vlaneseq
        %v808 = vshrl.u32 %v807, 7
        %v809 = vsub.s32 0, %v808
        %v810 = vrot.slane %v805, %v809
        %v812 = vadd.f32 %v803, %v810
        %v813 = vadd.f32 %v804, %v810
        %v814 = vmax.f32 %v812, 0.0
        %v815 = vmax.f32 %v813, 0.0
        %816 = vst [vmem:[#allocation2] sm:$0x1] 0.0
        %817 = vst [vmem:[#allocation2 + $0x11] sm:$0x1] 0.0
        %818 = vst [vmem:[#allocation2 + $0x1] sm:$0xff] %v814
        %819 = vst [vmem:[#allocation2 + $0x9] sm:$0xff] %v815
        %v820 = vld [vmem:[#allocation2] sm:$0xff]
        %v821 = vld [vmem:[#allocation2 + $0x8] sm:$0xff]
        %v822 = vld [vmem:[#allocation6] sm:$0xff]
        %v823 = vld [vmem:[#allocation6 + $0x8] sm:$0xff]
        %v824 = vld [vmem:[#allocation6 + $0x10] sm:$0xff]
        %v825 = vld [vmem:[#allocation6 + $0x18] sm:$0xff]
        %v826 = vld [vmem:[#allocation6 + $0x20] sm:$0xff]
        %v827 = vld [vmem:[#allocation6 + $0x28] sm:$0xff]
        %v828 = vld [vmem:[#allocation6 + $0x30] sm:$0xff]
        %v829 = vld [vmem:[#allocation6 + $0x38] sm:$0xff]
        %v830 = vld [vmem:[#allocation6 + $0x40] sm:$0xff]
        %v831 = vld [vmem:[#allocation6 + $0x48] sm:$0xff]
        %v832 = vld [vmem:[#allocation6 + $0x50] sm:$0xff]
        %v833 = vld [vmem:[#allocation6 + $0x58] sm:$0xff]
        %v834 = vld [vmem:[#allocation6 + $0x60] sm:$0xff]
        %v835 = vld [vmem:[#allocation6 + $0x68] sm:$0xff]
        %v836 = vld [vmem:[#allocation6 + $0x70] sm:$0xff]
        %v837 = vld [vmem:[#allocation6 + $0x78] sm:$0xff]
        %v838 = vld [vmem:[#allocation6 + $0x80] sm:$0xff]
        %v839 = vld [vmem:[#allocation6 + $0x88] sm:$0xff]
        %v840 = vld [vmem:[#allocation6 + $0x90] sm:$0xff]
        %v841 = vld [vmem:[#allocation6 + $0x98] sm:$0xff]
        %v842 = vld [vmem:[#allocation6 + $0xa0] sm:$0xff]
        %v843 = vld [vmem:[#allocation6 + $0xa8] sm:$0xff]
        %v844 = vld [vmem:[#allocation6 + $0xb0] sm:$0xff]
        %v845 = vld [vmem:[#allocation6 + $0xb8] sm:$0xff]
        %v846 = vld [vmem:[#allocation6 + $0xc0] sm:$0xff]
        %v847 = vld [vmem:[#allocation6 + $0xc8] sm:$0xff]
        %v848 = vld [vmem:[#allocation6 + $0xd0] sm:$0xff]
        %v849 = vld [vmem:[#allocation6 + $0xd8] sm:$0xff]
        %v850 = vld [vmem:[#allocation6 + $0xe0] sm:$0xff]
        %v851 = vld [vmem:[#allocation6 + $0xe8] sm:$0xff]
        %v852 = vld [vmem:[#allocation6 + $0xf0] sm:$0xff]
        %v853 = vld [vmem:[#allocation6 + $0xf8] sm:$0xff]
        %v854 = vld [vmem:[#allocation2 + $0x1] sm:$0xff]
        %v855 = vld [vmem:[#allocation2 + $0x9] sm:$0xff]
        %s856 = scalar_lea.vmem [#allocation6], 256
        %v857 = vld [vmem:[%s856] sm:$0xff]
        %v858 = vld [vmem:[%s856 + $0x8] sm:$0xff]
        %v859 = vld [vmem:[%s856 + $0x10] sm:$0xff]
        %v860 = vld [vmem:[%s856 + $0x18] sm:$0xff]
        %v861 = vld [vmem:[%s856 + $0x20] sm:$0xff]
        %v862 = vld [vmem:[%s856 + $0x28] sm:$0xff]
        %v863 = vld [vmem:[%s856 + $0x30] sm:$0xff]
        %v864 = vld [vmem:[%s856 + $0x38] sm:$0xff]
        %v865 = vld [vmem:[%s856 + $0x40] sm:$0xff]
        %v866 = vld [vmem:[%s856 + $0x48] sm:$0xff]
        %v867 = vld [vmem:[%s856 + $0x50] sm:$0xff]
        %v868 = vld [vmem:[%s856 + $0x58] sm:$0xff]
        %v869 = vld [vmem:[%s856 + $0x60] sm:$0xff]
        %v870 = vld [vmem:[%s856 + $0x68] sm:$0xff]
        %v871 = vld [vmem:[%s856 + $0x70] sm:$0xff]
        %v872 = vld [vmem:[%s856 + $0x78] sm:$0xff]
        %v873 = vld [vmem:[%s856 + $0x80] sm:$0xff]
        %v874 = vld [vmem:[%s856 + $0x88] sm:$0xff]
        %v875 = vld [vmem:[%s856 + $0x90] sm:$0xff]
        %v876 = vld [vmem:[%s856 + $0x98] sm:$0xff]
        %v877 = vld [vmem:[%s856 + $0xa0] sm:$0xff]
        %v878 = vld [vmem:[%s856 + $0xa8] sm:$0xff]
        %v879 = vld [vmem:[%s856 + $0xb0] sm:$0xff]
        %v880 = vld [vmem:[%s856 + $0xb8] sm:$0xff]
        %v881 = vld [vmem:[%s856 + $0xc0] sm:$0xff]
        %v882 = vld [vmem:[%s856 + $0xc8] sm:$0xff]
        %v883 = vld [vmem:[%s856 + $0xd0] sm:$0xff]
        %v884 = vld [vmem:[%s856 + $0xd8] sm:$0xff]
        %v885 = vld [vmem:[%s856 + $0xe0] sm:$0xff]
        %v886 = vld [vmem:[%s856 + $0xe8] sm:$0xff]
        %v887 = vld [vmem:[%s856 + $0xf0] sm:$0xff]
        %v888 = vld [vmem:[%s856 + $0xf8] sm:$0xff]
        %889 = vmatprep.subr.mxu0 %v858
        %890 = vmatpush1.msra.mxu0 %v857
        %891 = vmatprep.subr.mxu0 %v860
        %892 = vmatpush1.msra.mxu0 %v859
        %893 = vmatprep.subr.mxu0 %v862
        %894 = vmatpush1.msra.mxu0 %v861
        %895 = vmatprep.subr.mxu0 %v864
        %896 = vmatpush1.msra.mxu0 %v863
        %897 = vmatprep.subr.mxu0 %v866
        %898 = vmatpush1.msra.mxu0 %v865
        %899 = vmatprep.subr.mxu0 %v868
        %900 = vmatpush1.msra.mxu0 %v867
        %901 = vmatprep.subr.mxu0 %v870
        %902 = vmatpush1.msra.mxu0 %v869
        %903 = vmatprep.subr.mxu0 %v872
        %904 = vmatpush1.msra.mxu0 %v871
        %905 = vmatprep.subr.mxu0 %v874
        %906 = vmatpush1.msra.mxu0 %v873
        %907 = vmatprep.subr.mxu0 %v876
        %908 = vmatpush1.msra.mxu0 %v875
        %909 = vmatprep.subr.mxu0 %v878
        %910 = vmatpush1.msra.mxu0 %v877
        %911 = vmatprep.subr.mxu0 %v880
        %912 = vmatpush1.msra.mxu0 %v879
        %913 = vmatprep.subr.mxu0 %v882
        %914 = vmatpush1.msra.mxu0 %v881
        %915 = vmatprep.subr.mxu0 %v884
        %916 = vmatpush1.msra.mxu0 %v883
        %917 = vmatprep.subr.mxu0 %v886
        %918 = vmatpush1.msra.mxu0 %v885
        %919 = vmatprep.subr.mxu0 %v888
        %920 = vmatpush1.msra.mxu0 %v887
        %921 = vmatprep.subr.mxu0 0.0
        %922 = vmatpush1.msra.mxu0 0.0
        %923 = vmatprep.subr.mxu0 0.0
        %924 = vmatpush1.msra.mxu0 0.0
        %925 = vmatprep.subr.mxu0 0.0
        %926 = vmatpush1.msra.mxu0 0.0
        %927 = vmatprep.subr.mxu0 0.0
        %928 = vmatpush1.msra.mxu0 0.0
        %929 = vmatprep.subr.mxu0 0.0
        %930 = vmatpush1.msra.mxu0 0.0
        %931 = vmatprep.subr.mxu0 0.0
        %932 = vmatpush1.msra.mxu0 0.0
        %933 = vmatprep.subr.mxu0 0.0
        %934 = vmatpush1.msra.mxu0 0.0
        %935 = vmatprep.subr.mxu0 0.0
        %936 = vmatpush1.msra.mxu0 0.0
        %937 = vmatprep.subr.mxu0 0.0
        %938 = vmatpush1.msra.mxu0 0.0
        %939 = vmatprep.subr.mxu0 0.0
        %940 = vmatpush1.msra.mxu0 0.0
        %941 = vmatprep.subr.mxu0 0.0
        %942 = vmatpush1.msra.mxu0 0.0
        %943 = vmatprep.subr.mxu0 0.0
        %944 = vmatpush1.msra.mxu0 0.0
        %945 = vmatprep.subr.mxu0 0.0
        %946 = vmatpush1.msra.mxu0 0.0
        %947 = vmatprep.subr.mxu0 0.0
        %948 = vmatpush1.msra.mxu0 0.0
        %949 = vmatprep.subr.mxu0 0.0
        %950 = vmatpush1.msra.mxu0 0.0
        %951 = vmatprep.subr.mxu0 0.0
        %952 = vmatpush1.msra.mxu0 0.0
        %953 = vmatprep.mubr.f32.mxu0 0.0
        %954 = vmatmul.mubr.f32.gmra.mrb[0].mxu0 %v854
        %v955 = vpop.f32.mrb[0].mxu0
        %v956 = vadd.f32 0.0, %v955
        %v957 = vpop.f32.mrb[0].mxu0
        %v958 = vadd.f32 0.0, %v957
        %959 = vmatprep.mubr.f32.mxu0 0.0
        %960 = vmatmul.mubr.f32.gmra.mrb[0].mxu0 %v855
        %v961 = vpop.f32.mrb[0].mxu0
        %v962 = vadd.f32 0.0, %v961
        %v963 = vpop.f32.mrb[0].mxu0
        %v964 = vadd.f32 0.0, %v963
        %965 = vdwg.mxu0
        %966 = vmatprep.subr.mxu0 %v823
        %967 = vmatpush1.msra.mxu0 %v822
        %968 = vmatprep.subr.mxu0 %v825
        %969 = vmatpush1.msra.mxu0 %v824
        %970 = vmatprep.subr.mxu0 %v827
        %971 = vmatpush1.msra.mxu0 %v826
        %972 = vmatprep.subr.mxu0 %v829
        %973 = vmatpush1.msra.mxu0 %v828
        %974 = vmatprep.subr.mxu0 %v831
        %975 = vmatpush1.msra.mxu0 %v830
        %976 = vmatprep.subr.mxu0 %v833
        %977 = vmatpush1.msra.mxu0 %v832
        %978 = vmatprep.subr.mxu0 %v835
        %979 = vmatpush1.msra.mxu0 %v834
        %980 = vmatprep.subr.mxu0 %v837
        %981 = vmatpush1.msra.mxu0 %v836
        %982 = vmatprep.subr.mxu0 %v839
        %983 = vmatpush1.msra.mxu0 %v838
        %984 = vmatprep.subr.mxu0 %v841
        %985 = vmatpush1.msra.mxu0 %v840
        %986 = vmatprep.subr.mxu0 %v843
        %987 = vmatpush1.msra.mxu0 %v842
        %988 = vmatprep.subr.mxu0 %v845
        %989 = vmatpush1.msra.mxu0 %v844
        %990 = vmatprep.subr.mxu0 %v847
        %991 = vmatpush1.msra.mxu0 %v846
        %992 = vmatprep.subr.mxu0 %v849
        %993 = vmatpush1.msra.mxu0 %v848
        %994 = vmatprep.subr.mxu0 %v851
        %995 = vmatpush1.msra.mxu0 %v850
        %996 = vmatprep.subr.mxu0 %v853
        %997 = vmatpush1.msra.mxu0 %v852
        %998 = vmatprep.subr.mxu0 0.0
        %999 = vmatpush1.msra.mxu0 0.0
        %1000 = vmatprep.subr.mxu0 0.0
        %1001 = vmatpush1.msra.mxu0 0.0
        %1002 = vmatprep.subr.mxu0 0.0
        %1003 = vmatpush1.msra.mxu0 0.0
        %1004 = vmatprep.subr.mxu0 0.0
        %1005 = vmatpush1.msra.mxu0 0.0
        %1006 = vmatprep.subr.mxu0 0.0
        %1007 = vmatpush1.msra.mxu0 0.0
        %1008 = vmatprep.subr.mxu0 0.0
        %1009 = vmatpush1.msra.mxu0 0.0
        %1010 = vmatprep.subr.mxu0 0.0
        %1011 = vmatpush1.msra.mxu0 0.0
        %1012 = vmatprep.subr.mxu0 0.0
        %1013 = vmatpush1.msra.mxu0 0.0
        %1014 = vmatprep.subr.mxu0 0.0
        %1015 = vmatpush1.msra.mxu0 0.0
        %1016 = vmatprep.subr.mxu0 0.0
        %1017 = vmatpush1.msra.mxu0 0.0
        %1018 = vmatprep.subr.mxu0 0.0
        %1019 = vmatpush1.msra.mxu0 0.0
        %1020 = vmatprep.subr.mxu0 0.0
        %1021 = vmatpush1.msra.mxu0 0.0
        %1022 = vmatprep.subr.mxu0 0.0
        %1023 = vmatpush1.msra.mxu0 0.0
        %1024 = vmatprep.subr.mxu0 0.0
        %1025 = vmatpush1.msra.mxu0 0.0
        %1026 = vmatprep.subr.mxu0 0.0
        %1027 = vmatpush1.msra.mxu0 0.0
        %1028 = vmatprep.subr.mxu0 0.0
        %1029 = vmatpush1.msra.mxu0 0.0
        %1030 = vmatprep.mubr.f32.mxu0 0.0
        %1031 = vmatmul.mubr.f32.gmra.mrb[0].mxu0 %v820
        %v1032 = vpop.f32.mrb[0].mxu0
        %v1033 = vadd.f32 %v956, %v1032
        %v1034 = vpop.f32.mrb[0].mxu0
        %v1035 = vadd.f32 %v958, %v1034
        %1036 = vmatprep.mubr.f32.mxu0 0.0
        %1037 = vmatmul.mubr.f32.gmra.mrb[0].mxu0 %v821
        %v1038 = vpop.f32.mrb[0].mxu0
        %v1039 = vadd.f32 %v962, %v1038
        %v1040 = vpop.f32.mrb[0].mxu0
        %v1041 = vadd.f32 %v964, %v1040
        %1042 = vdwg.mxu0
        %v1043 = vld [vmem:[#allocation2 + $0x2] sm:$0xff]
        %v1044 = vld [vmem:[#allocation2 + $0xa] sm:$0xff]
        %s1045 = scalar_lea.vmem [#allocation6], 512
        %v1046 = vld [vmem:[%s1045] sm:$0xff]
        %v1047 = vld [vmem:[%s1045 + $0x8] sm:$0xff]
        %v1048 = vld [vmem:[%s1045 + $0x10] sm:$0xff]
        %v1049 = vld [vmem:[%s1045 + $0x18] sm:$0xff]
        %v1050 = vld [vmem:[%s1045 + $0x20] sm:$0xff]
        %v1051 = vld [vmem:[%s1045 + $0x28] sm:$0xff]
        %v1052 = vld [vmem:[%s1045 + $0x30] sm:$0xff]
        %v1053 = vld [vmem:[%s1045 + $0x38] sm:$0xff]
        %v1054 = vld [vmem:[%s1045 + $0x40] sm:$0xff]
        %v1055 = vld [vmem:[%s1045 + $0x48] sm:$0xff]
        %v1056 = vld [vmem:[%s1045 + $0x50] sm:$0xff]
        %v1057 = vld [vmem:[%s1045 + $0x58] sm:$0xff]
        %v1058 = vld [vmem:[%s1045 + $0x60] sm:$0xff]
        %v1059 = vld [vmem:[%s1045 + $0x68] sm:$0xff]
        %v1060 = vld [vmem:[%s1045 + $0x70] sm:$0xff]
        %v1061 = vld [vmem:[%s1045 + $0x78] sm:$0xff]
        %v1062 = vld [vmem:[%s1045 + $0x80] sm:$0xff]
        %v1063 = vld [vmem:[%s1045 + $0x88] sm:$0xff]
        %v1064 = vld [vmem:[%s1045 + $0x90] sm:$0xff]
        %v1065 = vld [vmem:[%s1045 + $0x98] sm:$0xff]
        %v1066 = vld [vmem:[%s1045 + $0xa0] sm:$0xff]
        %v1067 = vld [vmem:[%s1045 + $0xa8] sm:$0xff]
        %v1068 = vld [vmem:[%s1045 + $0xb0] sm:$0xff]
        %v1069 = vld [vmem:[%s1045 + $0xb8] sm:$0xff]
        %v1070 = vld [vmem:[%s1045 + $0xc0] sm:$0xff]
        %v1071 = vld [vmem:[%s1045 + $0xc8] sm:$0xff]
        %v1072 = vld [vmem:[%s1045 + $0xd0] sm:$0xff]
        %v1073 = vld [vmem:[%s1045 + $0xd8] sm:$0xff]
        %v1074 = vld [vmem:[%s1045 + $0xe0] sm:$0xff]
        %v1075 = vld [vmem:[%s1045 + $0xe8] sm:$0xff]
        %v1076 = vld [vmem:[%s1045 + $0xf0] sm:$0xff]
        %v1077 = vld [vmem:[%s1045 + $0xf8] sm:$0xff]
        %1078 = vmatprep.subr.mxu0 %v1047
        %1079 = vmatpush1.msra.mxu0 %v1046
        %1080 = vmatprep.subr.mxu0 %v1049
        %1081 = vmatpush1.msra.mxu0 %v1048
        %1082 = vmatprep.subr.mxu0 %v1051
        %1083 = vmatpush1.msra.mxu0 %v1050
        %1084 = vmatprep.subr.mxu0 %v1053
        %1085 = vmatpush1.msra.mxu0 %v1052
        %1086 = vmatprep.subr.mxu0 %v1055
        %1087 = vmatpush1.msra.mxu0 %v1054
        %1088 = vmatprep.subr.mxu0 %v1057
        %1089 = vmatpush1.msra.mxu0 %v1056
        %1090 = vmatprep.subr.mxu0 %v1059
        %1091 = vmatpush1.msra.mxu0 %v1058
        %1092 = vmatprep.subr.mxu0 %v1061
        %1093 = vmatpush1.msra.mxu0 %v1060
        %1094 = vmatprep.subr.mxu0 %v1063
        %1095 = vmatpush1.msra.mxu0 %v1062
        %1096 = vmatprep.subr.mxu0 %v1065
        %1097 = vmatpush1.msra.mxu0 %v1064
        %1098 = vmatprep.subr.mxu0 %v1067
        %1099 = vmatpush1.msra.mxu0 %v1066
        %1100 = vmatprep.subr.mxu0 %v1069
        %1101 = vmatpush1.msra.mxu0 %v1068
        %1102 = vmatprep.subr.mxu0 %v1071
        %1103 = vmatpush1.msra.mxu0 %v1070
        %1104 = vmatprep.subr.mxu0 %v1073
        %1105 = vmatpush1.msra.mxu0 %v1072
        %1106 = vmatprep.subr.mxu0 %v1075
        %1107 = vmatpush1.msra.mxu0 %v1074
        %1108 = vmatprep.subr.mxu0 %v1077
        %1109 = vmatpush1.msra.mxu0 %v1076
        %1110 = vmatprep.subr.mxu0 0.0
        %1111 = vmatpush1.msra.mxu0 0.0
        %1112 = vmatprep.subr.mxu0 0.0
        %1113 = vmatpush1.msra.mxu0 0.0
        %1114 = vmatprep.subr.mxu0 0.0
        %1115 = vmatpush1.msra.mxu0 0.0
        %1116 = vmatprep.subr.mxu0 0.0
        %1117 = vmatpush1.msra.mxu0 0.0
        %1118 = vmatprep.subr.mxu0 0.0
        %1119 = vmatpush1.msra.mxu0 0.0
        %1120 = vmatprep.subr.mxu0 0.0
        %1121 = vmatpush1.msra.mxu0 0.0
        %1122 = vmatprep.subr.mxu0 0.0
        %1123 = vmatpush1.msra.mxu0 0.0
        %1124 = vmatprep.subr.mxu0 0.0
        %1125 = vmatpush1.msra.mxu0 0.0
        %1126 = vmatprep.subr.mxu0 0.0
        %1127 = vmatpush1.msra.mxu0 0.0
        %1128 = vmatprep.subr.mxu0 0.0
        %1129 = vmatpush1.msra.mxu0 0.0
        %1130 = vmatprep.subr.mxu0 0.0
        %1131 = vmatpush1.msra.mxu0 0.0
        %1132 = vmatprep.subr.mxu0 0.0
        %1133 = vmatpush1.msra.mxu0 0.0
        %1134 = vmatprep.subr.mxu0 0.0
        %1135 = vmatpush1.msra.mxu0 0.0
        %1136 = vmatprep.subr.mxu0 0.0
        %1137 = vmatpush1.msra.mxu0 0.0
        %1138 = vmatprep.subr.mxu0 0.0
        %1139 = vmatpush1.msra.mxu0 0.0
        %1140 = vmatprep.subr.mxu0 0.0
        %1141 = vmatpush1.msra.mxu0 0.0
        %1142 = vmatprep.mubr.f32.mxu0 0.0
        %1143 = vmatmul.mubr.f32.gmra.mrb[0].mxu0 %v1043
        %v1144 = vpop.f32.mrb[0].mxu0
        %v1145 = vadd.f32 0.0, %v1144
        %v1146 = vpop.f32.mrb[0].mxu0
        %v1147 = vadd.f32 0.0, %v1146
        %1148 = vmatprep.mubr.f32.mxu0 0.0
        %1149 = vmatmul.mubr.f32.gmra.mrb[0].mxu0 %v1044
        %v1150 = vpop.f32.mrb[0].mxu0
        %v1151 = vadd.f32 0.0, %v1150
        %v1152 = vpop.f32.mrb[0].mxu0
        %v1153 = vadd.f32 0.0, %v1152
        %1154 = vdwg.mxu0
        %v1155 = vadd.f32 %v1033, %v1145
        %v1156 = vadd.f32 %v1035, %v1147
        %v1157 = vadd.f32 %v1039, %v1151
        %v1158 = vadd.f32 %v1041, %v1153
        %v1159 = vld [vmem:[%s4] sm:$0x3]
        %v1161 = vlaneseq
        %v1162 = vshrl.u32 %v1161, 7
        %v1163 = vsub.s32 0, %v1162
        %v1164 = vrot.slane %v1159, %v1163
        %v1165 = vlaneseq
        %v1166 = vshrl.u32 %v1165, 7
        %v1167 = vsub.s32 1, %v1166
        %v1168 = vrot.slane %v1159, %v1167
        %v1171 = vadd.f32 %v1155, %v1164
        %v1172 = vadd.f32 %v1156, %v1168
        %v1173 = vadd.f32 %v1157, %v1164
        %v1174 = vadd.f32 %v1158, %v1168
        %v1175 = vmax.f32 %v1171, 0.0
        %v1176 = vmax.f32 %v1172, 0.0
        %v1177 = vmax.f32 %v1173, 0.0
        %v1178 = vmax.f32 %v1174, 0.0
        %v1183 = vcombine.low %v1175, %v1176
        %v1184 = vcombine.high %v1175, %v1176
        %v1186 = vunpack.c.l.s4 1983009808
        %v1187 = vunpack.c.0.s8 %v1186
        %v1188 = vlaneseq
        %v1189 = vshrl.u32 %v1188, 7
        %v1190 = vsub.s32 %v1187, %v1189
        %v1191 = vrot.slane %v1183, %v1190
        %v1193 = vunpack.c.l.s4 1983009808
        %v1194 = vunpack.c.0.s8 %v1193
        %v1195 = vlaneseq
        %v1196 = vshrl.u32 %v1195, 7
        %v1197 = vsub.s32 %v1194, %v1196
        %v1198 = vrot.slane %v1184, %v1197
        %v1199 = vcombine.high %v1191, %v1191
        %v1200 = vcombine.high %v1198, %v1198
        %v1201 = vcombine.low %v1177, %v1178
        %v1202 = vcombine.high %v1177, %v1178
        %v1204 = vunpack.c.l.s4 1983009808
        %v1205 = vunpack.c.0.s8 %v1204
        %v1206 = vlaneseq
        %v1207 = vshrl.u32 %v1206, 7
        %v1208 = vsub.s32 %v1205, %v1207
        %v1209 = vrot.slane %v1201, %v1208
        %v1211 = vunpack.c.l.s4 1983009808
        %v1212 = vunpack.c.0.s8 %v1211
        %v1213 = vlaneseq
        %v1214 = vshrl.u32 %v1213, 7
        %v1215 = vsub.s32 %v1212, %v1214
        %v1216 = vrot.slane %v1202, %v1215
        %v1217 = vcombine.high %v1209, %v1209
        %v1218 = vcombine.high %v1216, %v1216
        %v1227 = vrot.slane %v1191, 7
        %v1228 = vrot.slane %v1227, 2
        %v1229 = vrot.slane %v1199, 7
        %v1230 = vrot.slane %v1229, 2
        %v1231 = vrot.slane %v1198, 7
        %v1232 = vrot.slane %v1231, 2
        %v1233 = vrot.slane %v1200, 7
        %v1234 = vrot.slane %v1233, 2
        %v1235 = vrot.slane %v1209, 7
        %v1236 = vrot.slane %v1235, 2
        %v1237 = vrot.slane %v1217, 7
        %v1238 = vrot.slane %v1237, 2
        %v1239 = vrot.slane %v1216, 7
        %v1240 = vrot.slane %v1239, 2
        %v1241 = vrot.slane %v1218, 7
        %v1242 = vrot.slane %v1241, 2
        %v1251 = vmax.f32 %v1191, %v1228
        %v1252 = vmax.f32 %v1199, %v1230
        %v1253 = vmax.f32 %v1198, %v1232
        %v1254 = vmax.f32 %v1200, %v1234
        %v1255 = vmax.f32 %v1209, %v1236
        %v1256 = vmax.f32 %v1217, %v1238
        %v1257 = vmax.f32 %v1216, %v1240
        %v1258 = vmax.f32 %v1218, %v1242
        %v1259 = vld [vmem:[#allocation8] sm:$0xff]
        %v1260 = vld [vmem:[#allocation8 + $0x8] sm:$0xff]
        %v1261 = vld [vmem:[#allocation8 + $0x10] sm:$0xff]
        %v1262 = vld [vmem:[#allocation8 + $0x18] sm:$0xff]
        %v1263 = vld [vmem:[#allocation8 + $0x20] sm:$0xff]
        %v1264 = vld [vmem:[#allocation8 + $0x28] sm:$0xff]
        %v1265 = vld [vmem:[#allocation8 + $0x30] sm:$0xff]
        %v1266 = vld [vmem:[#allocation8 + $0x38] sm:$0xff]
        %v1267 = vld [vmem:[#allocation8 + $0x40] sm:$0xff]
        %v1268 = vld [vmem:[#allocation8 + $0x48] sm:$0xff]
        %v1269 = vld [vmem:[#allocation8 + $0x50] sm:$0xff]
        %v1270 = vld [vmem:[#allocation8 + $0x58] sm:$0xff]
        %v1271 = vld [vmem:[#allocation8 + $0x60] sm:$0xff]
        %v1272 = vld [vmem:[#allocation8 + $0x68] sm:$0xff]
        %v1273 = vld [vmem:[#allocation8 + $0x70] sm:$0xff]
        %v1274 = vld [vmem:[#allocation8 + $0x78] sm:$0xff]
        %v1275 = vld [vmem:[#allocation8 + $0x80] sm:$0xff]
        %v1276 = vld [vmem:[#allocation8 + $0x88] sm:$0xff]
        %v1277 = vld [vmem:[#allocation8 + $0x90] sm:$0xff]
        %v1278 = vld [vmem:[#allocation8 + $0x98] sm:$0xff]
        %v1279 = vld [vmem:[#allocation8 + $0xa0] sm:$0xff]
        %v1280 = vld [vmem:[#allocation8 + $0xa8] sm:$0xff]
        %v1281 = vld [vmem:[#allocation8 + $0xb0] sm:$0xff]
        %v1282 = vld [vmem:[#allocation8 + $0xb8] sm:$0xff]
        %v1283 = vld [vmem:[#allocation8 + $0xc0] sm:$0xff]
        %v1284 = vld [vmem:[#allocation8 + $0xc8] sm:$0xff]
        %v1285 = vld [vmem:[#allocation8 + $0xd0] sm:$0xff]
        %v1286 = vld [vmem:[#allocation8 + $0xd8] sm:$0xff]
        %v1287 = vld [vmem:[#allocation8 + $0xe0] sm:$0xff]
        %v1288 = vld [vmem:[#allocation8 + $0xe8] sm:$0xff]
        %v1289 = vld [vmem:[#allocation8 + $0xf0] sm:$0xff]
        %v1290 = vld [vmem:[#allocation8 + $0xf8] sm:$0xff]
        %v1299 = vlaneseq
        %v1300 = vshrl.u32 %v1299, 7
        %v1301 = vsub.s32 0, %v1300
        %v1302 = vrot.slane %v1251, %v1301
        %v1303 = vlaneseq
        %v1304 = vshrl.u32 %v1303, 7
        %v1305 = vsub.s32 2, %v1304
        %v1306 = vrot.slane %v1251, %v1305
        %v1307 = vlaneseq
        %v1308 = vshrl.u32 %v1307, 7
        %v1309 = vsub.s32 0, %v1308
        %v1310 = vrot.slane %v1252, %v1309
        %v1311 = vlaneseq
        %v1312 = vshrl.u32 %v1311, 7
        %v1313 = vsub.s32 2, %v1312
        %v1314 = vrot.slane %v1252, %v1313
        %v1315 = vlaneseq
        %v1316 = vshrl.u32 %v1315, 7
        %v1317 = vsub.s32 0, %v1316
        %v1318 = vrot.slane %v1253, %v1317
        %v1319 = vlaneseq
        %v1320 = vshrl.u32 %v1319, 7
        %v1321 = vsub.s32 2, %v1320
        %v1322 = vrot.slane %v1253, %v1321
        %v1323 = vlaneseq
        %v1324 = vshrl.u32 %v1323, 7
        %v1325 = vsub.s32 0, %v1324
        %v1326 = vrot.slane %v1254, %v1325
        %v1327 = vlaneseq
        %v1328 = vshrl.u32 %v1327, 7
        %v1329 = vsub.s32 2, %v1328
        %v1330 = vrot.slane %v1254, %v1329
        %v1331 = vlaneseq
        %v1332 = vshrl.u32 %v1331, 7
        %v1333 = vsub.s32 0, %v1332
        %v1334 = vrot.slane %v1255, %v1333
        %v1335 = vlaneseq
        %v1336 = vshrl.u32 %v1335, 7
        %v1337 = vsub.s32 2, %v1336
        %v1338 = vrot.slane %v1255, %v1337
        %v1339 = vlaneseq
        %v1340 = vshrl.u32 %v1339, 7
        %v1341 = vsub.s32 0, %v1340
        %v1342 = vrot.slane %v1256, %v1341
        %v1343 = vlaneseq
        %v1344 = vshrl.u32 %v1343, 7
        %v1345 = vsub.s32 2, %v1344
        %v1346 = vrot.slane %v1256, %v1345
        %v1347 = vlaneseq
        %v1348 = vshrl.u32 %v1347, 7
        %v1349 = vsub.s32 0, %v1348
        %v1350 = vrot.slane %v1257, %v1349
        %v1351 = vlaneseq
        %v1352 = vshrl.u32 %v1351, 7
        %v1353 = vsub.s32 2, %v1352
        %v1354 = vrot.slane %v1257, %v1353
        %v1355 = vlaneseq
        %v1356 = vshrl.u32 %v1355, 7
        %v1357 = vsub.s32 0, %v1356
        %v1358 = vrot.slane %v1258, %v1357
        %v1359 = vlaneseq
        %v1360 = vshrl.u32 %v1359, 7
        %v1361 = vsub.s32 2, %v1360
        %v1362 = vrot.slane %v1258, %v1361
        %vm1363 = vcmask 1041409
        %v1364 = vsel %vm1363, %v1310, %v1302
        %vm1365 = vcmask 1042434
        %v1366 = vsel %vm1365, %v1318, %v1364
        %vm1367 = vcmask 1043459
        %v1368 = vsel %vm1367, %v1326, %v1366
        %vm1369 = vcmask 1044484
        %v1370 = vsel %vm1369, %v1334, %v1368
        %vm1371 = vcmask 1045509
        %v1372 = vsel %vm1371, %v1342, %v1370
        %vm1373 = vcmask 1046534
        %v1374 = vsel %vm1373, %v1350, %v1372
        %vm1375 = vcmask 1047559
        %v1376 = vsel %vm1375, %v1358, %v1374
        %v1377 = vsel %vm1363, %v1314, %v1306
        %v1378 = vsel %vm1365, %v1322, %v1377
        %v1379 = vsel %vm1367, %v1330, %v1378
        %v1380 = vsel %vm1369, %v1338, %v1379
        %v1381 = vsel %vm1371, %v1346, %v1380
        %v1382 = vsel %vm1373, %v1354, %v1381
        %v1383 = vsel %vm1375, %v1362, %v1382
        %1386 = vmatprep.subr.mxu0 0.0
        %1387 = vmatpush1.msra.mxu0 %v1259
        %1388 = vmatprep.subr.mxu0 0.0
        %1389 = vmatpush1.msra.mxu0 %v1260
        %1390 = vmatprep.subr.mxu0 0.0
        %1391 = vmatpush1.msra.mxu0 %v1261
        %1392 = vmatprep.subr.mxu0 0.0
        %1393 = vmatpush1.msra.mxu0 %v1262
        %1394 = vmatprep.subr.mxu0 0.0
        %1395 = vmatpush1.msra.mxu0 %v1263
        %1396 = vmatprep.subr.mxu0 0.0
        %1397 = vmatpush1.msra.mxu0 %v1264
        %1398 = vmatprep.subr.mxu0 0.0
        %1399 = vmatpush1.msra.mxu0 %v1265
        %1400 = vmatprep.subr.mxu0 0.0
        %1401 = vmatpush1.msra.mxu0 %v1266
        %1402 = vmatprep.subr.mxu0 0.0
        %1403 = vmatpush1.msra.mxu0 %v1267
        %1404 = vmatprep.subr.mxu0 0.0
        %1405 = vmatpush1.msra.mxu0 %v1268
        %1406 = vmatprep.subr.mxu0 0.0
        %1407 = vmatpush1.msra.mxu0 %v1269
        %1408 = vmatprep.subr.mxu0 0.0
        %1409 = vmatpush1.msra.mxu0 %v1270
        %1410 = vmatprep.subr.mxu0 0.0
        %1411 = vmatpush1.msra.mxu0 %v1271
        %1412 = vmatprep.subr.mxu0 0.0
        %1413 = vmatpush1.msra.mxu0 %v1272
        %1414 = vmatprep.subr.mxu0 0.0
        %1415 = vmatpush1.msra.mxu0 %v1273
        %1416 = vmatprep.subr.mxu0 0.0
        %1417 = vmatpush1.msra.mxu0 %v1274
        %1418 = vmatprep.subr.mxu0 0.0
        %1419 = vmatpush1.msra.mxu0 %v1275
        %1420 = vmatprep.subr.mxu0 0.0
        %1421 = vmatpush1.msra.mxu0 %v1276
        %1422 = vmatprep.subr.mxu0 0.0
        %1423 = vmatpush1.msra.mxu0 %v1277
        %1424 = vmatprep.subr.mxu0 0.0
        %1425 = vmatpush1.msra.mxu0 %v1278
        %1426 = vmatprep.subr.mxu0 0.0
        %1427 = vmatpush1.msra.mxu0 %v1279
        %1428 = vmatprep.subr.mxu0 0.0
        %1429 = vmatpush1.msra.mxu0 %v1280
        %1430 = vmatprep.subr.mxu0 0.0
        %1431 = vmatpush1.msra.mxu0 %v1281
        %1432 = vmatprep.subr.mxu0 0.0
        %1433 = vmatpush1.msra.mxu0 %v1282
        %1434 = vmatprep.subr.mxu0 0.0
        %1435 = vmatpush1.msra.mxu0 %v1283
        %1436 = vmatprep.subr.mxu0 0.0
        %1437 = vmatpush1.msra.mxu0 %v1284
        %1438 = vmatprep.subr.mxu0 0.0
        %1439 = vmatpush1.msra.mxu0 %v1285
        %1440 = vmatprep.subr.mxu0 0.0
        %1441 = vmatpush1.msra.mxu0 %v1286
        %1442 = vmatprep.subr.mxu0 0.0
        %1443 = vmatpush1.msra.mxu0 %v1287
        %1444 = vmatprep.subr.mxu0 0.0
        %1445 = vmatpush1.msra.mxu0 %v1288
        %1446 = vmatprep.subr.mxu0 0.0
        %1447 = vmatpush1.msra.mxu0 %v1289
        %1448 = vmatprep.subr.mxu0 0.0
        %1449 = vmatpush1.msra.mxu0 %v1290
        %1450 = vmatprep.mubr.f32.mxu0 %v1383
        %1451 = vmatmul.mubr.f32.gmra.mrb[0].mxu0 %v1376
        %v1452 = vpop.f32.mrb[0].mxu0
        %v1453 = vadd.f32 0.0, %v1452
        %v1454 = vpop.f32.mrb[0].mxu0
        %1455 = vdwg.mxu0
        %v1456 = vld [vmem:[#allocation9] sm:$0xff]
        %v1457 = vld [vmem:[#allocation9 + $0x8] sm:$0xff]
        %v1458 = vld [vmem:[#allocation9 + $0x10] sm:$0xff]
        %v1459 = vld [vmem:[#allocation9 + $0x18] sm:$0xff]
        %v1460 = vld [vmem:[#allocation9 + $0x20] sm:$0xff]
        %v1461 = vld [vmem:[#allocation9 + $0x28] sm:$0xff]
        %v1462 = vld [vmem:[#allocation9 + $0x30] sm:$0xff]
        %v1463 = vld [vmem:[#allocation9 + $0x38] sm:$0xff]
        %v1464 = vld [vmem:[#allocation9 + $0x40] sm:$0xff]
        %v1465 = vld [vmem:[#allocation9 + $0x48] sm:$0xff]
        %v1466 = vld [vmem:[#allocation9 + $0x50] sm:$0xff]
        %v1467 = vld [vmem:[#allocation9 + $0x58] sm:$0xff]
        %v1468 = vld [vmem:[#allocation9 + $0x60] sm:$0xff]
        %v1469 = vld [vmem:[#allocation9 + $0x68] sm:$0xff]
        %v1470 = vld [vmem:[#allocation9 + $0x70] sm:$0xff]
        %v1471 = vld [vmem:[#allocation9 + $0x78] sm:$0xff]
        %v1472 = vld [vmem:[#allocation9 + $0x80] sm:$0xff]
        %v1473 = vld [vmem:[#allocation9 + $0x88] sm:$0xff]
        %v1474 = vld [vmem:[#allocation9 + $0x90] sm:$0xff]
        %v1475 = vld [vmem:[#allocation9 + $0x98] sm:$0xff]
        %v1476 = vld [vmem:[#allocation9 + $0xa0] sm:$0xff]
        %v1477 = vld [vmem:[#allocation9 + $0xa8] sm:$0xff]
        %v1478 = vld [vmem:[#allocation9 + $0xb0] sm:$0xff]
        %v1479 = vld [vmem:[#allocation9 + $0xb8] sm:$0xff]
        %v1480 = vld [vmem:[#allocation9 + $0xc0] sm:$0xff]
        %v1481 = vld [vmem:[#allocation9 + $0xc8] sm:$0xff]
        %v1482 = vld [vmem:[#allocation9 + $0xd0] sm:$0xff]
        %v1483 = vld [vmem:[#allocation9 + $0xd8] sm:$0xff]
        %v1484 = vld [vmem:[#allocation9 + $0xe0] sm:$0xff]
        %v1485 = vld [vmem:[#allocation9 + $0xe8] sm:$0xff]
        %v1486 = vld [vmem:[#allocation9 + $0xf0] sm:$0xff]
        %v1487 = vld [vmem:[#allocation9 + $0xf8] sm:$0xff]
        %1488 = vmatprep.subr.mxu0 0.0
        %1489 = vmatpush1.msra.mxu0 %v1456
        %1490 = vmatprep.subr.mxu0 0.0
        %1491 = vmatpush1.msra.mxu0 %v1457
        %1492 = vmatprep.subr.mxu0 0.0
        %1493 = vmatpush1.msra.mxu0 %v1458
        %1494 = vmatprep.subr.mxu0 0.0
        %1495 = vmatpush1.msra.mxu0 %v1459
        %1496 = vmatprep.subr.mxu0 0.0
        %1497 = vmatpush1.msra.mxu0 %v1460
        %1498 = vmatprep.subr.mxu0 0.0
        %1499 = vmatpush1.msra.mxu0 %v1461
        %1500 = vmatprep.subr.mxu0 0.0
        %1501 = vmatpush1.msra.mxu0 %v1462
        %1502 = vmatprep.subr.mxu0 0.0
        %1503 = vmatpush1.msra.mxu0 %v1463
        %1504 = vmatprep.subr.mxu0 0.0
        %1505 = vmatpush1.msra.mxu0 %v1464
        %1506 = vmatprep.subr.mxu0 0.0
        %1507 = vmatpush1.msra.mxu0 %v1465
        %1508 = vmatprep.subr.mxu0 0.0
        %1509 = vmatpush1.msra.mxu0 %v1466
        %1510 = vmatprep.subr.mxu0 0.0
        %1511 = vmatpush1.msra.mxu0 %v1467
        %1512 = vmatprep.subr.mxu0 0.0
        %1513 = vmatpush1.msra.mxu0 %v1468
        %1514 = vmatprep.subr.mxu0 0.0
        %1515 = vmatpush1.msra.mxu0 %v1469
        %1516 = vmatprep.subr.mxu0 0.0
        %1517 = vmatpush1.msra.mxu0 %v1470
        %1518 = vmatprep.subr.mxu0 0.0
        %1519 = vmatpush1.msra.mxu0 %v1471
        %1520 = vmatprep.subr.mxu0 0.0
        %1521 = vmatpush1.msra.mxu0 %v1472
        %1522 = vmatprep.subr.mxu0 0.0
        %1523 = vmatpush1.msra.mxu0 %v1473
        %1524 = vmatprep.subr.mxu0 0.0
        %1525 = vmatpush1.msra.mxu0 %v1474
        %1526 = vmatprep.subr.mxu0 0.0
        %1527 = vmatpush1.msra.mxu0 %v1475
        %1528 = vmatprep.subr.mxu0 0.0
        %1529 = vmatpush1.msra.mxu0 %v1476
        %1530 = vmatprep.subr.mxu0 0.0
        %1531 = vmatpush1.msra.mxu0 %v1477
        %1532 = vmatprep.subr.mxu0 0.0
        %1533 = vmatpush1.msra.mxu0 %v1478
        %1534 = vmatprep.subr.mxu0 0.0
        %1535 = vmatpush1.msra.mxu0 %v1479
        %1536 = vmatprep.subr.mxu0 0.0
        %1537 = vmatpush1.msra.mxu0 %v1480
        %1538 = vmatprep.subr.mxu0 0.0
        %1539 = vmatpush1.msra.mxu0 %v1481
        %1540 = vmatprep.subr.mxu0 0.0
        %1541 = vmatpush1.msra.mxu0 %v1482
        %1542 = vmatprep.subr.mxu0 0.0
        %1543 = vmatpush1.msra.mxu0 %v1483
        %1544 = vmatprep.subr.mxu0 0.0
        %1545 = vmatpush1.msra.mxu0 %v1484
        %1546 = vmatprep.subr.mxu0 0.0
        %1547 = vmatpush1.msra.mxu0 %v1485
        %1548 = vmatprep.subr.mxu0 0.0
        %1549 = vmatpush1.msra.mxu0 %v1486
        %1550 = vmatprep.subr.mxu0 0.0
        %1551 = vmatpush1.msra.mxu0 %v1487
        %1552 = vmatprep.mubr.f32.mxu0 %v1383
        %1553 = vmatmul.mubr.f32.gmra.mrb[0].mxu0 %v1376
        %v1554 = vpop.f32.mrb[0].mxu0
        %v1555 = vadd.f32 0.0, %v1554
        %v1556 = vpop.f32.mrb[0].mxu0
        %1557 = vdwg.mxu0
        %v1558 = vmax.f32 %v1453, %v1555
        %v1559 = vpack.c.bf16 %v1558, %v1558
        %v1560 = vld [vmem:[%s7] sm:$0xff]
        %v1561 = vld [vmem:[%s7 + $0x8] sm:$0xff]
        %v1562 = vld [vmem:[%s7 + $0x10] sm:$0xff]
        %v1563 = vld [vmem:[%s7 + $0x18] sm:$0xff]
        %v1564 = vld [vmem:[%s7 + $0x20] sm:$0xff]
        %v1565 = vld [vmem:[%s7 + $0x28] sm:$0xff]
        %v1566 = vld [vmem:[%s7 + $0x30] sm:$0xff]
        %v1567 = vld [vmem:[%s7 + $0x38] sm:$0xff]
        %v1568 = vld [vmem:[%s7 + $0x40] sm:$0xff]
        %v1569 = vld [vmem:[%s7 + $0x48] sm:$0xff]
        %v1570 = vld [vmem:[%s7 + $0x50] sm:$0xff]
        %v1571 = vld [vmem:[%s7 + $0x58] sm:$0xff]
        %v1572 = vld [vmem:[%s7 + $0x60] sm:$0xff]
        %v1573 = vld [vmem:[%s7 + $0x68] sm:$0xff]
        %v1574 = vld [vmem:[%s7 + $0x70] sm:$0xff]
        %v1575 = vld [vmem:[%s7 + $0x78] sm:$0xff]
        %v1576 = vld [vmem:[%s7 + $0x80] sm:$0xff]
        %v1577 = vld [vmem:[%s7 + $0x88] sm:$0xff]
        %v1578 = vld [vmem:[%s7 + $0x90] sm:$0xff]
        %v1579 = vld [vmem:[%s7 + $0x98] sm:$0xff]
        %v1580 = vld [vmem:[%s7 + $0xa0] sm:$0xff]
        %v1581 = vld [vmem:[%s7 + $0xa8] sm:$0xff]
        %v1582 = vld [vmem:[%s7 + $0xb0] sm:$0xff]
        %v1583 = vld [vmem:[%s7 + $0xb8] sm:$0xff]
        %v1584 = vld [vmem:[%s7 + $0xc0] sm:$0xff]
        %v1585 = vld [vmem:[%s7 + $0xc8] sm:$0xff]
        %v1586 = vld [vmem:[%s7 + $0xd0] sm:$0xff]
        %v1587 = vld [vmem:[%s7 + $0xd8] sm:$0xff]
        %v1588 = vld [vmem:[%s7 + $0xe0] sm:$0xff]
        %v1589 = vld [vmem:[%s7 + $0xe8] sm:$0xff]
        %v1590 = vld [vmem:[%s7 + $0xf0] sm:$0xff]
        %v1591 = vld [vmem:[%s7 + $0xf8] sm:$0xff]
        %v1592 = vld [vmem:[%s7 + $0x100] sm:$0xff]
        %v1593 = vld [vmem:[%s7 + $0x108] sm:$0xff]
        %v1594 = vld [vmem:[%s7 + $0x110] sm:$0xff]
        %v1595 = vld [vmem:[%s7 + $0x118] sm:$0xff]
        %v1596 = vld [vmem:[%s7 + $0x120] sm:$0xff]
        %v1597 = vld [vmem:[%s7 + $0x128] sm:$0xff]
        %v1598 = vld [vmem:[%s7 + $0x130] sm:$0xff]
        %v1599 = vld [vmem:[%s7 + $0x138] sm:$0xff]
        %v1600 = vld [vmem:[%s7 + $0x140] sm:$0xff]
        %v1601 = vld [vmem:[%s7 + $0x148] sm:$0xff]
        %v1602 = vld [vmem:[%s7 + $0x150] sm:$0xff]
        %v1603 = vld [vmem:[%s7 + $0x158] sm:$0xff]
        %v1604 = vld [vmem:[%s7 + $0x160] sm:$0xff]
        %v1605 = vld [vmem:[%s7 + $0x168] sm:$0xff]
        %v1606 = vld [vmem:[%s7 + $0x170] sm:$0xff]
        %v1607 = vld [vmem:[%s7 + $0x178] sm:$0xff]
        %v1608 = vld [vmem:[%s7 + $0x180] sm:$0xff]
        %v1609 = vld [vmem:[%s7 + $0x188] sm:$0xff]
        %v1610 = vld [vmem:[%s7 + $0x190] sm:$0xff]
        %v1611 = vld [vmem:[%s7 + $0x198] sm:$0xff]
        %v1612 = vld [vmem:[%s7 + $0x1a0] sm:$0xff]
        %v1613 = vld [vmem:[%s7 + $0x1a8] sm:$0xff]
        %v1614 = vld [vmem:[%s7 + $0x1b0] sm:$0xff]
        %v1615 = vld [vmem:[%s7 + $0x1b8] sm:$0xff]
        %v1616 = vld [vmem:[%s7 + $0x1c0] sm:$0xff]
        %v1617 = vld [vmem:[%s7 + $0x1c8] sm:$0xff]
        %v1618 = vld [vmem:[%s7 + $0x1d0] sm:$0xff]
        %v1619 = vld [vmem:[%s7 + $0x1d8] sm:$0xff]
        %v1620 = vld [vmem:[%s7 + $0x1e0] sm:$0xff]
        %v1621 = vld [vmem:[%s7 + $0x1e8] sm:$0xff]
        %v1622 = vld [vmem:[%s7 + $0x1f0] sm:$0xff]
        %v1623 = vld [vmem:[%s7 + $0x1f8] sm:$0xff]
        %v1688 = vunpack.c.l.b16 %v1560
        %v1689 = vunpack.c.h.b16 %v1560
        %v1690 = vunpack.c.l.b16 %v1561
        %v1691 = vunpack.c.h.b16 %v1561
        %v1692 = vunpack.c.l.b16 %v1562
        %v1693 = vunpack.c.h.b16 %v1562
        %v1694 = vunpack.c.l.b16 %v1563
        %v1695 = vunpack.c.h.b16 %v1563
        %v1696 = vunpack.c.l.b16 %v1564
        %v1697 = vunpack.c.h.b16 %v1564
        %v1698 = vunpack.c.l.b16 %v1565
        %v1699 = vunpack.c.h.b16 %v1565
        %v1700 = vunpack.c.l.b16 %v1566
        %v1701 = vunpack.c.h.b16 %v1566
        %v1702 = vunpack.c.l.b16 %v1567
        %v1703 = vunpack.c.h.b16 %v1567
        %v1704 = vunpack.c.l.b16 %v1568
        %v1705 = vunpack.c.h.b16 %v1568
        %v1706 = vunpack.c.l.b16 %v1569
        %v1707 = vunpack.c.h.b16 %v1569
        %v1708 = vunpack.c.l.b16 %v1570
        %v1709 = vunpack.c.h.b16 %v1570
        %v1710 = vunpack.c.l.b16 %v1571
        %v1711 = vunpack.c.h.b16 %v1571
        %v1712 = vunpack.c.l.b16 %v1572
        %v1713 = vunpack.c.h.b16 %v1572
        %v1714 = vunpack.c.l.b16 %v1573
        %v1715 = vunpack.c.h.b16 %v1573
        %v1716 = vunpack.c.l.b16 %v1574
        %v1717 = vunpack.c.h.b16 %v1574
        %v1718 = vunpack.c.l.b16 %v1575
        %v1719 = vunpack.c.h.b16 %v1575
        %v1720 = vunpack.c.l.b16 %v1576
        %v1721 = vunpack.c.h.b16 %v1576
        %v1722 = vunpack.c.l.b16 %v1577
        %v1723 = vunpack.c.h.b16 %v1577
        %v1724 = vunpack.c.l.b16 %v1578
        %v1725 = vunpack.c.h.b16 %v1578
        %v1726 = vunpack.c.l.b16 %v1579
        %v1727 = vunpack.c.h.b16 %v1579
        %v1728 = vunpack.c.l.b16 %v1580
        %v1729 = vunpack.c.h.b16 %v1580
        %v1730 = vunpack.c.l.b16 %v1581
        %v1731 = vunpack.c.h.b16 %v1581
        %v1732 = vunpack.c.l.b16 %v1582
        %v1733 = vunpack.c.h.b16 %v1582
        %v1734 = vunpack.c.l.b16 %v1583
        %v1735 = vunpack.c.h.b16 %v1583
        %v1736 = vunpack.c.l.b16 %v1584
        %v1737 = vunpack.c.h.b16 %v1584
        %v1738 = vunpack.c.l.b16 %v1585
        %v1739 = vunpack.c.h.b16 %v1585
        %v1740 = vunpack.c.l.b16 %v1586
        %v1741 = vunpack.c.h.b16 %v1586
        %v1742 = vunpack.c.l.b16 %v1587
        %v1743 = vunpack.c.h.b16 %v1587
        %v1744 = vunpack.c.l.b16 %v1588
        %v1745 = vunpack.c.h.b16 %v1588
        %v1746 = vunpack.c.l.b16 %v1589
        %v1747 = vunpack.c.h.b16 %v1589
        %v1748 = vunpack.c.l.b16 %v1590
        %v1749 = vunpack.c.h.b16 %v1590
        %v1750 = vunpack.c.l.b16 %v1591
        %v1751 = vunpack.c.h.b16 %v1591
        %v1752 = vunpack.c.l.b16 %v1592
        %v1753 = vunpack.c.h.b16 %v1592
        %v1754 = vunpack.c.l.b16 %v1593
        %v1755 = vunpack.c.h.b16 %v1593
        %v1756 = vunpack.c.l.b16 %v1594
        %v1757 = vunpack.c.h.b16 %v1594
        %v1758 = vunpack.c.l.b16 %v1595
        %v1759 = vunpack.c.h.b16 %v1595
        %v1760 = vunpack.c.l.b16 %v1596
        %v1761 = vunpack.c.h.b16 %v1596
        %v1762 = vunpack.c.l.b16 %v1597
        %v1763 = vunpack.c.h.b16 %v1597
        %v1764 = vunpack.c.l.b16 %v1598
        %v1765 = vunpack.c.h.b16 %v1598
        %v1766 = vunpack.c.l.b16 %v1599
        %v1767 = vunpack.c.h.b16 %v1599
        %v1768 = vunpack.c.l.b16 %v1600
        %v1769 = vunpack.c.h.b16 %v1600
        %v1770 = vunpack.c.l.b16 %v1601
        %v1771 = vunpack.c.h.b16 %v1601
        %v1772 = vunpack.c.l.b16 %v1602
        %v1773 = vunpack.c.h.b16 %v1602
        %v1774 = vunpack.c.l.b16 %v1603
        %v1775 = vunpack.c.h.b16 %v1603
        %v1776 = vunpack.c.l.b16 %v1604
        %v1777 = vunpack.c.h.b16 %v1604
        %v1778 = vunpack.c.l.b16 %v1605
        %v1779 = vunpack.c.h.b16 %v1605
        %v1780 = vunpack.c.l.b16 %v1606
        %v1781 = vunpack.c.h.b16 %v1606
        %v1782 = vunpack.c.l.b16 %v1607
        %v1783 = vunpack.c.h.b16 %v1607
        %v1784 = vunpack.c.l.b16 %v1608
        %v1785 = vunpack.c.h.b16 %v1608
        %v1786 = vunpack.c.l.b16 %v1609
        %v1787 = vunpack.c.h.b16 %v1609
        %v1788 = vunpack.c.l.b16 %v1610
        %v1789 = vunpack.c.h.b16 %v1610
        %v1790 = vunpack.c.l.b16 %v1611
        %v1791 = vunpack.c.h.b16 %v1611
        %v1792 = vunpack.c.l.b16 %v1612
        %v1793 = vunpack.c.h.b16 %v1612
        %v1794 = vunpack.c.l.b16 %v1613
        %v1795 = vunpack.c.h.b16 %v1613
        %v1796 = vunpack.c.l.b16 %v1614
        %v1797 = vunpack.c.h.b16 %v1614
        %v1798 = vunpack.c.l.b16 %v1615
        %v1799 = vunpack.c.h.b16 %v1615
        %v1800 = vunpack.c.l.b16 %v1616
        %v1801 = vunpack.c.h.b16 %v1616
        %v1802 = vunpack.c.l.b16 %v1617
        %v1803 = vunpack.c.h.b16 %v1617
        %v1804 = vunpack.c.l.b16 %v1618
        %v1805 = vunpack.c.h.b16 %v1618
        %v1806 = vunpack.c.l.b16 %v1619
        %v1807 = vunpack.c.h.b16 %v1619
        %v1808 = vunpack.c.l.b16 %v1620
        %v1809 = vunpack.c.h.b16 %v1620
        %v1810 = vunpack.c.l.b16 %v1621
        %v1811 = vunpack.c.h.b16 %v1621
        %v1812 = vunpack.c.l.b16 %v1622
        %v1813 = vunpack.c.h.b16 %v1622
        %v1814 = vunpack.c.l.b16 %v1623
        %v1815 = vunpack.c.h.b16 %v1623
        %v1816 = vpack.c.b16 %v1696, %v1688
        %v1817 = vpack.c.b16 %v1697, %v1689
        %v1818 = vpack.c.b16 %v1698, %v1690
        %v1819 = vpack.c.b16 %v1699, %v1691
        %v1820 = vpack.c.b16 %v1700, %v1692
        %v1821 = vpack.c.b16 %v1701, %v1693
        %v1822 = vpack.c.b16 %v1702, %v1694
        %v1823 = vpack.c.b16 %v1703, %v1695
        %v1824 = vpack.c.b16 %v1712, %v1704
        %v1825 = vpack.c.b16 %v1713, %v1705
        %v1826 = vpack.c.b16 %v1714, %v1706
        %v1827 = vpack.c.b16 %v1715, %v1707
        %v1828 = vpack.c.b16 %v1716, %v1708
        %v1829 = vpack.c.b16 %v1717, %v1709
        %v1830 = vpack.c.b16 %v1718, %v1710
        %v1831 = vpack.c.b16 %v1719, %v1711
        %v1832 = vpack.c.b16 %v1728, %v1720
        %v1833 = vpack.c.b16 %v1729, %v1721
        %v1834 = vpack.c.b16 %v1730, %v1722
        %v1835 = vpack.c.b16 %v1731, %v1723
        %v1836 = vpack.c.b16 %v1732, %v1724
        %v1837 = vpack.c.b16 %v1733, %v1725
        %v1838 = vpack.c.b16 %v1734, %v1726
        %v1839 = vpack.c.b16 %v1735, %v1727
        %v1840 = vpack.c.b16 %v1744, %v1736
        %v1841 = vpack.c.b16 %v1745, %v1737
        %v1842 = vpack.c.b16 %v1746, %v1738
        %v1843 = vpack.c.b16 %v1747, %v1739
        %v1844 = vpack.c.b16 %v1748, %v1740
        %v1845 = vpack.c.b16 %v1749, %v1741
        %v1846 = vpack.c.b16 %v1750, %v1742
        %v1847 = vpack.c.b16 %v1751, %v1743
        %v1848 = vpack.c.b16 %v1760, %v1752
        %v1849 = vpack.c.b16 %v1761, %v1753
        %v1850 = vpack.c.b16 %v1762, %v1754
        %v1851 = vpack.c.b16 %v1763, %v1755
        %v1852 = vpack.c.b16 %v1764, %v1756
        %v1853 = vpack.c.b16 %v1765, %v1757
        %v1854 = vpack.c.b16 %v1766, %v1758
        %v1855 = vpack.c.b16 %v1767, %v1759
        %v1856 = vpack.c.b16 %v1776, %v1768
        %v1857 = vpack.c.b16 %v1777, %v1769
        %v1858 = vpack.c.b16 %v1778, %v1770
        %v1859 = vpack.c.b16 %v1779, %v1771
        %v1860 = vpack.c.b16 %v1780, %v1772
        %v1861 = vpack.c.b16 %v1781, %v1773
        %v1862 = vpack.c.b16 %v1782, %v1774
        %v1863 = vpack.c.b16 %v1783, %v1775
        %v1864 = vpack.c.b16 %v1792, %v1784
        %v1865 = vpack.c.b16 %v1793, %v1785
        %v1866 = vpack.c.b16 %v1794, %v1786
        %v1867 = vpack.c.b16 %v1795, %v1787
        %v1868 = vpack.c.b16 %v1796, %v1788
        %v1869 = vpack.c.b16 %v1797, %v1789
        %v1870 = vpack.c.b16 %v1798, %v1790
        %v1871 = vpack.c.b16 %v1799, %v1791
        %v1872 = vpack.c.b16 %v1808, %v1800
        %v1873 = vpack.c.b16 %v1809, %v1801
        %v1874 = vpack.c.b16 %v1810, %v1802
        %v1875 = vpack.c.b16 %v1811, %v1803
        %v1876 = vpack.c.b16 %v1812, %v1804
        %v1877 = vpack.c.b16 %v1813, %v1805
        %v1878 = vpack.c.b16 %v1814, %v1806
        %v1879 = vpack.c.b16 %v1815, %v1807
        %1944 = vmatprep.subr.bf16.mxu0 %v1817
        %1945 = vmatpush1.bf16.msra.mxu0 %v1816
        %1946 = vmatprep.subr.bf16.mxu0 %v1825
        %1947 = vmatpush1.bf16.msra.mxu0 %v1824
        %1948 = vmatprep.subr.bf16.mxu0 %v1833
        %1949 = vmatpush1.bf16.msra.mxu0 %v1832
        %1950 = vmatprep.subr.bf16.mxu0 %v1841
        %1951 = vmatpush1.bf16.msra.mxu0 %v1840
        %1952 = vmatprep.subr.bf16.mxu0 %v1849
        %1953 = vmatpush1.bf16.msra.mxu0 %v1848
        %1954 = vmatprep.subr.bf16.mxu0 %v1857
        %1955 = vmatpush1.bf16.msra.mxu0 %v1856
        %1956 = vmatprep.subr.bf16.mxu0 %v1865
        %1957 = vmatpush1.bf16.msra.mxu0 %v1864
        %1958 = vmatprep.subr.bf16.mxu0 %v1873
        %1959 = vmatpush1.bf16.msra.mxu0 %v1872
        %1960 = vmatprep.subr.bf16.mxu0 0
        %1961 = vmatpush1.bf16.msra.mxu0 0
        %1962 = vmatprep.subr.bf16.mxu0 0
        %1963 = vmatpush1.bf16.msra.mxu0 0
        %1964 = vmatprep.subr.bf16.mxu0 0
        %1965 = vmatpush1.bf16.msra.mxu0 0
        %1966 = vmatprep.subr.bf16.mxu0 0
        %1967 = vmatpush1.bf16.msra.mxu0 0
        %1968 = vmatprep.subr.bf16.mxu0 0
        %1969 = vmatpush1.bf16.msra.mxu0 0
        %1970 = vmatprep.subr.bf16.mxu0 0
        %1971 = vmatpush1.bf16.msra.mxu0 0
        %1972 = vmatprep.subr.bf16.mxu0 0
        %1973 = vmatpush1.bf16.msra.mxu0 0
        %1974 = vmatprep.subr.bf16.mxu0 0
        %1975 = vmatpush1.bf16.msra.mxu0 0
        %1976 = vmatprep.mubr.bf16.mxu0 0
        %1977 = vmatmul.mubr.bf16.gmra.mrb[0].mxu0 %v1559
        %v1978 = vpop.f32.mrb[0].mxu0
        %v1979 = vadd.f32 0.0, %v1978
        %v1980 = vpop.f32.mrb[0].mxu0
        %v1981 = vadd.f32 0.0, %v1980
        %v1982 = vpop.f32.mrb[0].mxu0
        %v1983 = vpop.f32.mrb[0].mxu0
        %1984 = vdwg.mxu0
        %1985 = vmatprep.subr.bf16.mxu0 %v1819
        %1986 = vmatpush1.bf16.msra.mxu0 %v1818
        %1987 = vmatprep.subr.bf16.mxu0 %v1827
        %1988 = vmatpush1.bf16.msra.mxu0 %v1826
        %1989 = vmatprep.subr.bf16.mxu0 %v1835
        %1990 = vmatpush1.bf16.msra.mxu0 %v1834
        %1991 = vmatprep.subr.bf16.mxu0 %v1843
        %1992 = vmatpush1.bf16.msra.mxu0 %v1842
        %1993 = vmatprep.subr.bf16.mxu0 %v1851
        %1994 = vmatpush1.bf16.msra.mxu0 %v1850
        %1995 = vmatprep.subr.bf16.mxu0 %v1859
        %1996 = vmatpush1.bf16.msra.mxu0 %v1858
        %1997 = vmatprep.subr.bf16.mxu0 %v1867
        %1998 = vmatpush1.bf16.msra.mxu0 %v1866
        %1999 = vmatprep.subr.bf16.mxu0 %v1875
        %2000 = vmatpush1.bf16.msra.mxu0 %v1874
        %2001 = vmatprep.subr.bf16.mxu0 0
        %2002 = vmatpush1.bf16.msra.mxu0 0
        %2003 = vmatprep.subr.bf16.mxu0 0
        %2004 = vmatpush1.bf16.msra.mxu0 0
        %2005 = vmatprep.subr.bf16.mxu0 0
        %2006 = vmatpush1.bf16.msra.mxu0 0
        %2007 = vmatprep.subr.bf16.mxu0 0
        %2008 = vmatpush1.bf16.msra.mxu0 0
        %2009 = vmatprep.subr.bf16.mxu0 0
        %2010 = vmatpush1.bf16.msra.mxu0 0
        %2011 = vmatprep.subr.bf16.mxu0 0
        %2012 = vmatpush1.bf16.msra.mxu0 0
        %2013 = vmatprep.subr.bf16.mxu0 0
        %2014 = vmatpush1.bf16.msra.mxu0 0
        %2015 = vmatprep.subr.bf16.mxu0 0
        %2016 = vmatpush1.bf16.msra.mxu0 0
        %2017 = vmatprep.mubr.bf16.mxu0 0
        %2018 = vmatmul.mubr.bf16.gmra.mrb[0].mxu0 %v1559
        %v2019 = vpop.f32.mrb[0].mxu0
        %v2020 = vadd.f32 0.0, %v2019
        %v2021 = vpop.f32.mrb[0].mxu0
        %v2022 = vadd.f32 0.0, %v2021
        %v2023 = vpop.f32.mrb[0].mxu0
        %v2024 = vpop.f32.mrb[0].mxu0
        %2025 = vdwg.mxu0
        %2026 = vmatprep.subr.bf16.mxu0 %v1821
        %2027 = vmatpush1.bf16.msra.mxu0 %v1820
        %2028 = vmatprep.subr.bf16.mxu0 %v1829
        %2029 = vmatpush1.bf16.msra.mxu0 %v1828
        %2030 = vmatprep.subr.bf16.mxu0 %v1837
        %2031 = vmatpush1.bf16.msra.mxu0 %v1836
        %2032 = vmatprep.subr.bf16.mxu0 %v1845
        %2033 = vmatpush1.bf16.msra.mxu0 %v1844
        %2034 = vmatprep.subr.bf16.mxu0 %v1853
        %2035 = vmatpush1.bf16.msra.mxu0 %v1852
        %2036 = vmatprep.subr.bf16.mxu0 %v1861
        %2037 = vmatpush1.bf16.msra.mxu0 %v1860
        %2038 = vmatprep.subr.bf16.mxu0 %v1869
        %2039 = vmatpush1.bf16.msra.mxu0 %v1868
        %2040 = vmatprep.subr.bf16.mxu0 %v1877
        %2041 = vmatpush1.bf16.msra.mxu0 %v1876
        %2042 = vmatprep.subr.bf16.mxu0 0
        %2043 = vmatpush1.bf16.msra.mxu0 0
        %2044 = vmatprep.subr.bf16.mxu0 0
        %2045 = vmatpush1.bf16.msra.mxu0 0
        %2046 = vmatprep.subr.bf16.mxu0 0
        %2047 = vmatpush1.bf16.msra.mxu0 0
        %2048 = vmatprep.subr.bf16.mxu0 0
        %2049 = vmatpush1.bf16.msra.mxu0 0
        %2050 = vmatprep.subr.bf16.mxu0 0
        %2051 = vmatpush1.bf16.msra.mxu0 0
        %2052 = vmatprep.subr.bf16.mxu0 0
        %2053 = vmatpush1.bf16.msra.mxu0 0
        %2054 = vmatprep.subr.bf16.mxu0 0
        %2055 = vmatpush1.bf16.msra.mxu0 0
        %2056 = vmatprep.subr.bf16.mxu0 0
        %2057 = vmatpush1.bf16.msra.mxu0 0
        %2058 = vmatprep.mubr.bf16.mxu0 0
        %2059 = vmatmul.mubr.bf16.gmra.mrb[0].mxu0 %v1559
        %v2060 = vpop.f32.mrb[0].mxu0
        %v2061 = vadd.f32 0.0, %v2060
        %v2062 = vpop.f32.mrb[0].mxu0
        %v2063 = vadd.f32 0.0, %v2062
        %v2064 = vpop.f32.mrb[0].mxu0
        %v2065 = vpop.f32.mrb[0].mxu0
        %2066 = vdwg.mxu0
        %2067 = vmatprep.subr.bf16.mxu0 %v1823
        %2068 = vmatpush1.bf16.msra.mxu0 %v1822
        %2069 = vmatprep.subr.bf16.mxu0 %v1831
        %2070 = vmatpush1.bf16.msra.mxu0 %v1830
        %2071 = vmatprep.subr.bf16.mxu0 %v1839
        %2072 = vmatpush1.bf16.msra.mxu0 %v1838
        %2073 = vmatprep.subr.bf16.mxu0 %v1847
        %2074 = vmatpush1.bf16.msra.mxu0 %v1846
        %2075 = vmatprep.subr.bf16.mxu0 %v1855
        %2076 = vmatpush1.bf16.msra.mxu0 %v1854
        %2077 = vmatprep.subr.bf16.mxu0 %v1863
        %2078 = vmatpush1.bf16.msra.mxu0 %v1862
        %2079 = vmatprep.subr.bf16.mxu0 %v1871
        %2080 = vmatpush1.bf16.msra.mxu0 %v1870
        %2081 = vmatprep.subr.bf16.mxu0 %v1879
        %2082 = vmatpush1.bf16.msra.mxu0 %v1878
        %2083 = vmatprep.subr.bf16.mxu0 0
        %2084 = vmatpush1.bf16.msra.mxu0 0
        %2085 = vmatprep.subr.bf16.mxu0 0
        %2086 = vmatpush1.bf16.msra.mxu0 0
        %2087 = vmatprep.subr.bf16.mxu0 0
        %2088 = vmatpush1.bf16.msra.mxu0 0
        %2089 = vmatprep.subr.bf16.mxu0 0
        %2090 = vmatpush1.bf16.msra.mxu0 0
        %2091 = vmatprep.subr.bf16.mxu0 0
        %2092 = vmatpush1.bf16.msra.mxu0 0
        %2093 = vmatprep.subr.bf16.mxu0 0
        %2094 = vmatpush1.bf16.msra.mxu0 0
        %2095 = vmatprep.subr.bf16.mxu0 0
        %2096 = vmatpush1.bf16.msra.mxu0 0
        %2097 = vmatprep.subr.bf16.mxu0 0
        %2098 = vmatpush1.bf16.msra.mxu0 0
        %2099 = vmatprep.mubr.bf16.mxu0 0
        %2100 = vmatmul.mubr.bf16.gmra.mrb[0].mxu0 %v1559
        %v2101 = vpop.f32.mrb[0].mxu0
        %v2102 = vadd.f32 0.0, %v2101
        %v2103 = vpop.f32.mrb[0].mxu0
        %v2104 = vadd.f32 0.0, %v2103
        %v2105 = vpop.f32.mrb[0].mxu0
        %v2106 = vpop.f32.mrb[0].mxu0
        %2107 = vdwg.mxu0
        %v2109 = vrot.slane %v1981, 1
        %v2111 = vadd.f32 %v1979, %v2109
        %v2113 = vrot.slane %v2020, 2
        %v2115 = vadd.f32 %v2111, %v2113
        %v2117 = vrot.slane %v2022, 3
        %v2119 = vadd.f32 %v2115, %v2117
        %v2121 = vrot.slane %v2061, 4
        %v2123 = vadd.f32 %v2119, %v2121
        %v2125 = vrot.slane %v2063, 5
        %v2127 = vadd.f32 %v2123, %v2125
        %v2129 = vrot.slane %v2102, 6
        %v2131 = vadd.f32 %v2127, %v2129
        %v2133 = vrot.slane %v2104, 7
        %v2135 = vadd.f32 %v2131, %v2133
        %v2136 = vld [vmem:[%s8] sm:$0x1]
        %v2137 = vadd.f32 %v2135, %v2136
        %v2138 = vmax.f32 %v2137, 0.0
        %v2139 = vpack.c.bf16 %v2138, %v2138
        %v2140 = vld [vmem:[#allocation11] sm:$0xff]
        %v2141 = vld [vmem:[#allocation11 + $0x8] sm:$0xff]
        %v2142 = vld [vmem:[#allocation11 + $0x10] sm:$0xff]
        %v2143 = vld [vmem:[#allocation11 + $0x18] sm:$0xff]
        %v2144 = vld [vmem:[#allocation11 + $0x20] sm:$0xff]
        %v2145 = vld [vmem:[#allocation11 + $0x28] sm:$0xff]
        %v2146 = vld [vmem:[#allocation11 + $0x30] sm:$0xff]
        %v2147 = vld [vmem:[#allocation11 + $0x38] sm:$0xff]
        %v2148 = vld [vmem:[#allocation11 + $0x40] sm:$0xff]
        %v2149 = vld [vmem:[#allocation11 + $0x48] sm:$0xff]
        %v2150 = vld [vmem:[#allocation11 + $0x50] sm:$0xff]
        %v2151 = vld [vmem:[#allocation11 + $0x58] sm:$0xff]
        %v2152 = vld [vmem:[#allocation11 + $0x60] sm:$0xff]
        %v2153 = vld [vmem:[#allocation11 + $0x68] sm:$0xff]
        %v2154 = vld [vmem:[#allocation11 + $0x70] sm:$0xff]
        %v2155 = vld [vmem:[#allocation11 + $0x78] sm:$0xff]
        %v2156 = vld [vmem:[#allocation11 + $0x80] sm:$0xff]
        %v2157 = vld [vmem:[#allocation11 + $0x88] sm:$0xff]
        %v2158 = vld [vmem:[#allocation11 + $0x90] sm:$0xff]
        %v2159 = vld [vmem:[#allocation11 + $0x98] sm:$0xff]
        %v2160 = vld [vmem:[#allocation11 + $0xa0] sm:$0xff]
        %v2161 = vld [vmem:[#allocation11 + $0xa8] sm:$0xff]
        %v2162 = vld [vmem:[#allocation11 + $0xb0] sm:$0xff]
        %v2163 = vld [vmem:[#allocation11 + $0xb8] sm:$0xff]
        %v2164 = vld [vmem:[#allocation11 + $0xc0] sm:$0xff]
        %v2165 = vld [vmem:[#allocation11 + $0xc8] sm:$0xff]
        %v2166 = vld [vmem:[#allocation11 + $0xd0] sm:$0xff]
        %v2167 = vld [vmem:[#allocation11 + $0xd8] sm:$0xff]
        %v2168 = vld [vmem:[#allocation11 + $0xe0] sm:$0xff]
        %v2169 = vld [vmem:[#allocation11 + $0xe8] sm:$0xff]
        %v2170 = vld [vmem:[#allocation11 + $0xf0] sm:$0xff]
        %v2171 = vld [vmem:[#allocation11 + $0xf8] sm:$0xff]
        %v2172 = vld [vmem:[#allocation11 + $0x100] sm:$0xff]
        %v2173 = vld [vmem:[#allocation11 + $0x108] sm:$0xff]
        %v2174 = vld [vmem:[#allocation11 + $0x110] sm:$0xff]
        %v2175 = vld [vmem:[#allocation11 + $0x118] sm:$0xff]
        %v2176 = vld [vmem:[#allocation11 + $0x120] sm:$0xff]
        %v2177 = vld [vmem:[#allocation11 + $0x128] sm:$0xff]
        %v2178 = vld [vmem:[#allocation11 + $0x130] sm:$0xff]
        %v2179 = vld [vmem:[#allocation11 + $0x138] sm:$0xff]
        %v2180 = vld [vmem:[#allocation11 + $0x140] sm:$0xff]
        %v2181 = vld [vmem:[#allocation11 + $0x148] sm:$0xff]
        %v2182 = vld [vmem:[#allocation11 + $0x150] sm:$0xff]
        %v2183 = vld [vmem:[#allocation11 + $0x158] sm:$0xff]
        %v2184 = vld [vmem:[#allocation11 + $0x160] sm:$0xff]
        %v2185 = vld [vmem:[#allocation11 + $0x168] sm:$0xff]
        %v2186 = vld [vmem:[#allocation11 + $0x170] sm:$0xff]
        %v2187 = vld [vmem:[#allocation11 + $0x178] sm:$0xff]
        %v2188 = vld [vmem:[#allocation11 + $0x180] sm:$0xff]
        %v2189 = vld [vmem:[#allocation11 + $0x188] sm:$0xff]
        %v2190 = vld [vmem:[#allocation11 + $0x190] sm:$0xff]
        %v2191 = vld [vmem:[#allocation11 + $0x198] sm:$0xff]
        %v2192 = vld [vmem:[#allocation11 + $0x1a0] sm:$0xff]
        %v2193 = vld [vmem:[#allocation11 + $0x1a8] sm:$0xff]
        %v2194 = vld [vmem:[#allocation11 + $0x1b0] sm:$0xff]
        %v2195 = vld [vmem:[#allocation11 + $0x1b8] sm:$0xff]
        %v2196 = vld [vmem:[#allocation11 + $0x1c0] sm:$0xff]
        %v2197 = vld [vmem:[#allocation11 + $0x1c8] sm:$0xff]
        %v2198 = vld [vmem:[#allocation11 + $0x1d0] sm:$0xff]
        %v2199 = vld [vmem:[#allocation11 + $0x1d8] sm:$0xff]
        %v2200 = vld [vmem:[#allocation11 + $0x1e0] sm:$0xff]
        %v2201 = vld [vmem:[#allocation11 + $0x1e8] sm:$0xff]
        %v2202 = vld [vmem:[#allocation11 + $0x1f0] sm:$0xff]
        %v2203 = vld [vmem:[#allocation11 + $0x1f8] sm:$0xff]
        %v2204 = vld [vmem:[#allocation11 + $0x200] sm:$0xff]
        %v2205 = vld [vmem:[#allocation11 + $0x208] sm:$0xff]
        %v2206 = vld [vmem:[#allocation11 + $0x210] sm:$0xff]
        %v2207 = vld [vmem:[#allocation11 + $0x218] sm:$0xff]
        %v2208 = vld [vmem:[#allocation11 + $0x220] sm:$0xff]
        %v2209 = vld [vmem:[#allocation11 + $0x228] sm:$0xff]
        %v2210 = vld [vmem:[#allocation11 + $0x230] sm:$0xff]
        %v2211 = vld [vmem:[#allocation11 + $0x238] sm:$0xff]
        %v2212 = vld [vmem:[#allocation11 + $0x240] sm:$0xff]
        %v2213 = vld [vmem:[#allocation11 + $0x248] sm:$0xff]
        %v2214 = vld [vmem:[#allocation11 + $0x250] sm:$0xff]
        %v2215 = vld [vmem:[#allocation11 + $0x258] sm:$0xff]
        %v2216 = vld [vmem:[#allocation11 + $0x260] sm:$0xff]
        %v2217 = vld [vmem:[#allocation11 + $0x268] sm:$0xff]
        %v2218 = vld [vmem:[#allocation11 + $0x270] sm:$0xff]
        %v2219 = vld [vmem:[#allocation11 + $0x278] sm:$0xff]
        %v2220 = vld [vmem:[#allocation11 + $0x280] sm:$0xff]
        %v2221 = vld [vmem:[#allocation11 + $0x288] sm:$0xff]
        %v2222 = vld [vmem:[#allocation11 + $0x290] sm:$0xff]
        %v2223 = vld [vmem:[#allocation11 + $0x298] sm:$0xff]
        %v2224 = vld [vmem:[#allocation11 + $0x2a0] sm:$0xff]
        %v2225 = vld [vmem:[#allocation11 + $0x2a8] sm:$0xff]
        %v2226 = vld [vmem:[#allocation11 + $0x2b0] sm:$0xff]
        %v2227 = vld [vmem:[#allocation11 + $0x2b8] sm:$0xff]
        %v2228 = vld [vmem:[#allocation11 + $0x2c0] sm:$0xff]
        %v2229 = vld [vmem:[#allocation11 + $0x2c8] sm:$0xff]
        %v2230 = vld [vmem:[#allocation11 + $0x2d0] sm:$0xff]
        %v2231 = vld [vmem:[#allocation11 + $0x2d8] sm:$0xff]
        %v2232 = vld [vmem:[#allocation11 + $0x2e0] sm:$0xff]
        %v2233 = vld [vmem:[#allocation11 + $0x2e8] sm:$0xff]
        %v2234 = vld [vmem:[#allocation11 + $0x2f0] sm:$0xff]
        %v2235 = vld [vmem:[#allocation11 + $0x2f8] sm:$0xff]
        %v2236 = vld [vmem:[#allocation11 + $0x300] sm:$0xff]
        %v2237 = vld [vmem:[#allocation11 + $0x308] sm:$0xff]
        %v2238 = vld [vmem:[#allocation11 + $0x310] sm:$0xff]
        %v2239 = vld [vmem:[#allocation11 + $0x318] sm:$0xff]
        %v2240 = vld [vmem:[#allocation11 + $0x320] sm:$0xff]
        %v2241 = vld [vmem:[#allocation11 + $0x328] sm:$0xff]
        %v2242 = vld [vmem:[#allocation11 + $0x330] sm:$0xff]
        %v2243 = vld [vmem:[#allocation11 + $0x338] sm:$0xff]
        %v2244 = vld [vmem:[#allocation11 + $0x340] sm:$0xff]
        %v2245 = vld [vmem:[#allocation11 + $0x348] sm:$0xff]
        %v2246 = vld [vmem:[#allocation11 + $0x350] sm:$0xff]
        %v2247 = vld [vmem:[#allocation11 + $0x358] sm:$0xff]
        %v2248 = vld [vmem:[#allocation11 + $0x360] sm:$0xff]
        %v2249 = vld [vmem:[#allocation11 + $0x368] sm:$0xff]
        %v2250 = vld [vmem:[#allocation11 + $0x370] sm:$0xff]
        %v2251 = vld [vmem:[#allocation11 + $0x378] sm:$0xff]
        %v2252 = vld [vmem:[#allocation11 + $0x380] sm:$0xff]
        %v2253 = vld [vmem:[#allocation11 + $0x388] sm:$0xff]
        %v2254 = vld [vmem:[#allocation11 + $0x390] sm:$0xff]
        %v2255 = vld [vmem:[#allocation11 + $0x398] sm:$0xff]
        %v2256 = vld [vmem:[#allocation11 + $0x3a0] sm:$0xff]
        %v2257 = vld [vmem:[#allocation11 + $0x3a8] sm:$0xff]
        %v2258 = vld [vmem:[#allocation11 + $0x3b0] sm:$0xff]
        %v2259 = vld [vmem:[#allocation11 + $0x3b8] sm:$0xff]
        %v2260 = vld [vmem:[#allocation11 + $0x3c0] sm:$0xff]
        %v2261 = vld [vmem:[#allocation11 + $0x3c8] sm:$0xff]
        %v2262 = vld [vmem:[#allocation11 + $0x3d0] sm:$0xff]
        %v2263 = vld [vmem:[#allocation11 + $0x3d8] sm:$0xff]
        %v2264 = vld [vmem:[#allocation11 + $0x3e0] sm:$0xff]
        %v2265 = vld [vmem:[#allocation11 + $0x3e8] sm:$0xff]
        %v2266 = vld [vmem:[#allocation11 + $0x3f0] sm:$0xff]
        %v2267 = vld [vmem:[#allocation11 + $0x3f8] sm:$0xff]
        %v2268 = vld [vmem:[#allocation11 + $0x400] sm:$0xff]
        %v2269 = vld [vmem:[#allocation11 + $0x408] sm:$0xff]
        %v2270 = vld [vmem:[#allocation11 + $0x410] sm:$0xff]
        %v2271 = vld [vmem:[#allocation11 + $0x418] sm:$0xff]
        %v2272 = vld [vmem:[#allocation11 + $0x420] sm:$0xff]
        %v2273 = vld [vmem:[#allocation11 + $0x428] sm:$0xff]
        %v2274 = vld [vmem:[#allocation11 + $0x430] sm:$0xff]
        %v2275 = vld [vmem:[#allocation11 + $0x438] sm:$0xff]
        %v2276 = vld [vmem:[#allocation11 + $0x440] sm:$0xff]
        %v2277 = vld [vmem:[#allocation11 + $0x448] sm:$0xff]
        %v2278 = vld [vmem:[#allocation11 + $0x450] sm:$0xff]
        %v2279 = vld [vmem:[#allocation11 + $0x458] sm:$0xff]
        %v2280 = vld [vmem:[#allocation11 + $0x460] sm:$0xff]
        %v2281 = vld [vmem:[#allocation11 + $0x468] sm:$0xff]
        %v2282 = vld [vmem:[#allocation11 + $0x470] sm:$0xff]
        %v2283 = vld [vmem:[#allocation11 + $0x478] sm:$0xff]
        %v2284 = vld [vmem:[#allocation11 + $0x480] sm:$0xff]
        %v2285 = vld [vmem:[#allocation11 + $0x488] sm:$0xff]
        %v2286 = vld [vmem:[#allocation11 + $0x490] sm:$0xff]
        %v2287 = vld [vmem:[#allocation11 + $0x498] sm:$0xff]
        %v2288 = vld [vmem:[#allocation11 + $0x4a0] sm:$0xff]
        %v2289 = vld [vmem:[#allocation11 + $0x4a8] sm:$0xff]
        %v2290 = vld [vmem:[#allocation11 + $0x4b0] sm:$0xff]
        %v2291 = vld [vmem:[#allocation11 + $0x4b8] sm:$0xff]
        %v2292 = vld [vmem:[#allocation11 + $0x4c0] sm:$0xff]
        %v2293 = vld [vmem:[#allocation11 + $0x4c8] sm:$0xff]
        %v2294 = vld [vmem:[#allocation11 + $0x4d0] sm:$0xff]
        %v2295 = vld [vmem:[#allocation11 + $0x4d8] sm:$0xff]
        %v2296 = vld [vmem:[#allocation11 + $0x4e0] sm:$0xff]
        %v2297 = vld [vmem:[#allocation11 + $0x4e8] sm:$0xff]
        %v2298 = vld [vmem:[#allocation11 + $0x4f0] sm:$0xff]
        %v2299 = vld [vmem:[#allocation11 + $0x4f8] sm:$0xff]
        %v2300 = vld [vmem:[#allocation11 + $0x500] sm:$0xff]
        %v2301 = vld [vmem:[#allocation11 + $0x508] sm:$0xff]
        %v2302 = vld [vmem:[#allocation11 + $0x510] sm:$0xff]
        %v2303 = vld [vmem:[#allocation11 + $0x518] sm:$0xff]
        %v2304 = vld [vmem:[#allocation11 + $0x520] sm:$0xff]
        %v2305 = vld [vmem:[#allocation11 + $0x528] sm:$0xff]
        %v2306 = vld [vmem:[#allocation11 + $0x530] sm:$0xff]
        %v2307 = vld [vmem:[#allocation11 + $0x538] sm:$0xff]
        %v2308 = vld [vmem:[#allocation11 + $0x540] sm:$0xff]
        %v2309 = vld [vmem:[#allocation11 + $0x548] sm:$0xff]
        %v2310 = vld [vmem:[#allocation11 + $0x550] sm:$0xff]
        %v2311 = vld [vmem:[#allocation11 + $0x558] sm:$0xff]
        %v2312 = vld [vmem:[#allocation11 + $0x560] sm:$0xff]
        %v2313 = vld [vmem:[#allocation11 + $0x568] sm:$0xff]
        %v2314 = vld [vmem:[#allocation11 + $0x570] sm:$0xff]
        %v2315 = vld [vmem:[#allocation11 + $0x578] sm:$0xff]
        %v2316 = vld [vmem:[#allocation11 + $0x580] sm:$0xff]
        %v2317 = vld [vmem:[#allocation11 + $0x588] sm:$0xff]
        %v2318 = vld [vmem:[#allocation11 + $0x590] sm:$0xff]
        %v2319 = vld [vmem:[#allocation11 + $0x598] sm:$0xff]
        %v2320 = vld [vmem:[#allocation11 + $0x5a0] sm:$0xff]
        %v2321 = vld [vmem:[#allocation11 + $0x5a8] sm:$0xff]
        %v2322 = vld [vmem:[#allocation11 + $0x5b0] sm:$0xff]
        %v2323 = vld [vmem:[#allocation11 + $0x5b8] sm:$0xff]
        %v2324 = vld [vmem:[#allocation11 + $0x5c0] sm:$0xff]
        %v2325 = vld [vmem:[#allocation11 + $0x5c8] sm:$0xff]
        %v2326 = vld [vmem:[#allocation11 + $0x5d0] sm:$0xff]
        %v2327 = vld [vmem:[#allocation11 + $0x5d8] sm:$0xff]
        %v2328 = vld [vmem:[#allocation11 + $0x5e0] sm:$0xff]
        %v2329 = vld [vmem:[#allocation11 + $0x5e8] sm:$0xff]
        %v2330 = vld [vmem:[#allocation11 + $0x5f0] sm:$0xff]
        %v2331 = vld [vmem:[#allocation11 + $0x5f8] sm:$0xff]
        %v2332 = vld [vmem:[#allocation11 + $0x600] sm:$0xff]
        %v2333 = vld [vmem:[#allocation11 + $0x608] sm:$0xff]
        %v2334 = vld [vmem:[#allocation11 + $0x610] sm:$0xff]
        %v2335 = vld [vmem:[#allocation11 + $0x618] sm:$0xff]
        %v2336 = vld [vmem:[#allocation11 + $0x620] sm:$0xff]
        %v2337 = vld [vmem:[#allocation11 + $0x628] sm:$0xff]
        %v2338 = vld [vmem:[#allocation11 + $0x630] sm:$0xff]
        %v2339 = vld [vmem:[#allocation11 + $0x638] sm:$0xff]
        %v2340 = vld [vmem:[#allocation11 + $0x640] sm:$0xff]
        %v2341 = vld [vmem:[#allocation11 + $0x648] sm:$0xff]
        %v2342 = vld [vmem:[#allocation11 + $0x650] sm:$0xff]
        %v2343 = vld [vmem:[#allocation11 + $0x658] sm:$0xff]
        %v2344 = vld [vmem:[#allocation11 + $0x660] sm:$0xff]
        %v2345 = vld [vmem:[#allocation11 + $0x668] sm:$0xff]
        %v2346 = vld [vmem:[#allocation11 + $0x670] sm:$0xff]
        %v2347 = vld [vmem:[#allocation11 + $0x678] sm:$0xff]
        %v2348 = vld [vmem:[#allocation11 + $0x680] sm:$0xff]
        %v2349 = vld [vmem:[#allocation11 + $0x688] sm:$0xff]
        %v2350 = vld [vmem:[#allocation11 + $0x690] sm:$0xff]
        %v2351 = vld [vmem:[#allocation11 + $0x698] sm:$0xff]
        %v2352 = vld [vmem:[#allocation11 + $0x6a0] sm:$0xff]
        %v2353 = vld [vmem:[#allocation11 + $0x6a8] sm:$0xff]
        %v2354 = vld [vmem:[#allocation11 + $0x6b0] sm:$0xff]
        %v2355 = vld [vmem:[#allocation11 + $0x6b8] sm:$0xff]
        %v2356 = vld [vmem:[#allocation11 + $0x6c0] sm:$0xff]
        %v2357 = vld [vmem:[#allocation11 + $0x6c8] sm:$0xff]
        %v2358 = vld [vmem:[#allocation11 + $0x6d0] sm:$0xff]
        %v2359 = vld [vmem:[#allocation11 + $0x6d8] sm:$0xff]
        %v2360 = vld [vmem:[#allocation11 + $0x6e0] sm:$0xff]
        %v2361 = vld [vmem:[#allocation11 + $0x6e8] sm:$0xff]
        %v2362 = vld [vmem:[#allocation11 + $0x6f0] sm:$0xff]
        %v2363 = vld [vmem:[#allocation11 + $0x6f8] sm:$0xff]
        %v2364 = vld [vmem:[#allocation11 + $0x700] sm:$0xff]
        %v2365 = vld [vmem:[#allocation11 + $0x708] sm:$0xff]
        %v2366 = vld [vmem:[#allocation11 + $0x710] sm:$0xff]
        %v2367 = vld [vmem:[#allocation11 + $0x718] sm:$0xff]
        %v2368 = vld [vmem:[#allocation11 + $0x720] sm:$0xff]
        %v2369 = vld [vmem:[#allocation11 + $0x728] sm:$0xff]
        %v2370 = vld [vmem:[#allocation11 + $0x730] sm:$0xff]
        %v2371 = vld [vmem:[#allocation11 + $0x738] sm:$0xff]
        %v2372 = vld [vmem:[#allocation11 + $0x740] sm:$0xff]
        %v2373 = vld [vmem:[#allocation11 + $0x748] sm:$0xff]
        %v2374 = vld [vmem:[#allocation11 + $0x750] sm:$0xff]
        %v2375 = vld [vmem:[#allocation11 + $0x758] sm:$0xff]
        %v2376 = vld [vmem:[#allocation11 + $0x760] sm:$0xff]
        %v2377 = vld [vmem:[#allocation11 + $0x768] sm:$0xff]
        %v2378 = vld [vmem:[#allocation11 + $0x770] sm:$0xff]
        %v2379 = vld [vmem:[#allocation11 + $0x778] sm:$0xff]
        %v2380 = vld [vmem:[#allocation11 + $0x780] sm:$0xff]
        %v2381 = vld [vmem:[#allocation11 + $0x788] sm:$0xff]
        %v2382 = vld [vmem:[#allocation11 + $0x790] sm:$0xff]
        %v2383 = vld [vmem:[#allocation11 + $0x798] sm:$0xff]
        %v2384 = vld [vmem:[#allocation11 + $0x7a0] sm:$0xff]
        %v2385 = vld [vmem:[#allocation11 + $0x7a8] sm:$0xff]
        %v2386 = vld [vmem:[#allocation11 + $0x7b0] sm:$0xff]
        %v2387 = vld [vmem:[#allocation11 + $0x7b8] sm:$0xff]
        %v2388 = vld [vmem:[#allocation11 + $0x7c0] sm:$0xff]
        %v2389 = vld [vmem:[#allocation11 + $0x7c8] sm:$0xff]
        %v2390 = vld [vmem:[#allocation11 + $0x7d0] sm:$0xff]
        %v2391 = vld [vmem:[#allocation11 + $0x7d8] sm:$0xff]
        %v2392 = vld [vmem:[#allocation11 + $0x7e0] sm:$0xff]
        %v2393 = vld [vmem:[#allocation11 + $0x7e8] sm:$0xff]
        %v2394 = vld [vmem:[#allocation11 + $0x7f0] sm:$0xff]
        %v2395 = vld [vmem:[#allocation11 + $0x7f8] sm:$0xff]
        %v2396 = vld [vmem:[%s10] sm:$0xff]
        %v2397 = vld [vmem:[%s10 + $0x8] sm:$0xff]
        %v2398 = vld [vmem:[%s10 + $0x10] sm:$0xff]
        %v2399 = vld [vmem:[%s10 + $0x18] sm:$0xff]
        %v2656 = vunpack.c.l.b16 %v2140
        %v2657 = vunpack.c.h.b16 %v2140
        %v2658 = vunpack.c.l.b16 %v2141
        %v2659 = vunpack.c.h.b16 %v2141
        %v2660 = vunpack.c.l.b16 %v2142
        %v2661 = vunpack.c.h.b16 %v2142
        %v2662 = vunpack.c.l.b16 %v2143
        %v2663 = vunpack.c.h.b16 %v2143
        %v2664 = vunpack.c.l.b16 %v2144
        %v2665 = vunpack.c.h.b16 %v2144
        %v2666 = vunpack.c.l.b16 %v2145
        %v2667 = vunpack.c.h.b16 %v2145
        %v2668 = vunpack.c.l.b16 %v2146
        %v2669 = vunpack.c.h.b16 %v2146
        %v2670 = vunpack.c.l.b16 %v2147
        %v2671 = vunpack.c.h.b16 %v2147
        %v2672 = vunpack.c.l.b16 %v2148
        %v2673 = vunpack.c.h.b16 %v2148
        %v2674 = vunpack.c.l.b16 %v2149
        %v2675 = vunpack.c.h.b16 %v2149
        %v2676 = vunpack.c.l.b16 %v2150
        %v2677 = vunpack.c.h.b16 %v2150
        %v2678 = vunpack.c.l.b16 %v2151
        %v2679 = vunpack.c.h.b16 %v2151
        %v2680 = vunpack.c.l.b16 %v2152
        %v2681 = vunpack.c.h.b16 %v2152
        %v2682 = vunpack.c.l.b16 %v2153
        %v2683 = vunpack.c.h.b16 %v2153
        %v2684 = vunpack.c.l.b16 %v2154
        %v2685 = vunpack.c.h.b16 %v2154
        %v2686 = vunpack.c.l.b16 %v2155
        %v2687 = vunpack.c.h.b16 %v2155
        %v2688 = vunpack.c.l.b16 %v2156
        %v2689 = vunpack.c.h.b16 %v2156
        %v2690 = vunpack.c.l.b16 %v2157
        %v2691 = vunpack.c.h.b16 %v2157
        %v2692 = vunpack.c.l.b16 %v2158
        %v2693 = vunpack.c.h.b16 %v2158
        %v2694 = vunpack.c.l.b16 %v2159
        %v2695 = vunpack.c.h.b16 %v2159
        %v2696 = vunpack.c.l.b16 %v2160
        %v2697 = vunpack.c.h.b16 %v2160
        %v2698 = vunpack.c.l.b16 %v2161
        %v2699 = vunpack.c.h.b16 %v2161
        %v2700 = vunpack.c.l.b16 %v2162
        %v2701 = vunpack.c.h.b16 %v2162
        %v2702 = vunpack.c.l.b16 %v2163
        %v2703 = vunpack.c.h.b16 %v2163
        %v2704 = vunpack.c.l.b16 %v2164
        %v2705 = vunpack.c.h.b16 %v2164
        %v2706 = vunpack.c.l.b16 %v2165
        %v2707 = vunpack.c.h.b16 %v2165
        %v2708 = vunpack.c.l.b16 %v2166
        %v2709 = vunpack.c.h.b16 %v2166
        %v2710 = vunpack.c.l.b16 %v2167
        %v2711 = vunpack.c.h.b16 %v2167
        %v2712 = vunpack.c.l.b16 %v2168
        %v2713 = vunpack.c.h.b16 %v2168
        %v2714 = vunpack.c.l.b16 %v2169
        %v2715 = vunpack.c.h.b16 %v2169
        %v2716 = vunpack.c.l.b16 %v2170
        %v2717 = vunpack.c.h.b16 %v2170
        %v2718 = vunpack.c.l.b16 %v2171
        %v2719 = vunpack.c.h.b16 %v2171
        %v2720 = vunpack.c.l.b16 %v2172
        %v2721 = vunpack.c.h.b16 %v2172
        %v2722 = vunpack.c.l.b16 %v2173
        %v2723 = vunpack.c.h.b16 %v2173
        %v2724 = vunpack.c.l.b16 %v2174
        %v2725 = vunpack.c.h.b16 %v2174
        %v2726 = vunpack.c.l.b16 %v2175
        %v2727 = vunpack.c.h.b16 %v2175
        %v2728 = vunpack.c.l.b16 %v2176
        %v2729 = vunpack.c.h.b16 %v2176
        %v2730 = vunpack.c.l.b16 %v2177
        %v2731 = vunpack.c.h.b16 %v2177
        %v2732 = vunpack.c.l.b16 %v2178
        %v2733 = vunpack.c.h.b16 %v2178
        %v2734 = vunpack.c.l.b16 %v2179
        %v2735 = vunpack.c.h.b16 %v2179
        %v2736 = vunpack.c.l.b16 %v2180
        %v2737 = vunpack.c.h.b16 %v2180
        %v2738 = vunpack.c.l.b16 %v2181
        %v2739 = vunpack.c.h.b16 %v2181
        %v2740 = vunpack.c.l.b16 %v2182
        %v2741 = vunpack.c.h.b16 %v2182
        %v2742 = vunpack.c.l.b16 %v2183
        %v2743 = vunpack.c.h.b16 %v2183
        %v2744 = vunpack.c.l.b16 %v2184
        %v2745 = vunpack.c.h.b16 %v2184
        %v2746 = vunpack.c.l.b16 %v2185
        %v2747 = vunpack.c.h.b16 %v2185
        %v2748 = vunpack.c.l.b16 %v2186
        %v2749 = vunpack.c.h.b16 %v2186
        %v2750 = vunpack.c.l.b16 %v2187
        %v2751 = vunpack.c.h.b16 %v2187
        %v2752 = vunpack.c.l.b16 %v2188
        %v2753 = vunpack.c.h.b16 %v2188
        %v2754 = vunpack.c.l.b16 %v2189
        %v2755 = vunpack.c.h.b16 %v2189
        %v2756 = vunpack.c.l.b16 %v2190
        %v2757 = vunpack.c.h.b16 %v2190
        %v2758 = vunpack.c.l.b16 %v2191
        %v2759 = vunpack.c.h.b16 %v2191
        %v2760 = vunpack.c.l.b16 %v2192
        %v2761 = vunpack.c.h.b16 %v2192
        %v2762 = vunpack.c.l.b16 %v2193
        %v2763 = vunpack.c.h.b16 %v2193
        %v2764 = vunpack.c.l.b16 %v2194
        %v2765 = vunpack.c.h.b16 %v2194
        %v2766 = vunpack.c.l.b16 %v2195
        %v2767 = vunpack.c.h.b16 %v2195
        %v2768 = vunpack.c.l.b16 %v2196
        %v2769 = vunpack.c.h.b16 %v2196
        %v2770 = vunpack.c.l.b16 %v2197
        %v2771 = vunpack.c.h.b16 %v2197
        %v2772 = vunpack.c.l.b16 %v2198
        %v2773 = vunpack.c.h.b16 %v2198
        %v2774 = vunpack.c.l.b16 %v2199
        %v2775 = vunpack.c.h.b16 %v2199
        %v2776 = vunpack.c.l.b16 %v2200
        %v2777 = vunpack.c.h.b16 %v2200
        %v2778 = vunpack.c.l.b16 %v2201
        %v2779 = vunpack.c.h.b16 %v2201
        %v2780 = vunpack.c.l.b16 %v2202
        %v2781 = vunpack.c.h.b16 %v2202
        %v2782 = vunpack.c.l.b16 %v2203
        %v2783 = vunpack.c.h.b16 %v2203
        %v2784 = vunpack.c.l.b16 %v2204
        %v2785 = vunpack.c.h.b16 %v2204
        %v2786 = vunpack.c.l.b16 %v2205
        %v2787 = vunpack.c.h.b16 %v2205
        %v2788 = vunpack.c.l.b16 %v2206
        %v2789 = vunpack.c.h.b16 %v2206
        %v2790 = vunpack.c.l.b16 %v2207
        %v2791 = vunpack.c.h.b16 %v2207
        %v2792 = vunpack.c.l.b16 %v2208
        %v2793 = vunpack.c.h.b16 %v2208
        %v2794 = vunpack.c.l.b16 %v2209
        %v2795 = vunpack.c.h.b16 %v2209
        %v2796 = vunpack.c.l.b16 %v2210
        %v2797 = vunpack.c.h.b16 %v2210
        %v2798 = vunpack.c.l.b16 %v2211
        %v2799 = vunpack.c.h.b16 %v2211
        %v2800 = vunpack.c.l.b16 %v2212
        %v2801 = vunpack.c.h.b16 %v2212
        %v2802 = vunpack.c.l.b16 %v2213
        %v2803 = vunpack.c.h.b16 %v2213
        %v2804 = vunpack.c.l.b16 %v2214
        %v2805 = vunpack.c.h.b16 %v2214
        %v2806 = vunpack.c.l.b16 %v2215
        %v2807 = vunpack.c.h.b16 %v2215
        %v2808 = vunpack.c.l.b16 %v2216
        %v2809 = vunpack.c.h.b16 %v2216
        %v2810 = vunpack.c.l.b16 %v2217
        %v2811 = vunpack.c.h.b16 %v2217
        %v2812 = vunpack.c.l.b16 %v2218
        %v2813 = vunpack.c.h.b16 %v2218
        %v2814 = vunpack.c.l.b16 %v2219
        %v2815 = vunpack.c.h.b16 %v2219
        %v2816 = vunpack.c.l.b16 %v2220
        %v2817 = vunpack.c.h.b16 %v2220
        %v2818 = vunpack.c.l.b16 %v2221
        %v2819 = vunpack.c.h.b16 %v2221
        %v2820 = vunpack.c.l.b16 %v2222
        %v2821 = vunpack.c.h.b16 %v2222
        %v2822 = vunpack.c.l.b16 %v2223
        %v2823 = vunpack.c.h.b16 %v2223
        %v2824 = vunpack.c.l.b16 %v2224
        %v2825 = vunpack.c.h.b16 %v2224
        %v2826 = vunpack.c.l.b16 %v2225
        %v2827 = vunpack.c.h.b16 %v2225
        %v2828 = vunpack.c.l.b16 %v2226
        %v2829 = vunpack.c.h.b16 %v2226
        %v2830 = vunpack.c.l.b16 %v2227
        %v2831 = vunpack.c.h.b16 %v2227
        %v2832 = vunpack.c.l.b16 %v2228
        %v2833 = vunpack.c.h.b16 %v2228
        %v2834 = vunpack.c.l.b16 %v2229
        %v2835 = vunpack.c.h.b16 %v2229
        %v2836 = vunpack.c.l.b16 %v2230
        %v2837 = vunpack.c.h.b16 %v2230
        %v2838 = vunpack.c.l.b16 %v2231
        %v2839 = vunpack.c.h.b16 %v2231
        %v2840 = vunpack.c.l.b16 %v2232
        %v2841 = vunpack.c.h.b16 %v2232
        %v2842 = vunpack.c.l.b16 %v2233
        %v2843 = vunpack.c.h.b16 %v2233
        %v2844 = vunpack.c.l.b16 %v2234
        %v2845 = vunpack.c.h.b16 %v2234
        %v2846 = vunpack.c.l.b16 %v2235
        %v2847 = vunpack.c.h.b16 %v2235
        %v2848 = vunpack.c.l.b16 %v2236
        %v2849 = vunpack.c.h.b16 %v2236
        %v2850 = vunpack.c.l.b16 %v2237
        %v2851 = vunpack.c.h.b16 %v2237
        %v2852 = vunpack.c.l.b16 %v2238
        %v2853 = vunpack.c.h.b16 %v2238
        %v2854 = vunpack.c.l.b16 %v2239
        %v2855 = vunpack.c.h.b16 %v2239
        %v2856 = vunpack.c.l.b16 %v2240
        %v2857 = vunpack.c.h.b16 %v2240
        %v2858 = vunpack.c.l.b16 %v2241
        %v2859 = vunpack.c.h.b16 %v2241
        %v2860 = vunpack.c.l.b16 %v2242
        %v2861 = vunpack.c.h.b16 %v2242
        %v2862 = vunpack.c.l.b16 %v2243
        %v2863 = vunpack.c.h.b16 %v2243
        %v2864 = vunpack.c.l.b16 %v2244
        %v2865 = vunpack.c.h.b16 %v2244
        %v2866 = vunpack.c.l.b16 %v2245
        %v2867 = vunpack.c.h.b16 %v2245
        %v2868 = vunpack.c.l.b16 %v2246
        %v2869 = vunpack.c.h.b16 %v2246
        %v2870 = vunpack.c.l.b16 %v2247
        %v2871 = vunpack.c.h.b16 %v2247
        %v2872 = vunpack.c.l.b16 %v2248
        %v2873 = vunpack.c.h.b16 %v2248
        %v2874 = vunpack.c.l.b16 %v2249
        %v2875 = vunpack.c.h.b16 %v2249
        %v2876 = vunpack.c.l.b16 %v2250
        %v2877 = vunpack.c.h.b16 %v2250
        %v2878 = vunpack.c.l.b16 %v2251
        %v2879 = vunpack.c.h.b16 %v2251
        %v2880 = vunpack.c.l.b16 %v2252
        %v2881 = vunpack.c.h.b16 %v2252
        %v2882 = vunpack.c.l.b16 %v2253
        %v2883 = vunpack.c.h.b16 %v2253
        %v2884 = vunpack.c.l.b16 %v2254
        %v2885 = vunpack.c.h.b16 %v2254
        %v2886 = vunpack.c.l.b16 %v2255
        %v2887 = vunpack.c.h.b16 %v2255
        %v2888 = vunpack.c.l.b16 %v2256
        %v2889 = vunpack.c.h.b16 %v2256
        %v2890 = vunpack.c.l.b16 %v2257
        %v2891 = vunpack.c.h.b16 %v2257
        %v2892 = vunpack.c.l.b16 %v2258
        %v2893 = vunpack.c.h.b16 %v2258
        %v2894 = vunpack.c.l.b16 %v2259
        %v2895 = vunpack.c.h.b16 %v2259
        %v2896 = vunpack.c.l.b16 %v2260
        %v2897 = vunpack.c.h.b16 %v2260
        %v2898 = vunpack.c.l.b16 %v2261
        %v2899 = vunpack.c.h.b16 %v2261
        %v2900 = vunpack.c.l.b16 %v2262
        %v2901 = vunpack.c.h.b16 %v2262
        %v2902 = vunpack.c.l.b16 %v2263
        %v2903 = vunpack.c.h.b16 %v2263
        %v2904 = vunpack.c.l.b16 %v2264
        %v2905 = vunpack.c.h.b16 %v2264
        %v2906 = vunpack.c.l.b16 %v2265
        %v2907 = vunpack.c.h.b16 %v2265
        %v2908 = vunpack.c.l.b16 %v2266
        %v2909 = vunpack.c.h.b16 %v2266
        %v2910 = vunpack.c.l.b16 %v2267
        %v2911 = vunpack.c.h.b16 %v2267
        %v2912 = vunpack.c.l.b16 %v2268
        %v2913 = vunpack.c.h.b16 %v2268
        %v2914 = vunpack.c.l.b16 %v2269
        %v2915 = vunpack.c.h.b16 %v2269
        %v2916 = vunpack.c.l.b16 %v2270
        %v2917 = vunpack.c.h.b16 %v2270
        %v2918 = vunpack.c.l.b16 %v2271
        %v2919 = vunpack.c.h.b16 %v2271
        %v2920 = vunpack.c.l.b16 %v2272
        %v2921 = vunpack.c.h.b16 %v2272
        %v2922 = vunpack.c.l.b16 %v2273
        %v2923 = vunpack.c.h.b16 %v2273
        %v2924 = vunpack.c.l.b16 %v2274
        %v2925 = vunpack.c.h.b16 %v2274
        %v2926 = vunpack.c.l.b16 %v2275
        %v2927 = vunpack.c.h.b16 %v2275
        %v2928 = vunpack.c.l.b16 %v2276
        %v2929 = vunpack.c.h.b16 %v2276
        %v2930 = vunpack.c.l.b16 %v2277
        %v2931 = vunpack.c.h.b16 %v2277
        %v2932 = vunpack.c.l.b16 %v2278
        %v2933 = vunpack.c.h.b16 %v2278
        %v2934 = vunpack.c.l.b16 %v2279
        %v2935 = vunpack.c.h.b16 %v2279
        %v2936 = vunpack.c.l.b16 %v2280
        %v2937 = vunpack.c.h.b16 %v2280
        %v2938 = vunpack.c.l.b16 %v2281
        %v2939 = vunpack.c.h.b16 %v2281
        %v2940 = vunpack.c.l.b16 %v2282
        %v2941 = vunpack.c.h.b16 %v2282
        %v2942 = vunpack.c.l.b16 %v2283
        %v2943 = vunpack.c.h.b16 %v2283
        %v2944 = vunpack.c.l.b16 %v2284
        %v2945 = vunpack.c.h.b16 %v2284
        %v2946 = vunpack.c.l.b16 %v2285
        %v2947 = vunpack.c.h.b16 %v2285
        %v2948 = vunpack.c.l.b16 %v2286
        %v2949 = vunpack.c.h.b16 %v2286
        %v2950 = vunpack.c.l.b16 %v2287
        %v2951 = vunpack.c.h.b16 %v2287
        %v2952 = vunpack.c.l.b16 %v2288
        %v2953 = vunpack.c.h.b16 %v2288
        %v2954 = vunpack.c.l.b16 %v2289
        %v2955 = vunpack.c.h.b16 %v2289
        %v2956 = vunpack.c.l.b16 %v2290
        %v2957 = vunpack.c.h.b16 %v2290
        %v2958 = vunpack.c.l.b16 %v2291
        %v2959 = vunpack.c.h.b16 %v2291
        %v2960 = vunpack.c.l.b16 %v2292
        %v2961 = vunpack.c.h.b16 %v2292
        %v2962 = vunpack.c.l.b16 %v2293
        %v2963 = vunpack.c.h.b16 %v2293
        %v2964 = vunpack.c.l.b16 %v2294
        %v2965 = vunpack.c.h.b16 %v2294
        %v2966 = vunpack.c.l.b16 %v2295
        %v2967 = vunpack.c.h.b16 %v2295
        %v2968 = vunpack.c.l.b16 %v2296
        %v2969 = vunpack.c.h.b16 %v2296
        %v2970 = vunpack.c.l.b16 %v2297
        %v2971 = vunpack.c.h.b16 %v2297
        %v2972 = vunpack.c.l.b16 %v2298
        %v2973 = vunpack.c.h.b16 %v2298
        %v2974 = vunpack.c.l.b16 %v2299
        %v2975 = vunpack.c.h.b16 %v2299
        %v2976 = vunpack.c.l.b16 %v2300
        %v2977 = vunpack.c.h.b16 %v2300
        %v2978 = vunpack.c.l.b16 %v2301
        %v2979 = vunpack.c.h.b16 %v2301
        %v2980 = vunpack.c.l.b16 %v2302
        %v2981 = vunpack.c.h.b16 %v2302
        %v2982 = vunpack.c.l.b16 %v2303
        %v2983 = vunpack.c.h.b16 %v2303
        %v2984 = vunpack.c.l.b16 %v2304
        %v2985 = vunpack.c.h.b16 %v2304
        %v2986 = vunpack.c.l.b16 %v2305
        %v2987 = vunpack.c.h.b16 %v2305
        %v2988 = vunpack.c.l.b16 %v2306
        %v2989 = vunpack.c.h.b16 %v2306
        %v2990 = vunpack.c.l.b16 %v2307
        %v2991 = vunpack.c.h.b16 %v2307
        %v2992 = vunpack.c.l.b16 %v2308
        %v2993 = vunpack.c.h.b16 %v2308
        %v2994 = vunpack.c.l.b16 %v2309
        %v2995 = vunpack.c.h.b16 %v2309
        %v2996 = vunpack.c.l.b16 %v2310
        %v2997 = vunpack.c.h.b16 %v2310
        %v2998 = vunpack.c.l.b16 %v2311
        %v2999 = vunpack.c.h.b16 %v2311
        %v3000 = vunpack.c.l.b16 %v2312
        %v3001 = vunpack.c.h.b16 %v2312
        %v3002 = vunpack.c.l.b16 %v2313
        %v3003 = vunpack.c.h.b16 %v2313
        %v3004 = vunpack.c.l.b16 %v2314
        %v3005 = vunpack.c.h.b16 %v2314
        %v3006 = vunpack.c.l.b16 %v2315
        %v3007 = vunpack.c.h.b16 %v2315
        %v3008 = vunpack.c.l.b16 %v2316
        %v3009 = vunpack.c.h.b16 %v2316
        %v3010 = vunpack.c.l.b16 %v2317
        %v3011 = vunpack.c.h.b16 %v2317
        %v3012 = vunpack.c.l.b16 %v2318
        %v3013 = vunpack.c.h.b16 %v2318
        %v3014 = vunpack.c.l.b16 %v2319
        %v3015 = vunpack.c.h.b16 %v2319
        %v3016 = vunpack.c.l.b16 %v2320
        %v3017 = vunpack.c.h.b16 %v2320
        %v3018 = vunpack.c.l.b16 %v2321
        %v3019 = vunpack.c.h.b16 %v2321
        %v3020 = vunpack.c.l.b16 %v2322
        %v3021 = vunpack.c.h.b16 %v2322
        %v3022 = vunpack.c.l.b16 %v2323
        %v3023 = vunpack.c.h.b16 %v2323
        %v3024 = vunpack.c.l.b16 %v2324
        %v3025 = vunpack.c.h.b16 %v2324
        %v3026 = vunpack.c.l.b16 %v2325
        %v3027 = vunpack.c.h.b16 %v2325
        %v3028 = vunpack.c.l.b16 %v2326
        %v3029 = vunpack.c.h.b16 %v2326
        %v3030 = vunpack.c.l.b16 %v2327
        %v3031 = vunpack.c.h.b16 %v2327
        %v3032 = vunpack.c.l.b16 %v2328
        %v3033 = vunpack.c.h.b16 %v2328
        %v3034 = vunpack.c.l.b16 %v2329
        %v3035 = vunpack.c.h.b16 %v2329
        %v3036 = vunpack.c.l.b16 %v2330
        %v3037 = vunpack.c.h.b16 %v2330
        %v3038 = vunpack.c.l.b16 %v2331
        %v3039 = vunpack.c.h.b16 %v2331
        %v3040 = vunpack.c.l.b16 %v2332
        %v3041 = vunpack.c.h.b16 %v2332
        %v3042 = vunpack.c.l.b16 %v2333
        %v3043 = vunpack.c.h.b16 %v2333
        %v3044 = vunpack.c.l.b16 %v2334
        %v3045 = vunpack.c.h.b16 %v2334
        %v3046 = vunpack.c.l.b16 %v2335
        %v3047 = vunpack.c.h.b16 %v2335
        %v3048 = vunpack.c.l.b16 %v2336
        %v3049 = vunpack.c.h.b16 %v2336
        %v3050 = vunpack.c.l.b16 %v2337
        %v3051 = vunpack.c.h.b16 %v2337
        %v3052 = vunpack.c.l.b16 %v2338
        %v3053 = vunpack.c.h.b16 %v2338
        %v3054 = vunpack.c.l.b16 %v2339
        %v3055 = vunpack.c.h.b16 %v2339
        %v3056 = vunpack.c.l.b16 %v2340
        %v3057 = vunpack.c.h.b16 %v2340
        %v3058 = vunpack.c.l.b16 %v2341
        %v3059 = vunpack.c.h.b16 %v2341
        %v3060 = vunpack.c.l.b16 %v2342
        %v3061 = vunpack.c.h.b16 %v2342
        %v3062 = vunpack.c.l.b16 %v2343
        %v3063 = vunpack.c.h.b16 %v2343
        %v3064 = vunpack.c.l.b16 %v2344
        %v3065 = vunpack.c.h.b16 %v2344
        %v3066 = vunpack.c.l.b16 %v2345
        %v3067 = vunpack.c.h.b16 %v2345
        %v3068 = vunpack.c.l.b16 %v2346
        %v3069 = vunpack.c.h.b16 %v2346
        %v3070 = vunpack.c.l.b16 %v2347
        %v3071 = vunpack.c.h.b16 %v2347
        %v3072 = vunpack.c.l.b16 %v2348
        %v3073 = vunpack.c.h.b16 %v2348
        %v3074 = vunpack.c.l.b16 %v2349
        %v3075 = vunpack.c.h.b16 %v2349
        %v3076 = vunpack.c.l.b16 %v2350
        %v3077 = vunpack.c.h.b16 %v2350
        %v3078 = vunpack.c.l.b16 %v2351
        %v3079 = vunpack.c.h.b16 %v2351
        %v3080 = vunpack.c.l.b16 %v2352
        %v3081 = vunpack.c.h.b16 %v2352
        %v3082 = vunpack.c.l.b16 %v2353
        %v3083 = vunpack.c.h.b16 %v2353
        %v3084 = vunpack.c.l.b16 %v2354
        %v3085 = vunpack.c.h.b16 %v2354
        %v3086 = vunpack.c.l.b16 %v2355
        %v3087 = vunpack.c.h.b16 %v2355
        %v3088 = vunpack.c.l.b16 %v2356
        %v3089 = vunpack.c.h.b16 %v2356
        %v3090 = vunpack.c.l.b16 %v2357
        %v3091 = vunpack.c.h.b16 %v2357
        %v3092 = vunpack.c.l.b16 %v2358
        %v3093 = vunpack.c.h.b16 %v2358
        %v3094 = vunpack.c.l.b16 %v2359
        %v3095 = vunpack.c.h.b16 %v2359
        %v3096 = vunpack.c.l.b16 %v2360
        %v3097 = vunpack.c.h.b16 %v2360
        %v3098 = vunpack.c.l.b16 %v2361
        %v3099 = vunpack.c.h.b16 %v2361
        %v3100 = vunpack.c.l.b16 %v2362
        %v3101 = vunpack.c.h.b16 %v2362
        %v3102 = vunpack.c.l.b16 %v2363
        %v3103 = vunpack.c.h.b16 %v2363
        %v3104 = vunpack.c.l.b16 %v2364
        %v3105 = vunpack.c.h.b16 %v2364
        %v3106 = vunpack.c.l.b16 %v2365
        %v3107 = vunpack.c.h.b16 %v2365
        %v3108 = vunpack.c.l.b16 %v2366
        %v3109 = vunpack.c.h.b16 %v2366
        %v3110 = vunpack.c.l.b16 %v2367
        %v3111 = vunpack.c.h.b16 %v2367
        %v3112 = vunpack.c.l.b16 %v2368
        %v3113 = vunpack.c.h.b16 %v2368
        %v3114 = vunpack.c.l.b16 %v2369
        %v3115 = vunpack.c.h.b16 %v2369
        %v3116 = vunpack.c.l.b16 %v2370
        %v3117 = vunpack.c.h.b16 %v2370
        %v3118 = vunpack.c.l.b16 %v2371
        %v3119 = vunpack.c.h.b16 %v2371
        %v3120 = vunpack.c.l.b16 %v2372
        %v3121 = vunpack.c.h.b16 %v2372
        %v3122 = vunpack.c.l.b16 %v2373
        %v3123 = vunpack.c.h.b16 %v2373
        %v3124 = vunpack.c.l.b16 %v2374
        %v3125 = vunpack.c.h.b16 %v2374
        %v3126 = vunpack.c.l.b16 %v2375
        %v3127 = vunpack.c.h.b16 %v2375
        %v3128 = vunpack.c.l.b16 %v2376
        %v3129 = vunpack.c.h.b16 %v2376
        %v3130 = vunpack.c.l.b16 %v2377
        %v3131 = vunpack.c.h.b16 %v2377
        %v3132 = vunpack.c.l.b16 %v2378
        %v3133 = vunpack.c.h.b16 %v2378
        %v3134 = vunpack.c.l.b16 %v2379
        %v3135 = vunpack.c.h.b16 %v2379
        %v3136 = vunpack.c.l.b16 %v2380
        %v3137 = vunpack.c.h.b16 %v2380
        %v3138 = vunpack.c.l.b16 %v2381
        %v3139 = vunpack.c.h.b16 %v2381
        %v3140 = vunpack.c.l.b16 %v2382
        %v3141 = vunpack.c.h.b16 %v2382
        %v3142 = vunpack.c.l.b16 %v2383
        %v3143 = vunpack.c.h.b16 %v2383
        %v3144 = vunpack.c.l.b16 %v2384
        %v3145 = vunpack.c.h.b16 %v2384
        %v3146 = vunpack.c.l.b16 %v2385
        %v3147 = vunpack.c.h.b16 %v2385
        %v3148 = vunpack.c.l.b16 %v2386
        %v3149 = vunpack.c.h.b16 %v2386
        %v3150 = vunpack.c.l.b16 %v2387
        %v3151 = vunpack.c.h.b16 %v2387
        %v3152 = vunpack.c.l.b16 %v2388
        %v3153 = vunpack.c.h.b16 %v2388
        %v3154 = vunpack.c.l.b16 %v2389
        %v3155 = vunpack.c.h.b16 %v2389
        %v3156 = vunpack.c.l.b16 %v2390
        %v3157 = vunpack.c.h.b16 %v2390
        %v3158 = vunpack.c.l.b16 %v2391
        %v3159 = vunpack.c.h.b16 %v2391
        %v3160 = vunpack.c.l.b16 %v2392
        %v3161 = vunpack.c.h.b16 %v2392
        %v3162 = vunpack.c.l.b16 %v2393
        %v3163 = vunpack.c.h.b16 %v2393
        %v3164 = vunpack.c.l.b16 %v2394
        %v3165 = vunpack.c.h.b16 %v2394
        %v3166 = vunpack.c.l.b16 %v2395
        %v3167 = vunpack.c.h.b16 %v2395
        %v3168 = vpack.c.b16 %v2688, %v2656
        %v3169 = vpack.c.b16 %v2689, %v2657
        %v3170 = vpack.c.b16 %v2690, %v2658
        %v3171 = vpack.c.b16 %v2691, %v2659
        %v3172 = vpack.c.b16 %v2692, %v2660
        %v3173 = vpack.c.b16 %v2693, %v2661
        %v3174 = vpack.c.b16 %v2694, %v2662
        %v3175 = vpack.c.b16 %v2695, %v2663
        %v3176 = vpack.c.b16 %v2696, %v2664
        %v3177 = vpack.c.b16 %v2697, %v2665
        %v3178 = vpack.c.b16 %v2698, %v2666
        %v3179 = vpack.c.b16 %v2699, %v2667
        %v3180 = vpack.c.b16 %v2700, %v2668
        %v3181 = vpack.c.b16 %v2701, %v2669
        %v3182 = vpack.c.b16 %v2702, %v2670
        %v3183 = vpack.c.b16 %v2703, %v2671
        %v3184 = vpack.c.b16 %v2704, %v2672
        %v3185 = vpack.c.b16 %v2705, %v2673
        %v3186 = vpack.c.b16 %v2706, %v2674
        %v3187 = vpack.c.b16 %v2707, %v2675
        %v3188 = vpack.c.b16 %v2708, %v2676
        %v3189 = vpack.c.b16 %v2709, %v2677
        %v3190 = vpack.c.b16 %v2710, %v2678
        %v3191 = vpack.c.b16 %v2711, %v2679
        %v3192 = vpack.c.b16 %v2712, %v2680
        %v3193 = vpack.c.b16 %v2713, %v2681
        %v3194 = vpack.c.b16 %v2714, %v2682
        %v3195 = vpack.c.b16 %v2715, %v2683
        %v3196 = vpack.c.b16 %v2716, %v2684
        %v3197 = vpack.c.b16 %v2717, %v2685
        %v3198 = vpack.c.b16 %v2718, %v2686
        %v3199 = vpack.c.b16 %v2719, %v2687
        %v3200 = vpack.c.b16 %v2752, %v2720
        %v3201 = vpack.c.b16 %v2753, %v2721
        %v3202 = vpack.c.b16 %v2754, %v2722
        %v3203 = vpack.c.b16 %v2755, %v2723
        %v3204 = vpack.c.b16 %v2756, %v2724
        %v3205 = vpack.c.b16 %v2757, %v2725
        %v3206 = vpack.c.b16 %v2758, %v2726
        %v3207 = vpack.c.b16 %v2759, %v2727
        %v3208 = vpack.c.b16 %v2760, %v2728
        %v3209 = vpack.c.b16 %v2761, %v2729
        %v3210 = vpack.c.b16 %v2762, %v2730
        %v3211 = vpack.c.b16 %v2763, %v2731
        %v3212 = vpack.c.b16 %v2764, %v2732
        %v3213 = vpack.c.b16 %v2765, %v2733
        %v3214 = vpack.c.b16 %v2766, %v2734
        %v3215 = vpack.c.b16 %v2767, %v2735
        %v3216 = vpack.c.b16 %v2768, %v2736
        %v3217 = vpack.c.b16 %v2769, %v2737
        %v3218 = vpack.c.b16 %v2770, %v2738
        %v3219 = vpack.c.b16 %v2771, %v2739
        %v3220 = vpack.c.b16 %v2772, %v2740
        %v3221 = vpack.c.b16 %v2773, %v2741
        %v3222 = vpack.c.b16 %v2774, %v2742
        %v3223 = vpack.c.b16 %v2775, %v2743
        %v3224 = vpack.c.b16 %v2776, %v2744
        %v3225 = vpack.c.b16 %v2777, %v2745
        %v3226 = vpack.c.b16 %v2778, %v2746
        %v3227 = vpack.c.b16 %v2779, %v2747
        %v3228 = vpack.c.b16 %v2780, %v2748
        %v3229 = vpack.c.b16 %v2781, %v2749
        %v3230 = vpack.c.b16 %v2782, %v2750
        %v3231 = vpack.c.b16 %v2783, %v2751
        %v3232 = vpack.c.b16 %v2816, %v2784
        %v3233 = vpack.c.b16 %v2817, %v2785
        %v3234 = vpack.c.b16 %v2818, %v2786
        %v3235 = vpack.c.b16 %v2819, %v2787
        %v3236 = vpack.c.b16 %v2820, %v2788
        %v3237 = vpack.c.b16 %v2821, %v2789
        %v3238 = vpack.c.b16 %v2822, %v2790
        %v3239 = vpack.c.b16 %v2823, %v2791
        %v3240 = vpack.c.b16 %v2824, %v2792
        %v3241 = vpack.c.b16 %v2825, %v2793
        %v3242 = vpack.c.b16 %v2826, %v2794
        %v3243 = vpack.c.b16 %v2827, %v2795
        %v3244 = vpack.c.b16 %v2828, %v2796
        %v3245 = vpack.c.b16 %v2829, %v2797
        %v3246 = vpack.c.b16 %v2830, %v2798
        %v3247 = vpack.c.b16 %v2831, %v2799
        %v3248 = vpack.c.b16 %v2832, %v2800
        %v3249 = vpack.c.b16 %v2833, %v2801
        %v3250 = vpack.c.b16 %v2834, %v2802
        %v3251 = vpack.c.b16 %v2835, %v2803
        %v3252 = vpack.c.b16 %v2836, %v2804
        %v3253 = vpack.c.b16 %v2837, %v2805
        %v3254 = vpack.c.b16 %v2838, %v2806
        %v3255 = vpack.c.b16 %v2839, %v2807
        %v3256 = vpack.c.b16 %v2840, %v2808
        %v3257 = vpack.c.b16 %v2841, %v2809
        %v3258 = vpack.c.b16 %v2842, %v2810
        %v3259 = vpack.c.b16 %v2843, %v2811
        %v3260 = vpack.c.b16 %v2844, %v2812
        %v3261 = vpack.c.b16 %v2845, %v2813
        %v3262 = vpack.c.b16 %v2846, %v2814
        %v3263 = vpack.c.b16 %v2847, %v2815
        %v3264 = vpack.c.b16 %v2880, %v2848
        %v3265 = vpack.c.b16 %v2881, %v2849
        %v3266 = vpack.c.b16 %v2882, %v2850
        %v3267 = vpack.c.b16 %v2883, %v2851
        %v3268 = vpack.c.b16 %v2884, %v2852
        %v3269 = vpack.c.b16 %v2885, %v2853
        %v3270 = vpack.c.b16 %v2886, %v2854
        %v3271 = vpack.c.b16 %v2887, %v2855
        %v3272 = vpack.c.b16 %v2888, %v2856
        %v3273 = vpack.c.b16 %v2889, %v2857
        %v3274 = vpack.c.b16 %v2890, %v2858
        %v3275 = vpack.c.b16 %v2891, %v2859
        %v3276 = vpack.c.b16 %v2892, %v2860
        %v3277 = vpack.c.b16 %v2893, %v2861
        %v3278 = vpack.c.b16 %v2894, %v2862
        %v3279 = vpack.c.b16 %v2895, %v2863
        %v3280 = vpack.c.b16 %v2896, %v2864
        %v3281 = vpack.c.b16 %v2897, %v2865
        %v3282 = vpack.c.b16 %v2898, %v2866
        %v3283 = vpack.c.b16 %v2899, %v2867
        %v3284 = vpack.c.b16 %v2900, %v2868
        %v3285 = vpack.c.b16 %v2901, %v2869
        %v3286 = vpack.c.b16 %v2902, %v2870
        %v3287 = vpack.c.b16 %v2903, %v2871
        %v3288 = vpack.c.b16 %v2904, %v2872
        %v3289 = vpack.c.b16 %v2905, %v2873
        %v3290 = vpack.c.b16 %v2906, %v2874
        %v3291 = vpack.c.b16 %v2907, %v2875
        %v3292 = vpack.c.b16 %v2908, %v2876
        %v3293 = vpack.c.b16 %v2909, %v2877
        %v3294 = vpack.c.b16 %v2910, %v2878
        %v3295 = vpack.c.b16 %v2911, %v2879
        %v3296 = vpack.c.b16 %v2944, %v2912
        %v3297 = vpack.c.b16 %v2945, %v2913
        %v3298 = vpack.c.b16 %v2946, %v2914
        %v3299 = vpack.c.b16 %v2947, %v2915
        %v3300 = vpack.c.b16 %v2948, %v2916
        %v3301 = vpack.c.b16 %v2949, %v2917
        %v3302 = vpack.c.b16 %v2950, %v2918
        %v3303 = vpack.c.b16 %v2951, %v2919
        %v3304 = vpack.c.b16 %v2952, %v2920
        %v3305 = vpack.c.b16 %v2953, %v2921
        %v3306 = vpack.c.b16 %v2954, %v2922
        %v3307 = vpack.c.b16 %v2955, %v2923
        %v3308 = vpack.c.b16 %v2956, %v2924
        %v3309 = vpack.c.b16 %v2957, %v2925
        %v3310 = vpack.c.b16 %v2958, %v2926
        %v3311 = vpack.c.b16 %v2959, %v2927
        %v3312 = vpack.c.b16 %v2960, %v2928
        %v3313 = vpack.c.b16 %v2961, %v2929
        %v3314 = vpack.c.b16 %v2962, %v2930
        %v3315 = vpack.c.b16 %v2963, %v2931
        %v3316 = vpack.c.b16 %v2964, %v2932
        %v3317 = vpack.c.b16 %v2965, %v2933
        %v3318 = vpack.c.b16 %v2966, %v2934
        %v3319 = vpack.c.b16 %v2967, %v2935
        %v3320 = vpack.c.b16 %v2968, %v2936
        %v3321 = vpack.c.b16 %v2969, %v2937
        %v3322 = vpack.c.b16 %v2970, %v2938
        %v3323 = vpack.c.b16 %v2971, %v2939
        %v3324 = vpack.c.b16 %v2972, %v2940
        %v3325 = vpack.c.b16 %v2973, %v2941
        %v3326 = vpack.c.b16 %v2974, %v2942
        %v3327 = vpack.c.b16 %v2975, %v2943
        %v3328 = vpack.c.b16 %v3008, %v2976
        %v3329 = vpack.c.b16 %v3009, %v2977
        %v3330 = vpack.c.b16 %v3010, %v2978
        %v3331 = vpack.c.b16 %v3011, %v2979
        %v3332 = vpack.c.b16 %v3012, %v2980
        %v3333 = vpack.c.b16 %v3013, %v2981
        %v3334 = vpack.c.b16 %v3014, %v2982
        %v3335 = vpack.c.b16 %v3015, %v2983
        %v3336 = vpack.c.b16 %v3016, %v2984
        %v3337 = vpack.c.b16 %v3017, %v2985
        %v3338 = vpack.c.b16 %v3018, %v2986
        %v3339 = vpack.c.b16 %v3019, %v2987
        %v3340 = vpack.c.b16 %v3020, %v2988
        %v3341 = vpack.c.b16 %v3021, %v2989
        %v3342 = vpack.c.b16 %v3022, %v2990
        %v3343 = vpack.c.b16 %v3023, %v2991
        %v3344 = vpack.c.b16 %v3024, %v2992
        %v3345 = vpack.c.b16 %v3025, %v2993
        %v3346 = vpack.c.b16 %v3026, %v2994
        %v3347 = vpack.c.b16 %v3027, %v2995
        %v3348 = vpack.c.b16 %v3028, %v2996
        %v3349 = vpack.c.b16 %v3029, %v2997
        %v3350 = vpack.c.b16 %v3030, %v2998
        %v3351 = vpack.c.b16 %v3031, %v2999
        %v3352 = vpack.c.b16 %v3032, %v3000
        %v3353 = vpack.c.b16 %v3033, %v3001
        %v3354 = vpack.c.b16 %v3034, %v3002
        %v3355 = vpack.c.b16 %v3035, %v3003
        %v3356 = vpack.c.b16 %v3036, %v3004
        %v3357 = vpack.c.b16 %v3037, %v3005
        %v3358 = vpack.c.b16 %v3038, %v3006
        %v3359 = vpack.c.b16 %v3039, %v3007
        %v3360 = vpack.c.b16 %v3072, %v3040
        %v3361 = vpack.c.b16 %v3073, %v3041
        %v3362 = vpack.c.b16 %v3074, %v3042
        %v3363 = vpack.c.b16 %v3075, %v3043
        %v3364 = vpack.c.b16 %v3076, %v3044
        %v3365 = vpack.c.b16 %v3077, %v3045
        %v3366 = vpack.c.b16 %v3078, %v3046
        %v3367 = vpack.c.b16 %v3079, %v3047
        %v3368 = vpack.c.b16 %v3080, %v3048
        %v3369 = vpack.c.b16 %v3081, %v3049
        %v3370 = vpack.c.b16 %v3082, %v3050
        %v3371 = vpack.c.b16 %v3083, %v3051
        %v3372 = vpack.c.b16 %v3084, %v3052
        %v3373 = vpack.c.b16 %v3085, %v3053
        %v3374 = vpack.c.b16 %v3086, %v3054
        %v3375 = vpack.c.b16 %v3087, %v3055
        %v3376 = vpack.c.b16 %v3088, %v3056
        %v3377 = vpack.c.b16 %v3089, %v3057
        %v3378 = vpack.c.b16 %v3090, %v3058
        %v3379 = vpack.c.b16 %v3091, %v3059
        %v3380 = vpack.c.b16 %v3092, %v3060
        %v3381 = vpack.c.b16 %v3093, %v3061
        %v3382 = vpack.c.b16 %v3094, %v3062
        %v3383 = vpack.c.b16 %v3095, %v3063
        %v3384 = vpack.c.b16 %v3096, %v3064
        %v3385 = vpack.c.b16 %v3097, %v3065
        %v3386 = vpack.c.b16 %v3098, %v3066
        %v3387 = vpack.c.b16 %v3099, %v3067
        %v3388 = vpack.c.b16 %v3100, %v3068
        %v3389 = vpack.c.b16 %v3101, %v3069
        %v3390 = vpack.c.b16 %v3102, %v3070
        %v3391 = vpack.c.b16 %v3103, %v3071
        %v3392 = vpack.c.b16 %v3136, %v3104
        %v3393 = vpack.c.b16 %v3137, %v3105
        %v3394 = vpack.c.b16 %v3138, %v3106
        %v3395 = vpack.c.b16 %v3139, %v3107
        %v3396 = vpack.c.b16 %v3140, %v3108
        %v3397 = vpack.c.b16 %v3141, %v3109
        %v3398 = vpack.c.b16 %v3142, %v3110
        %v3399 = vpack.c.b16 %v3143, %v3111
        %v3400 = vpack.c.b16 %v3144, %v3112
        %v3401 = vpack.c.b16 %v3145, %v3113
        %v3402 = vpack.c.b16 %v3146, %v3114
        %v3403 = vpack.c.b16 %v3147, %v3115
        %v3404 = vpack.c.b16 %v3148, %v3116
        %v3405 = vpack.c.b16 %v3149, %v3117
        %v3406 = vpack.c.b16 %v3150, %v3118
        %v3407 = vpack.c.b16 %v3151, %v3119
        %v3408 = vpack.c.b16 %v3152, %v3120
        %v3409 = vpack.c.b16 %v3153, %v3121
        %v3410 = vpack.c.b16 %v3154, %v3122
        %v3411 = vpack.c.b16 %v3155, %v3123
        %v3412 = vpack.c.b16 %v3156, %v3124
        %v3413 = vpack.c.b16 %v3157, %v3125
        %v3414 = vpack.c.b16 %v3158, %v3126
        %v3415 = vpack.c.b16 %v3159, %v3127
        %v3416 = vpack.c.b16 %v3160, %v3128
        %v3417 = vpack.c.b16 %v3161, %v3129
        %v3418 = vpack.c.b16 %v3162, %v3130
        %v3419 = vpack.c.b16 %v3163, %v3131
        %v3420 = vpack.c.b16 %v3164, %v3132
        %v3421 = vpack.c.b16 %v3165, %v3133
        %v3422 = vpack.c.b16 %v3166, %v3134
        %v3423 = vpack.c.b16 %v3167, %v3135
        %v3684 = vlaneseq
        %v3685 = vshrl.u32 %v3684, 7
        %v3686 = vsub.s32 0, %v3685
        %v3687 = vrot.slane %v2396, %v3686
        %v3688 = vlaneseq
        %v3689 = vshrl.u32 %v3688, 7
        %v3690 = vsub.s32 1, %v3689
        %v3691 = vrot.slane %v2396, %v3690
        %v3692 = vlaneseq
        %v3693 = vshrl.u32 %v3692, 7
        %v3694 = vsub.s32 2, %v3693
        %v3695 = vrot.slane %v2396, %v3694
        %v3696 = vlaneseq
        %v3697 = vshrl.u32 %v3696, 7
        %v3698 = vsub.s32 3, %v3697
        %v3699 = vrot.slane %v2396, %v3698
        %v3700 = vlaneseq
        %v3701 = vshrl.u32 %v3700, 7
        %v3702 = vsub.s32 4, %v3701
        %v3703 = vrot.slane %v2396, %v3702
        %v3704 = vlaneseq
        %v3705 = vshrl.u32 %v3704, 7
        %v3706 = vsub.s32 5, %v3705
        %v3707 = vrot.slane %v2396, %v3706
        %v3708 = vlaneseq
        %v3709 = vshrl.u32 %v3708, 7
        %v3710 = vsub.s32 6, %v3709
        %v3711 = vrot.slane %v2396, %v3710
        %v3712 = vlaneseq
        %v3713 = vshrl.u32 %v3712, 7
        %v3714 = vsub.s32 7, %v3713
        %v3715 = vrot.slane %v2396, %v3714
        %v3716 = vlaneseq
        %v3717 = vshrl.u32 %v3716, 7
        %v3718 = vsub.s32 0, %v3717
        %v3719 = vrot.slane %v2397, %v3718
        %v3720 = vlaneseq
        %v3721 = vshrl.u32 %v3720, 7
        %v3722 = vsub.s32 1, %v3721
        %v3723 = vrot.slane %v2397, %v3722
        %v3724 = vlaneseq
        %v3725 = vshrl.u32 %v3724, 7
        %v3726 = vsub.s32 2, %v3725
        %v3727 = vrot.slane %v2397, %v3726
        %v3728 = vlaneseq
        %v3729 = vshrl.u32 %v3728, 7
        %v3730 = vsub.s32 3, %v3729
        %v3731 = vrot.slane %v2397, %v3730
        %v3732 = vlaneseq
        %v3733 = vshrl.u32 %v3732, 7
        %v3734 = vsub.s32 4, %v3733
        %v3735 = vrot.slane %v2397, %v3734
        %v3736 = vlaneseq
        %v3737 = vshrl.u32 %v3736, 7
        %v3738 = vsub.s32 5, %v3737
        %v3739 = vrot.slane %v2397, %v3738
        %v3740 = vlaneseq
        %v3741 = vshrl.u32 %v3740, 7
        %v3742 = vsub.s32 6, %v3741
        %v3743 = vrot.slane %v2397, %v3742
        %v3744 = vlaneseq
        %v3745 = vshrl.u32 %v3744, 7
        %v3746 = vsub.s32 7, %v3745
        %v3747 = vrot.slane %v2397, %v3746
        %v3748 = vlaneseq
        %v3749 = vshrl.u32 %v3748, 7
        %v3750 = vsub.s32 0, %v3749
        %v3751 = vrot.slane %v2398, %v3750
        %v3752 = vlaneseq
        %v3753 = vshrl.u32 %v3752, 7
        %v3754 = vsub.s32 1, %v3753
        %v3755 = vrot.slane %v2398, %v3754
        %v3756 = vlaneseq
        %v3757 = vshrl.u32 %v3756, 7
        %v3758 = vsub.s32 2, %v3757
        %v3759 = vrot.slane %v2398, %v3758
        %v3760 = vlaneseq
        %v3761 = vshrl.u32 %v3760, 7
        %v3762 = vsub.s32 3, %v3761
        %v3763 = vrot.slane %v2398, %v3762
        %v3764 = vlaneseq
        %v3765 = vshrl.u32 %v3764, 7
        %v3766 = vsub.s32 4, %v3765
        %v3767 = vrot.slane %v2398, %v3766
        %v3768 = vlaneseq
        %v3769 = vshrl.u32 %v3768, 7
        %v3770 = vsub.s32 5, %v3769
        %v3771 = vrot.slane %v2398, %v3770
        %v3772 = vlaneseq
        %v3773 = vshrl.u32 %v3772, 7
        %v3774 = vsub.s32 6, %v3773
        %v3775 = vrot.slane %v2398, %v3774
        %v3776 = vlaneseq
        %v3777 = vshrl.u32 %v3776, 7
        %v3778 = vsub.s32 7, %v3777
        %v3779 = vrot.slane %v2398, %v3778
        %v3780 = vlaneseq
        %v3781 = vshrl.u32 %v3780, 7
        %v3782 = vsub.s32 0, %v3781
        %v3783 = vrot.slane %v2399, %v3782
        %v3784 = vlaneseq
        %v3785 = vshrl.u32 %v3784, 7
        %v3786 = vsub.s32 1, %v3785
        %v3787 = vrot.slane %v2399, %v3786
        %v3788 = vlaneseq
        %v3789 = vshrl.u32 %v3788, 7
        %v3790 = vsub.s32 2, %v3789
        %v3791 = vrot.slane %v2399, %v3790
        %v3792 = vlaneseq
        %v3793 = vshrl.u32 %v3792, 7
        %v3794 = vsub.s32 3, %v3793
        %v3795 = vrot.slane %v2399, %v3794
        %v3796 = vlaneseq
        %v3797 = vshrl.u32 %v3796, 7
        %v3798 = vsub.s32 4, %v3797
        %v3799 = vrot.slane %v2399, %v3798
        %v3800 = vlaneseq
        %v3801 = vshrl.u32 %v3800, 7
        %v3802 = vsub.s32 5, %v3801
        %v3803 = vrot.slane %v2399, %v3802
        %v3804 = vlaneseq
        %v3805 = vshrl.u32 %v3804, 7
        %v3806 = vsub.s32 6, %v3805
        %v3807 = vrot.slane %v2399, %v3806
        %v3808 = vlaneseq
        %v3809 = vshrl.u32 %v3808, 7
        %v3810 = vsub.s32 7, %v3809
        %v3811 = vrot.slane %v2399, %v3810
        %3844 = vmatprep.subr.bf16.mxu0 %v3169
        %3845 = vmatpush1.bf16.msra.mxu0 %v3168
        %3846 = vmatprep.subr.bf16.mxu0 %v3201
        %3847 = vmatpush1.bf16.msra.mxu0 %v3200
        %3848 = vmatprep.subr.bf16.mxu0 %v3233
        %3849 = vmatpush1.bf16.msra.mxu0 %v3232
        %3850 = vmatprep.subr.bf16.mxu0 %v3265
        %3851 = vmatpush1.bf16.msra.mxu0 %v3264
        %3852 = vmatprep.subr.bf16.mxu0 %v3297
        %3853 = vmatpush1.bf16.msra.mxu0 %v3296
        %3854 = vmatprep.subr.bf16.mxu0 %v3329
        %3855 = vmatpush1.bf16.msra.mxu0 %v3328
        %3856 = vmatprep.subr.bf16.mxu0 %v3361
        %3857 = vmatpush1.bf16.msra.mxu0 %v3360
        %3858 = vmatprep.subr.bf16.mxu0 %v3393
        %3859 = vmatpush1.bf16.msra.mxu0 %v3392
        %3860 = vmatprep.subr.bf16.mxu0 0
        %3861 = vmatpush1.bf16.msra.mxu0 0
        %3862 = vmatprep.subr.bf16.mxu0 0
        %3863 = vmatpush1.bf16.msra.mxu0 0
        %3864 = vmatprep.subr.bf16.mxu0 0
        %3865 = vmatpush1.bf16.msra.mxu0 0
        %3866 = vmatprep.subr.bf16.mxu0 0
        %3867 = vmatpush1.bf16.msra.mxu0 0
        %3868 = vmatprep.subr.bf16.mxu0 0
        %3869 = vmatpush1.bf16.msra.mxu0 0
        %3870 = vmatprep.subr.bf16.mxu0 0
        %3871 = vmatpush1.bf16.msra.mxu0 0
        %3872 = vmatprep.subr.bf16.mxu0 0
        %3873 = vmatpush1.bf16.msra.mxu0 0
        %3874 = vmatprep.subr.bf16.mxu0 0
        %3875 = vmatpush1.bf16.msra.mxu0 0
        %3876 = vmatprep.mubr.bf16.mxu0 0
        %3877 = vmatmul.mubr.bf16.gmra.mrb[0].mxu0 %v2139
        %v3878 = vpop.f32.mrb[0].mxu0
        %v3879 = vadd.f32 %v3687, %v3878
        %v3880 = vpop.f32.mrb[0].mxu0
        %v3881 = vadd.f32 %v3691, %v3880
        %v3882 = vpop.f32.mrb[0].mxu0
        %v3883 = vpop.f32.mrb[0].mxu0
        %3884 = vdwg.mxu0
        %3885 = vmatprep.subr.bf16.mxu0 %v3171
        %3886 = vmatpush1.bf16.msra.mxu0 %v3170
        %3887 = vmatprep.subr.bf16.mxu0 %v3203
        %3888 = vmatpush1.bf16.msra.mxu0 %v3202
        %3889 = vmatprep.subr.bf16.mxu0 %v3235
        %3890 = vmatpush1.bf16.msra.mxu0 %v3234
        %3891 = vmatprep.subr.bf16.mxu0 %v3267
        %3892 = vmatpush1.bf16.msra.mxu0 %v3266
        %3893 = vmatprep.subr.bf16.mxu0 %v3299
        %3894 = vmatpush1.bf16.msra.mxu0 %v3298
        %3895 = vmatprep.subr.bf16.mxu0 %v3331
        %3896 = vmatpush1.bf16.msra.mxu0 %v3330
        %3897 = vmatprep.subr.bf16.mxu0 %v3363
        %3898 = vmatpush1.bf16.msra.mxu0 %v3362
        %3899 = vmatprep.subr.bf16.mxu0 %v3395
        %3900 = vmatpush1.bf16.msra.mxu0 %v3394
        %3901 = vmatprep.subr.bf16.mxu0 0
        %3902 = vmatpush1.bf16.msra.mxu0 0
        %3903 = vmatprep.subr.bf16.mxu0 0
        %3904 = vmatpush1.bf16.msra.mxu0 0
        %3905 = vmatprep.subr.bf16.mxu0 0
        %3906 = vmatpush1.bf16.msra.mxu0 0
        %3907 = vmatprep.subr.bf16.mxu0 0
        %3908 = vmatpush1.bf16.msra.mxu0 0
        %3909 = vmatprep.subr.bf16.mxu0 0
        %3910 = vmatpush1.bf16.msra.mxu0 0
        %3911 = vmatprep.subr.bf16.mxu0 0
        %3912 = vmatpush1.bf16.msra.mxu0 0
        %3913 = vmatprep.subr.bf16.mxu0 0
        %3914 = vmatpush1.bf16.msra.mxu0 0
        %3915 = vmatprep.subr.bf16.mxu0 0
        %3916 = vmatpush1.bf16.msra.mxu0 0
        %3917 = vmatprep.mubr.bf16.mxu0 0
        %3918 = vmatmul.mubr.bf16.gmra.mrb[0].mxu0 %v2139
        %v3919 = vpop.f32.mrb[0].mxu0
        %v3920 = vadd.f32 %v3695, %v3919
        %v3921 = vpop.f32.mrb[0].mxu0
        %v3922 = vadd.f32 %v3699, %v3921
        %v3923 = vpop.f32.mrb[0].mxu0
        %v3924 = vpop.f32.mrb[0].mxu0
        %3925 = vdwg.mxu0
        %3926 = vmatprep.subr.bf16.mxu0 %v3173
        %3927 = vmatpush1.bf16.msra.mxu0 %v3172
        %3928 = vmatprep.subr.bf16.mxu0 %v3205
        %3929 = vmatpush1.bf16.msra.mxu0 %v3204
        %3930 = vmatprep.subr.bf16.mxu0 %v3237
        %3931 = vmatpush1.bf16.msra.mxu0 %v3236
        %3932 = vmatprep.subr.bf16.mxu0 %v3269
        %3933 = vmatpush1.bf16.msra.mxu0 %v3268
        %3934 = vmatprep.subr.bf16.mxu0 %v3301
        %3935 = vmatpush1.bf16.msra.mxu0 %v3300
        %3936 = vmatprep.subr.bf16.mxu0 %v3333
        %3937 = vmatpush1.bf16.msra.mxu0 %v3332
        %3938 = vmatprep.subr.bf16.mxu0 %v3365
        %3939 = vmatpush1.bf16.msra.mxu0 %v3364
        %3940 = vmatprep.subr.bf16.mxu0 %v3397
        %3941 = vmatpush1.bf16.msra.mxu0 %v3396
        %3942 = vmatprep.subr.bf16.mxu0 0
        %3943 = vmatpush1.bf16.msra.mxu0 0
        %3944 = vmatprep.subr.bf16.mxu0 0
        %3945 = vmatpush1.bf16.msra.mxu0 0
        %3946 = vmatprep.subr.bf16.mxu0 0
        %3947 = vmatpush1.bf16.msra.mxu0 0
        %3948 = vmatprep.subr.bf16.mxu0 0
        %3949 = vmatpush1.bf16.msra.mxu0 0
        %3950 = vmatprep.subr.bf16.mxu0 0
        %3951 = vmatpush1.bf16.msra.mxu0 0
        %3952 = vmatprep.subr.bf16.mxu0 0
        %3953 = vmatpush1.bf16.msra.mxu0 0
        %3954 = vmatprep.subr.bf16.mxu0 0
        %3955 = vmatpush1.bf16.msra.mxu0 0
        %3956 = vmatprep.subr.bf16.mxu0 0
        %3957 = vmatpush1.bf16.msra.mxu0 0
        %3958 = vmatprep.mubr.bf16.mxu0 0
        %3959 = vmatmul.mubr.bf16.gmra.mrb[0].mxu0 %v2139
        %v3960 = vpop.f32.mrb[0].mxu0
        %v3961 = vadd.f32 %v3703, %v3960
        %v3962 = vpop.f32.mrb[0].mxu0
        %v3963 = vadd.f32 %v3707, %v3962
        %v3964 = vpop.f32.mrb[0].mxu0
        %v3965 = vpop.f32.mrb[0].mxu0
        %3966 = vdwg.mxu0
        %3967 = vmatprep.subr.bf16.mxu0 %v3175
        %3968 = vmatpush1.bf16.msra.mxu0 %v3174
        %3969 = vmatprep.subr.bf16.mxu0 %v3207
        %3970 = vmatpush1.bf16.msra.mxu0 %v3206
        %3971 = vmatprep.subr.bf16.mxu0 %v3239
        %3972 = vmatpush1.bf16.msra.mxu0 %v3238
        %3973 = vmatprep.subr.bf16.mxu0 %v3271
        %3974 = vmatpush1.bf16.msra.mxu0 %v3270
        %3975 = vmatprep.subr.bf16.mxu0 %v3303
        %3976 = vmatpush1.bf16.msra.mxu0 %v3302
        %3977 = vmatprep.subr.bf16.mxu0 %v3335
        %3978 = vmatpush1.bf16.msra.mxu0 %v3334
        %3979 = vmatprep.subr.bf16.mxu0 %v3367
        %3980 = vmatpush1.bf16.msra.mxu0 %v3366
        %3981 = vmatprep.subr.bf16.mxu0 %v3399
        %3982 = vmatpush1.bf16.msra.mxu0 %v3398
        %3983 = vmatprep.subr.bf16.mxu0 0
        %3984 = vmatpush1.bf16.msra.mxu0 0
        %3985 = vmatprep.subr.bf16.mxu0 0
        %3986 = vmatpush1.bf16.msra.mxu0 0
        %3987 = vmatprep.subr.bf16.mxu0 0
        %3988 = vmatpush1.bf16.msra.mxu0 0
        %3989 = vmatprep.subr.bf16.mxu0 0
        %3990 = vmatpush1.bf16.msra.mxu0 0
        %3991 = vmatprep.subr.bf16.mxu0 0
        %3992 = vmatpush1.bf16.msra.mxu0 0
        %3993 = vmatprep.subr.bf16.mxu0 0
        %3994 = vmatpush1.bf16.msra.mxu0 0
        %3995 = vmatprep.subr.bf16.mxu0 0
        %3996 = vmatpush1.bf16.msra.mxu0 0
        %3997 = vmatprep.subr.bf16.mxu0 0
        %3998 = vmatpush1.bf16.msra.mxu0 0
        %3999 = vmatprep.mubr.bf16.mxu0 0
        %4000 = vmatmul.mubr.bf16.gmra.mrb[0].mxu0 %v2139
        %v4001 = vpop.f32.mrb[0].mxu0
        %v4002 = vadd.f32 %v3711, %v4001
        %v4003 = vpop.f32.mrb[0].mxu0
        %v4004 = vadd.f32 %v3715, %v4003
        %v4005 = vpop.f32.mrb[0].mxu0
        %v4006 = vpop.f32.mrb[0].mxu0
        %4007 = vdwg.mxu0
        %4008 = vmatprep.subr.bf16.mxu0 %v3177
        %4009 = vmatpush1.bf16.msra.mxu0 %v3176
        %4010 = vmatprep.subr.bf16.mxu0 %v3209
        %4011 = vmatpush1.bf16.msra.mxu0 %v3208
        %4012 = vmatprep.subr.bf16.mxu0 %v3241
        %4013 = vmatpush1.bf16.msra.mxu0 %v3240
        %4014 = vmatprep.subr.bf16.mxu0 %v3273
        %4015 = vmatpush1.bf16.msra.mxu0 %v3272
        %4016 = vmatprep.subr.bf16.mxu0 %v3305
        %4017 = vmatpush1.bf16.msra.mxu0 %v3304
        %4018 = vmatprep.subr.bf16.mxu0 %v3337
        %4019 = vmatpush1.bf16.msra.mxu0 %v3336
        %4020 = vmatprep.subr.bf16.mxu0 %v3369
        %4021 = vmatpush1.bf16.msra.mxu0 %v3368
        %4022 = vmatprep.subr.bf16.mxu0 %v3401
        %4023 = vmatpush1.bf16.msra.mxu0 %v3400
        %4024 = vmatprep.subr.bf16.mxu0 0
        %4025 = vmatpush1.bf16.msra.mxu0 0
        %4026 = vmatprep.subr.bf16.mxu0 0
        %4027 = vmatpush1.bf16.msra.mxu0 0
        %4028 = vmatprep.subr.bf16.mxu0 0
        %4029 = vmatpush1.bf16.msra.mxu0 0
        %4030 = vmatprep.subr.bf16.mxu0 0
        %4031 = vmatpush1.bf16.msra.mxu0 0
        %4032 = vmatprep.subr.bf16.mxu0 0
        %4033 = vmatpush1.bf16.msra.mxu0 0
        %4034 = vmatprep.subr.bf16.mxu0 0
        %4035 = vmatpush1.bf16.msra.mxu0 0
        %4036 = vmatprep.subr.bf16.mxu0 0
        %4037 = vmatpush1.bf16.msra.mxu0 0
        %4038 = vmatprep.subr.bf16.mxu0 0
        %4039 = vmatpush1.bf16.msra.mxu0 0
        %4040 = vmatprep.mubr.bf16.mxu0 0
        %4041 = vmatmul.mubr.bf16.gmra.mrb[0].mxu0 %v2139
        %v4042 = vpop.f32.mrb[0].mxu0
        %v4043 = vadd.f32 %v3719, %v4042
        %v4044 = vpop.f32.mrb[0].mxu0
        %v4045 = vadd.f32 %v3723, %v4044
        %v4046 = vpop.f32.mrb[0].mxu0
        %v4047 = vpop.f32.mrb[0].mxu0
        %4048 = vdwg.mxu0
        %4049 = vmatprep.subr.bf16.mxu0 %v3179
        %4050 = vmatpush1.bf16.msra.mxu0 %v3178
        %4051 = vmatprep.subr.bf16.mxu0 %v3211
        %4052 = vmatpush1.bf16.msra.mxu0 %v3210
        %4053 = vmatprep.subr.bf16.mxu0 %v3243
        %4054 = vmatpush1.bf16.msra.mxu0 %v3242
        %4055 = vmatprep.subr.bf16.mxu0 %v3275
        %4056 = vmatpush1.bf16.msra.mxu0 %v3274
        %4057 = vmatprep.subr.bf16.mxu0 %v3307
        %4058 = vmatpush1.bf16.msra.mxu0 %v3306
        %4059 = vmatprep.subr.bf16.mxu0 %v3339
        %4060 = vmatpush1.bf16.msra.mxu0 %v3338
        %4061 = vmatprep.subr.bf16.mxu0 %v3371
        %4062 = vmatpush1.bf16.msra.mxu0 %v3370
        %4063 = vmatprep.subr.bf16.mxu0 %v3403
        %4064 = vmatpush1.bf16.msra.mxu0 %v3402
        %4065 = vmatprep.subr.bf16.mxu0 0
        %4066 = vmatpush1.bf16.msra.mxu0 0
        %4067 = vmatprep.subr.bf16.mxu0 0
        %4068 = vmatpush1.bf16.msra.mxu0 0
        %4069 = vmatprep.subr.bf16.mxu0 0
        %4070 = vmatpush1.bf16.msra.mxu0 0
        %4071 = vmatprep.subr.bf16.mxu0 0
        %4072 = vmatpush1.bf16.msra.mxu0 0
        %4073 = vmatprep.subr.bf16.mxu0 0
        %4074 = vmatpush1.bf16.msra.mxu0 0
        %4075 = vmatprep.subr.bf16.mxu0 0
        %4076 = vmatpush1.bf16.msra.mxu0 0
        %4077 = vmatprep.subr.bf16.mxu0 0
        %4078 = vmatpush1.bf16.msra.mxu0 0
        %4079 = vmatprep.subr.bf16.mxu0 0
        %4080 = vmatpush1.bf16.msra.mxu0 0
        %4081 = vmatprep.mubr.bf16.mxu0 0
        %4082 = vmatmul.mubr.bf16.gmra.mrb[0].mxu0 %v2139
        %v4083 = vpop.f32.mrb[0].mxu0
        %v4084 = vadd.f32 %v3727, %v4083
        %v4085 = vpop.f32.mrb[0].mxu0
        %v4086 = vadd.f32 %v3731, %v4085
        %v4087 = vpop.f32.mrb[0].mxu0
        %v4088 = vpop.f32.mrb[0].mxu0
        %4089 = vdwg.mxu0
        %4090 = vmatprep.subr.bf16.mxu0 %v3181
        %4091 = vmatpush1.bf16.msra.mxu0 %v3180
        %4092 = vmatprep.subr.bf16.mxu0 %v3213
        %4093 = vmatpush1.bf16.msra.mxu0 %v3212
        %4094 = vmatprep.subr.bf16.mxu0 %v3245
        %4095 = vmatpush1.bf16.msra.mxu0 %v3244
        %4096 = vmatprep.subr.bf16.mxu0 %v3277
        %4097 = vmatpush1.bf16.msra.mxu0 %v3276
        %4098 = vmatprep.subr.bf16.mxu0 %v3309
        %4099 = vmatpush1.bf16.msra.mxu0 %v3308
        %4100 = vmatprep.subr.bf16.mxu0 %v3341
        %4101 = vmatpush1.bf16.msra.mxu0 %v3340
        %4102 = vmatprep.subr.bf16.mxu0 %v3373
        %4103 = vmatpush1.bf16.msra.mxu0 %v3372
        %4104 = vmatprep.subr.bf16.mxu0 %v3405
        %4105 = vmatpush1.bf16.msra.mxu0 %v3404
        %4106 = vmatprep.subr.bf16.mxu0 0
        %4107 = vmatpush1.bf16.msra.mxu0 0
        %4108 = vmatprep.subr.bf16.mxu0 0
        %4109 = vmatpush1.bf16.msra.mxu0 0
        %4110 = vmatprep.subr.bf16.mxu0 0
        %4111 = vmatpush1.bf16.msra.mxu0 0
        %4112 = vmatprep.subr.bf16.mxu0 0
        %4113 = vmatpush1.bf16.msra.mxu0 0
        %4114 = vmatprep.subr.bf16.mxu0 0
        %4115 = vmatpush1.bf16.msra.mxu0 0
        %4116 = vmatprep.subr.bf16.mxu0 0
        %4117 = vmatpush1.bf16.msra.mxu0 0
        %4118 = vmatprep.subr.bf16.mxu0 0
        %4119 = vmatpush1.bf16.msra.mxu0 0
        %4120 = vmatprep.subr.bf16.mxu0 0
        %4121 = vmatpush1.bf16.msra.mxu0 0
        %4122 = vmatprep.mubr.bf16.mxu0 0
        %4123 = vmatmul.mubr.bf16.gmra.mrb[0].mxu0 %v2139
        %v4124 = vpop.f32.mrb[0].mxu0
        %v4125 = vadd.f32 %v3735, %v4124
        %v4126 = vpop.f32.mrb[0].mxu0
        %v4127 = vadd.f32 %v3739, %v4126
        %v4128 = vpop.f32.mrb[0].mxu0
        %v4129 = vpop.f32.mrb[0].mxu0
        %4130 = vdwg.mxu0
        %4131 = vmatprep.subr.bf16.mxu0 %v3183
        %4132 = vmatpush1.bf16.msra.mxu0 %v3182
        %4133 = vmatprep.subr.bf16.mxu0 %v3215
        %4134 = vmatpush1.bf16.msra.mxu0 %v3214
        %4135 = vmatprep.subr.bf16.mxu0 %v3247
        %4136 = vmatpush1.bf16.msra.mxu0 %v3246
        %4137 = vmatprep.subr.bf16.mxu0 %v3279
        %4138 = vmatpush1.bf16.msra.mxu0 %v3278
        %4139 = vmatprep.subr.bf16.mxu0 %v3311
        %4140 = vmatpush1.bf16.msra.mxu0 %v3310
        %4141 = vmatprep.subr.bf16.mxu0 %v3343
        %4142 = vmatpush1.bf16.msra.mxu0 %v3342
        %4143 = vmatprep.subr.bf16.mxu0 %v3375
        %4144 = vmatpush1.bf16.msra.mxu0 %v3374
        %4145 = vmatprep.subr.bf16.mxu0 %v3407
        %4146 = vmatpush1.bf16.msra.mxu0 %v3406
        %4147 = vmatprep.subr.bf16.mxu0 0
        %4148 = vmatpush1.bf16.msra.mxu0 0
        %4149 = vmatprep.subr.bf16.mxu0 0
        %4150 = vmatpush1.bf16.msra.mxu0 0
        %4151 = vmatprep.subr.bf16.mxu0 0
        %4152 = vmatpush1.bf16.msra.mxu0 0
        %4153 = vmatprep.subr.bf16.mxu0 0
        %4154 = vmatpush1.bf16.msra.mxu0 0
        %4155 = vmatprep.subr.bf16.mxu0 0
        %4156 = vmatpush1.bf16.msra.mxu0 0
        %4157 = vmatprep.subr.bf16.mxu0 0
        %4158 = vmatpush1.bf16.msra.mxu0 0
        %4159 = vmatprep.subr.bf16.mxu0 0
        %4160 = vmatpush1.bf16.msra.mxu0 0
        %4161 = vmatprep.subr.bf16.mxu0 0
        %4162 = vmatpush1.bf16.msra.mxu0 0
        %4163 = vmatprep.mubr.bf16.mxu0 0
        %4164 = vmatmul.mubr.bf16.gmra.mrb[0].mxu0 %v2139
        %v4165 = vpop.f32.mrb[0].mxu0
        %v4166 = vadd.f32 %v3743, %v4165
        %v4167 = vpop.f32.mrb[0].mxu0
        %v4168 = vadd.f32 %v3747, %v4167
        %v4169 = vpop.f32.mrb[0].mxu0
        %v4170 = vpop.f32.mrb[0].mxu0
        %4171 = vdwg.mxu0
        %4172 = vmatprep.subr.bf16.mxu0 %v3185
        %4173 = vmatpush1.bf16.msra.mxu0 %v3184
        %4174 = vmatprep.subr.bf16.mxu0 %v3217
        %4175 = vmatpush1.bf16.msra.mxu0 %v3216
        %4176 = vmatprep.subr.bf16.mxu0 %v3249
        %4177 = vmatpush1.bf16.msra.mxu0 %v3248
        %4178 = vmatprep.subr.bf16.mxu0 %v3281
        %4179 = vmatpush1.bf16.msra.mxu0 %v3280
        %4180 = vmatprep.subr.bf16.mxu0 %v3313
        %4181 = vmatpush1.bf16.msra.mxu0 %v3312
        %4182 = vmatprep.subr.bf16.mxu0 %v3345
        %4183 = vmatpush1.bf16.msra.mxu0 %v3344
        %4184 = vmatprep.subr.bf16.mxu0 %v3377
        %4185 = vmatpush1.bf16.msra.mxu0 %v3376
        %4186 = vmatprep.subr.bf16.mxu0 %v3409
        %4187 = vmatpush1.bf16.msra.mxu0 %v3408
        %4188 = vmatprep.subr.bf16.mxu0 0
        %4189 = vmatpush1.bf16.msra.mxu0 0
        %4190 = vmatprep.subr.bf16.mxu0 0
        %4191 = vmatpush1.bf16.msra.mxu0 0
        %4192 = vmatprep.subr.bf16.mxu0 0
        %4193 = vmatpush1.bf16.msra.mxu0 0
        %4194 = vmatprep.subr.bf16.mxu0 0
        %4195 = vmatpush1.bf16.msra.mxu0 0
        %4196 = vmatprep.subr.bf16.mxu0 0
        %4197 = vmatpush1.bf16.msra.mxu0 0
        %4198 = vmatprep.subr.bf16.mxu0 0
        %4199 = vmatpush1.bf16.msra.mxu0 0
        %4200 = vmatprep.subr.bf16.mxu0 0
        %4201 = vmatpush1.bf16.msra.mxu0 0
        %4202 = vmatprep.subr.bf16.mxu0 0
        %4203 = vmatpush1.bf16.msra.mxu0 0
        %4204 = vmatprep.mubr.bf16.mxu0 0
        %4205 = vmatmul.mubr.bf16.gmra.mrb[0].mxu0 %v2139
        %v4206 = vpop.f32.mrb[0].mxu0
        %v4207 = vadd.f32 %v3751, %v4206
        %v4208 = vpop.f32.mrb[0].mxu0
        %v4209 = vadd.f32 %v3755, %v4208
        %v4210 = vpop.f32.mrb[0].mxu0
        %v4211 = vpop.f32.mrb[0].mxu0
        %4212 = vdwg.mxu0
        %4213 = vmatprep.subr.bf16.mxu0 %v3187
        %4214 = vmatpush1.bf16.msra.mxu0 %v3186
        %4215 = vmatprep.subr.bf16.mxu0 %v3219
        %4216 = vmatpush1.bf16.msra.mxu0 %v3218
        %4217 = vmatprep.subr.bf16.mxu0 %v3251
        %4218 = vmatpush1.bf16.msra.mxu0 %v3250
        %4219 = vmatprep.subr.bf16.mxu0 %v3283
        %4220 = vmatpush1.bf16.msra.mxu0 %v3282
        %4221 = vmatprep.subr.bf16.mxu0 %v3315
        %4222 = vmatpush1.bf16.msra.mxu0 %v3314
        %4223 = vmatprep.subr.bf16.mxu0 %v3347
        %4224 = vmatpush1.bf16.msra.mxu0 %v3346
        %4225 = vmatprep.subr.bf16.mxu0 %v3379
        %4226 = vmatpush1.bf16.msra.mxu0 %v3378
        %4227 = vmatprep.subr.bf16.mxu0 %v3411
        %4228 = vmatpush1.bf16.msra.mxu0 %v3410
        %4229 = vmatprep.subr.bf16.mxu0 0
        %4230 = vmatpush1.bf16.msra.mxu0 0
        %4231 = vmatprep.subr.bf16.mxu0 0
        %4232 = vmatpush1.bf16.msra.mxu0 0
        %4233 = vmatprep.subr.bf16.mxu0 0
        %4234 = vmatpush1.bf16.msra.mxu0 0
        %4235 = vmatprep.subr.bf16.mxu0 0
        %4236 = vmatpush1.bf16.msra.mxu0 0
        %4237 = vmatprep.subr.bf16.mxu0 0
        %4238 = vmatpush1.bf16.msra.mxu0 0
        %4239 = vmatprep.subr.bf16.mxu0 0
        %4240 = vmatpush1.bf16.msra.mxu0 0
        %4241 = vmatprep.subr.bf16.mxu0 0
        %4242 = vmatpush1.bf16.msra.mxu0 0
        %4243 = vmatprep.subr.bf16.mxu0 0
        %4244 = vmatpush1.bf16.msra.mxu0 0
        %4245 = vmatprep.mubr.bf16.mxu0 0
        %4246 = vmatmul.mubr.bf16.gmra.mrb[0].mxu0 %v2139
        %v4247 = vpop.f32.mrb[0].mxu0
        %v4248 = vadd.f32 %v3759, %v4247
        %v4249 = vpop.f32.mrb[0].mxu0
        %v4250 = vadd.f32 %v3763, %v4249
        %v4251 = vpop.f32.mrb[0].mxu0
        %v4252 = vpop.f32.mrb[0].mxu0
        %4253 = vdwg.mxu0
        %4254 = vmatprep.subr.bf16.mxu0 %v3189
        %4255 = vmatpush1.bf16.msra.mxu0 %v3188
        %4256 = vmatprep.subr.bf16.mxu0 %v3221
        %4257 = vmatpush1.bf16.msra.mxu0 %v3220
        %4258 = vmatprep.subr.bf16.mxu0 %v3253
        %4259 = vmatpush1.bf16.msra.mxu0 %v3252
        %4260 = vmatprep.subr.bf16.mxu0 %v3285
        %4261 = vmatpush1.bf16.msra.mxu0 %v3284
        %4262 = vmatprep.subr.bf16.mxu0 %v3317
        %4263 = vmatpush1.bf16.msra.mxu0 %v3316
        %4264 = vmatprep.subr.bf16.mxu0 %v3349
        %4265 = vmatpush1.bf16.msra.mxu0 %v3348
        %4266 = vmatprep.subr.bf16.mxu0 %v3381
        %4267 = vmatpush1.bf16.msra.mxu0 %v3380
        %4268 = vmatprep.subr.bf16.mxu0 %v3413
        %4269 = vmatpush1.bf16.msra.mxu0 %v3412
        %4270 = vmatprep.subr.bf16.mxu0 0
        %4271 = vmatpush1.bf16.msra.mxu0 0
        %4272 = vmatprep.subr.bf16.mxu0 0
        %4273 = vmatpush1.bf16.msra.mxu0 0
        %4274 = vmatprep.subr.bf16.mxu0 0
        %4275 = vmatpush1.bf16.msra.mxu0 0
        %4276 = vmatprep.subr.bf16.mxu0 0
        %4277 = vmatpush1.bf16.msra.mxu0 0
        %4278 = vmatprep.subr.bf16.mxu0 0
        %4279 = vmatpush1.bf16.msra.mxu0 0
        %4280 = vmatprep.subr.bf16.mxu0 0
        %4281 = vmatpush1.bf16.msra.mxu0 0
        %4282 = vmatprep.subr.bf16.mxu0 0
        %4283 = vmatpush1.bf16.msra.mxu0 0
        %4284 = vmatprep.subr.bf16.mxu0 0
        %4285 = vmatpush1.bf16.msra.mxu0 0
        %4286 = vmatprep.mubr.bf16.mxu0 0
        %4287 = vmatmul.mubr.bf16.gmra.mrb[0].mxu0 %v2139
        %v4288 = vpop.f32.mrb[0].mxu0
        %v4289 = vadd.f32 %v3767, %v4288
        %v4290 = vpop.f32.mrb[0].mxu0
        %v4291 = vadd.f32 %v3771, %v4290
        %v4292 = vpop.f32.mrb[0].mxu0
        %v4293 = vpop.f32.mrb[0].mxu0
        %4294 = vdwg.mxu0
        %4295 = vmatprep.subr.bf16.mxu0 %v3191
        %4296 = vmatpush1.bf16.msra.mxu0 %v3190
        %4297 = vmatprep.subr.bf16.mxu0 %v3223
        %4298 = vmatpush1.bf16.msra.mxu0 %v3222
        %4299 = vmatprep.subr.bf16.mxu0 %v3255
        %4300 = vmatpush1.bf16.msra.mxu0 %v3254
        %4301 = vmatprep.subr.bf16.mxu0 %v3287
        %4302 = vmatpush1.bf16.msra.mxu0 %v3286
        %4303 = vmatprep.subr.bf16.mxu0 %v3319
        %4304 = vmatpush1.bf16.msra.mxu0 %v3318
        %4305 = vmatprep.subr.bf16.mxu0 %v3351
        %4306 = vmatpush1.bf16.msra.mxu0 %v3350
        %4307 = vmatprep.subr.bf16.mxu0 %v3383
        %4308 = vmatpush1.bf16.msra.mxu0 %v3382
        %4309 = vmatprep.subr.bf16.mxu0 %v3415
        %4310 = vmatpush1.bf16.msra.mxu0 %v3414
        %4311 = vmatprep.subr.bf16.mxu0 0
        %4312 = vmatpush1.bf16.msra.mxu0 0
        %4313 = vmatprep.subr.bf16.mxu0 0
        %4314 = vmatpush1.bf16.msra.mxu0 0
        %4315 = vmatprep.subr.bf16.mxu0 0
        %4316 = vmatpush1.bf16.msra.mxu0 0
        %4317 = vmatprep.subr.bf16.mxu0 0
        %4318 = vmatpush1.bf16.msra.mxu0 0
        %4319 = vmatprep.subr.bf16.mxu0 0
        %4320 = vmatpush1.bf16.msra.mxu0 0
        %4321 = vmatprep.subr.bf16.mxu0 0
        %4322 = vmatpush1.bf16.msra.mxu0 0
        %4323 = vmatprep.subr.bf16.mxu0 0
        %4324 = vmatpush1.bf16.msra.mxu0 0
        %4325 = vmatprep.subr.bf16.mxu0 0
        %4326 = vmatpush1.bf16.msra.mxu0 0
        %4327 = vmatprep.mubr.bf16.mxu0 0
        %4328 = vmatmul.mubr.bf16.gmra.mrb[0].mxu0 %v2139
        %v4329 = vpop.f32.mrb[0].mxu0
        %v4330 = vadd.f32 %v3775, %v4329
        %v4331 = vpop.f32.mrb[0].mxu0
        %v4332 = vadd.f32 %v3779, %v4331
        %v4333 = vpop.f32.mrb[0].mxu0
        %v4334 = vpop.f32.mrb[0].mxu0
        %4335 = vdwg.mxu0
        %4336 = vmatprep.subr.bf16.mxu0 %v3193
        %4337 = vmatpush1.bf16.msra.mxu0 %v3192
        %4338 = vmatprep.subr.bf16.mxu0 %v3225
        %4339 = vmatpush1.bf16.msra.mxu0 %v3224
        %4340 = vmatprep.subr.bf16.mxu0 %v3257
        %4341 = vmatpush1.bf16.msra.mxu0 %v3256
        %4342 = vmatprep.subr.bf16.mxu0 %v3289
        %4343 = vmatpush1.bf16.msra.mxu0 %v3288
        %4344 = vmatprep.subr.bf16.mxu0 %v3321
        %4345 = vmatpush1.bf16.msra.mxu0 %v3320
        %4346 = vmatprep.subr.bf16.mxu0 %v3353
        %4347 = vmatpush1.bf16.msra.mxu0 %v3352
        %4348 = vmatprep.subr.bf16.mxu0 %v3385
        %4349 = vmatpush1.bf16.msra.mxu0 %v3384
        %4350 = vmatprep.subr.bf16.mxu0 %v3417
        %4351 = vmatpush1.bf16.msra.mxu0 %v3416
        %4352 = vmatprep.subr.bf16.mxu0 0
        %4353 = vmatpush1.bf16.msra.mxu0 0
        %4354 = vmatprep.subr.bf16.mxu0 0
        %4355 = vmatpush1.bf16.msra.mxu0 0
        %4356 = vmatprep.subr.bf16.mxu0 0
        %4357 = vmatpush1.bf16.msra.mxu0 0
        %4358 = vmatprep.subr.bf16.mxu0 0
        %4359 = vmatpush1.bf16.msra.mxu0 0
        %4360 = vmatprep.subr.bf16.mxu0 0
        %4361 = vmatpush1.bf16.msra.mxu0 0
        %4362 = vmatprep.subr.bf16.mxu0 0
        %4363 = vmatpush1.bf16.msra.mxu0 0
        %4364 = vmatprep.subr.bf16.mxu0 0
        %4365 = vmatpush1.bf16.msra.mxu0 0
        %4366 = vmatprep.subr.bf16.mxu0 0
        %4367 = vmatpush1.bf16.msra.mxu0 0
        %4368 = vmatprep.mubr.bf16.mxu0 0
        %4369 = vmatmul.mubr.bf16.gmra.mrb[0].mxu0 %v2139
        %v4370 = vpop.f32.mrb[0].mxu0
        %v4371 = vadd.f32 %v3783, %v4370
        %v4372 = vpop.f32.mrb[0].mxu0
        %v4373 = vadd.f32 %v3787, %v4372
        %v4374 = vpop.f32.mrb[0].mxu0
        %v4375 = vpop.f32.mrb[0].mxu0
        %4376 = vdwg.mxu0
        %4377 = vmatprep.subr.bf16.mxu0 %v3195
        %4378 = vmatpush1.bf16.msra.mxu0 %v3194
        %4379 = vmatprep.subr.bf16.mxu0 %v3227
        %4380 = vmatpush1.bf16.msra.mxu0 %v3226
        %4381 = vmatprep.subr.bf16.mxu0 %v3259
        %4382 = vmatpush1.bf16.msra.mxu0 %v3258
        %4383 = vmatprep.subr.bf16.mxu0 %v3291
        %4384 = vmatpush1.bf16.msra.mxu0 %v3290
        %4385 = vmatprep.subr.bf16.mxu0 %v3323
        %4386 = vmatpush1.bf16.msra.mxu0 %v3322
        %4387 = vmatprep.subr.bf16.mxu0 %v3355
        %4388 = vmatpush1.bf16.msra.mxu0 %v3354
        %4389 = vmatprep.subr.bf16.mxu0 %v3387
        %4390 = vmatpush1.bf16.msra.mxu0 %v3386
        %4391 = vmatprep.subr.bf16.mxu0 %v3419
        %4392 = vmatpush1.bf16.msra.mxu0 %v3418
        %4393 = vmatprep.subr.bf16.mxu0 0
        %4394 = vmatpush1.bf16.msra.mxu0 0
        %4395 = vmatprep.subr.bf16.mxu0 0
        %4396 = vmatpush1.bf16.msra.mxu0 0
        %4397 = vmatprep.subr.bf16.mxu0 0
        %4398 = vmatpush1.bf16.msra.mxu0 0
        %4399 = vmatprep.subr.bf16.mxu0 0
        %4400 = vmatpush1.bf16.msra.mxu0 0
        %4401 = vmatprep.subr.bf16.mxu0 0
        %4402 = vmatpush1.bf16.msra.mxu0 0
        %4403 = vmatprep.subr.bf16.mxu0 0
        %4404 = vmatpush1.bf16.msra.mxu0 0
        %4405 = vmatprep.subr.bf16.mxu0 0
        %4406 = vmatpush1.bf16.msra.mxu0 0
        %4407 = vmatprep.subr.bf16.mxu0 0
        %4408 = vmatpush1.bf16.msra.mxu0 0
        %4409 = vmatprep.mubr.bf16.mxu0 0
        %4410 = vmatmul.mubr.bf16.gmra.mrb[0].mxu0 %v2139
        %v4411 = vpop.f32.mrb[0].mxu0
        %v4412 = vadd.f32 %v3791, %v4411
        %v4413 = vpop.f32.mrb[0].mxu0
        %v4414 = vadd.f32 %v3795, %v4413
        %v4415 = vpop.f32.mrb[0].mxu0
        %v4416 = vpop.f32.mrb[0].mxu0
        %4417 = vdwg.mxu0
        %4418 = vmatprep.subr.bf16.mxu0 %v3197
        %4419 = vmatpush1.bf16.msra.mxu0 %v3196
        %4420 = vmatprep.subr.bf16.mxu0 %v3229
        %4421 = vmatpush1.bf16.msra.mxu0 %v3228
        %4422 = vmatprep.subr.bf16.mxu0 %v3261
        %4423 = vmatpush1.bf16.msra.mxu0 %v3260
        %4424 = vmatprep.subr.bf16.mxu0 %v3293
        %4425 = vmatpush1.bf16.msra.mxu0 %v3292
        %4426 = vmatprep.subr.bf16.mxu0 %v3325
        %4427 = vmatpush1.bf16.msra.mxu0 %v3324
        %4428 = vmatprep.subr.bf16.mxu0 %v3357
        %4429 = vmatpush1.bf16.msra.mxu0 %v3356
        %4430 = vmatprep.subr.bf16.mxu0 %v3389
        %4431 = vmatpush1.bf16.msra.mxu0 %v3388
        %4432 = vmatprep.subr.bf16.mxu0 %v3421
        %4433 = vmatpush1.bf16.msra.mxu0 %v3420
        %4434 = vmatprep.subr.bf16.mxu0 0
        %4435 = vmatpush1.bf16.msra.mxu0 0
        %4436 = vmatprep.subr.bf16.mxu0 0
        %4437 = vmatpush1.bf16.msra.mxu0 0
        %4438 = vmatprep.subr.bf16.mxu0 0
        %4439 = vmatpush1.bf16.msra.mxu0 0
        %4440 = vmatprep.subr.bf16.mxu0 0
        %4441 = vmatpush1.bf16.msra.mxu0 0
        %4442 = vmatprep.subr.bf16.mxu0 0
        %4443 = vmatpush1.bf16.msra.mxu0 0
        %4444 = vmatprep.subr.bf16.mxu0 0
        %4445 = vmatpush1.bf16.msra.mxu0 0
        %4446 = vmatprep.subr.bf16.mxu0 0
        %4447 = vmatpush1.bf16.msra.mxu0 0
        %4448 = vmatprep.subr.bf16.mxu0 0
        %4449 = vmatpush1.bf16.msra.mxu0 0
        %4450 = vmatprep.mubr.bf16.mxu0 0
        %4451 = vmatmul.mubr.bf16.gmra.mrb[0].mxu0 %v2139
        %v4452 = vpop.f32.mrb[0].mxu0
        %v4453 = vadd.f32 %v3799, %v4452
        %v4454 = vpop.f32.mrb[0].mxu0
        %v4455 = vadd.f32 %v3803, %v4454
        %v4456 = vpop.f32.mrb[0].mxu0
        %v4457 = vpop.f32.mrb[0].mxu0
        %4458 = vdwg.mxu0
        %4459 = vmatprep.subr.bf16.mxu0 %v3199
        %4460 = vmatpush1.bf16.msra.mxu0 %v3198
        %4461 = vmatprep.subr.bf16.mxu0 %v3231
        %4462 = vmatpush1.bf16.msra.mxu0 %v3230
        %4463 = vmatprep.subr.bf16.mxu0 %v3263
        %4464 = vmatpush1.bf16.msra.mxu0 %v3262
        %4465 = vmatprep.subr.bf16.mxu0 %v3295
        %4466 = vmatpush1.bf16.msra.mxu0 %v3294
        %4467 = vmatprep.subr.bf16.mxu0 %v3327
        %4468 = vmatpush1.bf16.msra.mxu0 %v3326
        %4469 = vmatprep.subr.bf16.mxu0 %v3359
        %4470 = vmatpush1.bf16.msra.mxu0 %v3358
        %4471 = vmatprep.subr.bf16.mxu0 %v3391
        %4472 = vmatpush1.bf16.msra.mxu0 %v3390
        %4473 = vmatprep.subr.bf16.mxu0 %v3423
        %4474 = vmatpush1.bf16.msra.mxu0 %v3422
        %4475 = vmatprep.subr.bf16.mxu0 0
        %4476 = vmatpush1.bf16.msra.mxu0 0
        %4477 = vmatprep.subr.bf16.mxu0 0
        %4478 = vmatpush1.bf16.msra.mxu0 0
        %4479 = vmatprep.subr.bf16.mxu0 0
        %4480 = vmatpush1.bf16.msra.mxu0 0
        %4481 = vmatprep.subr.bf16.mxu0 0
        %4482 = vmatpush1.bf16.msra.mxu0 0
        %4483 = vmatprep.subr.bf16.mxu0 0
        %4484 = vmatpush1.bf16.msra.mxu0 0
        %4485 = vmatprep.subr.bf16.mxu0 0
        %4486 = vmatpush1.bf16.msra.mxu0 0
        %4487 = vmatprep.subr.bf16.mxu0 0
        %4488 = vmatpush1.bf16.msra.mxu0 0
        %4489 = vmatprep.subr.bf16.mxu0 0
        %4490 = vmatpush1.bf16.msra.mxu0 0
        %4491 = vmatprep.mubr.bf16.mxu0 0
        %4492 = vmatmul.mubr.bf16.gmra.mrb[0].mxu0 %v2139
        %v4493 = vpop.f32.mrb[0].mxu0
        %v4494 = vadd.f32 %v3807, %v4493
        %v4495 = vpop.f32.mrb[0].mxu0
        %v4496 = vadd.f32 %v3811, %v4495
        %v4497 = vpop.f32.mrb[0].mxu0
        %v4498 = vpop.f32.mrb[0].mxu0
        %4499 = vdwg.mxu0
        %v4500 = vmax.f32 %v3879, 0.0
        %v4501 = vmax.f32 %v3881, 0.0
        %v4502 = vmax.f32 %v3920, 0.0
        %v4503 = vmax.f32 %v3922, 0.0
        %v4504 = vmax.f32 %v3961, 0.0
        %v4505 = vmax.f32 %v3963, 0.0
        %v4506 = vmax.f32 %v4002, 0.0
        %v4507 = vmax.f32 %v4004, 0.0
        %v4508 = vmax.f32 %v4043, 0.0
        %v4509 = vmax.f32 %v4045, 0.0
        %v4510 = vmax.f32 %v4084, 0.0
        %v4511 = vmax.f32 %v4086, 0.0
        %v4512 = vmax.f32 %v4125, 0.0
        %v4513 = vmax.f32 %v4127, 0.0
        %v4514 = vmax.f32 %v4166, 0.0
        %v4515 = vmax.f32 %v4168, 0.0
        %v4516 = vmax.f32 %v4207, 0.0
        %v4517 = vmax.f32 %v4209, 0.0
        %v4518 = vmax.f32 %v4248, 0.0
        %v4519 = vmax.f32 %v4250, 0.0
        %v4520 = vmax.f32 %v4289, 0.0
        %v4521 = vmax.f32 %v4291, 0.0
        %v4522 = vmax.f32 %v4330, 0.0
        %v4523 = vmax.f32 %v4332, 0.0
        %v4524 = vmax.f32 %v4371, 0.0
        %v4525 = vmax.f32 %v4373, 0.0
        %v4526 = vmax.f32 %v4412, 0.0
        %v4527 = vmax.f32 %v4414, 0.0
        %v4528 = vmax.f32 %v4453, 0.0
        %v4529 = vmax.f32 %v4455, 0.0
        %v4530 = vmax.f32 %v4494, 0.0
        %v4531 = vmax.f32 %v4496, 0.0
        %v4532 = vpack.c.bf16 %v4500, %v4500
        %v4533 = vpack.c.bf16 %v4501, %v4501
        %v4534 = vpack.c.bf16 %v4502, %v4502
        %v4535 = vpack.c.bf16 %v4503, %v4503
        %v4536 = vpack.c.bf16 %v4504, %v4504
        %v4537 = vpack.c.bf16 %v4505, %v4505
        %v4538 = vpack.c.bf16 %v4506, %v4506
        %v4539 = vpack.c.bf16 %v4507, %v4507
        %v4540 = vpack.c.bf16 %v4508, %v4508
        %v4541 = vpack.c.bf16 %v4509, %v4509
        %v4542 = vpack.c.bf16 %v4510, %v4510
        %v4543 = vpack.c.bf16 %v4511, %v4511
        %v4544 = vpack.c.bf16 %v4512, %v4512
        %v4545 = vpack.c.bf16 %v4513, %v4513
        %v4546 = vpack.c.bf16 %v4514, %v4514
        %v4547 = vpack.c.bf16 %v4515, %v4515
        %v4548 = vpack.c.bf16 %v4516, %v4516
        %v4549 = vpack.c.bf16 %v4517, %v4517
        %v4550 = vpack.c.bf16 %v4518, %v4518
        %v4551 = vpack.c.bf16 %v4519, %v4519
        %v4552 = vpack.c.bf16 %v4520, %v4520
        %v4553 = vpack.c.bf16 %v4521, %v4521
        %v4554 = vpack.c.bf16 %v4522, %v4522
        %v4555 = vpack.c.bf16 %v4523, %v4523
        %v4556 = vpack.c.bf16 %v4524, %v4524
        %v4557 = vpack.c.bf16 %v4525, %v4525
        %v4558 = vpack.c.bf16 %v4526, %v4526
        %v4559 = vpack.c.bf16 %v4527, %v4527
        %v4560 = vpack.c.bf16 %v4528, %v4528
        %v4561 = vpack.c.bf16 %v4529, %v4529
        %v4562 = vpack.c.bf16 %v4530, %v4530
        %v4563 = vpack.c.bf16 %v4531, %v4531
        %v4564 = vld [vmem:[#allocation12] sm:$0xf]
        %v4565 = vld [vmem:[#allocation12 + $0x4] sm:$0xf]
        %v4566 = vld [vmem:[#allocation12 + $0x8] sm:$0xf]
        %v4567 = vld [vmem:[#allocation12 + $0xc] sm:$0xf]
        %v4568 = vld [vmem:[#allocation12 + $0x10] sm:$0xf]
        %v4569 = vld [vmem:[#allocation12 + $0x14] sm:$0xf]
        %v4570 = vld [vmem:[#allocation12 + $0x18] sm:$0xf]
        %v4571 = vld [vmem:[#allocation12 + $0x1c] sm:$0xf]
        %v4572 = vld [vmem:[#allocation12 + $0x20] sm:$0xf]
        %v4573 = vld [vmem:[#allocation12 + $0x24] sm:$0xf]
        %v4574 = vld [vmem:[#allocation12 + $0x28] sm:$0xf]
        %v4575 = vld [vmem:[#allocation12 + $0x2c] sm:$0xf]
        %v4576 = vld [vmem:[#allocation12 + $0x30] sm:$0xf]
        %v4577 = vld [vmem:[#allocation12 + $0x34] sm:$0xf]
        %v4578 = vld [vmem:[#allocation12 + $0x38] sm:$0xf]
        %v4579 = vld [vmem:[#allocation12 + $0x3c] sm:$0xf]
        %v4580 = vld [vmem:[#allocation12 + $0x40] sm:$0xf]
        %v4581 = vld [vmem:[#allocation12 + $0x44] sm:$0xf]
        %v4582 = vld [vmem:[#allocation12 + $0x48] sm:$0xf]
        %v4583 = vld [vmem:[#allocation12 + $0x4c] sm:$0xf]
        %v4584 = vld [vmem:[#allocation12 + $0x50] sm:$0xf]
        %v4585 = vld [vmem:[#allocation12 + $0x54] sm:$0xf]
        %v4586 = vld [vmem:[#allocation12 + $0x58] sm:$0xf]
        %v4587 = vld [vmem:[#allocation12 + $0x5c] sm:$0xf]
        %v4588 = vld [vmem:[#allocation12 + $0x60] sm:$0xf]
        %v4589 = vld [vmem:[#allocation12 + $0x64] sm:$0xf]
        %v4590 = vld [vmem:[#allocation12 + $0x68] sm:$0xf]
        %v4591 = vld [vmem:[#allocation12 + $0x6c] sm:$0xf]
        %v4592 = vld [vmem:[#allocation12 + $0x70] sm:$0xf]
        %v4593 = vld [vmem:[#allocation12 + $0x74] sm:$0xf]
        %v4594 = vld [vmem:[#allocation12 + $0x78] sm:$0xf]
        %v4595 = vld [vmem:[#allocation12 + $0x7c] sm:$0xf]
        %v4596 = vld [vmem:[#allocation12 + $0x80] sm:$0xf]
        %v4597 = vld [vmem:[#allocation12 + $0x84] sm:$0xf]
        %v4598 = vld [vmem:[#allocation12 + $0x88] sm:$0xf]
        %v4599 = vld [vmem:[#allocation12 + $0x8c] sm:$0xf]
        %v4600 = vld [vmem:[#allocation12 + $0x90] sm:$0xf]
        %v4601 = vld [vmem:[#allocation12 + $0x94] sm:$0xf]
        %v4602 = vld [vmem:[#allocation12 + $0x98] sm:$0xf]
        %v4603 = vld [vmem:[#allocation12 + $0x9c] sm:$0xf]
        %v4604 = vld [vmem:[#allocation12 + $0xa0] sm:$0xf]
        %v4605 = vld [vmem:[#allocation12 + $0xa4] sm:$0xf]
        %v4606 = vld [vmem:[#allocation12 + $0xa8] sm:$0xf]
        %v4607 = vld [vmem:[#allocation12 + $0xac] sm:$0xf]
        %v4608 = vld [vmem:[#allocation12 + $0xb0] sm:$0xf]
        %v4609 = vld [vmem:[#allocation12 + $0xb4] sm:$0xf]
        %v4610 = vld [vmem:[#allocation12 + $0xb8] sm:$0xf]
        %v4611 = vld [vmem:[#allocation12 + $0xbc] sm:$0xf]
        %v4612 = vld [vmem:[#allocation12 + $0xc0] sm:$0xf]
        %v4613 = vld [vmem:[#allocation12 + $0xc4] sm:$0xf]
        %v4614 = vld [vmem:[#allocation12 + $0xc8] sm:$0xf]
        %v4615 = vld [vmem:[#allocation12 + $0xcc] sm:$0xf]
        %v4616 = vld [vmem:[#allocation12 + $0xd0] sm:$0xf]
        %v4617 = vld [vmem:[#allocation12 + $0xd4] sm:$0xf]
        %v4618 = vld [vmem:[#allocation12 + $0xd8] sm:$0xf]
        %v4619 = vld [vmem:[#allocation12 + $0xdc] sm:$0xf]
        %v4620 = vld [vmem:[#allocation12 + $0xe0] sm:$0xf]
        %v4621 = vld [vmem:[#allocation12 + $0xe4] sm:$0xf]
        %v4622 = vld [vmem:[#allocation12 + $0xe8] sm:$0xf]
        %v4623 = vld [vmem:[#allocation12 + $0xec] sm:$0xf]
        %v4624 = vld [vmem:[#allocation12 + $0xf0] sm:$0xf]
        %v4625 = vld [vmem:[#allocation12 + $0xf4] sm:$0xf]
        %v4626 = vld [vmem:[#allocation12 + $0xf8] sm:$0xf]
        %v4627 = vld [vmem:[#allocation12 + $0xfc] sm:$0xf]
        %v4628 = vld [vmem:[#allocation12 + $0x100] sm:$0xf]
        %v4629 = vld [vmem:[#allocation12 + $0x104] sm:$0xf]
        %v4630 = vld [vmem:[#allocation12 + $0x108] sm:$0xf]
        %v4631 = vld [vmem:[#allocation12 + $0x10c] sm:$0xf]
        %v4632 = vld [vmem:[#allocation12 + $0x110] sm:$0xf]
        %v4633 = vld [vmem:[#allocation12 + $0x114] sm:$0xf]
        %v4634 = vld [vmem:[#allocation12 + $0x118] sm:$0xf]
        %v4635 = vld [vmem:[#allocation12 + $0x11c] sm:$0xf]
        %v4636 = vld [vmem:[#allocation12 + $0x120] sm:$0xf]
        %v4637 = vld [vmem:[#allocation12 + $0x124] sm:$0xf]
        %v4638 = vld [vmem:[#allocation12 + $0x128] sm:$0xf]
        %v4639 = vld [vmem:[#allocation12 + $0x12c] sm:$0xf]
        %v4640 = vld [vmem:[#allocation12 + $0x130] sm:$0xf]
        %v4641 = vld [vmem:[#allocation12 + $0x134] sm:$0xf]
        %v4642 = vld [vmem:[#allocation12 + $0x138] sm:$0xf]
        %v4643 = vld [vmem:[#allocation12 + $0x13c] sm:$0xf]
        %v4644 = vld [vmem:[#allocation12 + $0x140] sm:$0xf]
        %v4645 = vld [vmem:[#allocation12 + $0x144] sm:$0xf]
        %v4646 = vld [vmem:[#allocation12 + $0x148] sm:$0xf]
        %v4647 = vld [vmem:[#allocation12 + $0x14c] sm:$0xf]
        %v4648 = vld [vmem:[#allocation12 + $0x150] sm:$0xf]
        %v4649 = vld [vmem:[#allocation12 + $0x154] sm:$0xf]
        %v4650 = vld [vmem:[#allocation12 + $0x158] sm:$0xf]
        %v4651 = vld [vmem:[#allocation12 + $0x15c] sm:$0xf]
        %v4652 = vld [vmem:[#allocation12 + $0x160] sm:$0xf]
        %v4653 = vld [vmem:[#allocation12 + $0x164] sm:$0xf]
        %v4654 = vld [vmem:[#allocation12 + $0x168] sm:$0xf]
        %v4655 = vld [vmem:[#allocation12 + $0x16c] sm:$0xf]
        %v4656 = vld [vmem:[#allocation12 + $0x170] sm:$0xf]
        %v4657 = vld [vmem:[#allocation12 + $0x174] sm:$0xf]
        %v4658 = vld [vmem:[#allocation12 + $0x178] sm:$0xf]
        %v4659 = vld [vmem:[#allocation12 + $0x17c] sm:$0xf]
        %v4660 = vld [vmem:[#allocation12 + $0x180] sm:$0xf]
        %v4661 = vld [vmem:[#allocation12 + $0x184] sm:$0xf]
        %v4662 = vld [vmem:[#allocation12 + $0x188] sm:$0xf]
        %v4663 = vld [vmem:[#allocation12 + $0x18c] sm:$0xf]
        %v4664 = vld [vmem:[#allocation12 + $0x190] sm:$0xf]
        %v4665 = vld [vmem:[#allocation12 + $0x194] sm:$0xf]
        %v4666 = vld [vmem:[#allocation12 + $0x198] sm:$0xf]
        %v4667 = vld [vmem:[#allocation12 + $0x19c] sm:$0xf]
        %v4668 = vld [vmem:[#allocation12 + $0x1a0] sm:$0xf]
        %v4669 = vld [vmem:[#allocation12 + $0x1a4] sm:$0xf]
        %v4670 = vld [vmem:[#allocation12 + $0x1a8] sm:$0xf]
        %v4671 = vld [vmem:[#allocation12 + $0x1ac] sm:$0xf]
        %v4672 = vld [vmem:[#allocation12 + $0x1b0] sm:$0xf]
        %v4673 = vld [vmem:[#allocation12 + $0x1b4] sm:$0xf]
        %v4674 = vld [vmem:[#allocation12 + $0x1b8] sm:$0xf]
        %v4675 = vld [vmem:[#allocation12 + $0x1bc] sm:$0xf]
        %v4676 = vld [vmem:[#allocation12 + $0x1c0] sm:$0xf]
        %v4677 = vld [vmem:[#allocation12 + $0x1c4] sm:$0xf]
        %v4678 = vld [vmem:[#allocation12 + $0x1c8] sm:$0xf]
        %v4679 = vld [vmem:[#allocation12 + $0x1cc] sm:$0xf]
        %v4680 = vld [vmem:[#allocation12 + $0x1d0] sm:$0xf]
        %v4681 = vld [vmem:[#allocation12 + $0x1d4] sm:$0xf]
        %v4682 = vld [vmem:[#allocation12 + $0x1d8] sm:$0xf]
        %v4683 = vld [vmem:[#allocation12 + $0x1dc] sm:$0xf]
        %v4684 = vld [vmem:[#allocation12 + $0x1e0] sm:$0xf]
        %v4685 = vld [vmem:[#allocation12 + $0x1e4] sm:$0xf]
        %v4686 = vld [vmem:[#allocation12 + $0x1e8] sm:$0xf]
        %v4687 = vld [vmem:[#allocation12 + $0x1ec] sm:$0xf]
        %v4688 = vld [vmem:[#allocation12 + $0x1f0] sm:$0xf]
        %v4689 = vld [vmem:[#allocation12 + $0x1f4] sm:$0xf]
        %v4690 = vld [vmem:[#allocation12 + $0x1f8] sm:$0xf]
        %v4691 = vld [vmem:[#allocation12 + $0x1fc] sm:$0xf]
        %v4692 = vld [vmem:[#allocation12 + $0x200] sm:$0xf]
        %v4693 = vld [vmem:[#allocation12 + $0x204] sm:$0xf]
        %v4694 = vld [vmem:[#allocation12 + $0x208] sm:$0xf]
        %v4695 = vld [vmem:[#allocation12 + $0x20c] sm:$0xf]
        %v4696 = vld [vmem:[#allocation12 + $0x210] sm:$0xf]
        %v4697 = vld [vmem:[#allocation12 + $0x214] sm:$0xf]
        %v4698 = vld [vmem:[#allocation12 + $0x218] sm:$0xf]
        %v4699 = vld [vmem:[#allocation12 + $0x21c] sm:$0xf]
        %v4700 = vld [vmem:[#allocation12 + $0x220] sm:$0xf]
        %v4701 = vld [vmem:[#allocation12 + $0x224] sm:$0xf]
        %v4702 = vld [vmem:[#allocation12 + $0x228] sm:$0xf]
        %v4703 = vld [vmem:[#allocation12 + $0x22c] sm:$0xf]
        %v4704 = vld [vmem:[#allocation12 + $0x230] sm:$0xf]
        %v4705 = vld [vmem:[#allocation12 + $0x234] sm:$0xf]
        %v4706 = vld [vmem:[#allocation12 + $0x238] sm:$0xf]
        %v4707 = vld [vmem:[#allocation12 + $0x23c] sm:$0xf]
        %v4708 = vld [vmem:[#allocation12 + $0x240] sm:$0xf]
        %v4709 = vld [vmem:[#allocation12 + $0x244] sm:$0xf]
        %v4710 = vld [vmem:[#allocation12 + $0x248] sm:$0xf]
        %v4711 = vld [vmem:[#allocation12 + $0x24c] sm:$0xf]
        %v4712 = vld [vmem:[#allocation12 + $0x250] sm:$0xf]
        %v4713 = vld [vmem:[#allocation12 + $0x254] sm:$0xf]
        %v4714 = vld [vmem:[#allocation12 + $0x258] sm:$0xf]
        %v4715 = vld [vmem:[#allocation12 + $0x25c] sm:$0xf]
        %v4716 = vld [vmem:[#allocation12 + $0x260] sm:$0xf]
        %v4717 = vld [vmem:[#allocation12 + $0x264] sm:$0xf]
        %v4718 = vld [vmem:[#allocation12 + $0x268] sm:$0xf]
        %v4719 = vld [vmem:[#allocation12 + $0x26c] sm:$0xf]
        %v4720 = vld [vmem:[#allocation12 + $0x270] sm:$0xf]
        %v4721 = vld [vmem:[#allocation12 + $0x274] sm:$0xf]
        %v4722 = vld [vmem:[#allocation12 + $0x278] sm:$0xf]
        %v4723 = vld [vmem:[#allocation12 + $0x27c] sm:$0xf]
        %v4724 = vld [vmem:[#allocation12 + $0x280] sm:$0xf]
        %v4725 = vld [vmem:[#allocation12 + $0x284] sm:$0xf]
        %v4726 = vld [vmem:[#allocation12 + $0x288] sm:$0xf]
        %v4727 = vld [vmem:[#allocation12 + $0x28c] sm:$0xf]
        %v4728 = vld [vmem:[#allocation12 + $0x290] sm:$0xf]
        %v4729 = vld [vmem:[#allocation12 + $0x294] sm:$0xf]
        %v4730 = vld [vmem:[#allocation12 + $0x298] sm:$0xf]
        %v4731 = vld [vmem:[#allocation12 + $0x29c] sm:$0xf]
        %v4732 = vld [vmem:[#allocation12 + $0x2a0] sm:$0xf]
        %v4733 = vld [vmem:[#allocation12 + $0x2a4] sm:$0xf]
        %v4734 = vld [vmem:[#allocation12 + $0x2a8] sm:$0xf]
        %v4735 = vld [vmem:[#allocation12 + $0x2ac] sm:$0xf]
        %v4736 = vld [vmem:[#allocation12 + $0x2b0] sm:$0xf]
        %v4737 = vld [vmem:[#allocation12 + $0x2b4] sm:$0xf]
        %v4738 = vld [vmem:[#allocation12 + $0x2b8] sm:$0xf]
        %v4739 = vld [vmem:[#allocation12 + $0x2bc] sm:$0xf]
        %v4740 = vld [vmem:[#allocation12 + $0x2c0] sm:$0xf]
        %v4741 = vld [vmem:[#allocation12 + $0x2c4] sm:$0xf]
        %v4742 = vld [vmem:[#allocation12 + $0x2c8] sm:$0xf]
        %v4743 = vld [vmem:[#allocation12 + $0x2cc] sm:$0xf]
        %v4744 = vld [vmem:[#allocation12 + $0x2d0] sm:$0xf]
        %v4745 = vld [vmem:[#allocation12 + $0x2d4] sm:$0xf]
        %v4746 = vld [vmem:[#allocation12 + $0x2d8] sm:$0xf]
        %v4747 = vld [vmem:[#allocation12 + $0x2dc] sm:$0xf]
        %v4748 = vld [vmem:[#allocation12 + $0x2e0] sm:$0xf]
        %v4749 = vld [vmem:[#allocation12 + $0x2e4] sm:$0xf]
        %v4750 = vld [vmem:[#allocation12 + $0x2e8] sm:$0xf]
        %v4751 = vld [vmem:[#allocation12 + $0x2ec] sm:$0xf]
        %v4752 = vld [vmem:[#allocation12 + $0x2f0] sm:$0xf]
        %v4753 = vld [vmem:[#allocation12 + $0x2f4] sm:$0xf]
        %v4754 = vld [vmem:[#allocation12 + $0x2f8] sm:$0xf]
        %v4755 = vld [vmem:[#allocation12 + $0x2fc] sm:$0xf]
        %v4756 = vld [vmem:[#allocation12 + $0x300] sm:$0xf]
        %v4757 = vld [vmem:[#allocation12 + $0x304] sm:$0xf]
        %v4758 = vld [vmem:[#allocation12 + $0x308] sm:$0xf]
        %v4759 = vld [vmem:[#allocation12 + $0x30c] sm:$0xf]
        %v4760 = vld [vmem:[#allocation12 + $0x310] sm:$0xf]
        %v4761 = vld [vmem:[#allocation12 + $0x314] sm:$0xf]
        %v4762 = vld [vmem:[#allocation12 + $0x318] sm:$0xf]
        %v4763 = vld [vmem:[#allocation12 + $0x31c] sm:$0xf]
        %v4764 = vld [vmem:[#allocation12 + $0x320] sm:$0xf]
        %v4765 = vld [vmem:[#allocation12 + $0x324] sm:$0xf]
        %v4766 = vld [vmem:[#allocation12 + $0x328] sm:$0xf]
        %v4767 = vld [vmem:[#allocation12 + $0x32c] sm:$0xf]
        %v4768 = vld [vmem:[#allocation12 + $0x330] sm:$0xf]
        %v4769 = vld [vmem:[#allocation12 + $0x334] sm:$0xf]
        %v4770 = vld [vmem:[#allocation12 + $0x338] sm:$0xf]
        %v4771 = vld [vmem:[#allocation12 + $0x33c] sm:$0xf]
        %v4772 = vld [vmem:[#allocation12 + $0x340] sm:$0xf]
        %v4773 = vld [vmem:[#allocation12 + $0x344] sm:$0xf]
        %v4774 = vld [vmem:[#allocation12 + $0x348] sm:$0xf]
        %v4775 = vld [vmem:[#allocation12 + $0x34c] sm:$0xf]
        %v4776 = vld [vmem:[#allocation12 + $0x350] sm:$0xf]
        %v4777 = vld [vmem:[#allocation12 + $0x354] sm:$0xf]
        %v4778 = vld [vmem:[#allocation12 + $0x358] sm:$0xf]
        %v4779 = vld [vmem:[#allocation12 + $0x35c] sm:$0xf]
        %v4780 = vld [vmem:[#allocation12 + $0x360] sm:$0xf]
        %v4781 = vld [vmem:[#allocation12 + $0x364] sm:$0xf]
        %v4782 = vld [vmem:[#allocation12 + $0x368] sm:$0xf]
        %v4783 = vld [vmem:[#allocation12 + $0x36c] sm:$0xf]
        %v4784 = vld [vmem:[#allocation12 + $0x370] sm:$0xf]
        %v4785 = vld [vmem:[#allocation12 + $0x374] sm:$0xf]
        %v4786 = vld [vmem:[#allocation12 + $0x378] sm:$0xf]
        %v4787 = vld [vmem:[#allocation12 + $0x37c] sm:$0xf]
        %v4788 = vld [vmem:[#allocation12 + $0x380] sm:$0xf]
        %v4789 = vld [vmem:[#allocation12 + $0x384] sm:$0xf]
        %v4790 = vld [vmem:[#allocation12 + $0x388] sm:$0xf]
        %v4791 = vld [vmem:[#allocation12 + $0x38c] sm:$0xf]
        %v4792 = vld [vmem:[#allocation12 + $0x390] sm:$0xf]
        %v4793 = vld [vmem:[#allocation12 + $0x394] sm:$0xf]
        %v4794 = vld [vmem:[#allocation12 + $0x398] sm:$0xf]
        %v4795 = vld [vmem:[#allocation12 + $0x39c] sm:$0xf]
        %v4796 = vld [vmem:[#allocation12 + $0x3a0] sm:$0xf]
        %v4797 = vld [vmem:[#allocation12 + $0x3a4] sm:$0xf]
        %v4798 = vld [vmem:[#allocation12 + $0x3a8] sm:$0xf]
        %v4799 = vld [vmem:[#allocation12 + $0x3ac] sm:$0xf]
        %v4800 = vld [vmem:[#allocation12 + $0x3b0] sm:$0xf]
        %v4801 = vld [vmem:[#allocation12 + $0x3b4] sm:$0xf]
        %v4802 = vld [vmem:[#allocation12 + $0x3b8] sm:$0xf]
        %v4803 = vld [vmem:[#allocation12 + $0x3bc] sm:$0xf]
        %v4804 = vld [vmem:[#allocation12 + $0x3c0] sm:$0xf]
        %v4805 = vld [vmem:[#allocation12 + $0x3c4] sm:$0xf]
        %v4806 = vld [vmem:[#allocation12 + $0x3c8] sm:$0xf]
        %v4807 = vld [vmem:[#allocation12 + $0x3cc] sm:$0xf]
        %v4808 = vld [vmem:[#allocation12 + $0x3d0] sm:$0xf]
        %v4809 = vld [vmem:[#allocation12 + $0x3d4] sm:$0xf]
        %v4810 = vld [vmem:[#allocation12 + $0x3d8] sm:$0xf]
        %v4811 = vld [vmem:[#allocation12 + $0x3dc] sm:$0xf]
        %v4812 = vld [vmem:[#allocation12 + $0x3e0] sm:$0xf]
        %v4813 = vld [vmem:[#allocation12 + $0x3e4] sm:$0xf]
        %v4814 = vld [vmem:[#allocation12 + $0x3e8] sm:$0xf]
        %v4815 = vld [vmem:[#allocation12 + $0x3ec] sm:$0xf]
        %v4816 = vld [vmem:[#allocation12 + $0x3f0] sm:$0xf]
        %v4817 = vld [vmem:[#allocation12 + $0x3f4] sm:$0xf]
        %v4818 = vld [vmem:[#allocation12 + $0x3f8] sm:$0xf]
        %v4819 = vld [vmem:[#allocation12 + $0x3fc] sm:$0xf]
        %v4820 = vld [vmem:[#allocation12 + $0x400] sm:$0xf]
        %v4821 = vld [vmem:[#allocation12 + $0x404] sm:$0xf]
        %v4822 = vld [vmem:[#allocation12 + $0x408] sm:$0xf]
        %v4823 = vld [vmem:[#allocation12 + $0x40c] sm:$0xf]
        %v4824 = vld [vmem:[#allocation12 + $0x410] sm:$0xf]
        %v4825 = vld [vmem:[#allocation12 + $0x414] sm:$0xf]
        %v4826 = vld [vmem:[#allocation12 + $0x418] sm:$0xf]
        %v4827 = vld [vmem:[#allocation12 + $0x41c] sm:$0xf]
        %v4828 = vld [vmem:[#allocation12 + $0x420] sm:$0xf]
        %v4829 = vld [vmem:[#allocation12 + $0x424] sm:$0xf]
        %v4830 = vld [vmem:[#allocation12 + $0x428] sm:$0xf]
        %v4831 = vld [vmem:[#allocation12 + $0x42c] sm:$0xf]
        %v4832 = vld [vmem:[#allocation12 + $0x430] sm:$0xf]
        %v4833 = vld [vmem:[#allocation12 + $0x434] sm:$0xf]
        %v4834 = vld [vmem:[#allocation12 + $0x438] sm:$0xf]
        %v4835 = vld [vmem:[#allocation12 + $0x43c] sm:$0xf]
        %v4836 = vld [vmem:[#allocation12 + $0x440] sm:$0xf]
        %v4837 = vld [vmem:[#allocation12 + $0x444] sm:$0xf]
        %v4838 = vld [vmem:[#allocation12 + $0x448] sm:$0xf]
        %v4839 = vld [vmem:[#allocation12 + $0x44c] sm:$0xf]
        %v4840 = vld [vmem:[#allocation12 + $0x450] sm:$0xf]
        %v4841 = vld [vmem:[#allocation12 + $0x454] sm:$0xf]
        %v4842 = vld [vmem:[#allocation12 + $0x458] sm:$0xf]
        %v4843 = vld [vmem:[#allocation12 + $0x45c] sm:$0xf]
        %v4844 = vld [vmem:[#allocation12 + $0x460] sm:$0xf]
        %v4845 = vld [vmem:[#allocation12 + $0x464] sm:$0xf]
        %v4846 = vld [vmem:[#allocation12 + $0x468] sm:$0xf]
        %v4847 = vld [vmem:[#allocation12 + $0x46c] sm:$0xf]
        %v4848 = vld [vmem:[#allocation12 + $0x470] sm:$0xf]
        %v4849 = vld [vmem:[#allocation12 + $0x474] sm:$0xf]
        %v4850 = vld [vmem:[#allocation12 + $0x478] sm:$0xf]
        %v4851 = vld [vmem:[#allocation12 + $0x47c] sm:$0xf]
        %v4852 = vld [vmem:[#allocation12 + $0x480] sm:$0xf]
        %v4853 = vld [vmem:[#allocation12 + $0x484] sm:$0xf]
        %v4854 = vld [vmem:[#allocation12 + $0x488] sm:$0xf]
        %v4855 = vld [vmem:[#allocation12 + $0x48c] sm:$0xf]
        %v4856 = vld [vmem:[#allocation12 + $0x490] sm:$0xf]
        %v4857 = vld [vmem:[#allocation12 + $0x494] sm:$0xf]
        %v4858 = vld [vmem:[#allocation12 + $0x498] sm:$0xf]
        %v4859 = vld [vmem:[#allocation12 + $0x49c] sm:$0xf]
        %v4860 = vld [vmem:[#allocation12 + $0x4a0] sm:$0xf]
        %v4861 = vld [vmem:[#allocation12 + $0x4a4] sm:$0xf]
        %v4862 = vld [vmem:[#allocation12 + $0x4a8] sm:$0xf]
        %v4863 = vld [vmem:[#allocation12 + $0x4ac] sm:$0xf]
        %v4864 = vld [vmem:[#allocation12 + $0x4b0] sm:$0xf]
        %v4865 = vld [vmem:[#allocation12 + $0x4b4] sm:$0xf]
        %v4866 = vld [vmem:[#allocation12 + $0x4b8] sm:$0xf]
        %v4867 = vld [vmem:[#allocation12 + $0x4bc] sm:$0xf]
        %v4868 = vld [vmem:[#allocation12 + $0x4c0] sm:$0xf]
        %v4869 = vld [vmem:[#allocation12 + $0x4c4] sm:$0xf]
        %v4870 = vld [vmem:[#allocation12 + $0x4c8] sm:$0xf]
        %v4871 = vld [vmem:[#allocation12 + $0x4cc] sm:$0xf]
        %v4872 = vld [vmem:[#allocation12 + $0x4d0] sm:$0xf]
        %v4873 = vld [vmem:[#allocation12 + $0x4d4] sm:$0xf]
        %v4874 = vld [vmem:[#allocation12 + $0x4d8] sm:$0xf]
        %v4875 = vld [vmem:[#allocation12 + $0x4dc] sm:$0xf]
        %v4876 = vld [vmem:[#allocation12 + $0x4e0] sm:$0xf]
        %v4877 = vld [vmem:[#allocation12 + $0x4e4] sm:$0xf]
        %v4878 = vld [vmem:[#allocation12 + $0x4e8] sm:$0xf]
        %v4879 = vld [vmem:[#allocation12 + $0x4ec] sm:$0xf]
        %v4880 = vld [vmem:[#allocation12 + $0x4f0] sm:$0xf]
        %v4881 = vld [vmem:[#allocation12 + $0x4f4] sm:$0xf]
        %v4882 = vld [vmem:[#allocation12 + $0x4f8] sm:$0xf]
        %v4883 = vld [vmem:[#allocation12 + $0x4fc] sm:$0xf]
        %v4884 = vld [vmem:[#allocation12 + $0x500] sm:$0xf]
        %v4885 = vld [vmem:[#allocation12 + $0x504] sm:$0xf]
        %v4886 = vld [vmem:[#allocation12 + $0x508] sm:$0xf]
        %v4887 = vld [vmem:[#allocation12 + $0x50c] sm:$0xf]
        %v4888 = vld [vmem:[#allocation12 + $0x510] sm:$0xf]
        %v4889 = vld [vmem:[#allocation12 + $0x514] sm:$0xf]
        %v4890 = vld [vmem:[#allocation12 + $0x518] sm:$0xf]
        %v4891 = vld [vmem:[#allocation12 + $0x51c] sm:$0xf]
        %v4892 = vld [vmem:[#allocation12 + $0x520] sm:$0xf]
        %v4893 = vld [vmem:[#allocation12 + $0x524] sm:$0xf]
        %v4894 = vld [vmem:[#allocation12 + $0x528] sm:$0xf]
        %v4895 = vld [vmem:[#allocation12 + $0x52c] sm:$0xf]
        %v4896 = vld [vmem:[#allocation12 + $0x530] sm:$0xf]
        %v4897 = vld [vmem:[#allocation12 + $0x534] sm:$0xf]
        %v4898 = vld [vmem:[#allocation12 + $0x538] sm:$0xf]
        %v4899 = vld [vmem:[#allocation12 + $0x53c] sm:$0xf]
        %v4900 = vld [vmem:[#allocation12 + $0x540] sm:$0xf]
        %v4901 = vld [vmem:[#allocation12 + $0x544] sm:$0xf]
        %v4902 = vld [vmem:[#allocation12 + $0x548] sm:$0xf]
        %v4903 = vld [vmem:[#allocation12 + $0x54c] sm:$0xf]
        %v4904 = vld [vmem:[#allocation12 + $0x550] sm:$0xf]
        %v4905 = vld [vmem:[#allocation12 + $0x554] sm:$0xf]
        %v4906 = vld [vmem:[#allocation12 + $0x558] sm:$0xf]
        %v4907 = vld [vmem:[#allocation12 + $0x55c] sm:$0xf]
        %v4908 = vld [vmem:[#allocation12 + $0x560] sm:$0xf]
        %v4909 = vld [vmem:[#allocation12 + $0x564] sm:$0xf]
        %v4910 = vld [vmem:[#allocation12 + $0x568] sm:$0xf]
        %v4911 = vld [vmem:[#allocation12 + $0x56c] sm:$0xf]
        %v4912 = vld [vmem:[#allocation12 + $0x570] sm:$0xf]
        %v4913 = vld [vmem:[#allocation12 + $0x574] sm:$0xf]
        %v4914 = vld [vmem:[#allocation12 + $0x578] sm:$0xf]
        %v4915 = vld [vmem:[#allocation12 + $0x57c] sm:$0xf]
        %v4916 = vld [vmem:[#allocation12 + $0x580] sm:$0xf]
        %v4917 = vld [vmem:[#allocation12 + $0x584] sm:$0xf]
        %v4918 = vld [vmem:[#allocation12 + $0x588] sm:$0xf]
        %v4919 = vld [vmem:[#allocation12 + $0x58c] sm:$0xf]
        %v4920 = vld [vmem:[#allocation12 + $0x590] sm:$0xf]
        %v4921 = vld [vmem:[#allocation12 + $0x594] sm:$0xf]
        %v4922 = vld [vmem:[#allocation12 + $0x598] sm:$0xf]
        %v4923 = vld [vmem:[#allocation12 + $0x59c] sm:$0xf]
        %v4924 = vld [vmem:[#allocation12 + $0x5a0] sm:$0xf]
        %v4925 = vld [vmem:[#allocation12 + $0x5a4] sm:$0xf]
        %v4926 = vld [vmem:[#allocation12 + $0x5a8] sm:$0xf]
        %v4927 = vld [vmem:[#allocation12 + $0x5ac] sm:$0xf]
        %v4928 = vld [vmem:[#allocation12 + $0x5b0] sm:$0xf]
        %v4929 = vld [vmem:[#allocation12 + $0x5b4] sm:$0xf]
        %v4930 = vld [vmem:[#allocation12 + $0x5b8] sm:$0xf]
        %v4931 = vld [vmem:[#allocation12 + $0x5bc] sm:$0xf]
        %v4932 = vld [vmem:[#allocation12 + $0x5c0] sm:$0xf]
        %v4933 = vld [vmem:[#allocation12 + $0x5c4] sm:$0xf]
        %v4934 = vld [vmem:[#allocation12 + $0x5c8] sm:$0xf]
        %v4935 = vld [vmem:[#allocation12 + $0x5cc] sm:$0xf]
        %v4936 = vld [vmem:[#allocation12 + $0x5d0] sm:$0xf]
        %v4937 = vld [vmem:[#allocation12 + $0x5d4] sm:$0xf]
        %v4938 = vld [vmem:[#allocation12 + $0x5d8] sm:$0xf]
        %v4939 = vld [vmem:[#allocation12 + $0x5dc] sm:$0xf]
        %v4940 = vld [vmem:[#allocation12 + $0x5e0] sm:$0xf]
        %v4941 = vld [vmem:[#allocation12 + $0x5e4] sm:$0xf]
        %v4942 = vld [vmem:[#allocation12 + $0x5e8] sm:$0xf]
        %v4943 = vld [vmem:[#allocation12 + $0x5ec] sm:$0xf]
        %v4944 = vld [vmem:[#allocation12 + $0x5f0] sm:$0xf]
        %v4945 = vld [vmem:[#allocation12 + $0x5f4] sm:$0xf]
        %v4946 = vld [vmem:[#allocation12 + $0x5f8] sm:$0xf]
        %v4947 = vld [vmem:[#allocation12 + $0x5fc] sm:$0xf]
        %v4948 = vld [vmem:[#allocation12 + $0x600] sm:$0xf]
        %v4949 = vld [vmem:[#allocation12 + $0x604] sm:$0xf]
        %v4950 = vld [vmem:[#allocation12 + $0x608] sm:$0xf]
        %v4951 = vld [vmem:[#allocation12 + $0x60c] sm:$0xf]
        %v4952 = vld [vmem:[#allocation12 + $0x610] sm:$0xf]
        %v4953 = vld [vmem:[#allocation12 + $0x614] sm:$0xf]
        %v4954 = vld [vmem:[#allocation12 + $0x618] sm:$0xf]
        %v4955 = vld [vmem:[#allocation12 + $0x61c] sm:$0xf]
        %v4956 = vld [vmem:[#allocation12 + $0x620] sm:$0xf]
        %v4957 = vld [vmem:[#allocation12 + $0x624] sm:$0xf]
        %v4958 = vld [vmem:[#allocation12 + $0x628] sm:$0xf]
        %v4959 = vld [vmem:[#allocation12 + $0x62c] sm:$0xf]
        %v4960 = vld [vmem:[#allocation12 + $0x630] sm:$0xf]
        %v4961 = vld [vmem:[#allocation12 + $0x634] sm:$0xf]
        %v4962 = vld [vmem:[#allocation12 + $0x638] sm:$0xf]
        %v4963 = vld [vmem:[#allocation12 + $0x63c] sm:$0xf]
        %v4964 = vld [vmem:[#allocation12 + $0x640] sm:$0xf]
        %v4965 = vld [vmem:[#allocation12 + $0x644] sm:$0xf]
        %v4966 = vld [vmem:[#allocation12 + $0x648] sm:$0xf]
        %v4967 = vld [vmem:[#allocation12 + $0x64c] sm:$0xf]
        %v4968 = vld [vmem:[#allocation12 + $0x650] sm:$0xf]
        %v4969 = vld [vmem:[#allocation12 + $0x654] sm:$0xf]
        %v4970 = vld [vmem:[#allocation12 + $0x658] sm:$0xf]
        %v4971 = vld [vmem:[#allocation12 + $0x65c] sm:$0xf]
        %v4972 = vld [vmem:[#allocation12 + $0x660] sm:$0xf]
        %v4973 = vld [vmem:[#allocation12 + $0x664] sm:$0xf]
        %v4974 = vld [vmem:[#allocation12 + $0x668] sm:$0xf]
        %v4975 = vld [vmem:[#allocation12 + $0x66c] sm:$0xf]
        %v4976 = vld [vmem:[#allocation12 + $0x670] sm:$0xf]
        %v4977 = vld [vmem:[#allocation12 + $0x674] sm:$0xf]
        %v4978 = vld [vmem:[#allocation12 + $0x678] sm:$0xf]
        %v4979 = vld [vmem:[#allocation12 + $0x67c] sm:$0xf]
        %v4980 = vld [vmem:[#allocation12 + $0x680] sm:$0xf]
        %v4981 = vld [vmem:[#allocation12 + $0x684] sm:$0xf]
        %v4982 = vld [vmem:[#allocation12 + $0x688] sm:$0xf]
        %v4983 = vld [vmem:[#allocation12 + $0x68c] sm:$0xf]
        %v4984 = vld [vmem:[#allocation12 + $0x690] sm:$0xf]
        %v4985 = vld [vmem:[#allocation12 + $0x694] sm:$0xf]
        %v4986 = vld [vmem:[#allocation12 + $0x698] sm:$0xf]
        %v4987 = vld [vmem:[#allocation12 + $0x69c] sm:$0xf]
        %v4988 = vld [vmem:[#allocation12 + $0x6a0] sm:$0xf]
        %v4989 = vld [vmem:[#allocation12 + $0x6a4] sm:$0xf]
        %v4990 = vld [vmem:[#allocation12 + $0x6a8] sm:$0xf]
        %v4991 = vld [vmem:[#allocation12 + $0x6ac] sm:$0xf]
        %v4992 = vld [vmem:[#allocation12 + $0x6b0] sm:$0xf]
        %v4993 = vld [vmem:[#allocation12 + $0x6b4] sm:$0xf]
        %v4994 = vld [vmem:[#allocation12 + $0x6b8] sm:$0xf]
        %v4995 = vld [vmem:[#allocation12 + $0x6bc] sm:$0xf]
        %v4996 = vld [vmem:[#allocation12 + $0x6c0] sm:$0xf]
        %v4997 = vld [vmem:[#allocation12 + $0x6c4] sm:$0xf]
        %v4998 = vld [vmem:[#allocation12 + $0x6c8] sm:$0xf]
        %v4999 = vld [vmem:[#allocation12 + $0x6cc] sm:$0xf]
        %v5000 = vld [vmem:[#allocation12 + $0x6d0] sm:$0xf]
        %v5001 = vld [vmem:[#allocation12 + $0x6d4] sm:$0xf]
        %v5002 = vld [vmem:[#allocation12 + $0x6d8] sm:$0xf]
        %v5003 = vld [vmem:[#allocation12 + $0x6dc] sm:$0xf]
        %v5004 = vld [vmem:[#allocation12 + $0x6e0] sm:$0xf]
        %v5005 = vld [vmem:[#allocation12 + $0x6e4] sm:$0xf]
        %v5006 = vld [vmem:[#allocation12 + $0x6e8] sm:$0xf]
        %v5007 = vld [vmem:[#allocation12 + $0x6ec] sm:$0xf]
        %v5008 = vld [vmem:[#allocation12 + $0x6f0] sm:$0xf]
        %v5009 = vld [vmem:[#allocation12 + $0x6f4] sm:$0xf]
        %v5010 = vld [vmem:[#allocation12 + $0x6f8] sm:$0xf]
        %v5011 = vld [vmem:[#allocation12 + $0x6fc] sm:$0xf]
        %v5012 = vld [vmem:[#allocation12 + $0x700] sm:$0xf]
        %v5013 = vld [vmem:[#allocation12 + $0x704] sm:$0xf]
        %v5014 = vld [vmem:[#allocation12 + $0x708] sm:$0xf]
        %v5015 = vld [vmem:[#allocation12 + $0x70c] sm:$0xf]
        %v5016 = vld [vmem:[#allocation12 + $0x710] sm:$0xf]
        %v5017 = vld [vmem:[#allocation12 + $0x714] sm:$0xf]
        %v5018 = vld [vmem:[#allocation12 + $0x718] sm:$0xf]
        %v5019 = vld [vmem:[#allocation12 + $0x71c] sm:$0xf]
        %v5020 = vld [vmem:[#allocation12 + $0x720] sm:$0xf]
        %v5021 = vld [vmem:[#allocation12 + $0x724] sm:$0xf]
        %v5022 = vld [vmem:[#allocation12 + $0x728] sm:$0xf]
        %v5023 = vld [vmem:[#allocation12 + $0x72c] sm:$0xf]
        %v5024 = vld [vmem:[#allocation12 + $0x730] sm:$0xf]
        %v5025 = vld [vmem:[#allocation12 + $0x734] sm:$0xf]
        %v5026 = vld [vmem:[#allocation12 + $0x738] sm:$0xf]
        %v5027 = vld [vmem:[#allocation12 + $0x73c] sm:$0xf]
        %v5028 = vld [vmem:[#allocation12 + $0x740] sm:$0xf]
        %v5029 = vld [vmem:[#allocation12 + $0x744] sm:$0xf]
        %v5030 = vld [vmem:[#allocation12 + $0x748] sm:$0xf]
        %v5031 = vld [vmem:[#allocation12 + $0x74c] sm:$0xf]
        %v5032 = vld [vmem:[#allocation12 + $0x750] sm:$0xf]
        %v5033 = vld [vmem:[#allocation12 + $0x754] sm:$0xf]
        %v5034 = vld [vmem:[#allocation12 + $0x758] sm:$0xf]
        %v5035 = vld [vmem:[#allocation12 + $0x75c] sm:$0xf]
        %v5036 = vld [vmem:[#allocation12 + $0x760] sm:$0xf]
        %v5037 = vld [vmem:[#allocation12 + $0x764] sm:$0xf]
        %v5038 = vld [vmem:[#allocation12 + $0x768] sm:$0xf]
        %v5039 = vld [vmem:[#allocation12 + $0x76c] sm:$0xf]
        %v5040 = vld [vmem:[#allocation12 + $0x770] sm:$0xf]
        %v5041 = vld [vmem:[#allocation12 + $0x774] sm:$0xf]
        %v5042 = vld [vmem:[#allocation12 + $0x778] sm:$0xf]
        %v5043 = vld [vmem:[#allocation12 + $0x77c] sm:$0xf]
        %v5044 = vld [vmem:[#allocation12 + $0x780] sm:$0xf]
        %v5045 = vld [vmem:[#allocation12 + $0x784] sm:$0xf]
        %v5046 = vld [vmem:[#allocation12 + $0x788] sm:$0xf]
        %v5047 = vld [vmem:[#allocation12 + $0x78c] sm:$0xf]
        %v5048 = vld [vmem:[#allocation12 + $0x790] sm:$0xf]
        %v5049 = vld [vmem:[#allocation12 + $0x794] sm:$0xf]
        %v5050 = vld [vmem:[#allocation12 + $0x798] sm:$0xf]
        %v5051 = vld [vmem:[#allocation12 + $0x79c] sm:$0xf]
        %v5052 = vld [vmem:[#allocation12 + $0x7a0] sm:$0xf]
        %v5053 = vld [vmem:[#allocation12 + $0x7a4] sm:$0xf]
        %v5054 = vld [vmem:[#allocation12 + $0x7a8] sm:$0xf]
        %v5055 = vld [vmem:[#allocation12 + $0x7ac] sm:$0xf]
        %v5056 = vld [vmem:[#allocation12 + $0x7b0] sm:$0xf]
        %v5057 = vld [vmem:[#allocation12 + $0x7b4] sm:$0xf]
        %v5058 = vld [vmem:[#allocation12 + $0x7b8] sm:$0xf]
        %v5059 = vld [vmem:[#allocation12 + $0x7bc] sm:$0xf]
        %v5060 = vld [vmem:[#allocation12 + $0x7c0] sm:$0xf]
        %v5061 = vld [vmem:[#allocation12 + $0x7c4] sm:$0xf]
        %v5062 = vld [vmem:[#allocation12 + $0x7c8] sm:$0xf]
        %v5063 = vld [vmem:[#allocation12 + $0x7cc] sm:$0xf]
        %v5064 = vld [vmem:[#allocation12 + $0x7d0] sm:$0xf]
        %v5065 = vld [vmem:[#allocation12 + $0x7d4] sm:$0xf]
        %v5066 = vld [vmem:[#allocation12 + $0x7d8] sm:$0xf]
        %v5067 = vld [vmem:[#allocation12 + $0x7dc] sm:$0xf]
        %v5068 = vld [vmem:[#allocation12 + $0x7e0] sm:$0xf]
        %v5069 = vld [vmem:[#allocation12 + $0x7e4] sm:$0xf]
        %v5070 = vld [vmem:[#allocation12 + $0x7e8] sm:$0xf]
        %v5071 = vld [vmem:[#allocation12 + $0x7ec] sm:$0xf]
        %v5072 = vld [vmem:[#allocation12 + $0x7f0] sm:$0xf]
        %v5073 = vld [vmem:[#allocation12 + $0x7f4] sm:$0xf]
        %v5074 = vld [vmem:[#allocation12 + $0x7f8] sm:$0xf]
        %v5075 = vld [vmem:[#allocation12 + $0x7fc] sm:$0xf]
        %v5076 = vld [vmem:[%s12] sm:$0x1]
        %v5589 = vunpack.c.l.b16 %v4564
        %v5590 = vunpack.c.l.b16 %v4565
        %v5591 = vunpack.c.l.b16 %v4566
        %v5592 = vunpack.c.l.b16 %v4567
        %v5593 = vunpack.c.l.b16 %v4568
        %v5594 = vunpack.c.l.b16 %v4569
        %v5595 = vunpack.c.l.b16 %v4570
        %v5596 = vunpack.c.l.b16 %v4571
        %v5597 = vunpack.c.l.b16 %v4572
        %v5598 = vunpack.c.l.b16 %v4573
        %v5599 = vunpack.c.l.b16 %v4574
        %v5600 = vunpack.c.l.b16 %v4575
        %v5601 = vunpack.c.l.b16 %v4576
        %v5602 = vunpack.c.l.b16 %v4577
        %v5603 = vunpack.c.l.b16 %v4578
        %v5604 = vunpack.c.l.b16 %v4579
        %v5605 = vunpack.c.l.b16 %v4580
        %v5606 = vunpack.c.l.b16 %v4581
        %v5607 = vunpack.c.l.b16 %v4582
        %v5608 = vunpack.c.l.b16 %v4583
        %v5609 = vunpack.c.l.b16 %v4584
        %v5610 = vunpack.c.l.b16 %v4585
        %v5611 = vunpack.c.l.b16 %v4586
        %v5612 = vunpack.c.l.b16 %v4587
        %v5613 = vunpack.c.l.b16 %v4588
        %v5614 = vunpack.c.l.b16 %v4589
        %v5615 = vunpack.c.l.b16 %v4590
        %v5616 = vunpack.c.l.b16 %v4591
        %v5617 = vunpack.c.l.b16 %v4592
        %v5618 = vunpack.c.l.b16 %v4593
        %v5619 = vunpack.c.l.b16 %v4594
        %v5620 = vunpack.c.l.b16 %v4595
        %v5621 = vunpack.c.l.b16 %v4596
        %v5622 = vunpack.c.l.b16 %v4597
        %v5623 = vunpack.c.l.b16 %v4598
        %v5624 = vunpack.c.l.b16 %v4599
        %v5625 = vunpack.c.l.b16 %v4600
        %v5626 = vunpack.c.l.b16 %v4601
        %v5627 = vunpack.c.l.b16 %v4602
        %v5628 = vunpack.c.l.b16 %v4603
        %v5629 = vunpack.c.l.b16 %v4604
        %v5630 = vunpack.c.l.b16 %v4605
        %v5631 = vunpack.c.l.b16 %v4606
        %v5632 = vunpack.c.l.b16 %v4607
        %v5633 = vunpack.c.l.b16 %v4608
        %v5634 = vunpack.c.l.b16 %v4609
        %v5635 = vunpack.c.l.b16 %v4610
        %v5636 = vunpack.c.l.b16 %v4611
        %v5637 = vunpack.c.l.b16 %v4612
        %v5638 = vunpack.c.l.b16 %v4613
        %v5639 = vunpack.c.l.b16 %v4614
        %v5640 = vunpack.c.l.b16 %v4615
        %v5641 = vunpack.c.l.b16 %v4616
        %v5642 = vunpack.c.l.b16 %v4617
        %v5643 = vunpack.c.l.b16 %v4618
        %v5644 = vunpack.c.l.b16 %v4619
        %v5645 = vunpack.c.l.b16 %v4620
        %v5646 = vunpack.c.l.b16 %v4621
        %v5647 = vunpack.c.l.b16 %v4622
        %v5648 = vunpack.c.l.b16 %v4623
        %v5649 = vunpack.c.l.b16 %v4624
        %v5650 = vunpack.c.l.b16 %v4625
        %v5651 = vunpack.c.l.b16 %v4626
        %v5652 = vunpack.c.l.b16 %v4627
        %v5653 = vunpack.c.l.b16 %v4628
        %v5654 = vunpack.c.l.b16 %v4629
        %v5655 = vunpack.c.l.b16 %v4630
        %v5656 = vunpack.c.l.b16 %v4631
        %v5657 = vunpack.c.l.b16 %v4632
        %v5658 = vunpack.c.l.b16 %v4633
        %v5659 = vunpack.c.l.b16 %v4634
        %v5660 = vunpack.c.l.b16 %v4635
        %v5661 = vunpack.c.l.b16 %v4636
        %v5662 = vunpack.c.l.b16 %v4637
        %v5663 = vunpack.c.l.b16 %v4638
        %v5664 = vunpack.c.l.b16 %v4639
        %v5665 = vunpack.c.l.b16 %v4640
        %v5666 = vunpack.c.l.b16 %v4641
        %v5667 = vunpack.c.l.b16 %v4642
        %v5668 = vunpack.c.l.b16 %v4643
        %v5669 = vunpack.c.l.b16 %v4644
        %v5670 = vunpack.c.l.b16 %v4645
        %v5671 = vunpack.c.l.b16 %v4646
        %v5672 = vunpack.c.l.b16 %v4647
        %v5673 = vunpack.c.l.b16 %v4648
        %v5674 = vunpack.c.l.b16 %v4649
        %v5675 = vunpack.c.l.b16 %v4650
        %v5676 = vunpack.c.l.b16 %v4651
        %v5677 = vunpack.c.l.b16 %v4652
        %v5678 = vunpack.c.l.b16 %v4653
        %v5679 = vunpack.c.l.b16 %v4654
        %v5680 = vunpack.c.l.b16 %v4655
        %v5681 = vunpack.c.l.b16 %v4656
        %v5682 = vunpack.c.l.b16 %v4657
        %v5683 = vunpack.c.l.b16 %v4658
        %v5684 = vunpack.c.l.b16 %v4659
        %v5685 = vunpack.c.l.b16 %v4660
        %v5686 = vunpack.c.l.b16 %v4661
        %v5687 = vunpack.c.l.b16 %v4662
        %v5688 = vunpack.c.l.b16 %v4663
        %v5689 = vunpack.c.l.b16 %v4664
        %v5690 = vunpack.c.l.b16 %v4665
        %v5691 = vunpack.c.l.b16 %v4666
        %v5692 = vunpack.c.l.b16 %v4667
        %v5693 = vunpack.c.l.b16 %v4668
        %v5694 = vunpack.c.l.b16 %v4669
        %v5695 = vunpack.c.l.b16 %v4670
        %v5696 = vunpack.c.l.b16 %v4671
        %v5697 = vunpack.c.l.b16 %v4672
        %v5698 = vunpack.c.l.b16 %v4673
        %v5699 = vunpack.c.l.b16 %v4674
        %v5700 = vunpack.c.l.b16 %v4675
        %v5701 = vunpack.c.l.b16 %v4676
        %v5702 = vunpack.c.l.b16 %v4677
        %v5703 = vunpack.c.l.b16 %v4678
        %v5704 = vunpack.c.l.b16 %v4679
        %v5705 = vunpack.c.l.b16 %v4680
        %v5706 = vunpack.c.l.b16 %v4681
        %v5707 = vunpack.c.l.b16 %v4682
        %v5708 = vunpack.c.l.b16 %v4683
        %v5709 = vunpack.c.l.b16 %v4684
        %v5710 = vunpack.c.l.b16 %v4685
        %v5711 = vunpack.c.l.b16 %v4686
        %v5712 = vunpack.c.l.b16 %v4687
        %v5713 = vunpack.c.l.b16 %v4688
        %v5714 = vunpack.c.l.b16 %v4689
        %v5715 = vunpack.c.l.b16 %v4690
        %v5716 = vunpack.c.l.b16 %v4691
        %v5717 = vunpack.c.l.b16 %v4692
        %v5718 = vunpack.c.l.b16 %v4693
        %v5719 = vunpack.c.l.b16 %v4694
        %v5720 = vunpack.c.l.b16 %v4695
        %v5721 = vunpack.c.l.b16 %v4696
        %v5722 = vunpack.c.l.b16 %v4697
        %v5723 = vunpack.c.l.b16 %v4698
        %v5724 = vunpack.c.l.b16 %v4699
        %v5725 = vunpack.c.l.b16 %v4700
        %v5726 = vunpack.c.l.b16 %v4701
        %v5727 = vunpack.c.l.b16 %v4702
        %v5728 = vunpack.c.l.b16 %v4703
        %v5729 = vunpack.c.l.b16 %v4704
        %v5730 = vunpack.c.l.b16 %v4705
        %v5731 = vunpack.c.l.b16 %v4706
        %v5732 = vunpack.c.l.b16 %v4707
        %v5733 = vunpack.c.l.b16 %v4708
        %v5734 = vunpack.c.l.b16 %v4709
        %v5735 = vunpack.c.l.b16 %v4710
        %v5736 = vunpack.c.l.b16 %v4711
        %v5737 = vunpack.c.l.b16 %v4712
        %v5738 = vunpack.c.l.b16 %v4713
        %v5739 = vunpack.c.l.b16 %v4714
        %v5740 = vunpack.c.l.b16 %v4715
        %v5741 = vunpack.c.l.b16 %v4716
        %v5742 = vunpack.c.l.b16 %v4717
        %v5743 = vunpack.c.l.b16 %v4718
        %v5744 = vunpack.c.l.b16 %v4719
        %v5745 = vunpack.c.l.b16 %v4720
        %v5746 = vunpack.c.l.b16 %v4721
        %v5747 = vunpack.c.l.b16 %v4722
        %v5748 = vunpack.c.l.b16 %v4723
        %v5749 = vunpack.c.l.b16 %v4724
        %v5750 = vunpack.c.l.b16 %v4725
        %v5751 = vunpack.c.l.b16 %v4726
        %v5752 = vunpack.c.l.b16 %v4727
        %v5753 = vunpack.c.l.b16 %v4728
        %v5754 = vunpack.c.l.b16 %v4729
        %v5755 = vunpack.c.l.b16 %v4730
        %v5756 = vunpack.c.l.b16 %v4731
        %v5757 = vunpack.c.l.b16 %v4732
        %v5758 = vunpack.c.l.b16 %v4733
        %v5759 = vunpack.c.l.b16 %v4734
        %v5760 = vunpack.c.l.b16 %v4735
        %v5761 = vunpack.c.l.b16 %v4736
        %v5762 = vunpack.c.l.b16 %v4737
        %v5763 = vunpack.c.l.b16 %v4738
        %v5764 = vunpack.c.l.b16 %v4739
        %v5765 = vunpack.c.l.b16 %v4740
        %v5766 = vunpack.c.l.b16 %v4741
        %v5767 = vunpack.c.l.b16 %v4742
        %v5768 = vunpack.c.l.b16 %v4743
        %v5769 = vunpack.c.l.b16 %v4744
        %v5770 = vunpack.c.l.b16 %v4745
        %v5771 = vunpack.c.l.b16 %v4746
        %v5772 = vunpack.c.l.b16 %v4747
        %v5773 = vunpack.c.l.b16 %v4748
        %v5774 = vunpack.c.l.b16 %v4749
        %v5775 = vunpack.c.l.b16 %v4750
        %v5776 = vunpack.c.l.b16 %v4751
        %v5777 = vunpack.c.l.b16 %v4752
        %v5778 = vunpack.c.l.b16 %v4753
        %v5779 = vunpack.c.l.b16 %v4754
        %v5780 = vunpack.c.l.b16 %v4755
        %v5781 = vunpack.c.l.b16 %v4756
        %v5782 = vunpack.c.l.b16 %v4757
        %v5783 = vunpack.c.l.b16 %v4758
        %v5784 = vunpack.c.l.b16 %v4759
        %v5785 = vunpack.c.l.b16 %v4760
        %v5786 = vunpack.c.l.b16 %v4761
        %v5787 = vunpack.c.l.b16 %v4762
        %v5788 = vunpack.c.l.b16 %v4763
        %v5789 = vunpack.c.l.b16 %v4764
        %v5790 = vunpack.c.l.b16 %v4765
        %v5791 = vunpack.c.l.b16 %v4766
        %v5792 = vunpack.c.l.b16 %v4767
        %v5793 = vunpack.c.l.b16 %v4768
        %v5794 = vunpack.c.l.b16 %v4769
        %v5795 = vunpack.c.l.b16 %v4770
        %v5796 = vunpack.c.l.b16 %v4771
        %v5797 = vunpack.c.l.b16 %v4772
        %v5798 = vunpack.c.l.b16 %v4773
        %v5799 = vunpack.c.l.b16 %v4774
        %v5800 = vunpack.c.l.b16 %v4775
        %v5801 = vunpack.c.l.b16 %v4776
        %v5802 = vunpack.c.l.b16 %v4777
        %v5803 = vunpack.c.l.b16 %v4778
        %v5804 = vunpack.c.l.b16 %v4779
        %v5805 = vunpack.c.l.b16 %v4780
        %v5806 = vunpack.c.l.b16 %v4781
        %v5807 = vunpack.c.l.b16 %v4782
        %v5808 = vunpack.c.l.b16 %v4783
        %v5809 = vunpack.c.l.b16 %v4784
        %v5810 = vunpack.c.l.b16 %v4785
        %v5811 = vunpack.c.l.b16 %v4786
        %v5812 = vunpack.c.l.b16 %v4787
        %v5813 = vunpack.c.l.b16 %v4788
        %v5814 = vunpack.c.l.b16 %v4789
        %v5815 = vunpack.c.l.b16 %v4790
        %v5816 = vunpack.c.l.b16 %v4791
        %v5817 = vunpack.c.l.b16 %v4792
        %v5818 = vunpack.c.l.b16 %v4793
        %v5819 = vunpack.c.l.b16 %v4794
        %v5820 = vunpack.c.l.b16 %v4795
        %v5821 = vunpack.c.l.b16 %v4796
        %v5822 = vunpack.c.l.b16 %v4797
        %v5823 = vunpack.c.l.b16 %v4798
        %v5824 = vunpack.c.l.b16 %v4799
        %v5825 = vunpack.c.l.b16 %v4800
        %v5826 = vunpack.c.l.b16 %v4801
        %v5827 = vunpack.c.l.b16 %v4802
        %v5828 = vunpack.c.l.b16 %v4803
        %v5829 = vunpack.c.l.b16 %v4804
        %v5830 = vunpack.c.l.b16 %v4805
        %v5831 = vunpack.c.l.b16 %v4806
        %v5832 = vunpack.c.l.b16 %v4807
        %v5833 = vunpack.c.l.b16 %v4808
        %v5834 = vunpack.c.l.b16 %v4809
        %v5835 = vunpack.c.l.b16 %v4810
        %v5836 = vunpack.c.l.b16 %v4811
        %v5837 = vunpack.c.l.b16 %v4812
        %v5838 = vunpack.c.l.b16 %v4813
        %v5839 = vunpack.c.l.b16 %v4814
        %v5840 = vunpack.c.l.b16 %v4815
        %v5841 = vunpack.c.l.b16 %v4816
        %v5842 = vunpack.c.l.b16 %v4817
        %v5843 = vunpack.c.l.b16 %v4818
        %v5844 = vunpack.c.l.b16 %v4819
        %v5845 = vunpack.c.l.b16 %v4820
        %v5846 = vunpack.c.l.b16 %v4821
        %v5847 = vunpack.c.l.b16 %v4822
        %v5848 = vunpack.c.l.b16 %v4823
        %v5849 = vunpack.c.l.b16 %v4824
        %v5850 = vunpack.c.l.b16 %v4825
        %v5851 = vunpack.c.l.b16 %v4826
        %v5852 = vunpack.c.l.b16 %v4827
        %v5853 = vunpack.c.l.b16 %v4828
        %v5854 = vunpack.c.l.b16 %v4829
        %v5855 = vunpack.c.l.b16 %v4830
        %v5856 = vunpack.c.l.b16 %v4831
        %v5857 = vunpack.c.l.b16 %v4832
        %v5858 = vunpack.c.l.b16 %v4833
        %v5859 = vunpack.c.l.b16 %v4834
        %v5860 = vunpack.c.l.b16 %v4835
        %v5861 = vunpack.c.l.b16 %v4836
        %v5862 = vunpack.c.l.b16 %v4837
        %v5863 = vunpack.c.l.b16 %v4838
        %v5864 = vunpack.c.l.b16 %v4839
        %v5865 = vunpack.c.l.b16 %v4840
        %v5866 = vunpack.c.l.b16 %v4841
        %v5867 = vunpack.c.l.b16 %v4842
        %v5868 = vunpack.c.l.b16 %v4843
        %v5869 = vunpack.c.l.b16 %v4844
        %v5870 = vunpack.c.l.b16 %v4845
        %v5871 = vunpack.c.l.b16 %v4846
        %v5872 = vunpack.c.l.b16 %v4847
        %v5873 = vunpack.c.l.b16 %v4848
        %v5874 = vunpack.c.l.b16 %v4849
        %v5875 = vunpack.c.l.b16 %v4850
        %v5876 = vunpack.c.l.b16 %v4851
        %v5877 = vunpack.c.l.b16 %v4852
        %v5878 = vunpack.c.l.b16 %v4853
        %v5879 = vunpack.c.l.b16 %v4854
        %v5880 = vunpack.c.l.b16 %v4855
        %v5881 = vunpack.c.l.b16 %v4856
        %v5882 = vunpack.c.l.b16 %v4857
        %v5883 = vunpack.c.l.b16 %v4858
        %v5884 = vunpack.c.l.b16 %v4859
        %v5885 = vunpack.c.l.b16 %v4860
        %v5886 = vunpack.c.l.b16 %v4861
        %v5887 = vunpack.c.l.b16 %v4862
        %v5888 = vunpack.c.l.b16 %v4863
        %v5889 = vunpack.c.l.b16 %v4864
        %v5890 = vunpack.c.l.b16 %v4865
        %v5891 = vunpack.c.l.b16 %v4866
        %v5892 = vunpack.c.l.b16 %v4867
        %v5893 = vunpack.c.l.b16 %v4868
        %v5894 = vunpack.c.l.b16 %v4869
        %v5895 = vunpack.c.l.b16 %v4870
        %v5896 = vunpack.c.l.b16 %v4871
        %v5897 = vunpack.c.l.b16 %v4872
        %v5898 = vunpack.c.l.b16 %v4873
        %v5899 = vunpack.c.l.b16 %v4874
        %v5900 = vunpack.c.l.b16 %v4875
        %v5901 = vunpack.c.l.b16 %v4876
        %v5902 = vunpack.c.l.b16 %v4877
        %v5903 = vunpack.c.l.b16 %v4878
        %v5904 = vunpack.c.l.b16 %v4879
        %v5905 = vunpack.c.l.b16 %v4880
        %v5906 = vunpack.c.l.b16 %v4881
        %v5907 = vunpack.c.l.b16 %v4882
        %v5908 = vunpack.c.l.b16 %v4883
        %v5909 = vunpack.c.l.b16 %v4884
        %v5910 = vunpack.c.l.b16 %v4885
        %v5911 = vunpack.c.l.b16 %v4886
        %v5912 = vunpack.c.l.b16 %v4887
        %v5913 = vunpack.c.l.b16 %v4888
        %v5914 = vunpack.c.l.b16 %v4889
        %v5915 = vunpack.c.l.b16 %v4890
        %v5916 = vunpack.c.l.b16 %v4891
        %v5917 = vunpack.c.l.b16 %v4892
        %v5918 = vunpack.c.l.b16 %v4893
        %v5919 = vunpack.c.l.b16 %v4894
        %v5920 = vunpack.c.l.b16 %v4895
        %v5921 = vunpack.c.l.b16 %v4896
        %v5922 = vunpack.c.l.b16 %v4897
        %v5923 = vunpack.c.l.b16 %v4898
        %v5924 = vunpack.c.l.b16 %v4899
        %v5925 = vunpack.c.l.b16 %v4900
        %v5926 = vunpack.c.l.b16 %v4901
        %v5927 = vunpack.c.l.b16 %v4902
        %v5928 = vunpack.c.l.b16 %v4903
        %v5929 = vunpack.c.l.b16 %v4904
        %v5930 = vunpack.c.l.b16 %v4905
        %v5931 = vunpack.c.l.b16 %v4906
        %v5932 = vunpack.c.l.b16 %v4907
        %v5933 = vunpack.c.l.b16 %v4908
        %v5934 = vunpack.c.l.b16 %v4909
        %v5935 = vunpack.c.l.b16 %v4910
        %v5936 = vunpack.c.l.b16 %v4911
        %v5937 = vunpack.c.l.b16 %v4912
        %v5938 = vunpack.c.l.b16 %v4913
        %v5939 = vunpack.c.l.b16 %v4914
        %v5940 = vunpack.c.l.b16 %v4915
        %v5941 = vunpack.c.l.b16 %v4916
        %v5942 = vunpack.c.l.b16 %v4917
        %v5943 = vunpack.c.l.b16 %v4918
        %v5944 = vunpack.c.l.b16 %v4919
        %v5945 = vunpack.c.l.b16 %v4920
        %v5946 = vunpack.c.l.b16 %v4921
        %v5947 = vunpack.c.l.b16 %v4922
        %v5948 = vunpack.c.l.b16 %v4923
        %v5949 = vunpack.c.l.b16 %v4924
        %v5950 = vunpack.c.l.b16 %v4925
        %v5951 = vunpack.c.l.b16 %v4926
        %v5952 = vunpack.c.l.b16 %v4927
        %v5953 = vunpack.c.l.b16 %v4928
        %v5954 = vunpack.c.l.b16 %v4929
        %v5955 = vunpack.c.l.b16 %v4930
        %v5956 = vunpack.c.l.b16 %v4931
        %v5957 = vunpack.c.l.b16 %v4932
        %v5958 = vunpack.c.l.b16 %v4933
        %v5959 = vunpack.c.l.b16 %v4934
        %v5960 = vunpack.c.l.b16 %v4935
        %v5961 = vunpack.c.l.b16 %v4936
        %v5962 = vunpack.c.l.b16 %v4937
        %v5963 = vunpack.c.l.b16 %v4938
        %v5964 = vunpack.c.l.b16 %v4939
        %v5965 = vunpack.c.l.b16 %v4940
        %v5966 = vunpack.c.l.b16 %v4941
        %v5967 = vunpack.c.l.b16 %v4942
        %v5968 = vunpack.c.l.b16 %v4943
        %v5969 = vunpack.c.l.b16 %v4944
        %v5970 = vunpack.c.l.b16 %v4945
        %v5971 = vunpack.c.l.b16 %v4946
        %v5972 = vunpack.c.l.b16 %v4947
        %v5973 = vunpack.c.l.b16 %v4948
        %v5974 = vunpack.c.l.b16 %v4949
        %v5975 = vunpack.c.l.b16 %v4950
        %v5976 = vunpack.c.l.b16 %v4951
        %v5977 = vunpack.c.l.b16 %v4952
        %v5978 = vunpack.c.l.b16 %v4953
        %v5979 = vunpack.c.l.b16 %v4954
        %v5980 = vunpack.c.l.b16 %v4955
        %v5981 = vunpack.c.l.b16 %v4956
        %v5982 = vunpack.c.l.b16 %v4957
        %v5983 = vunpack.c.l.b16 %v4958
        %v5984 = vunpack.c.l.b16 %v4959
        %v5985 = vunpack.c.l.b16 %v4960
        %v5986 = vunpack.c.l.b16 %v4961
        %v5987 = vunpack.c.l.b16 %v4962
        %v5988 = vunpack.c.l.b16 %v4963
        %v5989 = vunpack.c.l.b16 %v4964
        %v5990 = vunpack.c.l.b16 %v4965
        %v5991 = vunpack.c.l.b16 %v4966
        %v5992 = vunpack.c.l.b16 %v4967
        %v5993 = vunpack.c.l.b16 %v4968
        %v5994 = vunpack.c.l.b16 %v4969
        %v5995 = vunpack.c.l.b16 %v4970
        %v5996 = vunpack.c.l.b16 %v4971
        %v5997 = vunpack.c.l.b16 %v4972
        %v5998 = vunpack.c.l.b16 %v4973
        %v5999 = vunpack.c.l.b16 %v4974
        %v6000 = vunpack.c.l.b16 %v4975
        %v6001 = vunpack.c.l.b16 %v4976
        %v6002 = vunpack.c.l.b16 %v4977
        %v6003 = vunpack.c.l.b16 %v4978
        %v6004 = vunpack.c.l.b16 %v4979
        %v6005 = vunpack.c.l.b16 %v4980
        %v6006 = vunpack.c.l.b16 %v4981
        %v6007 = vunpack.c.l.b16 %v4982
        %v6008 = vunpack.c.l.b16 %v4983
        %v6009 = vunpack.c.l.b16 %v4984
        %v6010 = vunpack.c.l.b16 %v4985
        %v6011 = vunpack.c.l.b16 %v4986
        %v6012 = vunpack.c.l.b16 %v4987
        %v6013 = vunpack.c.l.b16 %v4988
        %v6014 = vunpack.c.l.b16 %v4989
        %v6015 = vunpack.c.l.b16 %v4990
        %v6016 = vunpack.c.l.b16 %v4991
        %v6017 = vunpack.c.l.b16 %v4992
        %v6018 = vunpack.c.l.b16 %v4993
        %v6019 = vunpack.c.l.b16 %v4994
        %v6020 = vunpack.c.l.b16 %v4995
        %v6021 = vunpack.c.l.b16 %v4996
        %v6022 = vunpack.c.l.b16 %v4997
        %v6023 = vunpack.c.l.b16 %v4998
        %v6024 = vunpack.c.l.b16 %v4999
        %v6025 = vunpack.c.l.b16 %v5000
        %v6026 = vunpack.c.l.b16 %v5001
        %v6027 = vunpack.c.l.b16 %v5002
        %v6028 = vunpack.c.l.b16 %v5003
        %v6029 = vunpack.c.l.b16 %v5004
        %v6030 = vunpack.c.l.b16 %v5005
        %v6031 = vunpack.c.l.b16 %v5006
        %v6032 = vunpack.c.l.b16 %v5007
        %v6033 = vunpack.c.l.b16 %v5008
        %v6034 = vunpack.c.l.b16 %v5009
        %v6035 = vunpack.c.l.b16 %v5010
        %v6036 = vunpack.c.l.b16 %v5011
        %v6037 = vunpack.c.l.b16 %v5012
        %v6038 = vunpack.c.l.b16 %v5013
        %v6039 = vunpack.c.l.b16 %v5014
        %v6040 = vunpack.c.l.b16 %v5015
        %v6041 = vunpack.c.l.b16 %v5016
        %v6042 = vunpack.c.l.b16 %v5017
        %v6043 = vunpack.c.l.b16 %v5018
        %v6044 = vunpack.c.l.b16 %v5019
        %v6045 = vunpack.c.l.b16 %v5020
        %v6046 = vunpack.c.l.b16 %v5021
        %v6047 = vunpack.c.l.b16 %v5022
        %v6048 = vunpack.c.l.b16 %v5023
        %v6049 = vunpack.c.l.b16 %v5024
        %v6050 = vunpack.c.l.b16 %v5025
        %v6051 = vunpack.c.l.b16 %v5026
        %v6052 = vunpack.c.l.b16 %v5027
        %v6053 = vunpack.c.l.b16 %v5028
        %v6054 = vunpack.c.l.b16 %v5029
        %v6055 = vunpack.c.l.b16 %v5030
        %v6056 = vunpack.c.l.b16 %v5031
        %v6057 = vunpack.c.l.b16 %v5032
        %v6058 = vunpack.c.l.b16 %v5033
        %v6059 = vunpack.c.l.b16 %v5034
        %v6060 = vunpack.c.l.b16 %v5035
        %v6061 = vunpack.c.l.b16 %v5036
        %v6062 = vunpack.c.l.b16 %v5037
        %v6063 = vunpack.c.l.b16 %v5038
        %v6064 = vunpack.c.l.b16 %v5039
        %v6065 = vunpack.c.l.b16 %v5040
        %v6066 = vunpack.c.l.b16 %v5041
        %v6067 = vunpack.c.l.b16 %v5042
        %v6068 = vunpack.c.l.b16 %v5043
        %v6069 = vunpack.c.l.b16 %v5044
        %v6070 = vunpack.c.l.b16 %v5045
        %v6071 = vunpack.c.l.b16 %v5046
        %v6072 = vunpack.c.l.b16 %v5047
        %v6073 = vunpack.c.l.b16 %v5048
        %v6074 = vunpack.c.l.b16 %v5049
        %v6075 = vunpack.c.l.b16 %v5050
        %v6076 = vunpack.c.l.b16 %v5051
        %v6077 = vunpack.c.l.b16 %v5052
        %v6078 = vunpack.c.l.b16 %v5053
        %v6079 = vunpack.c.l.b16 %v5054
        %v6080 = vunpack.c.l.b16 %v5055
        %v6081 = vunpack.c.l.b16 %v5056
        %v6082 = vunpack.c.l.b16 %v5057
        %v6083 = vunpack.c.l.b16 %v5058
        %v6084 = vunpack.c.l.b16 %v5059
        %v6085 = vunpack.c.l.b16 %v5060
        %v6086 = vunpack.c.l.b16 %v5061
        %v6087 = vunpack.c.l.b16 %v5062
        %v6088 = vunpack.c.l.b16 %v5063
        %v6089 = vunpack.c.l.b16 %v5064
        %v6090 = vunpack.c.l.b16 %v5065
        %v6091 = vunpack.c.l.b16 %v5066
        %v6092 = vunpack.c.l.b16 %v5067
        %v6093 = vunpack.c.l.b16 %v5068
        %v6094 = vunpack.c.l.b16 %v5069
        %v6095 = vunpack.c.l.b16 %v5070
        %v6096 = vunpack.c.l.b16 %v5071
        %v6097 = vunpack.c.l.b16 %v5072
        %v6098 = vunpack.c.l.b16 %v5073
        %v6099 = vunpack.c.l.b16 %v5074
        %v6100 = vunpack.c.l.b16 %v5075
        %v6101 = vpack.c.b16 %v5590, %v5589
        %v6102 = vpack.c.b16 %v5592, %v5591
        %v6103 = vpack.c.b16 %v5594, %v5593
        %v6104 = vpack.c.b16 %v5596, %v5595
        %v6105 = vpack.c.b16 %v5598, %v5597
        %v6106 = vpack.c.b16 %v5600, %v5599
        %v6107 = vpack.c.b16 %v5602, %v5601
        %v6108 = vpack.c.b16 %v5604, %v5603
        %v6109 = vpack.c.b16 %v5606, %v5605
        %v6110 = vpack.c.b16 %v5608, %v5607
        %v6111 = vpack.c.b16 %v5610, %v5609
        %v6112 = vpack.c.b16 %v5612, %v5611
        %v6113 = vpack.c.b16 %v5614, %v5613
        %v6114 = vpack.c.b16 %v5616, %v5615
        %v6115 = vpack.c.b16 %v5618, %v5617
        %v6116 = vpack.c.b16 %v5620, %v5619
        %v6117 = vpack.c.b16 %v5622, %v5621
        %v6118 = vpack.c.b16 %v5624, %v5623
        %v6119 = vpack.c.b16 %v5626, %v5625
        %v6120 = vpack.c.b16 %v5628, %v5627
        %v6121 = vpack.c.b16 %v5630, %v5629
        %v6122 = vpack.c.b16 %v5632, %v5631
        %v6123 = vpack.c.b16 %v5634, %v5633
        %v6124 = vpack.c.b16 %v5636, %v5635
        %v6125 = vpack.c.b16 %v5638, %v5637
        %v6126 = vpack.c.b16 %v5640, %v5639
        %v6127 = vpack.c.b16 %v5642, %v5641
        %v6128 = vpack.c.b16 %v5644, %v5643
        %v6129 = vpack.c.b16 %v5646, %v5645
        %v6130 = vpack.c.b16 %v5648, %v5647
        %v6131 = vpack.c.b16 %v5650, %v5649
        %v6132 = vpack.c.b16 %v5652, %v5651
        %v6133 = vpack.c.b16 %v5654, %v5653
        %v6134 = vpack.c.b16 %v5656, %v5655
        %v6135 = vpack.c.b16 %v5658, %v5657
        %v6136 = vpack.c.b16 %v5660, %v5659
        %v6137 = vpack.c.b16 %v5662, %v5661
        %v6138 = vpack.c.b16 %v5664, %v5663
        %v6139 = vpack.c.b16 %v5666, %v5665
        %v6140 = vpack.c.b16 %v5668, %v5667
        %v6141 = vpack.c.b16 %v5670, %v5669
        %v6142 = vpack.c.b16 %v5672, %v5671
        %v6143 = vpack.c.b16 %v5674, %v5673
        %v6144 = vpack.c.b16 %v5676, %v5675
        %v6145 = vpack.c.b16 %v5678, %v5677
        %v6146 = vpack.c.b16 %v5680, %v5679
        %v6147 = vpack.c.b16 %v5682, %v5681
        %v6148 = vpack.c.b16 %v5684, %v5683
        %v6149 = vpack.c.b16 %v5686, %v5685
        %v6150 = vpack.c.b16 %v5688, %v5687
        %v6151 = vpack.c.b16 %v5690, %v5689
        %v6152 = vpack.c.b16 %v5692, %v5691
        %v6153 = vpack.c.b16 %v5694, %v5693
        %v6154 = vpack.c.b16 %v5696, %v5695
        %v6155 = vpack.c.b16 %v5698, %v5697
        %v6156 = vpack.c.b16 %v5700, %v5699
        %v6157 = vpack.c.b16 %v5702, %v5701
        %v6158 = vpack.c.b16 %v5704, %v5703
        %v6159 = vpack.c.b16 %v5706, %v5705
        %v6160 = vpack.c.b16 %v5708, %v5707
        %v6161 = vpack.c.b16 %v5710, %v5709
        %v6162 = vpack.c.b16 %v5712, %v5711
        %v6163 = vpack.c.b16 %v5714, %v5713
        %v6164 = vpack.c.b16 %v5716, %v5715
        %v6165 = vpack.c.b16 %v5718, %v5717
        %v6166 = vpack.c.b16 %v5720, %v5719
        %v6167 = vpack.c.b16 %v5722, %v5721
        %v6168 = vpack.c.b16 %v5724, %v5723
        %v6169 = vpack.c.b16 %v5726, %v5725
        %v6170 = vpack.c.b16 %v5728, %v5727
        %v6171 = vpack.c.b16 %v5730, %v5729
        %v6172 = vpack.c.b16 %v5732, %v5731
        %v6173 = vpack.c.b16 %v5734, %v5733
        %v6174 = vpack.c.b16 %v5736, %v5735
        %v6175 = vpack.c.b16 %v5738, %v5737
        %v6176 = vpack.c.b16 %v5740, %v5739
        %v6177 = vpack.c.b16 %v5742, %v5741
        %v6178 = vpack.c.b16 %v5744, %v5743
        %v6179 = vpack.c.b16 %v5746, %v5745
        %v6180 = vpack.c.b16 %v5748, %v5747
        %v6181 = vpack.c.b16 %v5750, %v5749
        %v6182 = vpack.c.b16 %v5752, %v5751
        %v6183 = vpack.c.b16 %v5754, %v5753
        %v6184 = vpack.c.b16 %v5756, %v5755
        %v6185 = vpack.c.b16 %v5758, %v5757
        %v6186 = vpack.c.b16 %v5760, %v5759
        %v6187 = vpack.c.b16 %v5762, %v5761
        %v6188 = vpack.c.b16 %v5764, %v5763
        %v6189 = vpack.c.b16 %v5766, %v5765
        %v6190 = vpack.c.b16 %v5768, %v5767
        %v6191 = vpack.c.b16 %v5770, %v5769
        %v6192 = vpack.c.b16 %v5772, %v5771
        %v6193 = vpack.c.b16 %v5774, %v5773
        %v6194 = vpack.c.b16 %v5776, %v5775
        %v6195 = vpack.c.b16 %v5778, %v5777
        %v6196 = vpack.c.b16 %v5780, %v5779
        %v6197 = vpack.c.b16 %v5782, %v5781
        %v6198 = vpack.c.b16 %v5784, %v5783
        %v6199 = vpack.c.b16 %v5786, %v5785
        %v6200 = vpack.c.b16 %v5788, %v5787
        %v6201 = vpack.c.b16 %v5790, %v5789
        %v6202 = vpack.c.b16 %v5792, %v5791
        %v6203 = vpack.c.b16 %v5794, %v5793
        %v6204 = vpack.c.b16 %v5796, %v5795
        %v6205 = vpack.c.b16 %v5798, %v5797
        %v6206 = vpack.c.b16 %v5800, %v5799
        %v6207 = vpack.c.b16 %v5802, %v5801
        %v6208 = vpack.c.b16 %v5804, %v5803
        %v6209 = vpack.c.b16 %v5806, %v5805
        %v6210 = vpack.c.b16 %v5808, %v5807
        %v6211 = vpack.c.b16 %v5810, %v5809
        %v6212 = vpack.c.b16 %v5812, %v5811
        %v6213 = vpack.c.b16 %v5814, %v5813
        %v6214 = vpack.c.b16 %v5816, %v5815
        %v6215 = vpack.c.b16 %v5818, %v5817
        %v6216 = vpack.c.b16 %v5820, %v5819
        %v6217 = vpack.c.b16 %v5822, %v5821
        %v6218 = vpack.c.b16 %v5824, %v5823
        %v6219 = vpack.c.b16 %v5826, %v5825
        %v6220 = vpack.c.b16 %v5828, %v5827
        %v6221 = vpack.c.b16 %v5830, %v5829
        %v6222 = vpack.c.b16 %v5832, %v5831
        %v6223 = vpack.c.b16 %v5834, %v5833
        %v6224 = vpack.c.b16 %v5836, %v5835
        %v6225 = vpack.c.b16 %v5838, %v5837
        %v6226 = vpack.c.b16 %v5840, %v5839
        %v6227 = vpack.c.b16 %v5842, %v5841
        %v6228 = vpack.c.b16 %v5844, %v5843
        %v6229 = vpack.c.b16 %v5846, %v5845
        %v6230 = vpack.c.b16 %v5848, %v5847
        %v6231 = vpack.c.b16 %v5850, %v5849
        %v6232 = vpack.c.b16 %v5852, %v5851
        %v6233 = vpack.c.b16 %v5854, %v5853
        %v6234 = vpack.c.b16 %v5856, %v5855
        %v6235 = vpack.c.b16 %v5858, %v5857
        %v6236 = vpack.c.b16 %v5860, %v5859
        %v6237 = vpack.c.b16 %v5862, %v5861
        %v6238 = vpack.c.b16 %v5864, %v5863
        %v6239 = vpack.c.b16 %v5866, %v5865
        %v6240 = vpack.c.b16 %v5868, %v5867
        %v6241 = vpack.c.b16 %v5870, %v5869
        %v6242 = vpack.c.b16 %v5872, %v5871
        %v6243 = vpack.c.b16 %v5874, %v5873
        %v6244 = vpack.c.b16 %v5876, %v5875
        %v6245 = vpack.c.b16 %v5878, %v5877
        %v6246 = vpack.c.b16 %v5880, %v5879
        %v6247 = vpack.c.b16 %v5882, %v5881
        %v6248 = vpack.c.b16 %v5884, %v5883
        %v6249 = vpack.c.b16 %v5886, %v5885
        %v6250 = vpack.c.b16 %v5888, %v5887
        %v6251 = vpack.c.b16 %v5890, %v5889
        %v6252 = vpack.c.b16 %v5892, %v5891
        %v6253 = vpack.c.b16 %v5894, %v5893
        %v6254 = vpack.c.b16 %v5896, %v5895
        %v6255 = vpack.c.b16 %v5898, %v5897
        %v6256 = vpack.c.b16 %v5900, %v5899
        %v6257 = vpack.c.b16 %v5902, %v5901
        %v6258 = vpack.c.b16 %v5904, %v5903
        %v6259 = vpack.c.b16 %v5906, %v5905
        %v6260 = vpack.c.b16 %v5908, %v5907
        %v6261 = vpack.c.b16 %v5910, %v5909
        %v6262 = vpack.c.b16 %v5912, %v5911
        %v6263 = vpack.c.b16 %v5914, %v5913
        %v6264 = vpack.c.b16 %v5916, %v5915
        %v6265 = vpack.c.b16 %v5918, %v5917
        %v6266 = vpack.c.b16 %v5920, %v5919
        %v6267 = vpack.c.b16 %v5922, %v5921
        %v6268 = vpack.c.b16 %v5924, %v5923
        %v6269 = vpack.c.b16 %v5926, %v5925
        %v6270 = vpack.c.b16 %v5928, %v5927
        %v6271 = vpack.c.b16 %v5930, %v5929
        %v6272 = vpack.c.b16 %v5932, %v5931
        %v6273 = vpack.c.b16 %v5934, %v5933
        %v6274 = vpack.c.b16 %v5936, %v5935
        %v6275 = vpack.c.b16 %v5938, %v5937
        %v6276 = vpack.c.b16 %v5940, %v5939
        %v6277 = vpack.c.b16 %v5942, %v5941
        %v6278 = vpack.c.b16 %v5944, %v5943
        %v6279 = vpack.c.b16 %v5946, %v5945
        %v6280 = vpack.c.b16 %v5948, %v5947
        %v6281 = vpack.c.b16 %v5950, %v5949
        %v6282 = vpack.c.b16 %v5952, %v5951
        %v6283 = vpack.c.b16 %v5954, %v5953
        %v6284 = vpack.c.b16 %v5956, %v5955
        %v6285 = vpack.c.b16 %v5958, %v5957
        %v6286 = vpack.c.b16 %v5960, %v5959
        %v6287 = vpack.c.b16 %v5962, %v5961
        %v6288 = vpack.c.b16 %v5964, %v5963
        %v6289 = vpack.c.b16 %v5966, %v5965
        %v6290 = vpack.c.b16 %v5968, %v5967
        %v6291 = vpack.c.b16 %v5970, %v5969
        %v6292 = vpack.c.b16 %v5972, %v5971
        %v6293 = vpack.c.b16 %v5974, %v5973
        %v6294 = vpack.c.b16 %v5976, %v5975
        %v6295 = vpack.c.b16 %v5978, %v5977
        %v6296 = vpack.c.b16 %v5980, %v5979
        %v6297 = vpack.c.b16 %v5982, %v5981
        %v6298 = vpack.c.b16 %v5984, %v5983
        %v6299 = vpack.c.b16 %v5986, %v5985
        %v6300 = vpack.c.b16 %v5988, %v5987
        %v6301 = vpack.c.b16 %v5990, %v5989
        %v6302 = vpack.c.b16 %v5992, %v5991
        %v6303 = vpack.c.b16 %v5994, %v5993
        %v6304 = vpack.c.b16 %v5996, %v5995
        %v6305 = vpack.c.b16 %v5998, %v5997
        %v6306 = vpack.c.b16 %v6000, %v5999
        %v6307 = vpack.c.b16 %v6002, %v6001
        %v6308 = vpack.c.b16 %v6004, %v6003
        %v6309 = vpack.c.b16 %v6006, %v6005
        %v6310 = vpack.c.b16 %v6008, %v6007
        %v6311 = vpack.c.b16 %v6010, %v6009
        %v6312 = vpack.c.b16 %v6012, %v6011
        %v6313 = vpack.c.b16 %v6014, %v6013
        %v6314 = vpack.c.b16 %v6016, %v6015
        %v6315 = vpack.c.b16 %v6018, %v6017
        %v6316 = vpack.c.b16 %v6020, %v6019
        %v6317 = vpack.c.b16 %v6022, %v6021
        %v6318 = vpack.c.b16 %v6024, %v6023
        %v6319 = vpack.c.b16 %v6026, %v6025
        %v6320 = vpack.c.b16 %v6028, %v6027
        %v6321 = vpack.c.b16 %v6030, %v6029
        %v6322 = vpack.c.b16 %v6032, %v6031
        %v6323 = vpack.c.b16 %v6034, %v6033
        %v6324 = vpack.c.b16 %v6036, %v6035
        %v6325 = vpack.c.b16 %v6038, %v6037
        %v6326 = vpack.c.b16 %v6040, %v6039
        %v6327 = vpack.c.b16 %v6042, %v6041
        %v6328 = vpack.c.b16 %v6044, %v6043
        %v6329 = vpack.c.b16 %v6046, %v6045
        %v6330 = vpack.c.b16 %v6048, %v6047
        %v6331 = vpack.c.b16 %v6050, %v6049
        %v6332 = vpack.c.b16 %v6052, %v6051
        %v6333 = vpack.c.b16 %v6054, %v6053
        %v6334 = vpack.c.b16 %v6056, %v6055
        %v6335 = vpack.c.b16 %v6058, %v6057
        %v6336 = vpack.c.b16 %v6060, %v6059
        %v6337 = vpack.c.b16 %v6062, %v6061
        %v6338 = vpack.c.b16 %v6064, %v6063
        %v6339 = vpack.c.b16 %v6066, %v6065
        %v6340 = vpack.c.b16 %v6068, %v6067
        %v6341 = vpack.c.b16 %v6070, %v6069
        %v6342 = vpack.c.b16 %v6072, %v6071
        %v6343 = vpack.c.b16 %v6074, %v6073
        %v6344 = vpack.c.b16 %v6076, %v6075
        %v6345 = vpack.c.b16 %v6078, %v6077
        %v6346 = vpack.c.b16 %v6080, %v6079
        %v6347 = vpack.c.b16 %v6082, %v6081
        %v6348 = vpack.c.b16 %v6084, %v6083
        %v6349 = vpack.c.b16 %v6086, %v6085
        %v6350 = vpack.c.b16 %v6088, %v6087
        %v6351 = vpack.c.b16 %v6090, %v6089
        %v6352 = vpack.c.b16 %v6092, %v6091
        %v6353 = vpack.c.b16 %v6094, %v6093
        %v6354 = vpack.c.b16 %v6096, %v6095
        %v6355 = vpack.c.b16 %v6098, %v6097
        %v6356 = vpack.c.b16 %v6100, %v6099
        %6613 = vmatprep.subr.bf16.mxu0 0
        %6614 = vmatpush1.bf16.msra.mxu0 %v6101
        %6615 = vmatprep.subr.bf16.mxu0 0
        %6616 = vmatpush1.bf16.msra.mxu0 %v6102
        %6617 = vmatprep.subr.bf16.mxu0 0
        %6618 = vmatpush1.bf16.msra.mxu0 %v6103
        %6619 = vmatprep.subr.bf16.mxu0 0
        %6620 = vmatpush1.bf16.msra.mxu0 %v6104
        %6621 = vmatprep.subr.bf16.mxu0 0
        %6622 = vmatpush1.bf16.msra.mxu0 %v6105
        %6623 = vmatprep.subr.bf16.mxu0 0
        %6624 = vmatpush1.bf16.msra.mxu0 %v6106
        %6625 = vmatprep.subr.bf16.mxu0 0
        %6626 = vmatpush1.bf16.msra.mxu0 %v6107
        %6627 = vmatprep.subr.bf16.mxu0 0
        %6628 = vmatpush1.bf16.msra.mxu0 %v6108
        %6629 = vmatprep.subr.bf16.mxu0 0
        %6630 = vmatpush1.bf16.msra.mxu0 %v6109
        %6631 = vmatprep.subr.bf16.mxu0 0
        %6632 = vmatpush1.bf16.msra.mxu0 %v6110
        %6633 = vmatprep.subr.bf16.mxu0 0
        %6634 = vmatpush1.bf16.msra.mxu0 %v6111
        %6635 = vmatprep.subr.bf16.mxu0 0
        %6636 = vmatpush1.bf16.msra.mxu0 %v6112
        %6637 = vmatprep.subr.bf16.mxu0 0
        %6638 = vmatpush1.bf16.msra.mxu0 %v6113
        %6639 = vmatprep.subr.bf16.mxu0 0
        %6640 = vmatpush1.bf16.msra.mxu0 %v6114
        %6641 = vmatprep.subr.bf16.mxu0 0
        %6642 = vmatpush1.bf16.msra.mxu0 %v6115
        %6643 = vmatprep.subr.bf16.mxu0 0
        %6644 = vmatpush1.bf16.msra.mxu0 %v6116
        %6645 = vmatprep.mubr.bf16.mxu0 %v4533
        %6646 = vmatmul.mubr.bf16.gmra.mrb[0].mxu0 %v4532
        %v6647 = vpop.f32.mrb[0].mxu0
        %v6648 = vadd.f32 %v5076, %v6647
        %v6649 = vpop.f32.mrb[0].mxu0
        %v6650 = vpop.f32.mrb[0].mxu0
        %v6651 = vpop.f32.mrb[0].mxu0
        %6652 = vdwg.mxu0
        %6653 = vmatprep.subr.bf16.mxu0 0
        %6654 = vmatpush1.bf16.msra.mxu0 %v6117
        %6655 = vmatprep.subr.bf16.mxu0 0
        %6656 = vmatpush1.bf16.msra.mxu0 %v6118
        %6657 = vmatprep.subr.bf16.mxu0 0
        %6658 = vmatpush1.bf16.msra.mxu0 %v6119
        %6659 = vmatprep.subr.bf16.mxu0 0
        %6660 = vmatpush1.bf16.msra.mxu0 %v6120
        %6661 = vmatprep.subr.bf16.mxu0 0
        %6662 = vmatpush1.bf16.msra.mxu0 %v6121
        %6663 = vmatprep.subr.bf16.mxu0 0
        %6664 = vmatpush1.bf16.msra.mxu0 %v6122
        %6665 = vmatprep.subr.bf16.mxu0 0
        %6666 = vmatpush1.bf16.msra.mxu0 %v6123
        %6667 = vmatprep.subr.bf16.mxu0 0
        %6668 = vmatpush1.bf16.msra.mxu0 %v6124
        %6669 = vmatprep.subr.bf16.mxu0 0
        %6670 = vmatpush1.bf16.msra.mxu0 %v6125
        %6671 = vmatprep.subr.bf16.mxu0 0
        %6672 = vmatpush1.bf16.msra.mxu0 %v6126
        %6673 = vmatprep.subr.bf16.mxu0 0
        %6674 = vmatpush1.bf16.msra.mxu0 %v6127
        %6675 = vmatprep.subr.bf16.mxu0 0
        %6676 = vmatpush1.bf16.msra.mxu0 %v6128
        %6677 = vmatprep.subr.bf16.mxu0 0
        %6678 = vmatpush1.bf16.msra.mxu0 %v6129
        %6679 = vmatprep.subr.bf16.mxu0 0
        %6680 = vmatpush1.bf16.msra.mxu0 %v6130
        %6681 = vmatprep.subr.bf16.mxu0 0
        %6682 = vmatpush1.bf16.msra.mxu0 %v6131
        %6683 = vmatprep.subr.bf16.mxu0 0
        %6684 = vmatpush1.bf16.msra.mxu0 %v6132
        %6685 = vmatprep.mubr.bf16.mxu0 %v4535
        %6686 = vmatmul.mubr.bf16.gmra.mrb[0].mxu0 %v4534
        %v6687 = vpop.f32.mrb[0].mxu0
        %v6688 = vadd.f32 %v6648, %v6687
        %v6689 = vpop.f32.mrb[0].mxu0
        %v6690 = vpop.f32.mrb[0].mxu0
        %v6691 = vpop.f32.mrb[0].mxu0
        %6692 = vdwg.mxu0
        %6693 = vmatprep.subr.bf16.mxu0 0
        %6694 = vmatpush1.bf16.msra.mxu0 %v6133
        %6695 = vmatprep.subr.bf16.mxu0 0
        %6696 = vmatpush1.bf16.msra.mxu0 %v6134
        %6697 = vmatprep.subr.bf16.mxu0 0
        %6698 = vmatpush1.bf16.msra.mxu0 %v6135
        %6699 = vmatprep.subr.bf16.mxu0 0
        %6700 = vmatpush1.bf16.msra.mxu0 %v6136
        %6701 = vmatprep.subr.bf16.mxu0 0
        %6702 = vmatpush1.bf16.msra.mxu0 %v6137
        %6703 = vmatprep.subr.bf16.mxu0 0
        %6704 = vmatpush1.bf16.msra.mxu0 %v6138
        %6705 = vmatprep.subr.bf16.mxu0 0
        %6706 = vmatpush1.bf16.msra.mxu0 %v6139
        %6707 = vmatprep.subr.bf16.mxu0 0
        %6708 = vmatpush1.bf16.msra.mxu0 %v6140
        %6709 = vmatprep.subr.bf16.mxu0 0
        %6710 = vmatpush1.bf16.msra.mxu0 %v6141
        %6711 = vmatprep.subr.bf16.mxu0 0
        %6712 = vmatpush1.bf16.msra.mxu0 %v6142
        %6713 = vmatprep.subr.bf16.mxu0 0
        %6714 = vmatpush1.bf16.msra.mxu0 %v6143
        %6715 = vmatprep.subr.bf16.mxu0 0
        %6716 = vmatpush1.bf16.msra.mxu0 %v6144
        %6717 = vmatprep.subr.bf16.mxu0 0
        %6718 = vmatpush1.bf16.msra.mxu0 %v6145
        %6719 = vmatprep.subr.bf16.mxu0 0
        %6720 = vmatpush1.bf16.msra.mxu0 %v6146
        %6721 = vmatprep.subr.bf16.mxu0 0
        %6722 = vmatpush1.bf16.msra.mxu0 %v6147
        %6723 = vmatprep.subr.bf16.mxu0 0
        %6724 = vmatpush1.bf16.msra.mxu0 %v6148
        %6725 = vmatprep.mubr.bf16.mxu0 %v4537
        %6726 = vmatmul.mubr.bf16.gmra.mrb[0].mxu0 %v4536
        %v6727 = vpop.f32.mrb[0].mxu0
        %v6728 = vadd.f32 %v6688, %v6727
        %v6729 = vpop.f32.mrb[0].mxu0
        %v6730 = vpop.f32.mrb[0].mxu0
        %v6731 = vpop.f32.mrb[0].mxu0
        %6732 = vdwg.mxu0
        %6733 = vmatprep.subr.bf16.mxu0 0
        %6734 = vmatpush1.bf16.msra.mxu0 %v6149
        %6735 = vmatprep.subr.bf16.mxu0 0
        %6736 = vmatpush1.bf16.msra.mxu0 %v6150
        %6737 = vmatprep.subr.bf16.mxu0 0
        %6738 = vmatpush1.bf16.msra.mxu0 %v6151
        %6739 = vmatprep.subr.bf16.mxu0 0
        %6740 = vmatpush1.bf16.msra.mxu0 %v6152
        %6741 = vmatprep.subr.bf16.mxu0 0
        %6742 = vmatpush1.bf16.msra.mxu0 %v6153
        %6743 = vmatprep.subr.bf16.mxu0 0
        %6744 = vmatpush1.bf16.msra.mxu0 %v6154
        %6745 = vmatprep.subr.bf16.mxu0 0
        %6746 = vmatpush1.bf16.msra.mxu0 %v6155
        %6747 = vmatprep.subr.bf16.mxu0 0
        %6748 = vmatpush1.bf16.msra.mxu0 %v6156
        %6749 = vmatprep.subr.bf16.mxu0 0
        %6750 = vmatpush1.bf16.msra.mxu0 %v6157
        %6751 = vmatprep.subr.bf16.mxu0 0
        %6752 = vmatpush1.bf16.msra.mxu0 %v6158
        %6753 = vmatprep.subr.bf16.mxu0 0
        %6754 = vmatpush1.bf16.msra.mxu0 %v6159
        %6755 = vmatprep.subr.bf16.mxu0 0
        %6756 = vmatpush1.bf16.msra.mxu0 %v6160
        %6757 = vmatprep.subr.bf16.mxu0 0
        %6758 = vmatpush1.bf16.msra.mxu0 %v6161
        %6759 = vmatprep.subr.bf16.mxu0 0
        %6760 = vmatpush1.bf16.msra.mxu0 %v6162
        %6761 = vmatprep.subr.bf16.mxu0 0
        %6762 = vmatpush1.bf16.msra.mxu0 %v6163
        %6763 = vmatprep.subr.bf16.mxu0 0
        %6764 = vmatpush1.bf16.msra.mxu0 %v6164
        %6765 = vmatprep.mubr.bf16.mxu0 %v4539
        %6766 = vmatmul.mubr.bf16.gmra.mrb[0].mxu0 %v4538
        %v6767 = vpop.f32.mrb[0].mxu0
        %v6768 = vadd.f32 %v6728, %v6767
        %v6769 = vpop.f32.mrb[0].mxu0
        %v6770 = vpop.f32.mrb[0].mxu0
        %v6771 = vpop.f32.mrb[0].mxu0
        %6772 = vdwg.mxu0
        %6773 = vmatprep.subr.bf16.mxu0 0
        %6774 = vmatpush1.bf16.msra.mxu0 %v6165
        %6775 = vmatprep.subr.bf16.mxu0 0
        %6776 = vmatpush1.bf16.msra.mxu0 %v6166
        %6777 = vmatprep.subr.bf16.mxu0 0
        %6778 = vmatpush1.bf16.msra.mxu0 %v6167
        %6779 = vmatprep.subr.bf16.mxu0 0
        %6780 = vmatpush1.bf16.msra.mxu0 %v6168
        %6781 = vmatprep.subr.bf16.mxu0 0
        %6782 = vmatpush1.bf16.msra.mxu0 %v6169
        %6783 = vmatprep.subr.bf16.mxu0 0
        %6784 = vmatpush1.bf16.msra.mxu0 %v6170
        %6785 = vmatprep.subr.bf16.mxu0 0
        %6786 = vmatpush1.bf16.msra.mxu0 %v6171
        %6787 = vmatprep.subr.bf16.mxu0 0
        %6788 = vmatpush1.bf16.msra.mxu0 %v6172
        %6789 = vmatprep.subr.bf16.mxu0 0
        %6790 = vmatpush1.bf16.msra.mxu0 %v6173
        %6791 = vmatprep.subr.bf16.mxu0 0
        %6792 = vmatpush1.bf16.msra.mxu0 %v6174
        %6793 = vmatprep.subr.bf16.mxu0 0
        %6794 = vmatpush1.bf16.msra.mxu0 %v6175
        %6795 = vmatprep.subr.bf16.mxu0 0
        %6796 = vmatpush1.bf16.msra.mxu0 %v6176
        %6797 = vmatprep.subr.bf16.mxu0 0
        %6798 = vmatpush1.bf16.msra.mxu0 %v6177
        %6799 = vmatprep.subr.bf16.mxu0 0
        %6800 = vmatpush1.bf16.msra.mxu0 %v6178
        %6801 = vmatprep.subr.bf16.mxu0 0
        %6802 = vmatpush1.bf16.msra.mxu0 %v6179
        %6803 = vmatprep.subr.bf16.mxu0 0
        %6804 = vmatpush1.bf16.msra.mxu0 %v6180
        %6805 = vmatprep.mubr.bf16.mxu0 %v4541
        %6806 = vmatmul.mubr.bf16.gmra.mrb[0].mxu0 %v4540
        %v6807 = vpop.f32.mrb[0].mxu0
        %v6808 = vadd.f32 %v6768, %v6807
        %v6809 = vpop.f32.mrb[0].mxu0
        %v6810 = vpop.f32.mrb[0].mxu0
        %v6811 = vpop.f32.mrb[0].mxu0
        %6812 = vdwg.mxu0
        %6813 = vmatprep.subr.bf16.mxu0 0
        %6814 = vmatpush1.bf16.msra.mxu0 %v6181
        %6815 = vmatprep.subr.bf16.mxu0 0
        %6816 = vmatpush1.bf16.msra.mxu0 %v6182
        %6817 = vmatprep.subr.bf16.mxu0 0
        %6818 = vmatpush1.bf16.msra.mxu0 %v6183
        %6819 = vmatprep.subr.bf16.mxu0 0
        %6820 = vmatpush1.bf16.msra.mxu0 %v6184
        %6821 = vmatprep.subr.bf16.mxu0 0
        %6822 = vmatpush1.bf16.msra.mxu0 %v6185
        %6823 = vmatprep.subr.bf16.mxu0 0
        %6824 = vmatpush1.bf16.msra.mxu0 %v6186
        %6825 = vmatprep.subr.bf16.mxu0 0
        %6826 = vmatpush1.bf16.msra.mxu0 %v6187
        %6827 = vmatprep.subr.bf16.mxu0 0
        %6828 = vmatpush1.bf16.msra.mxu0 %v6188
        %6829 = vmatprep.subr.bf16.mxu0 0
        %6830 = vmatpush1.bf16.msra.mxu0 %v6189
        %6831 = vmatprep.subr.bf16.mxu0 0
        %6832 = vmatpush1.bf16.msra.mxu0 %v6190
        %6833 = vmatprep.subr.bf16.mxu0 0
        %6834 = vmatpush1.bf16.msra.mxu0 %v6191
        %6835 = vmatprep.subr.bf16.mxu0 0
        %6836 = vmatpush1.bf16.msra.mxu0 %v6192
        %6837 = vmatprep.subr.bf16.mxu0 0
        %6838 = vmatpush1.bf16.msra.mxu0 %v6193
        %6839 = vmatprep.subr.bf16.mxu0 0
        %6840 = vmatpush1.bf16.msra.mxu0 %v6194
        %6841 = vmatprep.subr.bf16.mxu0 0
        %6842 = vmatpush1.bf16.msra.mxu0 %v6195
        %6843 = vmatprep.subr.bf16.mxu0 0
        %6844 = vmatpush1.bf16.msra.mxu0 %v6196
        %6845 = vmatprep.mubr.bf16.mxu0 %v4543
        %6846 = vmatmul.mubr.bf16.gmra.mrb[0].mxu0 %v4542
        %v6847 = vpop.f32.mrb[0].mxu0
        %v6848 = vadd.f32 %v6808, %v6847
        %v6849 = vpop.f32.mrb[0].mxu0
        %v6850 = vpop.f32.mrb[0].mxu0
        %v6851 = vpop.f32.mrb[0].mxu0
        %6852 = vdwg.mxu0
        %6853 = vmatprep.subr.bf16.mxu0 0
        %6854 = vmatpush1.bf16.msra.mxu0 %v6197
        %6855 = vmatprep.subr.bf16.mxu0 0
        %6856 = vmatpush1.bf16.msra.mxu0 %v6198
        %6857 = vmatprep.subr.bf16.mxu0 0
        %6858 = vmatpush1.bf16.msra.mxu0 %v6199
        %6859 = vmatprep.subr.bf16.mxu0 0
        %6860 = vmatpush1.bf16.msra.mxu0 %v6200
        %6861 = vmatprep.subr.bf16.mxu0 0
        %6862 = vmatpush1.bf16.msra.mxu0 %v6201
        %6863 = vmatprep.subr.bf16.mxu0 0
        %6864 = vmatpush1.bf16.msra.mxu0 %v6202
        %6865 = vmatprep.subr.bf16.mxu0 0
        %6866 = vmatpush1.bf16.msra.mxu0 %v6203
        %6867 = vmatprep.subr.bf16.mxu0 0
        %6868 = vmatpush1.bf16.msra.mxu0 %v6204
        %6869 = vmatprep.subr.bf16.mxu0 0
        %6870 = vmatpush1.bf16.msra.mxu0 %v6205
        %6871 = vmatprep.subr.bf16.mxu0 0
        %6872 = vmatpush1.bf16.msra.mxu0 %v6206
        %6873 = vmatprep.subr.bf16.mxu0 0
        %6874 = vmatpush1.bf16.msra.mxu0 %v6207
        %6875 = vmatprep.subr.bf16.mxu0 0
        %6876 = vmatpush1.bf16.msra.mxu0 %v6208
        %6877 = vmatprep.subr.bf16.mxu0 0
        %6878 = vmatpush1.bf16.msra.mxu0 %v6209
        %6879 = vmatprep.subr.bf16.mxu0 0
        %6880 = vmatpush1.bf16.msra.mxu0 %v6210
        %6881 = vmatprep.subr.bf16.mxu0 0
        %6882 = vmatpush1.bf16.msra.mxu0 %v6211
        %6883 = vmatprep.subr.bf16.mxu0 0
        %6884 = vmatpush1.bf16.msra.mxu0 %v6212
        %6885 = vmatprep.mubr.bf16.mxu0 %v4545
        %6886 = vmatmul.mubr.bf16.gmra.mrb[0].mxu0 %v4544
        %v6887 = vpop.f32.mrb[0].mxu0
        %v6888 = vadd.f32 %v6848, %v6887
        %v6889 = vpop.f32.mrb[0].mxu0
        %v6890 = vpop.f32.mrb[0].mxu0
        %v6891 = vpop.f32.mrb[0].mxu0
        %6892 = vdwg.mxu0
        %6893 = vmatprep.subr.bf16.mxu0 0
        %6894 = vmatpush1.bf16.msra.mxu0 %v6213
        %6895 = vmatprep.subr.bf16.mxu0 0
        %6896 = vmatpush1.bf16.msra.mxu0 %v6214
        %6897 = vmatprep.subr.bf16.mxu0 0
        %6898 = vmatpush1.bf16.msra.mxu0 %v6215
        %6899 = vmatprep.subr.bf16.mxu0 0
        %6900 = vmatpush1.bf16.msra.mxu0 %v6216
        %6901 = vmatprep.subr.bf16.mxu0 0
        %6902 = vmatpush1.bf16.msra.mxu0 %v6217
        %6903 = vmatprep.subr.bf16.mxu0 0
        %6904 = vmatpush1.bf16.msra.mxu0 %v6218
        %6905 = vmatprep.subr.bf16.mxu0 0
        %6906 = vmatpush1.bf16.msra.mxu0 %v6219
        %6907 = vmatprep.subr.bf16.mxu0 0
        %6908 = vmatpush1.bf16.msra.mxu0 %v6220
        %6909 = vmatprep.subr.bf16.mxu0 0
        %6910 = vmatpush1.bf16.msra.mxu0 %v6221
        %6911 = vmatprep.subr.bf16.mxu0 0
        %6912 = vmatpush1.bf16.msra.mxu0 %v6222
        %6913 = vmatprep.subr.bf16.mxu0 0
        %6914 = vmatpush1.bf16.msra.mxu0 %v6223
        %6915 = vmatprep.subr.bf16.mxu0 0
        %6916 = vmatpush1.bf16.msra.mxu0 %v6224
        %6917 = vmatprep.subr.bf16.mxu0 0
        %6918 = vmatpush1.bf16.msra.mxu0 %v6225
        %6919 = vmatprep.subr.bf16.mxu0 0
        %6920 = vmatpush1.bf16.msra.mxu0 %v6226
        %6921 = vmatprep.subr.bf16.mxu0 0
        %6922 = vmatpush1.bf16.msra.mxu0 %v6227
        %6923 = vmatprep.subr.bf16.mxu0 0
        %6924 = vmatpush1.bf16.msra.mxu0 %v6228
        %6925 = vmatprep.mubr.bf16.mxu0 %v4547
        %6926 = vmatmul.mubr.bf16.gmra.mrb[0].mxu0 %v4546
        %v6927 = vpop.f32.mrb[0].mxu0
        %v6928 = vadd.f32 %v6888, %v6927
        %v6929 = vpop.f32.mrb[0].mxu0
        %v6930 = vpop.f32.mrb[0].mxu0
        %v6931 = vpop.f32.mrb[0].mxu0
        %6932 = vdwg.mxu0
        %6933 = vmatprep.subr.bf16.mxu0 0
        %6934 = vmatpush1.bf16.msra.mxu0 %v6229
        %6935 = vmatprep.subr.bf16.mxu0 0
        %6936 = vmatpush1.bf16.msra.mxu0 %v6230
        %6937 = vmatprep.subr.bf16.mxu0 0
        %6938 = vmatpush1.bf16.msra.mxu0 %v6231
        %6939 = vmatprep.subr.bf16.mxu0 0
        %6940 = vmatpush1.bf16.msra.mxu0 %v6232
        %6941 = vmatprep.subr.bf16.mxu0 0
        %6942 = vmatpush1.bf16.msra.mxu0 %v6233
        %6943 = vmatprep.subr.bf16.mxu0 0
        %6944 = vmatpush1.bf16.msra.mxu0 %v6234
        %6945 = vmatprep.subr.bf16.mxu0 0
        %6946 = vmatpush1.bf16.msra.mxu0 %v6235
        %6947 = vmatprep.subr.bf16.mxu0 0
        %6948 = vmatpush1.bf16.msra.mxu0 %v6236
        %6949 = vmatprep.subr.bf16.mxu0 0
        %6950 = vmatpush1.bf16.msra.mxu0 %v6237
        %6951 = vmatprep.subr.bf16.mxu0 0
        %6952 = vmatpush1.bf16.msra.mxu0 %v6238
        %6953 = vmatprep.subr.bf16.mxu0 0
        %6954 = vmatpush1.bf16.msra.mxu0 %v6239
        %6955 = vmatprep.subr.bf16.mxu0 0
        %6956 = vmatpush1.bf16.msra.mxu0 %v6240
        %6957 = vmatprep.subr.bf16.mxu0 0
        %6958 = vmatpush1.bf16.msra.mxu0 %v6241
        %6959 = vmatprep.subr.bf16.mxu0 0
        %6960 = vmatpush1.bf16.msra.mxu0 %v6242
        %6961 = vmatprep.subr.bf16.mxu0 0
        %6962 = vmatpush1.bf16.msra.mxu0 %v6243
        %6963 = vmatprep.subr.bf16.mxu0 0
        %6964 = vmatpush1.bf16.msra.mxu0 %v6244
        %6965 = vmatprep.mubr.bf16.mxu0 %v4549
        %6966 = vmatmul.mubr.bf16.gmra.mrb[0].mxu0 %v4548
        %v6967 = vpop.f32.mrb[0].mxu0
        %v6968 = vadd.f32 %v6928, %v6967
        %v6969 = vpop.f32.mrb[0].mxu0
        %v6970 = vpop.f32.mrb[0].mxu0
        %v6971 = vpop.f32.mrb[0].mxu0
        %6972 = vdwg.mxu0
        %6973 = vmatprep.subr.bf16.mxu0 0
        %6974 = vmatpush1.bf16.msra.mxu0 %v6245
        %6975 = vmatprep.subr.bf16.mxu0 0
        %6976 = vmatpush1.bf16.msra.mxu0 %v6246
        %6977 = vmatprep.subr.bf16.mxu0 0
        %6978 = vmatpush1.bf16.msra.mxu0 %v6247
        %6979 = vmatprep.subr.bf16.mxu0 0
        %6980 = vmatpush1.bf16.msra.mxu0 %v6248
        %6981 = vmatprep.subr.bf16.mxu0 0
        %6982 = vmatpush1.bf16.msra.mxu0 %v6249
        %6983 = vmatprep.subr.bf16.mxu0 0
        %6984 = vmatpush1.bf16.msra.mxu0 %v6250
        %6985 = vmatprep.subr.bf16.mxu0 0
        %6986 = vmatpush1.bf16.msra.mxu0 %v6251
        %6987 = vmatprep.subr.bf16.mxu0 0
        %6988 = vmatpush1.bf16.msra.mxu0 %v6252
        %6989 = vmatprep.subr.bf16.mxu0 0
        %6990 = vmatpush1.bf16.msra.mxu0 %v6253
        %6991 = vmatprep.subr.bf16.mxu0 0
        %6992 = vmatpush1.bf16.msra.mxu0 %v6254
        %6993 = vmatprep.subr.bf16.mxu0 0
        %6994 = vmatpush1.bf16.msra.mxu0 %v6255
        %6995 = vmatprep.subr.bf16.mxu0 0
        %6996 = vmatpush1.bf16.msra.mxu0 %v6256
        %6997 = vmatprep.subr.bf16.mxu0 0
        %6998 = vmatpush1.bf16.msra.mxu0 %v6257
        %6999 = vmatprep.subr.bf16.mxu0 0
        %7000 = vmatpush1.bf16.msra.mxu0 %v6258
        %7001 = vmatprep.subr.bf16.mxu0 0
        %7002 = vmatpush1.bf16.msra.mxu0 %v6259
        %7003 = vmatprep.subr.bf16.mxu0 0
        %7004 = vmatpush1.bf16.msra.mxu0 %v6260
        %7005 = vmatprep.mubr.bf16.mxu0 %v4551
        %7006 = vmatmul.mubr.bf16.gmra.mrb[0].mxu0 %v4550
        %v7007 = vpop.f32.mrb[0].mxu0
        %v7008 = vadd.f32 %v6968, %v7007
        %v7009 = vpop.f32.mrb[0].mxu0
        %v7010 = vpop.f32.mrb[0].mxu0
        %v7011 = vpop.f32.mrb[0].mxu0
        %7012 = vdwg.mxu0
        %7013 = vmatprep.subr.bf16.mxu0 0
        %7014 = vmatpush1.bf16.msra.mxu0 %v6261
        %7015 = vmatprep.subr.bf16.mxu0 0
        %7016 = vmatpush1.bf16.msra.mxu0 %v6262
        %7017 = vmatprep.subr.bf16.mxu0 0
        %7018 = vmatpush1.bf16.msra.mxu0 %v6263
        %7019 = vmatprep.subr.bf16.mxu0 0
        %7020 = vmatpush1.bf16.msra.mxu0 %v6264
        %7021 = vmatprep.subr.bf16.mxu0 0
        %7022 = vmatpush1.bf16.msra.mxu0 %v6265
        %7023 = vmatprep.subr.bf16.mxu0 0
        %7024 = vmatpush1.bf16.msra.mxu0 %v6266
        %7025 = vmatprep.subr.bf16.mxu0 0
        %7026 = vmatpush1.bf16.msra.mxu0 %v6267
        %7027 = vmatprep.subr.bf16.mxu0 0
        %7028 = vmatpush1.bf16.msra.mxu0 %v6268
        %7029 = vmatprep.subr.bf16.mxu0 0
        %7030 = vmatpush1.bf16.msra.mxu0 %v6269
        %7031 = vmatprep.subr.bf16.mxu0 0
        %7032 = vmatpush1.bf16.msra.mxu0 %v6270
        %7033 = vmatprep.subr.bf16.mxu0 0
        %7034 = vmatpush1.bf16.msra.mxu0 %v6271
        %7035 = vmatprep.subr.bf16.mxu0 0
        %7036 = vmatpush1.bf16.msra.mxu0 %v6272
        %7037 = vmatprep.subr.bf16.mxu0 0
        %7038 = vmatpush1.bf16.msra.mxu0 %v6273
        %7039 = vmatprep.subr.bf16.mxu0 0
        %7040 = vmatpush1.bf16.msra.mxu0 %v6274
        %7041 = vmatprep.subr.bf16.mxu0 0
        %7042 = vmatpush1.bf16.msra.mxu0 %v6275
        %7043 = vmatprep.subr.bf16.mxu0 0
        %7044 = vmatpush1.bf16.msra.mxu0 %v6276
        %7045 = vmatprep.mubr.bf16.mxu0 %v4553
        %7046 = vmatmul.mubr.bf16.gmra.mrb[0].mxu0 %v4552
        %v7047 = vpop.f32.mrb[0].mxu0
        %v7048 = vadd.f32 %v7008, %v7047
        %v7049 = vpop.f32.mrb[0].mxu0
        %v7050 = vpop.f32.mrb[0].mxu0
        %v7051 = vpop.f32.mrb[0].mxu0
        %7052 = vdwg.mxu0
        %7053 = vmatprep.subr.bf16.mxu0 0
        %7054 = vmatpush1.bf16.msra.mxu0 %v6277
        %7055 = vmatprep.subr.bf16.mxu0 0
        %7056 = vmatpush1.bf16.msra.mxu0 %v6278
        %7057 = vmatprep.subr.bf16.mxu0 0
        %7058 = vmatpush1.bf16.msra.mxu0 %v6279
        %7059 = vmatprep.subr.bf16.mxu0 0
        %7060 = vmatpush1.bf16.msra.mxu0 %v6280
        %7061 = vmatprep.subr.bf16.mxu0 0
        %7062 = vmatpush1.bf16.msra.mxu0 %v6281
        %7063 = vmatprep.subr.bf16.mxu0 0
        %7064 = vmatpush1.bf16.msra.mxu0 %v6282
        %7065 = vmatprep.subr.bf16.mxu0 0
        %7066 = vmatpush1.bf16.msra.mxu0 %v6283
        %7067 = vmatprep.subr.bf16.mxu0 0
        %7068 = vmatpush1.bf16.msra.mxu0 %v6284
        %7069 = vmatprep.subr.bf16.mxu0 0
        %7070 = vmatpush1.bf16.msra.mxu0 %v6285
        %7071 = vmatprep.subr.bf16.mxu0 0
        %7072 = vmatpush1.bf16.msra.mxu0 %v6286
        %7073 = vmatprep.subr.bf16.mxu0 0
        %7074 = vmatpush1.bf16.msra.mxu0 %v6287
        %7075 = vmatprep.subr.bf16.mxu0 0
        %7076 = vmatpush1.bf16.msra.mxu0 %v6288
        %7077 = vmatprep.subr.bf16.mxu0 0
        %7078 = vmatpush1.bf16.msra.mxu0 %v6289
        %7079 = vmatprep.subr.bf16.mxu0 0
        %7080 = vmatpush1.bf16.msra.mxu0 %v6290
        %7081 = vmatprep.subr.bf16.mxu0 0
        %7082 = vmatpush1.bf16.msra.mxu0 %v6291
        %7083 = vmatprep.subr.bf16.mxu0 0
        %7084 = vmatpush1.bf16.msra.mxu0 %v6292
        %7085 = vmatprep.mubr.bf16.mxu0 %v4555
        %7086 = vmatmul.mubr.bf16.gmra.mrb[0].mxu0 %v4554
        %v7087 = vpop.f32.mrb[0].mxu0
        %v7088 = vadd.f32 %v7048, %v7087
        %v7089 = vpop.f32.mrb[0].mxu0
        %v7090 = vpop.f32.mrb[0].mxu0
        %v7091 = vpop.f32.mrb[0].mxu0
        %7092 = vdwg.mxu0
        %7093 = vmatprep.subr.bf16.mxu0 0
        %7094 = vmatpush1.bf16.msra.mxu0 %v6293
        %7095 = vmatprep.subr.bf16.mxu0 0
        %7096 = vmatpush1.bf16.msra.mxu0 %v6294
        %7097 = vmatprep.subr.bf16.mxu0 0
        %7098 = vmatpush1.bf16.msra.mxu0 %v6295
        %7099 = vmatprep.subr.bf16.mxu0 0
        %7100 = vmatpush1.bf16.msra.mxu0 %v6296
        %7101 = vmatprep.subr.bf16.mxu0 0
        %7102 = vmatpush1.bf16.msra.mxu0 %v6297
        %7103 = vmatprep.subr.bf16.mxu0 0
        %7104 = vmatpush1.bf16.msra.mxu0 %v6298
        %7105 = vmatprep.subr.bf16.mxu0 0
        %7106 = vmatpush1.bf16.msra.mxu0 %v6299
        %7107 = vmatprep.subr.bf16.mxu0 0
        %7108 = vmatpush1.bf16.msra.mxu0 %v6300
        %7109 = vmatprep.subr.bf16.mxu0 0
        %7110 = vmatpush1.bf16.msra.mxu0 %v6301
        %7111 = vmatprep.subr.bf16.mxu0 0
        %7112 = vmatpush1.bf16.msra.mxu0 %v6302
        %7113 = vmatprep.subr.bf16.mxu0 0
        %7114 = vmatpush1.bf16.msra.mxu0 %v6303
        %7115 = vmatprep.subr.bf16.mxu0 0
        %7116 = vmatpush1.bf16.msra.mxu0 %v6304
        %7117 = vmatprep.subr.bf16.mxu0 0
        %7118 = vmatpush1.bf16.msra.mxu0 %v6305
        %7119 = vmatprep.subr.bf16.mxu0 0
        %7120 = vmatpush1.bf16.msra.mxu0 %v6306
        %7121 = vmatprep.subr.bf16.mxu0 0
        %7122 = vmatpush1.bf16.msra.mxu0 %v6307
        %7123 = vmatprep.subr.bf16.mxu0 0
        %7124 = vmatpush1.bf16.msra.mxu0 %v6308
        %7125 = vmatprep.mubr.bf16.mxu0 %v4557
        %7126 = vmatmul.mubr.bf16.gmra.mrb[0].mxu0 %v4556
        %v7127 = vpop.f32.mrb[0].mxu0
        %v7128 = vadd.f32 %v7088, %v7127
        %v7129 = vpop.f32.mrb[0].mxu0
        %v7130 = vpop.f32.mrb[0].mxu0
        %v7131 = vpop.f32.mrb[0].mxu0
        %7132 = vdwg.mxu0
        %7133 = vmatprep.subr.bf16.mxu0 0
        %7134 = vmatpush1.bf16.msra.mxu0 %v6309
        %7135 = vmatprep.subr.bf16.mxu0 0
        %7136 = vmatpush1.bf16.msra.mxu0 %v6310
        %7137 = vmatprep.subr.bf16.mxu0 0
        %7138 = vmatpush1.bf16.msra.mxu0 %v6311
        %7139 = vmatprep.subr.bf16.mxu0 0
        %7140 = vmatpush1.bf16.msra.mxu0 %v6312
        %7141 = vmatprep.subr.bf16.mxu0 0
        %7142 = vmatpush1.bf16.msra.mxu0 %v6313
        %7143 = vmatprep.subr.bf16.mxu0 0
        %7144 = vmatpush1.bf16.msra.mxu0 %v6314
        %7145 = vmatprep.subr.bf16.mxu0 0
        %7146 = vmatpush1.bf16.msra.mxu0 %v6315
        %7147 = vmatprep.subr.bf16.mxu0 0
        %7148 = vmatpush1.bf16.msra.mxu0 %v6316
        %7149 = vmatprep.subr.bf16.mxu0 0
        %7150 = vmatpush1.bf16.msra.mxu0 %v6317
        %7151 = vmatprep.subr.bf16.mxu0 0
        %7152 = vmatpush1.bf16.msra.mxu0 %v6318
        %7153 = vmatprep.subr.bf16.mxu0 0
        %7154 = vmatpush1.bf16.msra.mxu0 %v6319
        %7155 = vmatprep.subr.bf16.mxu0 0
        %7156 = vmatpush1.bf16.msra.mxu0 %v6320
        %7157 = vmatprep.subr.bf16.mxu0 0
        %7158 = vmatpush1.bf16.msra.mxu0 %v6321
        %7159 = vmatprep.subr.bf16.mxu0 0
        %7160 = vmatpush1.bf16.msra.mxu0 %v6322
        %7161 = vmatprep.subr.bf16.mxu0 0
        %7162 = vmatpush1.bf16.msra.mxu0 %v6323
        %7163 = vmatprep.subr.bf16.mxu0 0
        %7164 = vmatpush1.bf16.msra.mxu0 %v6324
        %7165 = vmatprep.mubr.bf16.mxu0 %v4559
        %7166 = vmatmul.mubr.bf16.gmra.mrb[0].mxu0 %v4558
        %v7167 = vpop.f32.mrb[0].mxu0
        %v7168 = vadd.f32 %v7128, %v7167
        %v7169 = vpop.f32.mrb[0].mxu0
        %v7170 = vpop.f32.mrb[0].mxu0
        %v7171 = vpop.f32.mrb[0].mxu0
        %7172 = vdwg.mxu0
        %7173 = vmatprep.subr.bf16.mxu0 0
        %7174 = vmatpush1.bf16.msra.mxu0 %v6325
        %7175 = vmatprep.subr.bf16.mxu0 0
        %7176 = vmatpush1.bf16.msra.mxu0 %v6326
        %7177 = vmatprep.subr.bf16.mxu0 0
        %7178 = vmatpush1.bf16.msra.mxu0 %v6327
        %7179 = vmatprep.subr.bf16.mxu0 0
        %7180 = vmatpush1.bf16.msra.mxu0 %v6328
        %7181 = vmatprep.subr.bf16.mxu0 0
        %7182 = vmatpush1.bf16.msra.mxu0 %v6329
        %7183 = vmatprep.subr.bf16.mxu0 0
        %7184 = vmatpush1.bf16.msra.mxu0 %v6330
        %7185 = vmatprep.subr.bf16.mxu0 0
        %7186 = vmatpush1.bf16.msra.mxu0 %v6331
        %7187 = vmatprep.subr.bf16.mxu0 0
        %7188 = vmatpush1.bf16.msra.mxu0 %v6332
        %7189 = vmatprep.subr.bf16.mxu0 0
        %7190 = vmatpush1.bf16.msra.mxu0 %v6333
        %7191 = vmatprep.subr.bf16.mxu0 0
        %7192 = vmatpush1.bf16.msra.mxu0 %v6334
        %7193 = vmatprep.subr.bf16.mxu0 0
        %7194 = vmatpush1.bf16.msra.mxu0 %v6335
        %7195 = vmatprep.subr.bf16.mxu0 0
        %7196 = vmatpush1.bf16.msra.mxu0 %v6336
        %7197 = vmatprep.subr.bf16.mxu0 0
        %7198 = vmatpush1.bf16.msra.mxu0 %v6337
        %7199 = vmatprep.subr.bf16.mxu0 0
        %7200 = vmatpush1.bf16.msra.mxu0 %v6338
        %7201 = vmatprep.subr.bf16.mxu0 0
        %7202 = vmatpush1.bf16.msra.mxu0 %v6339
        %7203 = vmatprep.subr.bf16.mxu0 0
        %7204 = vmatpush1.bf16.msra.mxu0 %v6340
        %7205 = vmatprep.mubr.bf16.mxu0 %v4561
        %7206 = vmatmul.mubr.bf16.gmra.mrb[0].mxu0 %v4560
        %v7207 = vpop.f32.mrb[0].mxu0
        %v7208 = vadd.f32 %v7168, %v7207
        %v7209 = vpop.f32.mrb[0].mxu0
        %v7210 = vpop.f32.mrb[0].mxu0
        %v7211 = vpop.f32.mrb[0].mxu0
        %7212 = vdwg.mxu0
        %7213 = vmatprep.subr.bf16.mxu0 0
        %7214 = vmatpush1.bf16.msra.mxu0 %v6341
        %7215 = vmatprep.subr.bf16.mxu0 0
        %7216 = vmatpush1.bf16.msra.mxu0 %v6342
        %7217 = vmatprep.subr.bf16.mxu0 0
        %7218 = vmatpush1.bf16.msra.mxu0 %v6343
        %7219 = vmatprep.subr.bf16.mxu0 0
        %7220 = vmatpush1.bf16.msra.mxu0 %v6344
        %7221 = vmatprep.subr.bf16.mxu0 0
        %7222 = vmatpush1.bf16.msra.mxu0 %v6345
        %7223 = vmatprep.subr.bf16.mxu0 0
        %7224 = vmatpush1.bf16.msra.mxu0 %v6346
        %7225 = vmatprep.subr.bf16.mxu0 0
        %7226 = vmatpush1.bf16.msra.mxu0 %v6347
        %7227 = vmatprep.subr.bf16.mxu0 0
        %7228 = vmatpush1.bf16.msra.mxu0 %v6348
        %7229 = vmatprep.subr.bf16.mxu0 0
        %7230 = vmatpush1.bf16.msra.mxu0 %v6349
        %7231 = vmatprep.subr.bf16.mxu0 0
        %7232 = vmatpush1.bf16.msra.mxu0 %v6350
        %7233 = vmatprep.subr.bf16.mxu0 0
        %7234 = vmatpush1.bf16.msra.mxu0 %v6351
        %7235 = vmatprep.subr.bf16.mxu0 0
        %7236 = vmatpush1.bf16.msra.mxu0 %v6352
        %7237 = vmatprep.subr.bf16.mxu0 0
        %7238 = vmatpush1.bf16.msra.mxu0 %v6353
        %7239 = vmatprep.subr.bf16.mxu0 0
        %7240 = vmatpush1.bf16.msra.mxu0 %v6354
        %7241 = vmatprep.subr.bf16.mxu0 0
        %7242 = vmatpush1.bf16.msra.mxu0 %v6355
        %7243 = vmatprep.subr.bf16.mxu0 0
        %7244 = vmatpush1.bf16.msra.mxu0 %v6356
        %7245 = vmatprep.mubr.bf16.mxu0 %v4563
        %7246 = vmatmul.mubr.bf16.gmra.mrb[0].mxu0 %v4562
        %v7247 = vpop.f32.mrb[0].mxu0
        %v7248 = vadd.f32 %v7208, %v7247
        %v7249 = vpop.f32.mrb[0].mxu0
        %v7250 = vpop.f32.mrb[0].mxu0
        %v7251 = vpop.f32.mrb[0].mxu0
        %7252 = vdwg.mxu0
        %7253 = vst [vmem:[%s520] sm:$0x1] %v7248
        %s7254 = sand.u32 %s317, 1
        %s7255 = scalar_lea.sflag [#allocation5], %s7254
        %s7256 = sand.u32 %s317, 1
        %s7257 = scalar_lea.vmem [#allocation14], %s7256
        // Predicated region
        $region97: #{vgg_forward.1} parent=71 // pred_check
          %p7258 = pneg %p327
        $region98: #{vgg_forward.1} parent=71 // pred_check_branch
          %7260 = sbr.rel (%p7258) target = $region100
        $region99: #{vgg_forward.1} parent=71 // pred_region
          %s7262 = ssub.s32 16, 16
          %7263 = vsyncadd %s7255, %s7262
          %s7264 = smul.addr %s31, 16
          %s7265 = scalar_lea.hbm %s13, %s7264
          %s7267 = sshll.u32 %s7257, 4
          %s7268 = int_to_ptr.vmem [resolvable:$true] %s7267
          %7270 = dma.vmem_to_hbm [thread:$0]  %s7268, 16, %s7265, %s7255
        $region100: #{vgg_forward.1} parent=71 // pred_fallthru
          _
      $region72: #{vgg_forward.1} parent=5 // pred_fallthru
        _
      %p7271 = scmp.le.s32.totalorder 2, %s26
      // Predicated region
      $region101: #{vgg_forward.1} parent=5 // pred_check
        %p7272 = pneg %p7271
      $region102: #{vgg_forward.1} parent=5 // pred_check_branch
        %7274 = sbr.rel (%p7272) target = $region104
      $region103: #{vgg_forward.1} parent=5 // pred_region
        %s7275 = ssub.s32 %s26, 2
        // Predicated region
        $region105: #{vgg_forward.1} parent=103 // pred_check
          %p7276 = pneg %p333
        $region106: #{vgg_forward.1} parent=103 // pred_check_branch
          %7278 = sbr.rel (%p7276) target = $region108
        $region107: #{vgg_forward.1} parent=103 // pred_region
          %s7279 = sand.u32 %s318, 1
          %s7280 = scalar_lea.sflag [#allocation5], %s7279
          %s7281 = sand.u32 %s318, 1
          %s7282 = scalar_lea.vmem [#allocation14], %s7281
          %7283 = dma.done %s7280, 16
        $region108: #{vgg_forward.1} parent=103 // pred_fallthru
          _
      $region104: #{vgg_forward.1} parent=5 // pred_fallthru
        _
    $region6: #{vgg_forward.1} parent=1 // loop_footer
      %s30 = sadd.s32 1, %s26
    $region7: #{vgg_forward.1} parent=1 // loop_footer_branch
      %25 = sbr.rel target = $region3
    $region8: #{vgg_forward.1} parent=1 // loop_exit
      _
    %7284 = vsyncpa [#allocation4], 1
    %s7285 = scalar_lea.sflag [#allocation4], 1
    %7286 = vsyncpa %s7285, 1
    %7287 = vsyncpa [#allocation7], 1
    %7288 = vsyncpa [#allocation10], 1
    %7289 = vsyncpa [#allocation13], 1
    %7290 = vsyncpa [#allocation5], 1
    %s7291 = scalar_lea.sflag [#allocation5], 1
    %7292 = vsyncpa %s7291, 1

</llo_original>
